<compile_context>
chip_gen: v7x
topology: tpu7x:2x2x1
jax: 0.10.0
libtpu: 0.0.40
codegen_flags: <defaults>
</compile_context>

<pallas_src>
import functools

import jax
import jax.numpy as jnp
from jax.experimental import pallas as pl
from jax.experimental.pallas import tpu as pltpu


N_LAYERS = 2
N_HEADS = 4
PF_DIM = 512

_PER_LAYER_PARAMS = 22   # 6 (self-attn) + 2 (ln1) + 6 (enc-attn) + 2 (ln2) + 4 (ffn) + 2 (ln3)


# ----------------------------------------------------------------------------
# in-kernel helpers (trace-time functions over loaded values)
# ----------------------------------------------------------------------------

def _add_layernorm(x, r, gamma, beta):
    # LayerNorm(x + r), PyTorch defaults: eps=1e-5, biased variance.
    y = x + r
    mu = jnp.mean(y, axis=-1, keepdims=True)
    var = jnp.mean(jnp.square(y - mu), axis=-1, keepdims=True)
    return (y - mu) * jax.lax.rsqrt(var + 1e-5) * gamma + beta


def _attention(q_in, kv_in, key_mask, wq, bq, wkv, bkv, wo, bo, n_heads):
    """Multi-head attention on one batch element.

    q_in: (Lq, E), kv_in: (Lk, E), key_mask: (1, Lk) or None.
    wq has the 1/sqrt(dh) scale pre-folded; wkv is the fused [Wk | Wv] (E, 2E).
    """
    f32 = jnp.float32
    lq, e = q_in.shape
    dh = e // n_heads

    q = jnp.dot(q_in, wq, preferred_element_type=f32) + bq            # (Lq, E)  (pre-scaled)
    kv = jnp.dot(kv_in, wkv, preferred_element_type=f32) + bkv        # (Lk, 2E) fused K|V
    k = kv[:, :e]
    v = kv[:, e:]

    # Heads onto the leading axis -> one batched contraction for all heads.
    qh = jnp.stack([q[:, h * dh:(h + 1) * dh] for h in range(n_heads)], axis=0)  # (H, Lq, dh)
    kh = jnp.stack([k[:, h * dh:(h + 1) * dh] for h in range(n_heads)], axis=0)  # (H, Lk, dh)
    vh = jnp.stack([v[:, h * dh:(h + 1) * dh] for h in range(n_heads)], axis=0)  # (H, Lk, dh)

    energy = jnp.einsum('hqd,hkd->hqk', qh, kh, preferred_element_type=f32)      # (H, Lq, Lk)
    if key_mask is not None:
        energy = jnp.where(key_mask[None, :, :] == 0.0, jnp.float32(-1e10), energy)

    m = jnp.max(energy, axis=-1, keepdims=True)
    p = jnp.exp(energy - m)
    denom = jnp.sum(p, axis=-1, keepdims=True)
    attn = p * pl.reciprocal(denom, approx=True)

    ctx = jnp.einsum('hqk,hkd->hqd', attn, vh, preferred_element_type=f32)       # (H, Lq, dh)
    concat = jnp.concatenate([ctx[h] for h in range(n_heads)], axis=-1)          # (Lq, E)
    return jnp.dot(concat, wo, preferred_element_type=f32) + bo


# ----------------------------------------------------------------------------
# fused DeepCE kernel: one batch element per grid step
# ----------------------------------------------------------------------------

def _deepce_kernel(*refs, n_heads, n_layers):
    atom_ref, gene_ref, mask_ref = refs[:3]
    idx = 3
    w_fp, b_fp = refs[idx], refs[idx + 1]; idx += 2
    w_ge, b_ge = refs[idx], refs[idx + 1]; idx += 2
    layer_refs = []
    for _ in range(n_layers):
        layer_refs.append(refs[idx:idx + _PER_LAYER_PARAMS])
        idx += _PER_LAYER_PARAMS
    wh1, bh1, wh2t, bh2 = refs[idx:idx + 4]; idx += 4
    o_ref = refs[idx]

    f32 = jnp.float32

    # --- drug_fp (NeuralFingerprint) ---
    # TODO(synk): the real NeuralFingerprint performs degree-indexed graph convolutions
    # over a MolGraph batch (sparse neighbor lists); that structure is not available
    # here, so the per-atom embedding is a single linear projection.
    atoms = atom_ref[0]                                                          # (A, F_atom)
    drug_atom_embed = (jnp.dot(atoms, w_fp[...], preferred_element_type=f32)
                       + b_fp[...])                                              # (A, E)
    drug_embed = jnp.sum(drug_atom_embed, axis=0, keepdims=True)                 # (1, E)

    # gene embedding (shared across batch; recomputed per grid step -- negligible
    # at these sizes; hoist to its own call when num_gene/gene_input_dim are large)
    trg = jnp.dot(gene_ref[...], w_ge[...], preferred_element_type=f32) + b_ge[...]   # (G, E)

    src = drug_atom_embed
    key_mask = mask_ref[0]                                                       # (1, A)

    # --- drug_gene_attn: 2-layer transformer decoder ---
    for l in range(n_layers):
        (wq_s, bq_s, wkv_s, bkv_s, wo_s, bo_s, g1, be1,
         wq_c, bq_c, wkv_c, bkv_c, wo_c, bo_c, g2, be2,
         wf1, bf1, wf2, bf2, g3, be3) = layer_refs[l]

        # self attention (trg_mask is None in DeepCE -> no masking)
        sa = _attention(trg, trg, None,
                        wq_s[...], bq_s[...], wkv_s[...], bkv_s[...],
                        wo_s[...], bo_s[...], n_heads)
        trg = _add_layernorm(trg, sa, g1[...], be1[...])

        # encoder (drug<->gene) attention with atom mask
        ca = _attention(trg, src, key_mask,
                        wq_c[...], bq_c[...], wkv_c[...], bkv_c[...],
                        wo_c[...], bo_c[...], n_heads)
        trg = _add_layernorm(trg, ca, g2[...], be2[...])

        # positionwise feedforward (dropout = identity)
        h = jnp.maximum(
            jnp.dot(trg, wf1[...], preferred_element_type=f32) + bf1[...], 0.0)
        ff = jnp.dot(h, wf2[...], preferred_element_type=f32) + bf2[...]
        trg = _add_layernorm(trg, ff, g3[...], be3[...])

    # --- head: concat + relu -> linear_1 -> relu -> linear_2 ---
    dg = jnp.concatenate([trg, jnp.broadcast_to(drug_embed, trg.shape)], axis=-1)  # (G, 2E)
    dg = jnp.maximum(dg, 0.0)
    h1 = jnp.maximum(
        jnp.dot(dg, wh1[...], preferred_element_type=f32) + bh1[...], 0.0)         # (G, HID)
    # linear_2 emitted as a lane-dense (1, G) row (single store, no width-1 output)
    row = jax.lax.dot_general(wh2t[...], h1, (((1,), (1,)), ((), ())),
                              preferred_element_type=f32) + bh2[...]               # (1, G)
    o_ref[0] = row


# ----------------------------------------------------------------------------
# parameter prep / flattening (done once at trace time in plain JAX)
# ----------------------------------------------------------------------------

def _prep_attn(p, n_heads):
    wq, bq, wk, bk, wv, bv, wo, bo = p
    e = wq.shape[0]
    dh = e // n_heads
    scale = 1.0 / float(dh) ** 0.5
    wq_s = wq * scale                                   # fold 1/sqrt(dh) into Q projection
    bq_s = bq * scale
    wkv = jnp.concatenate([wk, wv], axis=1)             # (E, 2E)
    bkv = jnp.concatenate([bk, bv], axis=1)             # (1, 2E)
    return [wq_s, bq_s, wkv, bkv, wo, bo]


def _flatten_params(params):
    flat = [params["drug_fp"][0], params["drug_fp"][1],
            params["gene_embed"][0], params["gene_embed"][1]]
    for lp in params["attn_layers"]:
        flat += _prep_attn(lp["self_attn"], N_HEADS)
        flat += [lp["ln1"][0], lp["ln1"][1]]
        flat += _prep_attn(lp["enc_attn"], N_HEADS)
        flat += [lp["ln2"][0], lp["ln2"][1]]
        flat += list(lp["ff"])
        flat += [lp["ln3"][0], lp["ln3"][1]]
    w1, b1, w2, b2 = params["head"]
    flat += [w1, b1, w2.T, b2]                          # w2 (HID,1) -> pass (1,HID) for lane reduction
    return flat


# ----------------------------------------------------------------------------
# DeepCE forward (one fused pallas_call, grid over batch)
# ----------------------------------------------------------------------------

def deepce_forward(params, drug_atom_feat, input_gene, mask):
    """drug_atom_feat: [B, A, F_atom], input_gene: [G, gene_input_dim], mask: [B, A]."""
    b, a, f_atom = drug_atom_feat.shape
    g, gene_in = input_gene.shape

    flat = _flatten_params(params)
    mask3 = mask.reshape(b, 1, a).astype(jnp.float32)

    in_specs = [
        pl.BlockSpec((1, a, f_atom), lambda i: (i, 0, 0)),   # per-batch atom features
        pl.BlockSpec((g, gene_in), lambda i: (0, 0)),        # shared gene inputs
        pl.BlockSpec((1, 1, a), lambda i: (i, 0, 0)),        # per-batch atom mask
    ]
    for p in flat:                                           # weights: full VMEM-resident blocks
        in_specs.append(pl.BlockSpec(p.shape, lambda i, n=p.ndim: (0,) * n))

    out = pl.pallas_call(
        functools.partial(_deepce_kernel, n_heads=N_HEADS, n_layers=N_LAYERS),
        out_shape=jax.ShapeDtypeStruct((b, 1, g), jnp.float32),
        grid=(b,),
        in_specs=in_specs,
        out_specs=pl.BlockSpec((1, 1, g), lambda i: (i, 0, 0)),
        compiler_params=pltpu.CompilerParams(dimension_semantics=("parallel",)),
    )(drug_atom_feat, input_gene, mask3, *flat)
    return out.reshape(b, g)


# ----------------------------------------------------------------------------
# deterministic parameter construction
# ----------------------------------------------------------------------------

def _dense(key, d_in, d_out, w_scale=0.1, b_scale=0.02):
    kw, kb = jax.random.split(key)
    w = jax.random.normal(kw, (d_in, d_out), jnp.float32) * w_scale
    b = jax.random.normal(kb, (1, d_out), jnp.float32) * b_scale
    return w, b


def _mha_params(key, e):
    ks = jax.random.split(key, 4)
    wq, bq = _dense(ks[0], e, e)
    wk, bk = _dense(ks[1], e, e)
    wv, bv = _dense(ks[2], e, e)
    wo, bo = _dense(ks[3], e, e)
    return (wq, bq, wk, bk, wv, bv, wo, bo)


def _ln_params(e):
    return (jnp.ones((1, e), jnp.float32), jnp.zeros((1, e), jnp.float32))


def init_params(key, atom_dim, gene_input_dim, emb_dim, hid_dim):
    keys = jax.random.split(key, 16)
    it = iter(keys)
    params = {
        "emb_dim": emb_dim,
        "drug_fp": _dense(next(it), atom_dim, emb_dim),
        "gene_embed": _dense(next(it), gene_input_dim, emb_dim),
        "attn_layers": [],
    }
    for _ in range(N_LAYERS):
        layer = {
            "self_attn": _mha_params(next(it), emb_dim),
            "ln1": _ln_params(emb_dim),
            "enc_attn": _mha_params(next(it), emb_dim),
            "ln2": _ln_params(emb_dim),
            "ff": _dense(next(it), emb_dim, PF_DIM) + _dense(next(it), PF_DIM, emb_dim),
            "ln3": _ln_params(emb_dim),
        }
        params["attn_layers"].append(layer)
    w1, b1 = _dense(next(it), 2 * emb_dim, hid_dim)      # linear_1
    w2, b2 = _dense(next(it), hid_dim, 1)                # linear_2
    params["head"] = (w1, b1, w2, b2)
    return params


# ----------------------------------------------------------------------------
# main
# ----------------------------------------------------------------------------

if __name__ == "__main__":
    B = 2            # batch
    A = 8            # atoms per drug
    F_ATOM = 16      # drug_input_dim['atom']
    GENE_IN = 64     # gene_input_dim
    NUM_GENE = 16    # num_gene
    EMB = 32         # drug_emb_dim == gene_emb_dim
    HID = 32         # hid_dim

    key = jax.random.PRNGKey(0)
    k_param, k_atom, k_gene = jax.random.split(key, 3)

    params = init_params(k_param, F_ATOM, GENE_IN, EMB, HID)

    drug_atom_feat = jax.random.normal(k_atom, (B, A, F_ATOM), jnp.float32)
    input_gene = jax.random.normal(k_gene, (NUM_GENE, GENE_IN), jnp.float32)
    mask = jnp.ones((B, A), jnp.float32).at[1, 6:].set(0.0)   # pad last 2 atoms of drug 1

    out = deepce_forward(params, drug_atom_feat, input_gene, mask)
    out = jax.block_until_ready(out)
    assert out.shape == (B, NUM_GENE)
    print("KERNEL_OK")
</pallas_src>

<mosaic_0001>
module attributes {stable_mosaic.version = 11 : i64} {
  func.func @_deepce_kernel(%arg0: i32, %arg1: memref<1x8x16xf32, #tpu.memory_space<vmem>>, %arg2: memref<16x64xf32, #tpu.memory_space<vmem>>, %arg3: memref<1x1x8xf32, #tpu.memory_space<vmem>>, %arg4: memref<16x32xf32, #tpu.memory_space<vmem>>, %arg5: memref<1x32xf32, #tpu.memory_space<vmem>>, %arg6: memref<64x32xf32, #tpu.memory_space<vmem>>, %arg7: memref<1x32xf32, #tpu.memory_space<vmem>>, %arg8: memref<32x32xf32, #tpu.memory_space<vmem>>, %arg9: memref<1x32xf32, #tpu.memory_space<vmem>>, %arg10: memref<32x64xf32, #tpu.memory_space<vmem>>, %arg11: memref<1x64xf32, #tpu.memory_space<vmem>>, %arg12: memref<32x32xf32, #tpu.memory_space<vmem>>, %arg13: memref<1x32xf32, #tpu.memory_space<vmem>>, %arg14: memref<1x32xf32, #tpu.memory_space<vmem>>, %arg15: memref<1x32xf32, #tpu.memory_space<vmem>>, %arg16: memref<32x32xf32, #tpu.memory_space<vmem>>, %arg17: memref<1x32xf32, #tpu.memory_space<vmem>>, %arg18: memref<32x64xf32, #tpu.memory_space<vmem>>, %arg19: memref<1x64xf32, #tpu.memory_space<vmem>>, %arg20: memref<32x32xf32, #tpu.memory_space<vmem>>, %arg21: memref<1x32xf32, #tpu.memory_space<vmem>>, %arg22: memref<1x32xf32, #tpu.memory_space<vmem>>, %arg23: memref<1x32xf32, #tpu.memory_space<vmem>>, %arg24: memref<32x512xf32, #tpu.memory_space<vmem>>, %arg25: memref<1x512xf32, #tpu.memory_space<vmem>>, %arg26: memref<512x32xf32, #tpu.memory_space<vmem>>, %arg27: memref<1x32xf32, #tpu.memory_space<vmem>>, %arg28: memref<1x32xf32, #tpu.memory_space<vmem>>, %arg29: memref<1x32xf32, #tpu.memory_space<vmem>>, %arg30: memref<32x32xf32, #tpu.memory_space<vmem>>, %arg31: memref<1x32xf32, #tpu.memory_space<vmem>>, %arg32: memref<32x64xf32, #tpu.memory_space<vmem>>, %arg33: memref<1x64xf32, #tpu.memory_space<vmem>>, %arg34: memref<32x32xf32, #tpu.memory_space<vmem>>, %arg35: memref<1x32xf32, #tpu.memory_space<vmem>>, %arg36: memref<1x32xf32, #tpu.memory_space<vmem>>, %arg37: memref<1x32xf32, #tpu.memory_space<vmem>>, %arg38: memref<32x32xf32, #tpu.memory_space<vmem>>, %arg39: memref<1x32xf32, #tpu.memory_space<vmem>>, %arg40: memref<32x64xf32, #tpu.memory_space<vmem>>, %arg41: memref<1x64xf32, #tpu.memory_space<vmem>>, %arg42: memref<32x32xf32, #tpu.memory_space<vmem>>, %arg43: memref<1x32xf32, #tpu.memory_space<vmem>>, %arg44: memref<1x32xf32, #tpu.memory_space<vmem>>, %arg45: memref<1x32xf32, #tpu.memory_space<vmem>>, %arg46: memref<32x512xf32, #tpu.memory_space<vmem>>, %arg47: memref<1x512xf32, #tpu.memory_space<vmem>>, %arg48: memref<512x32xf32, #tpu.memory_space<vmem>>, %arg49: memref<1x32xf32, #tpu.memory_space<vmem>>, %arg50: memref<1x32xf32, #tpu.memory_space<vmem>>, %arg51: memref<1x32xf32, #tpu.memory_space<vmem>>, %arg52: memref<64x32xf32, #tpu.memory_space<vmem>>, %arg53: memref<1x32xf32, #tpu.memory_space<vmem>>, %arg54: memref<1x32xf32, #tpu.memory_space<vmem>>, %arg55: memref<1x1xf32, #tpu.memory_space<vmem>>, %arg56: memref<1x1x16xf32, #tpu.memory_space<vmem>>) attributes {dimension_semantics = [#tpu.dimension_semantics<parallel>], iteration_bounds = array<i64: 2>, scalar_prefetch = 0 : i64, scratch_operands = 0 : i64, tpu.core_type = #tpu.core_type<tc>, window_params = [{transform_indices = @transform_0, window_bounds = array<i64: 1, 8, 16>}, {pipeline_mode = #tpu.pipeline_mode<synchronous>, transform_indices = @transform_1, window_bounds = array<i64: 16, 64>}, {transform_indices = @transform_2, window_bounds = array<i64: 1, 1, 8>}, {pipeline_mode = #tpu.pipeline_mode<synchronous>, transform_indices = @transform_3, window_bounds = array<i64: 16, 32>}, {pipeline_mode = #tpu.pipeline_mode<synchronous>, transform_indices = @transform_4, window_bounds = array<i64: 1, 32>}, {pipeline_mode = #tpu.pipeline_mode<synchronous>, transform_indices = @transform_5, window_bounds = array<i64: 64, 32>}, {pipeline_mode = #tpu.pipeline_mode<synchronous>, transform_indices = @transform_6, window_bounds = array<i64: 1, 32>}, {pipeline_mode = #tpu.pipeline_mode<synchronous>, transform_indices = @transform_7, window_bounds = array<i64: 32, 32>}, {pipeline_mode = #tpu.pipeline_mode<synchronous>, transform_indices = @transform_8, window_bounds = array<i64: 1, 32>}, {pipeline_mode = #tpu.pipeline_mode<synchronous>, transform_indices = @transform_9, window_bounds = array<i64: 32, 64>}, {pipeline_mode = #tpu.pipeline_mode<synchronous>, transform_indices = @transform_10, window_bounds = array<i64: 1, 64>}, {pipeline_mode = #tpu.pipeline_mode<synchronous>, transform_indices = @transform_11, window_bounds = array<i64: 32, 32>}, {pipeline_mode = #tpu.pipeline_mode<synchronous>, transform_indices = @transform_12, window_bounds = array<i64: 1, 32>}, {pipeline_mode = #tpu.pipeline_mode<synchronous>, transform_indices = @transform_13, window_bounds = array<i64: 1, 32>}, {pipeline_mode = #tpu.pipeline_mode<synchronous>, transform_indices = @transform_14, window_bounds = array<i64: 1, 32>}, {pipeline_mode = #tpu.pipeline_mode<synchronous>, transform_indices = @transform_15, window_bounds = array<i64: 32, 32>}, {pipeline_mode = #tpu.pipeline_mode<synchronous>, transform_indices = @transform_16, window_bounds = array<i64: 1, 32>}, {pipeline_mode = #tpu.pipeline_mode<synchronous>, transform_indices = @transform_17, window_bounds = array<i64: 32, 64>}, {pipeline_mode = #tpu.pipeline_mode<synchronous>, transform_indices = @transform_18, window_bounds = array<i64: 1, 64>}, {pipeline_mode = #tpu.pipeline_mode<synchronous>, transform_indices = @transform_19, window_bounds = array<i64: 32, 32>}, {pipeline_mode = #tpu.pipeline_mode<synchronous>, transform_indices = @transform_20, window_bounds = array<i64: 1, 32>}, {pipeline_mode = #tpu.pipeline_mode<synchronous>, transform_indices = @transform_21, window_bounds = array<i64: 1, 32>}, {pipeline_mode = #tpu.pipeline_mode<synchronous>, transform_indices = @transform_22, window_bounds = array<i64: 1, 32>}, {pipeline_mode = #tpu.pipeline_mode<synchronous>, transform_indices = @transform_23, window_bounds = array<i64: 32, 512>}, {pipeline_mode = #tpu.pipeline_mode<synchronous>, transform_indices = @transform_24, window_bounds = array<i64: 1, 512>}, {pipeline_mode = #tpu.pipeline_mode<synchronous>, transform_indices = @transform_25, window_bounds = array<i64: 512, 32>}, {pipeline_mode = #tpu.pipeline_mode<synchronous>, transform_indices = @transform_26, window_bounds = array<i64: 1, 32>}, {pipeline_mode = #tpu.pipeline_mode<synchronous>, transform_indices = @transform_27, window_bounds = array<i64: 1, 32>}, {pipeline_mode = #tpu.pipeline_mode<synchronous>, transform_indices = @transform_28, window_bounds = array<i64: 1, 32>}, {pipeline_mode = #tpu.pipeline_mode<synchronous>, transform_indices = @transform_29, window_bounds = array<i64: 32, 32>}, {pipeline_mode = #tpu.pipeline_mode<synchronous>, transform_indices = @transform_30, window_bounds = array<i64: 1, 32>}, {pipeline_mode = #tpu.pipeline_mode<synchronous>, transform_indices = @transform_31, window_bounds = array<i64: 32, 64>}, {pipeline_mode = #tpu.pipeline_mode<synchronous>, transform_indices = @transform_32, window_bounds = array<i64: 1, 64>}, {pipeline_mode = #tpu.pipeline_mode<synchronous>, transform_indices = @transform_33, window_bounds = array<i64: 32, 32>}, {pipeline_mode = #tpu.pipeline_mode<synchronous>, transform_indices = @transform_34, window_bounds = array<i64: 1, 32>}, {pipeline_mode = #tpu.pipeline_mode<synchronous>, transform_indices = @transform_35, window_bounds = array<i64: 1, 32>}, {pipeline_mode = #tpu.pipeline_mode<synchronous>, transform_indices = @transform_36, window_bounds = array<i64: 1, 32>}, {pipeline_mode = #tpu.pipeline_mode<synchronous>, transform_indices = @transform_37, window_bounds = array<i64: 32, 32>}, {pipeline_mode = #tpu.pipeline_mode<synchronous>, transform_indices = @transform_38, window_bounds = array<i64: 1, 32>}, {pipeline_mode = #tpu.pipeline_mode<synchronous>, transform_indices = @transform_39, window_bounds = array<i64: 32, 64>}, {pipeline_mode = #tpu.pipeline_mode<synchronous>, transform_indices = @transform_40, window_bounds = array<i64: 1, 64>}, {pipeline_mode = #tpu.pipeline_mode<synchronous>, transform_indices = @transform_41, window_bounds = array<i64: 32, 32>}, {pipeline_mode = #tpu.pipeline_mode<synchronous>, transform_indices = @transform_42, window_bounds = array<i64: 1, 32>}, {pipeline_mode = #tpu.pipeline_mode<synchronous>, transform_indices = @transform_43, window_bounds = array<i64: 1, 32>}, {pipeline_mode = #tpu.pipeline_mode<synchronous>, transform_indices = @transform_44, window_bounds = array<i64: 1, 32>}, {pipeline_mode = #tpu.pipeline_mode<synchronous>, transform_indices = @transform_45, window_bounds = array<i64: 32, 512>}, {pipeline_mode = #tpu.pipeline_mode<synchronous>, transform_indices = @transform_46, window_bounds = array<i64: 1, 512>}, {pipeline_mode = #tpu.pipeline_mode<synchronous>, transform_indices = @transform_47, window_bounds = array<i64: 512, 32>}, {pipeline_mode = #tpu.pipeline_mode<synchronous>, transform_indices = @transform_48, window_bounds = array<i64: 1, 32>}, {pipeline_mode = #tpu.pipeline_mode<synchronous>, transform_indices = @transform_49, window_bounds = array<i64: 1, 32>}, {pipeline_mode = #tpu.pipeline_mode<synchronous>, transform_indices = @transform_50, window_bounds = array<i64: 1, 32>}, {pipeline_mode = #tpu.pipeline_mode<synchronous>, transform_indices = @transform_51, window_bounds = array<i64: 64, 32>}, {pipeline_mode = #tpu.pipeline_mode<synchronous>, transform_indices = @transform_52, window_bounds = array<i64: 1, 32>}, {pipeline_mode = #tpu.pipeline_mode<synchronous>, transform_indices = @transform_53, window_bounds = array<i64: 1, 32>}, {pipeline_mode = #tpu.pipeline_mode<synchronous>, transform_indices = @transform_54, window_bounds = array<i64: 1, 1>}, {transform_indices = @transform_55, window_bounds = array<i64: 1, 1, 16>}]} {
    %c0 = arith.constant 0 : index
    %c0_0 = arith.constant 0 : index
    %c0_1 = arith.constant 0 : index
    %0 = vector.load %arg1[%c0, %c0_0, %c0_1] : memref<1x8x16xf32, #tpu.memory_space<vmem>>, vector<1x8x16xf32>
    %1 = vector.shape_cast %0 : vector<1x8x16xf32> to vector<8x16xf32>
    %c0_2 = arith.constant 0 : index
    %c0_3 = arith.constant 0 : index
    %2 = vector.load %arg4[%c0_2, %c0_3] : memref<16x32xf32, #tpu.memory_space<vmem>>, vector<16x32xf32>
    %cst = arith.constant dense<0.000000e+00> : vector<8x32xf32>
    %3 = tpu.matmul %1, %2, %cst {dimension_numbers = #tpu.dot_dimension_numbers<[1], [0], [0], [1], [0, 0, 1, 1], [], []>} : vector<8x16xf32>, vector<16x32xf32>, vector<8x32xf32> -> vector<8x32xf32>
    %c0_4 = arith.constant 0 : index
    %c0_5 = arith.constant 0 : index
    %4 = vector.load %arg5[%c0_4, %c0_5] : memref<1x32xf32, #tpu.memory_space<vmem>>, vector<1x32xf32>
    %5 = vector.broadcast %4 : vector<1x32xf32> to vector<8x32xf32>
    %6 = arith.addf %3, %5 : vector<8x32xf32>
    %cst_6 = arith.constant dense<0.000000e+00> : vector<32xf32>
    %7 = vector.multi_reduction <add>, %6, %cst_6 [0] : vector<8x32xf32> to vector<32xf32>
    %8 = vector.shape_cast %7 : vector<32xf32> to vector<1x32xf32>
    %c0_7 = arith.constant 0 : index
    %c0_8 = arith.constant 0 : index
    %9 = vector.load %arg2[%c0_7, %c0_8] : memref<16x64xf32, #tpu.memory_space<vmem>>, vector<16x64xf32>
    %c0_9 = arith.constant 0 : index
    %c0_10 = arith.constant 0 : index
    %10 = vector.load %arg6[%c0_9, %c0_10] : memref<64x32xf32, #tpu.memory_space<vmem>>, vector<64x32xf32>
    %cst_11 = arith.constant dense<0.000000e+00> : vector<16x32xf32>
    %11 = tpu.matmul %9, %10, %cst_11 {dimension_numbers = #tpu.dot_dimension_numbers<[1], [0], [0], [1], [0, 0, 1, 1], [], []>} : vector<16x64xf32>, vector<64x32xf32>, vector<16x32xf32> -> vector<16x32xf32>
    %c0_12 = arith.constant 0 : index
    %c0_13 = arith.constant 0 : index
    %12 = vector.load %arg7[%c0_12, %c0_13] : memref<1x32xf32, #tpu.memory_space<vmem>>, vector<1x32xf32>
    %13 = vector.broadcast %12 : vector<1x32xf32> to vector<16x32xf32>
    %14 = arith.addf %11, %13 : vector<16x32xf32>
    %c0_14 = arith.constant 0 : index
    %c0_15 = arith.constant 0 : index
    %c0_16 = arith.constant 0 : index
    %15 = vector.load %arg3[%c0_14, %c0_15, %c0_16] : memref<1x1x8xf32, #tpu.memory_space<vmem>>, vector<1x1x8xf32>
    %16 = vector.shape_cast %15 : vector<1x1x8xf32> to vector<1x8xf32>
    %c0_17 = arith.constant 0 : index
    %c0_18 = arith.constant 0 : index
    %17 = vector.load %arg8[%c0_17, %c0_18] : memref<32x32xf32, #tpu.memory_space<vmem>>, vector<32x32xf32>
    %c0_19 = arith.constant 0 : index
    %c0_20 = arith.constant 0 : index
    %18 = vector.load %arg9[%c0_19, %c0_20] : memref<1x32xf32, #tpu.memory_space<vmem>>, vector<1x32xf32>
    %c0_21 = arith.constant 0 : index
    %c0_22 = arith.constant 0 : index
    %19 = vector.load %arg10[%c0_21, %c0_22] : memref<32x64xf32, #tpu.memory_space<vmem>>, vector<32x64xf32>
    %c0_23 = arith.constant 0 : index
    %c0_24 = arith.constant 0 : index
    %20 = vector.load %arg11[%c0_23, %c0_24] : memref<1x64xf32, #tpu.memory_space<vmem>>, vector<1x64xf32>
    %c0_25 = arith.constant 0 : index
    %c0_26 = arith.constant 0 : index
    %21 = vector.load %arg12[%c0_25, %c0_26] : memref<32x32xf32, #tpu.memory_space<vmem>>, vector<32x32xf32>
    %c0_27 = arith.constant 0 : index
    %c0_28 = arith.constant 0 : index
    %22 = vector.load %arg13[%c0_27, %c0_28] : memref<1x32xf32, #tpu.memory_space<vmem>>, vector<1x32xf32>
    %cst_29 = arith.constant dense<0.000000e+00> : vector<16x32xf32>
    %23 = tpu.matmul %14, %17, %cst_29 {dimension_numbers = #tpu.dot_dimension_numbers<[1], [0], [0], [1], [0, 0, 1, 1], [], []>} : vector<16x32xf32>, vector<32x32xf32>, vector<16x32xf32> -> vector<16x32xf32>
    %24 = vector.broadcast %18 : vector<1x32xf32> to vector<16x32xf32>
    %25 = arith.addf %23, %24 : vector<16x32xf32>
    %cst_30 = arith.constant dense<0.000000e+00> : vector<16x64xf32>
    %26 = tpu.matmul %14, %19, %cst_30 {dimension_numbers = #tpu.dot_dimension_numbers<[1], [0], [0], [1], [0, 0, 1, 1], [], []>} : vector<16x32xf32>, vector<32x64xf32>, vector<16x64xf32> -> vector<16x64xf32>
    %27 = vector.broadcast %20 : vector<1x64xf32> to vector<16x64xf32>
    %28 = arith.addf %26, %27 : vector<16x64xf32>
    %29 = vector.extract_strided_slice %28 {offsets = [0, 0], sizes = [16, 32], strides = [1, 1]} : vector<16x64xf32> to vector<16x32xf32>
    %30 = vector.extract_strided_slice %28 {offsets = [0, 32], sizes = [16, 32], strides = [1, 1]} : vector<16x64xf32> to vector<16x32xf32>
    %31 = vector.extract_strided_slice %25 {offsets = [0, 0], sizes = [16, 8], strides = [1, 1]} : vector<16x32xf32> to vector<16x8xf32>
    %32 = vector.extract_strided_slice %25 {offsets = [0, 8], sizes = [16, 8], strides = [1, 1]} : vector<16x32xf32> to vector<16x8xf32>
    %33 = vector.extract_strided_slice %25 {offsets = [0, 16], sizes = [16, 8], strides = [1, 1]} : vector<16x32xf32> to vector<16x8xf32>
    %34 = vector.extract_strided_slice %25 {offsets = [0, 24], sizes = [16, 8], strides = [1, 1]} : vector<16x32xf32> to vector<16x8xf32>
    %35 = vector.shape_cast %31 : vector<16x8xf32> to vector<1x16x8xf32>
    %36 = vector.shape_cast %32 : vector<16x8xf32> to vector<1x16x8xf32>
    %37 = vector.shape_cast %33 : vector<16x8xf32> to vector<1x16x8xf32>
    %38 = vector.shape_cast %34 : vector<16x8xf32> to vector<1x16x8xf32>
    %39 = tpu.concatenate %35, %36, %37, %38 in 0 : vector<1x16x8xf32>, vector<1x16x8xf32>, vector<1x16x8xf32>, vector<1x16x8xf32> -> vector<4x16x8xf32>
    %40 = vector.extract_strided_slice %29 {offsets = [0, 0], sizes = [16, 8], strides = [1, 1]} : vector<16x32xf32> to vector<16x8xf32>
    %41 = vector.extract_strided_slice %29 {offsets = [0, 8], sizes = [16, 8], strides = [1, 1]} : vector<16x32xf32> to vector<16x8xf32>
    %42 = vector.extract_strided_slice %29 {offsets = [0, 16], sizes = [16, 8], strides = [1, 1]} : vector<16x32xf32> to vector<16x8xf32>
    %43 = vector.extract_strided_slice %29 {offsets = [0, 24], sizes = [16, 8], strides = [1, 1]} : vector<16x32xf32> to vector<16x8xf32>
    %44 = vector.shape_cast %40 : vector<16x8xf32> to vector<1x16x8xf32>
    %45 = vector.shape_cast %41 : vector<16x8xf32> to vector<1x16x8xf32>
    %46 = vector.shape_cast %42 : vector<16x8xf32> to vector<1x16x8xf32>
    %47 = vector.shape_cast %43 : vector<16x8xf32> to vector<1x16x8xf32>
    %48 = tpu.concatenate %44, %45, %46, %47 in 0 : vector<1x16x8xf32>, vector<1x16x8xf32>, vector<1x16x8xf32>, vector<1x16x8xf32> -> vector<4x16x8xf32>
    %49 = vector.extract_strided_slice %30 {offsets = [0, 0], sizes = [16, 8], strides = [1, 1]} : vector<16x32xf32> to vector<16x8xf32>
    %50 = vector.extract_strided_slice %30 {offsets = [0, 8], sizes = [16, 8], strides = [1, 1]} : vector<16x32xf32> to vector<16x8xf32>
    %51 = vector.extract_strided_slice %30 {offsets = [0, 16], sizes = [16, 8], strides = [1, 1]} : vector<16x32xf32> to vector<16x8xf32>
    %52 = vector.extract_strided_slice %30 {offsets = [0, 24], sizes = [16, 8], strides = [1, 1]} : vector<16x32xf32> to vector<16x8xf32>
    %53 = vector.shape_cast %49 : vector<16x8xf32> to vector<1x16x8xf32>
    %54 = vector.shape_cast %50 : vector<16x8xf32> to vector<1x16x8xf32>
    %55 = vector.shape_cast %51 : vector<16x8xf32> to vector<1x16x8xf32>
    %56 = vector.shape_cast %52 : vector<16x8xf32> to vector<1x16x8xf32>
    %57 = tpu.concatenate %53, %54, %55, %56 in 0 : vector<1x16x8xf32>, vector<1x16x8xf32>, vector<1x16x8xf32>, vector<1x16x8xf32> -> vector<4x16x8xf32>
    "tpu.trace_start"() <{level = 10 : i32, message = "hqd,hkd->hqk"}> : () -> ()
    %cst_31 = arith.constant dense<0.000000e+00> : vector<4x16x16xf32>
    %58 = tpu.matmul %39, %48, %cst_31 {dimension_numbers = #tpu.dot_dimension_numbers<[2], [2], [1], [1], [0, 0, 0, 1, 1, 1], [0], [0]>} : vector<4x16x8xf32>, vector<4x16x8xf32>, vector<4x16x16xf32> -> vector<4x16x16xf32>
    "tpu.trace_stop"() : () -> ()
    %cst_32 = arith.constant dense<0xFF800000> : vector<4x16xf32>
    %59 = vector.multi_reduction <maximumf>, %58, %cst_32 [2] : vector<4x16x16xf32> to vector<4x16xf32>
    %60 = vector.shape_cast %59 : vector<4x16xf32> to vector<4x16x1xf32>
    %61 = vector.broadcast %60 : vector<4x16x1xf32> to vector<4x16x16xf32>
    %62 = arith.subf %58, %61 : vector<4x16x16xf32>
    %63 = math.exp %62 : vector<4x16x16xf32>
    %cst_33 = arith.constant dense<0.000000e+00> : vector<4x16xf32>
    %64 = vector.multi_reduction <add>, %63, %cst_33 [2] : vector<4x16x16xf32> to vector<4x16xf32>
    %65 = vector.shape_cast %64 : vector<4x16xf32> to vector<4x16x1xf32>
    %66 = tpu.reciprocal %65 {approx = true} : vector<4x16x1xf32> -> vector<4x16x1xf32>
    %67 = vector.broadcast %66 : vector<4x16x1xf32> to vector<4x16x16xf32>
    %68 = arith.mulf %63, %67 : vector<4x16x16xf32>
    "tpu.trace_start"() <{level = 10 : i32, message = "hqk,hkd->hqd"}> : () -> ()
    %cst_34 = arith.constant dense<0.000000e+00> : vector<4x16x8xf32>
    %69 = tpu.matmul %68, %57, %cst_34 {dimension_numbers = #tpu.dot_dimension_numbers<[2], [1], [1], [2], [0, 0, 0, 1, 1, 2], [0], [0]>} : vector<4x16x16xf32>, vector<4x16x8xf32>, vector<4x16x8xf32> -> vector<4x16x8xf32>
    "tpu.trace_stop"() : () -> ()
    %70 = vector.extract_strided_slice %69 {offsets = [0, 0, 0], sizes = [1, 16, 8], strides = [1, 1, 1]} : vector<4x16x8xf32> to vector<1x16x8xf32>
    %71 = vector.shape_cast %70 : vector<1x16x8xf32> to vector<16x8xf32>
    %72 = vector.extract_strided_slice %69 {offsets = [1, 0, 0], sizes = [1, 16, 8], strides = [1, 1, 1]} : vector<4x16x8xf32> to vector<1x16x8xf32>
    %73 = vector.shape_cast %72 : vector<1x16x8xf32> to vector<16x8xf32>
    %74 = vector.extract_strided_slice %69 {offsets = [2, 0, 0], sizes = [1, 16, 8], strides = [1, 1, 1]} : vector<4x16x8xf32> to vector<1x16x8xf32>
    %75 = vector.shape_cast %74 : vector<1x16x8xf32> to vector<16x8xf32>
    %76 = vector.extract_strided_slice %69 {offsets = [3, 0, 0], sizes = [1, 16, 8], strides = [1, 1, 1]} : vector<4x16x8xf32> to vector<1x16x8xf32>
    %77 = vector.shape_cast %76 : vector<1x16x8xf32> to vector<16x8xf32>
    %78 = tpu.concatenate %71, %73, %75, %77 in 1 : vector<16x8xf32>, vector<16x8xf32>, vector<16x8xf32>, vector<16x8xf32> -> vector<16x32xf32>
    %cst_35 = arith.constant dense<0.000000e+00> : vector<16x32xf32>
    %79 = tpu.matmul %78, %21, %cst_35 {dimension_numbers = #tpu.dot_dimension_numbers<[1], [0], [0], [1], [0, 0, 1, 1], [], []>} : vector<16x32xf32>, vector<32x32xf32>, vector<16x32xf32> -> vector<16x32xf32>
    %80 = vector.broadcast %22 : vector<1x32xf32> to vector<16x32xf32>
    %81 = arith.addf %79, %80 : vector<16x32xf32>
    %c0_36 = arith.constant 0 : index
    %c0_37 = arith.constant 0 : index
    %82 = vector.load %arg14[%c0_36, %c0_37] : memref<1x32xf32, #tpu.memory_space<vmem>>, vector<1x32xf32>
    %c0_38 = arith.constant 0 : index
    %c0_39 = arith.constant 0 : index
    %83 = vector.load %arg15[%c0_38, %c0_39] : memref<1x32xf32, #tpu.memory_space<vmem>>, vector<1x32xf32>
    %84 = arith.addf %14, %81 : vector<16x32xf32>
    %cst_40 = arith.constant dense<0.000000e+00> : vector<16xf32>
    %85 = vector.multi_reduction <add>, %84, %cst_40 [1] : vector<16x32xf32> to vector<16xf32>
    %86 = vector.shape_cast %85 : vector<16xf32> to vector<16x1xf32>
    %cst_41 = arith.constant 3.200000e+01 : f32
    %87 = vector.broadcast %cst_41 : f32 to vector<16x1xf32>
    %88 = arith.divf %86, %87 : vector<16x1xf32>
    %89 = vector.broadcast %88 : vector<16x1xf32> to vector<16x32xf32>
    %90 = arith.subf %84, %89 : vector<16x32xf32>
    %91 = arith.mulf %90, %90 : vector<16x32xf32>
    %cst_42 = arith.constant dense<0.000000e+00> : vector<16xf32>
    %92 = vector.multi_reduction <add>, %91, %cst_42 [1] : vector<16x32xf32> to vector<16xf32>
    %93 = vector.shape_cast %92 : vector<16xf32> to vector<16x1xf32>
    %cst_43 = arith.constant 3.200000e+01 : f32
    %94 = vector.broadcast %cst_43 : f32 to vector<16x1xf32>
    %95 = arith.divf %93, %94 : vector<16x1xf32>
    %96 = vector.broadcast %88 : vector<16x1xf32> to vector<16x32xf32>
    %97 = arith.subf %84, %96 : vector<16x32xf32>
    %cst_44 = arith.constant 9.99999974E-6 : f32
    %98 = vector.broadcast %cst_44 : f32 to vector<16x1xf32>
    %99 = arith.addf %95, %98 : vector<16x1xf32>
    %100 = math.rsqrt %99 : vector<16x1xf32>
    %101 = vector.broadcast %100 : vector<16x1xf32> to vector<16x32xf32>
    %102 = arith.mulf %97, %101 : vector<16x32xf32>
    %103 = vector.broadcast %82 : vector<1x32xf32> to vector<16x32xf32>
    %104 = arith.mulf %102, %103 : vector<16x32xf32>
    %105 = vector.broadcast %83 : vector<1x32xf32> to vector<16x32xf32>
    %106 = arith.addf %104, %105 : vector<16x32xf32>
    %c0_45 = arith.constant 0 : index
    %c0_46 = arith.constant 0 : index
    %107 = vector.load %arg16[%c0_45, %c0_46] : memref<32x32xf32, #tpu.memory_space<vmem>>, vector<32x32xf32>
    %c0_47 = arith.constant 0 : index
    %c0_48 = arith.constant 0 : index
    %108 = vector.load %arg17[%c0_47, %c0_48] : memref<1x32xf32, #tpu.memory_space<vmem>>, vector<1x32xf32>
    %c0_49 = arith.constant 0 : index
    %c0_50 = arith.constant 0 : index
    %109 = vector.load %arg18[%c0_49, %c0_50] : memref<32x64xf32, #tpu.memory_space<vmem>>, vector<32x64xf32>
    %c0_51 = arith.constant 0 : index
    %c0_52 = arith.constant 0 : index
    %110 = vector.load %arg19[%c0_51, %c0_52] : memref<1x64xf32, #tpu.memory_space<vmem>>, vector<1x64xf32>
    %c0_53 = arith.constant 0 : index
    %c0_54 = arith.constant 0 : index
    %111 = vector.load %arg20[%c0_53, %c0_54] : memref<32x32xf32, #tpu.memory_space<vmem>>, vector<32x32xf32>
    %c0_55 = arith.constant 0 : index
    %c0_56 = arith.constant 0 : index
    %112 = vector.load %arg21[%c0_55, %c0_56] : memref<1x32xf32, #tpu.memory_space<vmem>>, vector<1x32xf32>
    %cst_57 = arith.constant dense<0.000000e+00> : vector<16x32xf32>
    %113 = tpu.matmul %106, %107, %cst_57 {dimension_numbers = #tpu.dot_dimension_numbers<[1], [0], [0], [1], [0, 0, 1, 1], [], []>} : vector<16x32xf32>, vector<32x32xf32>, vector<16x32xf32> -> vector<16x32xf32>
    %114 = vector.broadcast %108 : vector<1x32xf32> to vector<16x32xf32>
    %115 = arith.addf %113, %114 : vector<16x32xf32>
    %cst_58 = arith.constant dense<0.000000e+00> : vector<8x64xf32>
    %116 = tpu.matmul %6, %109, %cst_58 {dimension_numbers = #tpu.dot_dimension_numbers<[1], [0], [0], [1], [0, 0, 1, 1], [], []>} : vector<8x32xf32>, vector<32x64xf32>, vector<8x64xf32> -> vector<8x64xf32>
    %117 = vector.broadcast %110 : vector<1x64xf32> to vector<8x64xf32>
    %118 = arith.addf %116, %117 : vector<8x64xf32>
    %119 = vector.extract_strided_slice %118 {offsets = [0, 0], sizes = [8, 32], strides = [1, 1]} : vector<8x64xf32> to vector<8x32xf32>
    %120 = vector.extract_strided_slice %118 {offsets = [0, 32], sizes = [8, 32], strides = [1, 1]} : vector<8x64xf32> to vector<8x32xf32>
    %121 = vector.extract_strided_slice %115 {offsets = [0, 0], sizes = [16, 8], strides = [1, 1]} : vector<16x32xf32> to vector<16x8xf32>
    %122 = vector.extract_strided_slice %115 {offsets = [0, 8], sizes = [16, 8], strides = [1, 1]} : vector<16x32xf32> to vector<16x8xf32>
    %123 = vector.extract_strided_slice %115 {offsets = [0, 16], sizes = [16, 8], strides = [1, 1]} : vector<16x32xf32> to vector<16x8xf32>
    %124 = vector.extract_strided_slice %115 {offsets = [0, 24], sizes = [16, 8], strides = [1, 1]} : vector<16x32xf32> to vector<16x8xf32>
    %125 = vector.shape_cast %121 : vector<16x8xf32> to vector<1x16x8xf32>
    %126 = vector.shape_cast %122 : vector<16x8xf32> to vector<1x16x8xf32>
    %127 = vector.shape_cast %123 : vector<16x8xf32> to vector<1x16x8xf32>
    %128 = vector.shape_cast %124 : vector<16x8xf32> to vector<1x16x8xf32>
    %129 = tpu.concatenate %125, %126, %127, %128 in 0 : vector<1x16x8xf32>, vector<1x16x8xf32>, vector<1x16x8xf32>, vector<1x16x8xf32> -> vector<4x16x8xf32>
    %130 = vector.extract_strided_slice %119 {offsets = [0, 0], sizes = [8, 8], strides = [1, 1]} : vector<8x32xf32> to vector<8x8xf32>
    %131 = vector.extract_strided_slice %119 {offsets = [0, 8], sizes = [8, 8], strides = [1, 1]} : vector<8x32xf32> to vector<8x8xf32>
    %132 = vector.extract_strided_slice %119 {offsets = [0, 16], sizes = [8, 8], strides = [1, 1]} : vector<8x32xf32> to vector<8x8xf32>
    %133 = vector.extract_strided_slice %119 {offsets = [0, 24], sizes = [8, 8], strides = [1, 1]} : vector<8x32xf32> to vector<8x8xf32>
    %134 = vector.shape_cast %130 : vector<8x8xf32> to vector<1x8x8xf32>
    %135 = vector.shape_cast %131 : vector<8x8xf32> to vector<1x8x8xf32>
    %136 = vector.shape_cast %132 : vector<8x8xf32> to vector<1x8x8xf32>
    %137 = vector.shape_cast %133 : vector<8x8xf32> to vector<1x8x8xf32>
    %138 = tpu.concatenate %134, %135, %136, %137 in 0 : vector<1x8x8xf32>, vector<1x8x8xf32>, vector<1x8x8xf32>, vector<1x8x8xf32> -> vector<4x8x8xf32>
    %139 = vector.extract_strided_slice %120 {offsets = [0, 0], sizes = [8, 8], strides = [1, 1]} : vector<8x32xf32> to vector<8x8xf32>
    %140 = vector.extract_strided_slice %120 {offsets = [0, 8], sizes = [8, 8], strides = [1, 1]} : vector<8x32xf32> to vector<8x8xf32>
    %141 = vector.extract_strided_slice %120 {offsets = [0, 16], sizes = [8, 8], strides = [1, 1]} : vector<8x32xf32> to vector<8x8xf32>
    %142 = vector.extract_strided_slice %120 {offsets = [0, 24], sizes = [8, 8], strides = [1, 1]} : vector<8x32xf32> to vector<8x8xf32>
    %143 = vector.shape_cast %139 : vector<8x8xf32> to vector<1x8x8xf32>
    %144 = vector.shape_cast %140 : vector<8x8xf32> to vector<1x8x8xf32>
    %145 = vector.shape_cast %141 : vector<8x8xf32> to vector<1x8x8xf32>
    %146 = vector.shape_cast %142 : vector<8x8xf32> to vector<1x8x8xf32>
    %147 = tpu.concatenate %143, %144, %145, %146 in 0 : vector<1x8x8xf32>, vector<1x8x8xf32>, vector<1x8x8xf32>, vector<1x8x8xf32> -> vector<4x8x8xf32>
    "tpu.trace_start"() <{level = 10 : i32, message = "hqd,hkd->hqk"}> : () -> ()
    %cst_59 = arith.constant dense<0.000000e+00> : vector<4x16x8xf32>
    %148 = tpu.matmul %129, %138, %cst_59 {dimension_numbers = #tpu.dot_dimension_numbers<[2], [2], [1], [1], [0, 0, 0, 1, 1, 1], [0], [0]>} : vector<4x16x8xf32>, vector<4x8x8xf32>, vector<4x16x8xf32> -> vector<4x16x8xf32>
    "tpu.trace_stop"() : () -> ()
    %149 = vector.shape_cast %16 : vector<1x8xf32> to vector<1x1x8xf32>
    %cst_60 = arith.constant 0.000000e+00 : f32
    %150 = vector.broadcast %cst_60 : f32 to vector<1x1x8xf32>
    %151 = arith.cmpf oeq, %149, %150 : vector<1x1x8xf32>
    %cst_61 = arith.constant -1.000000e+10 : f32
    %152 = vector.shape_cast %151 : vector<1x1x8xi1> to vector<1x1x8xi1>
    %153 = vector.broadcast %152 : vector<1x1x8xi1> to vector<4x16x8xi1>
    %154 = vector.broadcast %cst_61 : f32 to vector<4x16x8xf32>
    %155 = arith.select %153, %154, %148 : vector<4x16x8xi1>, vector<4x16x8xf32>
    %cst_62 = arith.constant dense<0xFF800000> : vector<4x16xf32>
    %156 = vector.multi_reduction <maximumf>, %155, %cst_62 [2] : vector<4x16x8xf32> to vector<4x16xf32>
    %157 = vector.shape_cast %156 : vector<4x16xf32> to vector<4x16x1xf32>
    %158 = vector.broadcast %157 : vector<4x16x1xf32> to vector<4x16x8xf32>
    %159 = arith.subf %155, %158 : vector<4x16x8xf32>
    %160 = math.exp %159 : vector<4x16x8xf32>
    %cst_63 = arith.constant dense<0.000000e+00> : vector<4x16xf32>
    %161 = vector.multi_reduction <add>, %160, %cst_63 [2] : vector<4x16x8xf32> to vector<4x16xf32>
    %162 = vector.shape_cast %161 : vector<4x16xf32> to vector<4x16x1xf32>
    %163 = tpu.reciprocal %162 {approx = true} : vector<4x16x1xf32> -> vector<4x16x1xf32>
    %164 = vector.broadcast %163 : vector<4x16x1xf32> to vector<4x16x8xf32>
    %165 = arith.mulf %160, %164 : vector<4x16x8xf32>
    "tpu.trace_start"() <{level = 10 : i32, message = "hqk,hkd->hqd"}> : () -> ()
    %cst_64 = arith.constant dense<0.000000e+00> : vector<4x16x8xf32>
    %166 = tpu.matmul %165, %147, %cst_64 {dimension_numbers = #tpu.dot_dimension_numbers<[2], [1], [1], [2], [0, 0, 0, 1, 1, 2], [0], [0]>} : vector<4x16x8xf32>, vector<4x8x8xf32>, vector<4x16x8xf32> -> vector<4x16x8xf32>
    "tpu.trace_stop"() : () -> ()
    %167 = vector.extract_strided_slice %166 {offsets = [0, 0, 0], sizes = [1, 16, 8], strides = [1, 1, 1]} : vector<4x16x8xf32> to vector<1x16x8xf32>
    %168 = vector.shape_cast %167 : vector<1x16x8xf32> to vector<16x8xf32>
    %169 = vector.extract_strided_slice %166 {offsets = [1, 0, 0], sizes = [1, 16, 8], strides = [1, 1, 1]} : vector<4x16x8xf32> to vector<1x16x8xf32>
    %170 = vector.shape_cast %169 : vector<1x16x8xf32> to vector<16x8xf32>
    %171 = vector.extract_strided_slice %166 {offsets = [2, 0, 0], sizes = [1, 16, 8], strides = [1, 1, 1]} : vector<4x16x8xf32> to vector<1x16x8xf32>
    %172 = vector.shape_cast %171 : vector<1x16x8xf32> to vector<16x8xf32>
    %173 = vector.extract_strided_slice %166 {offsets = [3, 0, 0], sizes = [1, 16, 8], strides = [1, 1, 1]} : vector<4x16x8xf32> to vector<1x16x8xf32>
    %174 = vector.shape_cast %173 : vector<1x16x8xf32> to vector<16x8xf32>
    %175 = tpu.concatenate %168, %170, %172, %174 in 1 : vector<16x8xf32>, vector<16x8xf32>, vector<16x8xf32>, vector<16x8xf32> -> vector<16x32xf32>
    %cst_65 = arith.constant dense<0.000000e+00> : vector<16x32xf32>
    %176 = tpu.matmul %175, %111, %cst_65 {dimension_numbers = #tpu.dot_dimension_numbers<[1], [0], [0], [1], [0, 0, 1, 1], [], []>} : vector<16x32xf32>, vector<32x32xf32>, vector<16x32xf32> -> vector<16x32xf32>
    %177 = vector.broadcast %112 : vector<1x32xf32> to vector<16x32xf32>
    %178 = arith.addf %176, %177 : vector<16x32xf32>
    %c0_66 = arith.constant 0 : index
    %c0_67 = arith.constant 0 : index
    %179 = vector.load %arg22[%c0_66, %c0_67] : memref<1x32xf32, #tpu.memory_space<vmem>>, vector<1x32xf32>
    %c0_68 = arith.constant 0 : index
    %c0_69 = arith.constant 0 : index
    %180 = vector.load %arg23[%c0_68, %c0_69] : memref<1x32xf32, #tpu.memory_space<vmem>>, vector<1x32xf32>
    %181 = arith.addf %106, %178 : vector<16x32xf32>
    %cst_70 = arith.constant dense<0.000000e+00> : vector<16xf32>
    %182 = vector.multi_reduction <add>, %181, %cst_70 [1] : vector<16x32xf32> to vector<16xf32>
    %183 = vector.shape_cast %182 : vector<16xf32> to vector<16x1xf32>
    %cst_71 = arith.constant 3.200000e+01 : f32
    %184 = vector.broadcast %cst_71 : f32 to vector<16x1xf32>
    %185 = arith.divf %183, %184 : vector<16x1xf32>
    %186 = vector.broadcast %185 : vector<16x1xf32> to vector<16x32xf32>
    %187 = arith.subf %181, %186 : vector<16x32xf32>
    %188 = arith.mulf %187, %187 : vector<16x32xf32>
    %cst_72 = arith.constant dense<0.000000e+00> : vector<16xf32>
    %189 = vector.multi_reduction <add>, %188, %cst_72 [1] : vector<16x32xf32> to vector<16xf32>
    %190 = vector.shape_cast %189 : vector<16xf32> to vector<16x1xf32>
    %cst_73 = arith.constant 3.200000e+01 : f32
    %191 = vector.broadcast %cst_73 : f32 to vector<16x1xf32>
    %192 = arith.divf %190, %191 : vector<16x1xf32>
    %193 = vector.broadcast %185 : vector<16x1xf32> to vector<16x32xf32>
    %194 = arith.subf %181, %193 : vector<16x32xf32>
    %cst_74 = arith.constant 9.99999974E-6 : f32
    %195 = vector.broadcast %cst_74 : f32 to vector<16x1xf32>
    %196 = arith.addf %192, %195 : vector<16x1xf32>
    %197 = math.rsqrt %196 : vector<16x1xf32>
    %198 = vector.broadcast %197 : vector<16x1xf32> to vector<16x32xf32>
    %199 = arith.mulf %194, %198 : vector<16x32xf32>
    %200 = vector.broadcast %179 : vector<1x32xf32> to vector<16x32xf32>
    %201 = arith.mulf %199, %200 : vector<16x32xf32>
    %202 = vector.broadcast %180 : vector<1x32xf32> to vector<16x32xf32>
    %203 = arith.addf %201, %202 : vector<16x32xf32>
    %c0_75 = arith.constant 0 : index
    %c0_76 = arith.constant 0 : index
    %204 = vector.load %arg24[%c0_75, %c0_76] : memref<32x512xf32, #tpu.memory_space<vmem>>, vector<32x512xf32>
    %cst_77 = arith.constant dense<0.000000e+00> : vector<16x512xf32>
    %205 = tpu.matmul %203, %204, %cst_77 {dimension_numbers = #tpu.dot_dimension_numbers<[1], [0], [0], [1], [0, 0, 1, 1], [], []>} : vector<16x32xf32>, vector<32x512xf32>, vector<16x512xf32> -> vector<16x512xf32>
    %c0_78 = arith.constant 0 : index
    %c0_79 = arith.constant 0 : index
    %206 = vector.load %arg25[%c0_78, %c0_79] : memref<1x512xf32, #tpu.memory_space<vmem>>, vector<1x512xf32>
    %207 = vector.broadcast %206 : vector<1x512xf32> to vector<16x512xf32>
    %208 = arith.addf %205, %207 : vector<16x512xf32>
    %cst_80 = arith.constant 0.000000e+00 : f32
    %209 = vector.broadcast %cst_80 : f32 to vector<16x512xf32>
    %210 = arith.maximumf %208, %209 : vector<16x512xf32>
    %c0_81 = arith.constant 0 : index
    %c0_82 = arith.constant 0 : index
    %211 = vector.load %arg26[%c0_81, %c0_82] : memref<512x32xf32, #tpu.memory_space<vmem>>, vector<512x32xf32>
    %cst_83 = arith.constant dense<0.000000e+00> : vector<16x32xf32>
    %212 = tpu.matmul %210, %211, %cst_83 {dimension_numbers = #tpu.dot_dimension_numbers<[1], [0], [0], [1], [0, 0, 1, 1], [], []>} : vector<16x512xf32>, vector<512x32xf32>, vector<16x32xf32> -> vector<16x32xf32>
    %c0_84 = arith.constant 0 : index
    %c0_85 = arith.constant 0 : index
    %213 = vector.load %arg27[%c0_84, %c0_85] : memref<1x32xf32, #tpu.memory_space<vmem>>, vector<1x32xf32>
    %214 = vector.broadcast %213 : vector<1x32xf32> to vector<16x32xf32>
    %215 = arith.addf %212, %214 : vector<16x32xf32>
    %c0_86 = arith.constant 0 : index
    %c0_87 = arith.constant 0 : index
    %216 = vector.load %arg28[%c0_86, %c0_87] : memref<1x32xf32, #tpu.memory_space<vmem>>, vector<1x32xf32>
    %c0_88 = arith.constant 0 : index
    %c0_89 = arith.constant 0 : index
    %217 = vector.load %arg29[%c0_88, %c0_89] : memref<1x32xf32, #tpu.memory_space<vmem>>, vector<1x32xf32>
    %218 = arith.addf %203, %215 : vector<16x32xf32>
    %cst_90 = arith.constant dense<0.000000e+00> : vector<16xf32>
    %219 = vector.multi_reduction <add>, %218, %cst_90 [1] : vector<16x32xf32> to vector<16xf32>
    %220 = vector.shape_cast %219 : vector<16xf32> to vector<16x1xf32>
    %cst_91 = arith.constant 3.200000e+01 : f32
    %221 = vector.broadcast %cst_91 : f32 to vector<16x1xf32>
    %222 = arith.divf %220, %221 : vector<16x1xf32>
    %223 = vector.broadcast %222 : vector<16x1xf32> to vector<16x32xf32>
    %224 = arith.subf %218, %223 : vector<16x32xf32>
    %225 = arith.mulf %224, %224 : vector<16x32xf32>
    %cst_92 = arith.constant dense<0.000000e+00> : vector<16xf32>
    %226 = vector.multi_reduction <add>, %225, %cst_92 [1] : vector<16x32xf32> to vector<16xf32>
    %227 = vector.shape_cast %226 : vector<16xf32> to vector<16x1xf32>
    %cst_93 = arith.constant 3.200000e+01 : f32
    %228 = vector.broadcast %cst_93 : f32 to vector<16x1xf32>
    %229 = arith.divf %227, %228 : vector<16x1xf32>
    %230 = vector.broadcast %222 : vector<16x1xf32> to vector<16x32xf32>
    %231 = arith.subf %218, %230 : vector<16x32xf32>
    %cst_94 = arith.constant 9.99999974E-6 : f32
    %232 = vector.broadcast %cst_94 : f32 to vector<16x1xf32>
    %233 = arith.addf %229, %232 : vector<16x1xf32>
    %234 = math.rsqrt %233 : vector<16x1xf32>
    %235 = vector.broadcast %234 : vector<16x1xf32> to vector<16x32xf32>
    %236 = arith.mulf %231, %235 : vector<16x32xf32>
    %237 = vector.broadcast %216 : vector<1x32xf32> to vector<16x32xf32>
    %238 = arith.mulf %236, %237 : vector<16x32xf32>
    %239 = vector.broadcast %217 : vector<1x32xf32> to vector<16x32xf32>
    %240 = arith.addf %238, %239 : vector<16x32xf32>
    %c0_95 = arith.constant 0 : index
    %c0_96 = arith.constant 0 : index
    %241 = vector.load %arg30[%c0_95, %c0_96] : memref<32x32xf32, #tpu.memory_space<vmem>>, vector<32x32xf32>
    %c0_97 = arith.constant 0 : index
    %c0_98 = arith.constant 0 : index
    %242 = vector.load %arg31[%c0_97, %c0_98] : memref<1x32xf32, #tpu.memory_space<vmem>>, vector<1x32xf32>
    %c0_99 = arith.constant 0 : index
    %c0_100 = arith.constant 0 : index
    %243 = vector.load %arg32[%c0_99, %c0_100] : memref<32x64xf32, #tpu.memory_space<vmem>>, vector<32x64xf32>
    %c0_101 = arith.constant 0 : index
    %c0_102 = arith.constant 0 : index
    %244 = vector.load %arg33[%c0_101, %c0_102] : memref<1x64xf32, #tpu.memory_space<vmem>>, vector<1x64xf32>
    %c0_103 = arith.constant 0 : index
    %c0_104 = arith.constant 0 : index
    %245 = vector.load %arg34[%c0_103, %c0_104] : memref<32x32xf32, #tpu.memory_space<vmem>>, vector<32x32xf32>
    %c0_105 = arith.constant 0 : index
    %c0_106 = arith.constant 0 : index
    %246 = vector.load %arg35[%c0_105, %c0_106] : memref<1x32xf32, #tpu.memory_space<vmem>>, vector<1x32xf32>
    %cst_107 = arith.constant dense<0.000000e+00> : vector<16x32xf32>
    %247 = tpu.matmul %240, %241, %cst_107 {dimension_numbers = #tpu.dot_dimension_numbers<[1], [0], [0], [1], [0, 0, 1, 1], [], []>} : vector<16x32xf32>, vector<32x32xf32>, vector<16x32xf32> -> vector<16x32xf32>
    %248 = vector.broadcast %242 : vector<1x32xf32> to vector<16x32xf32>
    %249 = arith.addf %247, %248 : vector<16x32xf32>
    %cst_108 = arith.constant dense<0.000000e+00> : vector<16x64xf32>
    %250 = tpu.matmul %240, %243, %cst_108 {dimension_numbers = #tpu.dot_dimension_numbers<[1], [0], [0], [1], [0, 0, 1, 1], [], []>} : vector<16x32xf32>, vector<32x64xf32>, vector<16x64xf32> -> vector<16x64xf32>
    %251 = vector.broadcast %244 : vector<1x64xf32> to vector<16x64xf32>
    %252 = arith.addf %250, %251 : vector<16x64xf32>
    %253 = vector.extract_strided_slice %252 {offsets = [0, 0], sizes = [16, 32], strides = [1, 1]} : vector<16x64xf32> to vector<16x32xf32>
    %254 = vector.extract_strided_slice %252 {offsets = [0, 32], sizes = [16, 32], strides = [1, 1]} : vector<16x64xf32> to vector<16x32xf32>
    %255 = vector.extract_strided_slice %249 {offsets = [0, 0], sizes = [16, 8], strides = [1, 1]} : vector<16x32xf32> to vector<16x8xf32>
    %256 = vector.extract_strided_slice %249 {offsets = [0, 8], sizes = [16, 8], strides = [1, 1]} : vector<16x32xf32> to vector<16x8xf32>
    %257 = vector.extract_strided_slice %249 {offsets = [0, 16], sizes = [16, 8], strides = [1, 1]} : vector<16x32xf32> to vector<16x8xf32>
    %258 = vector.extract_strided_slice %249 {offsets = [0, 24], sizes = [16, 8], strides = [1, 1]} : vector<16x32xf32> to vector<16x8xf32>
    %259 = vector.shape_cast %255 : vector<16x8xf32> to vector<1x16x8xf32>
    %260 = vector.shape_cast %256 : vector<16x8xf32> to vector<1x16x8xf32>
    %261 = vector.shape_cast %257 : vector<16x8xf32> to vector<1x16x8xf32>
    %262 = vector.shape_cast %258 : vector<16x8xf32> to vector<1x16x8xf32>
    %263 = tpu.concatenate %259, %260, %261, %262 in 0 : vector<1x16x8xf32>, vector<1x16x8xf32>, vector<1x16x8xf32>, vector<1x16x8xf32> -> vector<4x16x8xf32>
    %264 = vector.extract_strided_slice %253 {offsets = [0, 0], sizes = [16, 8], strides = [1, 1]} : vector<16x32xf32> to vector<16x8xf32>
    %265 = vector.extract_strided_slice %253 {offsets = [0, 8], sizes = [16, 8], strides = [1, 1]} : vector<16x32xf32> to vector<16x8xf32>
    %266 = vector.extract_strided_slice %253 {offsets = [0, 16], sizes = [16, 8], strides = [1, 1]} : vector<16x32xf32> to vector<16x8xf32>
    %267 = vector.extract_strided_slice %253 {offsets = [0, 24], sizes = [16, 8], strides = [1, 1]} : vector<16x32xf32> to vector<16x8xf32>
    %268 = vector.shape_cast %264 : vector<16x8xf32> to vector<1x16x8xf32>
    %269 = vector.shape_cast %265 : vector<16x8xf32> to vector<1x16x8xf32>
    %270 = vector.shape_cast %266 : vector<16x8xf32> to vector<1x16x8xf32>
    %271 = vector.shape_cast %267 : vector<16x8xf32> to vector<1x16x8xf32>
    %272 = tpu.concatenate %268, %269, %270, %271 in 0 : vector<1x16x8xf32>, vector<1x16x8xf32>, vector<1x16x8xf32>, vector<1x16x8xf32> -> vector<4x16x8xf32>
    %273 = vector.extract_strided_slice %254 {offsets = [0, 0], sizes = [16, 8], strides = [1, 1]} : vector<16x32xf32> to vector<16x8xf32>
    %274 = vector.extract_strided_slice %254 {offsets = [0, 8], sizes = [16, 8], strides = [1, 1]} : vector<16x32xf32> to vector<16x8xf32>
    %275 = vector.extract_strided_slice %254 {offsets = [0, 16], sizes = [16, 8], strides = [1, 1]} : vector<16x32xf32> to vector<16x8xf32>
    %276 = vector.extract_strided_slice %254 {offsets = [0, 24], sizes = [16, 8], strides = [1, 1]} : vector<16x32xf32> to vector<16x8xf32>
    %277 = vector.shape_cast %273 : vector<16x8xf32> to vector<1x16x8xf32>
    %278 = vector.shape_cast %274 : vector<16x8xf32> to vector<1x16x8xf32>
    %279 = vector.shape_cast %275 : vector<16x8xf32> to vector<1x16x8xf32>
    %280 = vector.shape_cast %276 : vector<16x8xf32> to vector<1x16x8xf32>
    %281 = tpu.concatenate %277, %278, %279, %280 in 0 : vector<1x16x8xf32>, vector<1x16x8xf32>, vector<1x16x8xf32>, vector<1x16x8xf32> -> vector<4x16x8xf32>
    "tpu.trace_start"() <{level = 10 : i32, message = "hqd,hkd->hqk"}> : () -> ()
    %cst_109 = arith.constant dense<0.000000e+00> : vector<4x16x16xf32>
    %282 = tpu.matmul %263, %272, %cst_109 {dimension_numbers = #tpu.dot_dimension_numbers<[2], [2], [1], [1], [0, 0, 0, 1, 1, 1], [0], [0]>} : vector<4x16x8xf32>, vector<4x16x8xf32>, vector<4x16x16xf32> -> vector<4x16x16xf32>
    "tpu.trace_stop"() : () -> ()
    %cst_110 = arith.constant dense<0xFF800000> : vector<4x16xf32>
    %283 = vector.multi_reduction <maximumf>, %282, %cst_110 [2] : vector<4x16x16xf32> to vector<4x16xf32>
    %284 = vector.shape_cast %283 : vector<4x16xf32> to vector<4x16x1xf32>
    %285 = vector.broadcast %284 : vector<4x16x1xf32> to vector<4x16x16xf32>
    %286 = arith.subf %282, %285 : vector<4x16x16xf32>
    %287 = math.exp %286 : vector<4x16x16xf32>
    %cst_111 = arith.constant dense<0.000000e+00> : vector<4x16xf32>
    %288 = vector.multi_reduction <add>, %287, %cst_111 [2] : vector<4x16x16xf32> to vector<4x16xf32>
    %289 = vector.shape_cast %288 : vector<4x16xf32> to vector<4x16x1xf32>
    %290 = tpu.reciprocal %289 {approx = true} : vector<4x16x1xf32> -> vector<4x16x1xf32>
    %291 = vector.broadcast %290 : vector<4x16x1xf32> to vector<4x16x16xf32>
    %292 = arith.mulf %287, %291 : vector<4x16x16xf32>
    "tpu.trace_start"() <{level = 10 : i32, message = "hqk,hkd->hqd"}> : () -> ()
    %cst_112 = arith.constant dense<0.000000e+00> : vector<4x16x8xf32>
    %293 = tpu.matmul %292, %281, %cst_112 {dimension_numbers = #tpu.dot_dimension_numbers<[2], [1], [1], [2], [0, 0, 0, 1, 1, 2], [0], [0]>} : vector<4x16x16xf32>, vector<4x16x8xf32>, vector<4x16x8xf32> -> vector<4x16x8xf32>
    "tpu.trace_stop"() : () -> ()
    %294 = vector.extract_strided_slice %293 {offsets = [0, 0, 0], sizes = [1, 16, 8], strides = [1, 1, 1]} : vector<4x16x8xf32> to vector<1x16x8xf32>
    %295 = vector.shape_cast %294 : vector<1x16x8xf32> to vector<16x8xf32>
    %296 = vector.extract_strided_slice %293 {offsets = [1, 0, 0], sizes = [1, 16, 8], strides = [1, 1, 1]} : vector<4x16x8xf32> to vector<1x16x8xf32>
    %297 = vector.shape_cast %296 : vector<1x16x8xf32> to vector<16x8xf32>
    %298 = vector.extract_strided_slice %293 {offsets = [2, 0, 0], sizes = [1, 16, 8], strides = [1, 1, 1]} : vector<4x16x8xf32> to vector<1x16x8xf32>
    %299 = vector.shape_cast %298 : vector<1x16x8xf32> to vector<16x8xf32>
    %300 = vector.extract_strided_slice %293 {offsets = [3, 0, 0], sizes = [1, 16, 8], strides = [1, 1, 1]} : vector<4x16x8xf32> to vector<1x16x8xf32>
    %301 = vector.shape_cast %300 : vector<1x16x8xf32> to vector<16x8xf32>
    %302 = tpu.concatenate %295, %297, %299, %301 in 1 : vector<16x8xf32>, vector<16x8xf32>, vector<16x8xf32>, vector<16x8xf32> -> vector<16x32xf32>
    %cst_113 = arith.constant dense<0.000000e+00> : vector<16x32xf32>
    %303 = tpu.matmul %302, %245, %cst_113 {dimension_numbers = #tpu.dot_dimension_numbers<[1], [0], [0], [1], [0, 0, 1, 1], [], []>} : vector<16x32xf32>, vector<32x32xf32>, vector<16x32xf32> -> vector<16x32xf32>
    %304 = vector.broadcast %246 : vector<1x32xf32> to vector<16x32xf32>
    %305 = arith.addf %303, %304 : vector<16x32xf32>
    %c0_114 = arith.constant 0 : index
    %c0_115 = arith.constant 0 : index
    %306 = vector.load %arg36[%c0_114, %c0_115] : memref<1x32xf32, #tpu.memory_space<vmem>>, vector<1x32xf32>
    %c0_116 = arith.constant 0 : index
    %c0_117 = arith.constant 0 : index
    %307 = vector.load %arg37[%c0_116, %c0_117] : memref<1x32xf32, #tpu.memory_space<vmem>>, vector<1x32xf32>
    %308 = arith.addf %240, %305 : vector<16x32xf32>
    %cst_118 = arith.constant dense<0.000000e+00> : vector<16xf32>
    %309 = vector.multi_reduction <add>, %308, %cst_118 [1] : vector<16x32xf32> to vector<16xf32>
    %310 = vector.shape_cast %309 : vector<16xf32> to vector<16x1xf32>
    %cst_119 = arith.constant 3.200000e+01 : f32
    %311 = vector.broadcast %cst_119 : f32 to vector<16x1xf32>
    %312 = arith.divf %310, %311 : vector<16x1xf32>
    %313 = vector.broadcast %312 : vector<16x1xf32> to vector<16x32xf32>
    %314 = arith.subf %308, %313 : vector<16x32xf32>
    %315 = arith.mulf %314, %314 : vector<16x32xf32>
    %cst_120 = arith.constant dense<0.000000e+00> : vector<16xf32>
    %316 = vector.multi_reduction <add>, %315, %cst_120 [1] : vector<16x32xf32> to vector<16xf32>
    %317 = vector.shape_cast %316 : vector<16xf32> to vector<16x1xf32>
    %cst_121 = arith.constant 3.200000e+01 : f32
    %318 = vector.broadcast %cst_121 : f32 to vector<16x1xf32>
    %319 = arith.divf %317, %318 : vector<16x1xf32>
    %320 = vector.broadcast %312 : vector<16x1xf32> to vector<16x32xf32>
    %321 = arith.subf %308, %320 : vector<16x32xf32>
    %cst_122 = arith.constant 9.99999974E-6 : f32
    %322 = vector.broadcast %cst_122 : f32 to vector<16x1xf32>
    %323 = arith.addf %319, %322 : vector<16x1xf32>
    %324 = math.rsqrt %323 : vector<16x1xf32>
    %325 = vector.broadcast %324 : vector<16x1xf32> to vector<16x32xf32>
    %326 = arith.mulf %321, %325 : vector<16x32xf32>
    %327 = vector.broadcast %306 : vector<1x32xf32> to vector<16x32xf32>
    %328 = arith.mulf %326, %327 : vector<16x32xf32>
    %329 = vector.broadcast %307 : vector<1x32xf32> to vector<16x32xf32>
    %330 = arith.addf %328, %329 : vector<16x32xf32>
    %c0_123 = arith.constant 0 : index
    %c0_124 = arith.constant 0 : index
    %331 = vector.load %arg38[%c0_123, %c0_124] : memref<32x32xf32, #tpu.memory_space<vmem>>, vector<32x32xf32>
    %c0_125 = arith.constant 0 : index
    %c0_126 = arith.constant 0 : index
    %332 = vector.load %arg39[%c0_125, %c0_126] : memref<1x32xf32, #tpu.memory_space<vmem>>, vector<1x32xf32>
    %c0_127 = arith.constant 0 : index
    %c0_128 = arith.constant 0 : index
    %333 = vector.load %arg40[%c0_127, %c0_128] : memref<32x64xf32, #tpu.memory_space<vmem>>, vector<32x64xf32>
    %c0_129 = arith.constant 0 : index
    %c0_130 = arith.constant 0 : index
    %334 = vector.load %arg41[%c0_129, %c0_130] : memref<1x64xf32, #tpu.memory_space<vmem>>, vector<1x64xf32>
    %c0_131 = arith.constant 0 : index
    %c0_132 = arith.constant 0 : index
    %335 = vector.load %arg42[%c0_131, %c0_132] : memref<32x32xf32, #tpu.memory_space<vmem>>, vector<32x32xf32>
    %c0_133 = arith.constant 0 : index
    %c0_134 = arith.constant 0 : index
    %336 = vector.load %arg43[%c0_133, %c0_134] : memref<1x32xf32, #tpu.memory_space<vmem>>, vector<1x32xf32>
    %cst_135 = arith.constant dense<0.000000e+00> : vector<16x32xf32>
    %337 = tpu.matmul %330, %331, %cst_135 {dimension_numbers = #tpu.dot_dimension_numbers<[1], [0], [0], [1], [0, 0, 1, 1], [], []>} : vector<16x32xf32>, vector<32x32xf32>, vector<16x32xf32> -> vector<16x32xf32>
    %338 = vector.broadcast %332 : vector<1x32xf32> to vector<16x32xf32>
    %339 = arith.addf %337, %338 : vector<16x32xf32>
    %cst_136 = arith.constant dense<0.000000e+00> : vector<8x64xf32>
    %340 = tpu.matmul %6, %333, %cst_136 {dimension_numbers = #tpu.dot_dimension_numbers<[1], [0], [0], [1], [0, 0, 1, 1], [], []>} : vector<8x32xf32>, vector<32x64xf32>, vector<8x64xf32> -> vector<8x64xf32>
    %341 = vector.broadcast %334 : vector<1x64xf32> to vector<8x64xf32>
    %342 = arith.addf %340, %341 : vector<8x64xf32>
    %343 = vector.extract_strided_slice %342 {offsets = [0, 0], sizes = [8, 32], strides = [1, 1]} : vector<8x64xf32> to vector<8x32xf32>
    %344 = vector.extract_strided_slice %342 {offsets = [0, 32], sizes = [8, 32], strides = [1, 1]} : vector<8x64xf32> to vector<8x32xf32>
    %345 = vector.extract_strided_slice %339 {offsets = [0, 0], sizes = [16, 8], strides = [1, 1]} : vector<16x32xf32> to vector<16x8xf32>
    %346 = vector.extract_strided_slice %339 {offsets = [0, 8], sizes = [16, 8], strides = [1, 1]} : vector<16x32xf32> to vector<16x8xf32>
    %347 = vector.extract_strided_slice %339 {offsets = [0, 16], sizes = [16, 8], strides = [1, 1]} : vector<16x32xf32> to vector<16x8xf32>
    %348 = vector.extract_strided_slice %339 {offsets = [0, 24], sizes = [16, 8], strides = [1, 1]} : vector<16x32xf32> to vector<16x8xf32>
    %349 = vector.shape_cast %345 : vector<16x8xf32> to vector<1x16x8xf32>
    %350 = vector.shape_cast %346 : vector<16x8xf32> to vector<1x16x8xf32>
    %351 = vector.shape_cast %347 : vector<16x8xf32> to vector<1x16x8xf32>
    %352 = vector.shape_cast %348 : vector<16x8xf32> to vector<1x16x8xf32>
    %353 = tpu.concatenate %349, %350, %351, %352 in 0 : vector<1x16x8xf32>, vector<1x16x8xf32>, vector<1x16x8xf32>, vector<1x16x8xf32> -> vector<4x16x8xf32>
    %354 = vector.extract_strided_slice %343 {offsets = [0, 0], sizes = [8, 8], strides = [1, 1]} : vector<8x32xf32> to vector<8x8xf32>
    %355 = vector.extract_strided_slice %343 {offsets = [0, 8], sizes = [8, 8], strides = [1, 1]} : vector<8x32xf32> to vector<8x8xf32>
    %356 = vector.extract_strided_slice %343 {offsets = [0, 16], sizes = [8, 8], strides = [1, 1]} : vector<8x32xf32> to vector<8x8xf32>
    %357 = vector.extract_strided_slice %343 {offsets = [0, 24], sizes = [8, 8], strides = [1, 1]} : vector<8x32xf32> to vector<8x8xf32>
    %358 = vector.shape_cast %354 : vector<8x8xf32> to vector<1x8x8xf32>
    %359 = vector.shape_cast %355 : vector<8x8xf32> to vector<1x8x8xf32>
    %360 = vector.shape_cast %356 : vector<8x8xf32> to vector<1x8x8xf32>
    %361 = vector.shape_cast %357 : vector<8x8xf32> to vector<1x8x8xf32>
    %362 = tpu.concatenate %358, %359, %360, %361 in 0 : vector<1x8x8xf32>, vector<1x8x8xf32>, vector<1x8x8xf32>, vector<1x8x8xf32> -> vector<4x8x8xf32>
    %363 = vector.extract_strided_slice %344 {offsets = [0, 0], sizes = [8, 8], strides = [1, 1]} : vector<8x32xf32> to vector<8x8xf32>
    %364 = vector.extract_strided_slice %344 {offsets = [0, 8], sizes = [8, 8], strides = [1, 1]} : vector<8x32xf32> to vector<8x8xf32>
    %365 = vector.extract_strided_slice %344 {offsets = [0, 16], sizes = [8, 8], strides = [1, 1]} : vector<8x32xf32> to vector<8x8xf32>
    %366 = vector.extract_strided_slice %344 {offsets = [0, 24], sizes = [8, 8], strides = [1, 1]} : vector<8x32xf32> to vector<8x8xf32>
    %367 = vector.shape_cast %363 : vector<8x8xf32> to vector<1x8x8xf32>
    %368 = vector.shape_cast %364 : vector<8x8xf32> to vector<1x8x8xf32>
    %369 = vector.shape_cast %365 : vector<8x8xf32> to vector<1x8x8xf32>
    %370 = vector.shape_cast %366 : vector<8x8xf32> to vector<1x8x8xf32>
    %371 = tpu.concatenate %367, %368, %369, %370 in 0 : vector<1x8x8xf32>, vector<1x8x8xf32>, vector<1x8x8xf32>, vector<1x8x8xf32> -> vector<4x8x8xf32>
    "tpu.trace_start"() <{level = 10 : i32, message = "hqd,hkd->hqk"}> : () -> ()
    %cst_137 = arith.constant dense<0.000000e+00> : vector<4x16x8xf32>
    %372 = tpu.matmul %353, %362, %cst_137 {dimension_numbers = #tpu.dot_dimension_numbers<[2], [2], [1], [1], [0, 0, 0, 1, 1, 1], [0], [0]>} : vector<4x16x8xf32>, vector<4x8x8xf32>, vector<4x16x8xf32> -> vector<4x16x8xf32>
    "tpu.trace_stop"() : () -> ()
    %373 = vector.shape_cast %16 : vector<1x8xf32> to vector<1x1x8xf32>
    %cst_138 = arith.constant 0.000000e+00 : f32
    %374 = vector.broadcast %cst_138 : f32 to vector<1x1x8xf32>
    %375 = arith.cmpf oeq, %373, %374 : vector<1x1x8xf32>
    %cst_139 = arith.constant -1.000000e+10 : f32
    %376 = vector.shape_cast %375 : vector<1x1x8xi1> to vector<1x1x8xi1>
    %377 = vector.broadcast %376 : vector<1x1x8xi1> to vector<4x16x8xi1>
    %378 = vector.broadcast %cst_139 : f32 to vector<4x16x8xf32>
    %379 = arith.select %377, %378, %372 : vector<4x16x8xi1>, vector<4x16x8xf32>
    %cst_140 = arith.constant dense<0xFF800000> : vector<4x16xf32>
    %380 = vector.multi_reduction <maximumf>, %379, %cst_140 [2] : vector<4x16x8xf32> to vector<4x16xf32>
    %381 = vector.shape_cast %380 : vector<4x16xf32> to vector<4x16x1xf32>
    %382 = vector.broadcast %381 : vector<4x16x1xf32> to vector<4x16x8xf32>
    %383 = arith.subf %379, %382 : vector<4x16x8xf32>
    %384 = math.exp %383 : vector<4x16x8xf32>
    %cst_141 = arith.constant dense<0.000000e+00> : vector<4x16xf32>
    %385 = vector.multi_reduction <add>, %384, %cst_141 [2] : vector<4x16x8xf32> to vector<4x16xf32>
    %386 = vector.shape_cast %385 : vector<4x16xf32> to vector<4x16x1xf32>
    %387 = tpu.reciprocal %386 {approx = true} : vector<4x16x1xf32> -> vector<4x16x1xf32>
    %388 = vector.broadcast %387 : vector<4x16x1xf32> to vector<4x16x8xf32>
    %389 = arith.mulf %384, %388 : vector<4x16x8xf32>
    "tpu.trace_start"() <{level = 10 : i32, message = "hqk,hkd->hqd"}> : () -> ()
    %cst_142 = arith.constant dense<0.000000e+00> : vector<4x16x8xf32>
    %390 = tpu.matmul %389, %371, %cst_142 {dimension_numbers = #tpu.dot_dimension_numbers<[2], [1], [1], [2], [0, 0, 0, 1, 1, 2], [0], [0]>} : vector<4x16x8xf32>, vector<4x8x8xf32>, vector<4x16x8xf32> -> vector<4x16x8xf32>
    "tpu.trace_stop"() : () -> ()
    %391 = vector.extract_strided_slice %390 {offsets = [0, 0, 0], sizes = [1, 16, 8], strides = [1, 1, 1]} : vector<4x16x8xf32> to vector<1x16x8xf32>
    %392 = vector.shape_cast %391 : vector<1x16x8xf32> to vector<16x8xf32>
    %393 = vector.extract_strided_slice %390 {offsets = [1, 0, 0], sizes = [1, 16, 8], strides = [1, 1, 1]} : vector<4x16x8xf32> to vector<1x16x8xf32>
    %394 = vector.shape_cast %393 : vector<1x16x8xf32> to vector<16x8xf32>
    %395 = vector.extract_strided_slice %390 {offsets = [2, 0, 0], sizes = [1, 16, 8], strides = [1, 1, 1]} : vector<4x16x8xf32> to vector<1x16x8xf32>
    %396 = vector.shape_cast %395 : vector<1x16x8xf32> to vector<16x8xf32>
    %397 = vector.extract_strided_slice %390 {offsets = [3, 0, 0], sizes = [1, 16, 8], strides = [1, 1, 1]} : vector<4x16x8xf32> to vector<1x16x8xf32>
    %398 = vector.shape_cast %397 : vector<1x16x8xf32> to vector<16x8xf32>
    %399 = tpu.concatenate %392, %394, %396, %398 in 1 : vector<16x8xf32>, vector<16x8xf32>, vector<16x8xf32>, vector<16x8xf32> -> vector<16x32xf32>
    %cst_143 = arith.constant dense<0.000000e+00> : vector<16x32xf32>
    %400 = tpu.matmul %399, %335, %cst_143 {dimension_numbers = #tpu.dot_dimension_numbers<[1], [0], [0], [1], [0, 0, 1, 1], [], []>} : vector<16x32xf32>, vector<32x32xf32>, vector<16x32xf32> -> vector<16x32xf32>
    %401 = vector.broadcast %336 : vector<1x32xf32> to vector<16x32xf32>
    %402 = arith.addf %400, %401 : vector<16x32xf32>
    %c0_144 = arith.constant 0 : index
    %c0_145 = arith.constant 0 : index
    %403 = vector.load %arg44[%c0_144, %c0_145] : memref<1x32xf32, #tpu.memory_space<vmem>>, vector<1x32xf32>
    %c0_146 = arith.constant 0 : index
    %c0_147 = arith.constant 0 : index
    %404 = vector.load %arg45[%c0_146, %c0_147] : memref<1x32xf32, #tpu.memory_space<vmem>>, vector<1x32xf32>
    %405 = arith.addf %330, %402 : vector<16x32xf32>
    %cst_148 = arith.constant dense<0.000000e+00> : vector<16xf32>
    %406 = vector.multi_reduction <add>, %405, %cst_148 [1] : vector<16x32xf32> to vector<16xf32>
    %407 = vector.shape_cast %406 : vector<16xf32> to vector<16x1xf32>
    %cst_149 = arith.constant 3.200000e+01 : f32
    %408 = vector.broadcast %cst_149 : f32 to vector<16x1xf32>
    %409 = arith.divf %407, %408 : vector<16x1xf32>
    %410 = vector.broadcast %409 : vector<16x1xf32> to vector<16x32xf32>
    %411 = arith.subf %405, %410 : vector<16x32xf32>
    %412 = arith.mulf %411, %411 : vector<16x32xf32>
    %cst_150 = arith.constant dense<0.000000e+00> : vector<16xf32>
    %413 = vector.multi_reduction <add>, %412, %cst_150 [1] : vector<16x32xf32> to vector<16xf32>
    %414 = vector.shape_cast %413 : vector<16xf32> to vector<16x1xf32>
    %cst_151 = arith.constant 3.200000e+01 : f32
    %415 = vector.broadcast %cst_151 : f32 to vector<16x1xf32>
    %416 = arith.divf %414, %415 : vector<16x1xf32>
    %417 = vector.broadcast %409 : vector<16x1xf32> to vector<16x32xf32>
    %418 = arith.subf %405, %417 : vector<16x32xf32>
    %cst_152 = arith.constant 9.99999974E-6 : f32
    %419 = vector.broadcast %cst_152 : f32 to vector<16x1xf32>
    %420 = arith.addf %416, %419 : vector<16x1xf32>
    %421 = math.rsqrt %420 : vector<16x1xf32>
    %422 = vector.broadcast %421 : vector<16x1xf32> to vector<16x32xf32>
    %423 = arith.mulf %418, %422 : vector<16x32xf32>
    %424 = vector.broadcast %403 : vector<1x32xf32> to vector<16x32xf32>
    %425 = arith.mulf %423, %424 : vector<16x32xf32>
    %426 = vector.broadcast %404 : vector<1x32xf32> to vector<16x32xf32>
    %427 = arith.addf %425, %426 : vector<16x32xf32>
    %c0_153 = arith.constant 0 : index
    %c0_154 = arith.constant 0 : index
    %428 = vector.load %arg46[%c0_153, %c0_154] : memref<32x512xf32, #tpu.memory_space<vmem>>, vector<32x512xf32>
    %cst_155 = arith.constant dense<0.000000e+00> : vector<16x512xf32>
    %429 = tpu.matmul %427, %428, %cst_155 {dimension_numbers = #tpu.dot_dimension_numbers<[1], [0], [0], [1], [0, 0, 1, 1], [], []>} : vector<16x32xf32>, vector<32x512xf32>, vector<16x512xf32> -> vector<16x512xf32>
    %c0_156 = arith.constant 0 : index
    %c0_157 = arith.constant 0 : index
    %430 = vector.load %arg47[%c0_156, %c0_157] : memref<1x512xf32, #tpu.memory_space<vmem>>, vector<1x512xf32>
    %431 = vector.broadcast %430 : vector<1x512xf32> to vector<16x512xf32>
    %432 = arith.addf %429, %431 : vector<16x512xf32>
    %cst_158 = arith.constant 0.000000e+00 : f32
    %433 = vector.broadcast %cst_158 : f32 to vector<16x512xf32>
    %434 = arith.maximumf %432, %433 : vector<16x512xf32>
    %c0_159 = arith.constant 0 : index
    %c0_160 = arith.constant 0 : index
    %435 = vector.load %arg48[%c0_159, %c0_160] : memref<512x32xf32, #tpu.memory_space<vmem>>, vector<512x32xf32>
    %cst_161 = arith.constant dense<0.000000e+00> : vector<16x32xf32>
    %436 = tpu.matmul %434, %435, %cst_161 {dimension_numbers = #tpu.dot_dimension_numbers<[1], [0], [0], [1], [0, 0, 1, 1], [], []>} : vector<16x512xf32>, vector<512x32xf32>, vector<16x32xf32> -> vector<16x32xf32>
    %c0_162 = arith.constant 0 : index
    %c0_163 = arith.constant 0 : index
    %437 = vector.load %arg49[%c0_162, %c0_163] : memref<1x32xf32, #tpu.memory_space<vmem>>, vector<1x32xf32>
    %438 = vector.broadcast %437 : vector<1x32xf32> to vector<16x32xf32>
    %439 = arith.addf %436, %438 : vector<16x32xf32>
    %c0_164 = arith.constant 0 : index
    %c0_165 = arith.constant 0 : index
    %440 = vector.load %arg50[%c0_164, %c0_165] : memref<1x32xf32, #tpu.memory_space<vmem>>, vector<1x32xf32>
    %c0_166 = arith.constant 0 : index
    %c0_167 = arith.constant 0 : index
    %441 = vector.load %arg51[%c0_166, %c0_167] : memref<1x32xf32, #tpu.memory_space<vmem>>, vector<1x32xf32>
    %442 = arith.addf %427, %439 : vector<16x32xf32>
    %cst_168 = arith.constant dense<0.000000e+00> : vector<16xf32>
    %443 = vector.multi_reduction <add>, %442, %cst_168 [1] : vector<16x32xf32> to vector<16xf32>
    %444 = vector.shape_cast %443 : vector<16xf32> to vector<16x1xf32>
    %cst_169 = arith.constant 3.200000e+01 : f32
    %445 = vector.broadcast %cst_169 : f32 to vector<16x1xf32>
    %446 = arith.divf %444, %445 : vector<16x1xf32>
    %447 = vector.broadcast %446 : vector<16x1xf32> to vector<16x32xf32>
    %448 = arith.subf %442, %447 : vector<16x32xf32>
    %449 = arith.mulf %448, %448 : vector<16x32xf32>
    %cst_170 = arith.constant dense<0.000000e+00> : vector<16xf32>
    %450 = vector.multi_reduction <add>, %449, %cst_170 [1] : vector<16x32xf32> to vector<16xf32>
    %451 = vector.shape_cast %450 : vector<16xf32> to vector<16x1xf32>
    %cst_171 = arith.constant 3.200000e+01 : f32
    %452 = vector.broadcast %cst_171 : f32 to vector<16x1xf32>
    %453 = arith.divf %451, %452 : vector<16x1xf32>
    %454 = vector.broadcast %446 : vector<16x1xf32> to vector<16x32xf32>
    %455 = arith.subf %442, %454 : vector<16x32xf32>
    %cst_172 = arith.constant 9.99999974E-6 : f32
    %456 = vector.broadcast %cst_172 : f32 to vector<16x1xf32>
    %457 = arith.addf %453, %456 : vector<16x1xf32>
    %458 = math.rsqrt %457 : vector<16x1xf32>
    %459 = vector.broadcast %458 : vector<16x1xf32> to vector<16x32xf32>
    %460 = arith.mulf %455, %459 : vector<16x32xf32>
    %461 = vector.broadcast %440 : vector<1x32xf32> to vector<16x32xf32>
    %462 = arith.mulf %460, %461 : vector<16x32xf32>
    %463 = vector.broadcast %441 : vector<1x32xf32> to vector<16x32xf32>
    %464 = arith.addf %462, %463 : vector<16x32xf32>
    %465 = vector.shape_cast %8 : vector<1x32xf32> to vector<1x32xf32>
    %466 = vector.broadcast %465 : vector<1x32xf32> to vector<16x32xf32>
    %467 = tpu.concatenate %464, %466 in 1 : vector<16x32xf32>, vector<16x32xf32> -> vector<16x64xf32>
    %cst_173 = arith.constant 0.000000e+00 : f32
    %468 = vector.broadcast %cst_173 : f32 to vector<16x64xf32>
    %469 = arith.maximumf %467, %468 : vector<16x64xf32>
    %c0_174 = arith.constant 0 : index
    %c0_175 = arith.constant 0 : index
    %470 = vector.load %arg52[%c0_174, %c0_175] : memref<64x32xf32, #tpu.memory_space<vmem>>, vector<64x32xf32>
    %cst_176 = arith.constant dense<0.000000e+00> : vector<16x32xf32>
    %471 = tpu.matmul %469, %470, %cst_176 {dimension_numbers = #tpu.dot_dimension_numbers<[1], [0], [0], [1], [0, 0, 1, 1], [], []>} : vector<16x64xf32>, vector<64x32xf32>, vector<16x32xf32> -> vector<16x32xf32>
    %c0_177 = arith.constant 0 : index
    %c0_178 = arith.constant 0 : index
    %472 = vector.load %arg53[%c0_177, %c0_178] : memref<1x32xf32, #tpu.memory_space<vmem>>, vector<1x32xf32>
    %473 = vector.broadcast %472 : vector<1x32xf32> to vector<16x32xf32>
    %474 = arith.addf %471, %473 : vector<16x32xf32>
    %cst_179 = arith.constant 0.000000e+00 : f32
    %475 = vector.broadcast %cst_179 : f32 to vector<16x32xf32>
    %476 = arith.maximumf %474, %475 : vector<16x32xf32>
    %c0_180 = arith.constant 0 : index
    %c0_181 = arith.constant 0 : index
    %477 = vector.load %arg54[%c0_180, %c0_181] : memref<1x32xf32, #tpu.memory_space<vmem>>, vector<1x32xf32>
    %cst_182 = arith.constant dense<0.000000e+00> : vector<1x16xf32>
    %478 = tpu.matmul %477, %476, %cst_182 {dimension_numbers = #tpu.dot_dimension_numbers<[1], [1], [0], [0], [0, 0, 1, 0], [], []>} : vector<1x32xf32>, vector<16x32xf32>, vector<1x16xf32> -> vector<1x16xf32>
    %c0_183 = arith.constant 0 : index
    %c0_184 = arith.constant 0 : index
    %479 = vector.load %arg55[%c0_183, %c0_184] : memref<1x1xf32, #tpu.memory_space<vmem>>, vector<1x1xf32>
    %480 = vector.broadcast %479 : vector<1x1xf32> to vector<1x16xf32>
    %481 = arith.addf %478, %480 : vector<1x16xf32>
    %c0_185 = arith.constant 0 : index
    %c0_186 = arith.constant 0 : index
    %c0_187 = arith.constant 0 : index
    %482 = vector.load %arg56[%c0_185, %c0_186, %c0_187] : memref<1x1x16xf32, #tpu.memory_space<vmem>>, vector<1x1x16xf32>
    %483 = vector.shape_cast %482 : vector<1x1x16xf32> to vector<1x16xf32>
    %484 = vector.shape_cast %481 : vector<1x16xf32> to vector<1x1x16xf32>
    tpu.vector_store %arg56[%c0_185, %c0_186, %c0_187], %484 {strides = array<i32>} : memref<1x1x16xf32, #tpu.memory_space<vmem>>, vector<1x1x16xf32>,
    return
  }
  func.func @transform_0(%arg0: i32) -> (i32, i32, i32) {
    %c0_i32 = arith.constant 0 : i32
    %c0_i32_0 = arith.constant 0 : i32
    %c0_i32_1 = arith.constant 0 : i32
    return %arg0, %c0_i32, %c0_i32_0 : i32, i32, i32
  }
  func.func @transform_1(%arg0: i32) -> (i32, i32) {
    %c0_i32 = arith.constant 0 : i32
    %c0_i32_0 = arith.constant 0 : i32
    %c0_i32_1 = arith.constant 0 : i32
    return %c0_i32, %c0_i32_0 : i32, i32
  }
  func.func @transform_2(%arg0: i32) -> (i32, i32, i32) {
    %c0_i32 = arith.constant 0 : i32
    %c0_i32_0 = arith.constant 0 : i32
    %c0_i32_1 = arith.constant 0 : i32
    return %arg0, %c0_i32, %c0_i32_0 : i32, i32, i32
  }
  func.func @transform_3(%arg0: i32) -> (i32, i32) {
    %c0_i32 = arith.constant 0 : i32
    %c0_i32_0 = arith.constant 0 : i32
    %c0_i32_1 = arith.constant 0 : i32
    return %c0_i32, %c0_i32_0 : i32, i32
  }
  func.func @transform_4(%arg0: i32) -> (i32, i32) {
    %c0_i32 = arith.constant 0 : i32
    %c0_i32_0 = arith.constant 0 : i32
    %c0_i32_1 = arith.constant 0 : i32
    return %c0_i32, %c0_i32_0 : i32, i32
  }
  func.func @transform_5(%arg0: i32) -> (i32, i32) {
    %c0_i32 = arith.constant 0 : i32
    %c0_i32_0 = arith.constant 0 : i32
    %c0_i32_1 = arith.constant 0 : i32
    return %c0_i32, %c0_i32_0 : i32, i32
  }
  func.func @transform_6(%arg0: i32) -> (i32, i32) {
    %c0_i32 = arith.constant 0 : i32
    %c0_i32_0 = arith.constant 0 : i32
    %c0_i32_1 = arith.constant 0 : i32
    return %c0_i32, %c0_i32_0 : i32, i32
  }
  func.func @transform_7(%arg0: i32) -> (i32, i32) {
    %c0_i32 = arith.constant 0 : i32
    %c0_i32_0 = arith.constant 0 : i32
    %c0_i32_1 = arith.constant 0 : i32
    return %c0_i32, %c0_i32_0 : i32, i32
  }
  func.func @transform_8(%arg0: i32) -> (i32, i32) {
    %c0_i32 = arith.constant 0 : i32
    %c0_i32_0 = arith.constant 0 : i32
    %c0_i32_1 = arith.constant 0 : i32
    return %c0_i32, %c0_i32_0 : i32, i32
  }
  func.func @transform_9(%arg0: i32) -> (i32, i32) {
    %c0_i32 = arith.constant 0 : i32
    %c0_i32_0 = arith.constant 0 : i32
    %c0_i32_1 = arith.constant 0 : i32
    return %c0_i32, %c0_i32_0 : i32, i32
  }
  func.func @transform_10(%arg0: i32) -> (i32, i32) {
    %c0_i32 = arith.constant 0 : i32
    %c0_i32_0 = arith.constant 0 : i32
    %c0_i32_1 = arith.constant 0 : i32
    return %c0_i32, %c0_i32_0 : i32, i32
  }
  func.func @transform_11(%arg0: i32) -> (i32, i32) {
    %c0_i32 = arith.constant 0 : i32
    %c0_i32_0 = arith.constant 0 : i32
    %c0_i32_1 = arith.constant 0 : i32
    return %c0_i32, %c0_i32_0 : i32, i32
  }
  func.func @transform_12(%arg0: i32) -> (i32, i32) {
    %c0_i32 = arith.constant 0 : i32
    %c0_i32_0 = arith.constant 0 : i32
    %c0_i32_1 = arith.constant 0 : i32
    return %c0_i32, %c0_i32_0 : i32, i32
  }
  func.func @transform_13(%arg0: i32) -> (i32, i32) {
    %c0_i32 = arith.constant 0 : i32
    %c0_i32_0 = arith.constant 0 : i32
    %c0_i32_1 = arith.constant 0 : i32
    return %c0_i32, %c0_i32_0 : i32, i32
  }
  func.func @transform_14(%arg0: i32) -> (i32, i32) {
    %c0_i32 = arith.constant 0 : i32
    %c0_i32_0 = arith.constant 0 : i32
    %c0_i32_1 = arith.constant 0 : i32
    return %c0_i32, %c0_i32_0 : i32, i32
  }
  func.func @transform_15(%arg0: i32) -> (i32, i32) {
    %c0_i32 = arith.constant 0 : i32
    %c0_i32_0 = arith.constant 0 : i32
    %c0_i32_1 = arith.constant 0 : i32
    return %c0_i32, %c0_i32_0 : i32, i32
  }
  func.func @transform_16(%arg0: i32) -> (i32, i32) {
    %c0_i32 = arith.constant 0 : i32
    %c0_i32_0 = arith.constant 0 : i32
    %c0_i32_1 = arith.constant 0 : i32
    return %c0_i32, %c0_i32_0 : i32, i32
  }
  func.func @transform_17(%arg0: i32) -> (i32, i32) {
    %c0_i32 = arith.constant 0 : i32
    %c0_i32_0 = arith.constant 0 : i32
    %c0_i32_1 = arith.constant 0 : i32
    return %c0_i32, %c0_i32_0 : i32, i32
  }
  func.func @transform_18(%arg0: i32) -> (i32, i32) {
    %c0_i32 = arith.constant 0 : i32
    %c0_i32_0 = arith.constant 0 : i32
    %c0_i32_1 = arith.constant 0 : i32
    return %c0_i32, %c0_i32_0 : i32, i32
  }
  func.func @transform_19(%arg0: i32) -> (i32, i32) {
    %c0_i32 = arith.constant 0 : i32
    %c0_i32_0 = arith.constant 0 : i32
    %c0_i32_1 = arith.constant 0 : i32
    return %c0_i32, %c0_i32_0 : i32, i32
  }
  func.func @transform_20(%arg0: i32) -> (i32, i32) {
    %c0_i32 = arith.constant 0 : i32
    %c0_i32_0 = arith.constant 0 : i32
    %c0_i32_1 = arith.constant 0 : i32
    return %c0_i32, %c0_i32_0 : i32, i32
  }
  func.func @transform_21(%arg0: i32) -> (i32, i32) {
    %c0_i32 = arith.constant 0 : i32
    %c0_i32_0 = arith.constant 0 : i32
    %c0_i32_1 = arith.constant 0 : i32
    return %c0_i32, %c0_i32_0 : i32, i32
  }
  func.func @transform_22(%arg0: i32) -> (i32, i32) {
    %c0_i32 = arith.constant 0 : i32
    %c0_i32_0 = arith.constant 0 : i32
    %c0_i32_1 = arith.constant 0 : i32
    return %c0_i32, %c0_i32_0 : i32, i32
  }
  func.func @transform_23(%arg0: i32) -> (i32, i32) {
    %c0_i32 = arith.constant 0 : i32
    %c0_i32_0 = arith.constant 0 : i32
    %c0_i32_1 = arith.constant 0 : i32
    return %c0_i32, %c0_i32_0 : i32, i32
  }
  func.func @transform_24(%arg0: i32) -> (i32, i32) {
    %c0_i32 = arith.constant 0 : i32
    %c0_i32_0 = arith.constant 0 : i32
    %c0_i32_1 = arith.constant 0 : i32
    return %c0_i32, %c0_i32_0 : i32, i32
  }
  func.func @transform_25(%arg0: i32) -> (i32, i32) {
    %c0_i32 = arith.constant 0 : i32
    %c0_i32_0 = arith.constant 0 : i32
    %c0_i32_1 = arith.constant 0 : i32
    return %c0_i32, %c0_i32_0 : i32, i32
  }
  func.func @transform_26(%arg0: i32) -> (i32, i32) {
    %c0_i32 = arith.constant 0 : i32
    %c0_i32_0 = arith.constant 0 : i32
    %c0_i32_1 = arith.constant 0 : i32
    return %c0_i32, %c0_i32_0 : i32, i32
  }
  func.func @transform_27(%arg0: i32) -> (i32, i32) {
    %c0_i32 = arith.constant 0 : i32
    %c0_i32_0 = arith.constant 0 : i32
    %c0_i32_1 = arith.constant 0 : i32
    return %c0_i32, %c0_i32_0 : i32, i32
  }
  func.func @transform_28(%arg0: i32) -> (i32, i32) {
    %c0_i32 = arith.constant 0 : i32
    %c0_i32_0 = arith.constant 0 : i32
    %c0_i32_1 = arith.constant 0 : i32
    return %c0_i32, %c0_i32_0 : i32, i32
  }
  func.func @transform_29(%arg0: i32) -> (i32, i32) {
    %c0_i32 = arith.constant 0 : i32
    %c0_i32_0 = arith.constant 0 : i32
    %c0_i32_1 = arith.constant 0 : i32
    return %c0_i32, %c0_i32_0 : i32, i32
  }
  func.func @transform_30(%arg0: i32) -> (i32, i32) {
    %c0_i32 = arith.constant 0 : i32
    %c0_i32_0 = arith.constant 0 : i32
    %c0_i32_1 = arith.constant 0 : i32
    return %c0_i32, %c0_i32_0 : i32, i32
  }
  func.func @transform_31(%arg0: i32) -> (i32, i32) {
    %c0_i32 = arith.constant 0 : i32
    %c0_i32_0 = arith.constant 0 : i32
    %c0_i32_1 = arith.constant 0 : i32
    return %c0_i32, %c0_i32_0 : i32, i32
  }
  func.func @transform_32(%arg0: i32) -> (i32, i32) {
    %c0_i32 = arith.constant 0 : i32
    %c0_i32_0 = arith.constant 0 : i32
    %c0_i32_1 = arith.constant 0 : i32
    return %c0_i32, %c0_i32_0 : i32, i32
  }
  func.func @transform_33(%arg0: i32) -> (i32, i32) {
    %c0_i32 = arith.constant 0 : i32
    %c0_i32_0 = arith.constant 0 : i32
    %c0_i32_1 = arith.constant 0 : i32
    return %c0_i32, %c0_i32_0 : i32, i32
  }
  func.func @transform_34(%arg0: i32) -> (i32, i32) {
    %c0_i32 = arith.constant 0 : i32
    %c0_i32_0 = arith.constant 0 : i32
    %c0_i32_1 = arith.constant 0 : i32
    return %c0_i32, %c0_i32_0 : i32, i32
  }
  func.func @transform_35(%arg0: i32) -> (i32, i32) {
    %c0_i32 = arith.constant 0 : i32
    %c0_i32_0 = arith.constant 0 : i32
    %c0_i32_1 = arith.constant 0 : i32
    return %c0_i32, %c0_i32_0 : i32, i32
  }
  func.func @transform_36(%arg0: i32) -> (i32, i32) {
    %c0_i32 = arith.constant 0 : i32
    %c0_i32_0 = arith.constant 0 : i32
    %c0_i32_1 = arith.constant 0 : i32
    return %c0_i32, %c0_i32_0 : i32, i32
  }
  func.func @transform_37(%arg0: i32) -> (i32, i32) {
    %c0_i32 = arith.constant 0 : i32
    %c0_i32_0 = arith.constant 0 : i32
    %c0_i32_1 = arith.constant 0 : i32
    return %c0_i32, %c0_i32_0 : i32, i32
  }
  func.func @transform_38(%arg0: i32) -> (i32, i32) {
    %c0_i32 = arith.constant 0 : i32
    %c0_i32_0 = arith.constant 0 : i32
    %c0_i32_1 = arith.constant 0 : i32
    return %c0_i32, %c0_i32_0 : i32, i32
  }
  func.func @transform_39(%arg0: i32) -> (i32, i32) {
    %c0_i32 = arith.constant 0 : i32
    %c0_i32_0 = arith.constant 0 : i32
    %c0_i32_1 = arith.constant 0 : i32
    return %c0_i32, %c0_i32_0 : i32, i32
  }
  func.func @transform_40(%arg0: i32) -> (i32, i32) {
    %c0_i32 = arith.constant 0 : i32
    %c0_i32_0 = arith.constant 0 : i32
    %c0_i32_1 = arith.constant 0 : i32
    return %c0_i32, %c0_i32_0 : i32, i32
  }
  func.func @transform_41(%arg0: i32) -> (i32, i32) {
    %c0_i32 = arith.constant 0 : i32
    %c0_i32_0 = arith.constant 0 : i32
    %c0_i32_1 = arith.constant 0 : i32
    return %c0_i32, %c0_i32_0 : i32, i32
  }
  func.func @transform_42(%arg0: i32) -> (i32, i32) {
    %c0_i32 = arith.constant 0 : i32
    %c0_i32_0 = arith.constant 0 : i32
    %c0_i32_1 = arith.constant 0 : i32
    return %c0_i32, %c0_i32_0 : i32, i32
  }
  func.func @transform_43(%arg0: i32) -> (i32, i32) {
    %c0_i32 = arith.constant 0 : i32
    %c0_i32_0 = arith.constant 0 : i32
    %c0_i32_1 = arith.constant 0 : i32
    return %c0_i32, %c0_i32_0 : i32, i32
  }
  func.func @transform_44(%arg0: i32) -> (i32, i32) {
    %c0_i32 = arith.constant 0 : i32
    %c0_i32_0 = arith.constant 0 : i32
    %c0_i32_1 = arith.constant 0 : i32
    return %c0_i32, %c0_i32_0 : i32, i32
  }
  func.func @transform_45(%arg0: i32) -> (i32, i32) {
    %c0_i32 = arith.constant 0 : i32
    %c0_i32_0 = arith.constant 0 : i32
    %c0_i32_1 = arith.constant 0 : i32
    return %c0_i32, %c0_i32_0 : i32, i32
  }
  func.func @transform_46(%arg0: i32) -> (i32, i32) {
    %c0_i32 = arith.constant 0 : i32
    %c0_i32_0 = arith.constant 0 : i32
    %c0_i32_1 = arith.constant 0 : i32
    return %c0_i32, %c0_i32_0 : i32, i32
  }
  func.func @transform_47(%arg0: i32) -> (i32, i32) {
    %c0_i32 = arith.constant 0 : i32
    %c0_i32_0 = arith.constant 0 : i32
    %c0_i32_1 = arith.constant 0 : i32
    return %c0_i32, %c0_i32_0 : i32, i32
  }
  func.func @transform_48(%arg0: i32) -> (i32, i32) {
    %c0_i32 = arith.constant 0 : i32
    %c0_i32_0 = arith.constant 0 : i32
    %c0_i32_1 = arith.constant 0 : i32
    return %c0_i32, %c0_i32_0 : i32, i32
  }
  func.func @transform_49(%arg0: i32) -> (i32, i32) {
    %c0_i32 = arith.constant 0 : i32
    %c0_i32_0 = arith.constant 0 : i32
    %c0_i32_1 = arith.constant 0 : i32
    return %c0_i32, %c0_i32_0 : i32, i32
  }
  func.func @transform_50(%arg0: i32) -> (i32, i32) {
    %c0_i32 = arith.constant 0 : i32
    %c0_i32_0 = arith.constant 0 : i32
    %c0_i32_1 = arith.constant 0 : i32
    return %c0_i32, %c0_i32_0 : i32, i32
  }
  func.func @transform_51(%arg0: i32) -> (i32, i32) {
    %c0_i32 = arith.constant 0 : i32
    %c0_i32_0 = arith.constant 0 : i32
    %c0_i32_1 = arith.constant 0 : i32
    return %c0_i32, %c0_i32_0 : i32, i32
  }
  func.func @transform_52(%arg0: i32) -> (i32, i32) {
    %c0_i32 = arith.constant 0 : i32
    %c0_i32_0 = arith.constant 0 : i32
    %c0_i32_1 = arith.constant 0 : i32
    return %c0_i32, %c0_i32_0 : i32, i32
  }
  func.func @transform_53(%arg0: i32) -> (i32, i32) {
    %c0_i32 = arith.constant 0 : i32
    %c0_i32_0 = arith.constant 0 : i32
    %c0_i32_1 = arith.constant 0 : i32
    return %c0_i32, %c0_i32_0 : i32, i32
  }
  func.func @transform_54(%arg0: i32) -> (i32, i32) {
    %c0_i32 = arith.constant 0 : i32
    %c0_i32_0 = arith.constant 0 : i32
    %c0_i32_1 = arith.constant 0 : i32
    return %c0_i32, %c0_i32_0 : i32, i32
  }
  func.func @transform_55(%arg0: i32) -> (i32, i32, i32) {
    %c0_i32 = arith.constant 0 : i32
    %c0_i32_0 = arith.constant 0 : i32
    %c0_i32_1 = arith.constant 0 : i32
    return %arg0, %c0_i32, %c0_i32_0 : i32, i32, i32
  }
}

</mosaic_0001>

<llo_original>
// kernel: tpu_custom_call.1
$region0: #{tpu_custom_call.1}
  #allocation0 [shape = 'u32[]', space=smem, size = 0x4, offset = 0x4, fixed_abs, tag = 'smem constant byte address 0x4 - core index']
  #allocation1 [shape = 'u32[144,128]{1,0:T(1,128)}', space=vmem, size = 0x12000, scoped, tag = 'internal scratch']
  #allocation2 [shape = 'f32[1,1]{1,0:T(1,128)S(1)}', space=vmem, size = 0x200, scoped, tag = 'scoped memory for tpu_custom_call.1']
  %s0 = inlined_call_operand.smem [shape: u32[56], index: -1, kind: input, shape index: {}]
  %s1 = sld [smem:[%s0]]
  %s2 = scalar_lea.smem %s0, 1
  %s3 = sld [smem:[%s2]]
  %s4 = scalar_lea.smem %s0, 2
  %s5 = sld [smem:[%s4]]
  %s6 = scalar_lea.smem %s0, 3
  %s7 = sld [smem:[%s6]]
  %s8 = scalar_lea.smem %s0, 4
  %s9 = sld [smem:[%s8]]
  %s10 = scalar_lea.smem %s0, 5
  %s11 = sld [smem:[%s10]]
  %s12 = scalar_lea.smem %s0, 6
  %s13 = sld [smem:[%s12]]
  %s14 = scalar_lea.smem %s0, 7
  %s15 = sld [smem:[%s14]]
  %s16 = scalar_lea.smem %s0, 8
  %s17 = sld [smem:[%s16]]
  %s18 = scalar_lea.smem %s0, 9
  %s19 = sld [smem:[%s18]]
  %s20 = scalar_lea.smem %s0, 10
  %s21 = sld [smem:[%s20]]
  %s22 = scalar_lea.smem %s0, 11
  %s23 = sld [smem:[%s22]]
  %s24 = scalar_lea.smem %s0, 12
  %s25 = sld [smem:[%s24]]
  %s26 = scalar_lea.smem %s0, 13
  %s27 = sld [smem:[%s26]]
  %s28 = scalar_lea.smem %s0, 14
  %s29 = sld [smem:[%s28]]
  %s30 = scalar_lea.smem %s0, 15
  %s31 = sld [smem:[%s30]]
  %s32 = scalar_lea.smem %s0, 16
  %s33 = sld [smem:[%s32]]
  %s34 = scalar_lea.smem %s0, 17
  %s35 = sld [smem:[%s34]]
  %s36 = scalar_lea.smem %s0, 18
  %s37 = sld [smem:[%s36]]
  %s38 = scalar_lea.smem %s0, 19
  %s39 = sld [smem:[%s38]]
  %s40 = scalar_lea.smem %s0, 20
  %s41 = sld [smem:[%s40]]
  %s42 = scalar_lea.smem %s0, 21
  %s43 = sld [smem:[%s42]]
  %s44 = scalar_lea.smem %s0, 22
  %s45 = sld [smem:[%s44]]
  %s46 = scalar_lea.smem %s0, 23
  %s47 = sld [smem:[%s46]]
  %s48 = scalar_lea.smem %s0, 24
  %s49 = sld [smem:[%s48]]
  %s50 = scalar_lea.smem %s0, 25
  %s51 = sld [smem:[%s50]]
  %s52 = scalar_lea.smem %s0, 26
  %s53 = sld [smem:[%s52]]
  %s54 = scalar_lea.smem %s0, 27
  %s55 = sld [smem:[%s54]]
  %s56 = scalar_lea.smem %s0, 28
  %s57 = sld [smem:[%s56]]
  %s58 = scalar_lea.smem %s0, 29
  %s59 = sld [smem:[%s58]]
  %s60 = scalar_lea.smem %s0, 30
  %s61 = sld [smem:[%s60]]
  %s62 = scalar_lea.smem %s0, 31
  %s63 = sld [smem:[%s62]]
  %s64 = scalar_lea.smem %s0, 32
  %s65 = sld [smem:[%s64]]
  %s66 = scalar_lea.smem %s0, 33
  %s67 = sld [smem:[%s66]]
  %s68 = scalar_lea.smem %s0, 34
  %s69 = sld [smem:[%s68]]
  %s70 = scalar_lea.smem %s0, 35
  %s71 = sld [smem:[%s70]]
  %s72 = scalar_lea.smem %s0, 36
  %s73 = sld [smem:[%s72]]
  %s74 = scalar_lea.smem %s0, 37
  %s75 = sld [smem:[%s74]]
  %s76 = scalar_lea.smem %s0, 38
  %s77 = sld [smem:[%s76]]
  %s78 = scalar_lea.smem %s0, 39
  %s79 = sld [smem:[%s78]]
  %s80 = scalar_lea.smem %s0, 40
  %s81 = sld [smem:[%s80]]
  %s82 = scalar_lea.smem %s0, 41
  %s83 = sld [smem:[%s82]]
  %s84 = scalar_lea.smem %s0, 42
  %s85 = sld [smem:[%s84]]
  %s86 = scalar_lea.smem %s0, 43
  %s87 = sld [smem:[%s86]]
  %s88 = scalar_lea.smem %s0, 44
  %s89 = sld [smem:[%s88]]
  %s90 = scalar_lea.smem %s0, 45
  %s91 = sld [smem:[%s90]]
  %s92 = scalar_lea.smem %s0, 46
  %s93 = sld [smem:[%s92]]
  %s94 = scalar_lea.smem %s0, 47
  %s95 = sld [smem:[%s94]]
  %s96 = scalar_lea.smem %s0, 48
  %s97 = sld [smem:[%s96]]
  %s98 = scalar_lea.smem %s0, 49
  %s99 = sld [smem:[%s98]]
  %s100 = scalar_lea.smem %s0, 50
  %s101 = sld [smem:[%s100]]
  %s102 = scalar_lea.smem %s0, 51
  %s103 = sld [smem:[%s102]]
  %s104 = scalar_lea.smem %s0, 52
  %s105 = sld [smem:[%s104]]
  %s106 = scalar_lea.smem %s0, 53
  %s107 = sld [smem:[%s106]]
  %s108 = scalar_lea.smem %s0, 54
  %s109 = sld [smem:[%s108]]
  %s110 = scalar_lea.smem %s0, 55
  %s111 = sld [smem:[%s110]]
  %s112 = sld [smem:[#allocation0]]
  $region305: #{tpu_custom_call.1} parent=0
    _
  %s114 = ssub.s32 1, %s112
  %s115 = scalar_select 0, %s114, %s112
  %v116 = vstv %s109
  %117 = vst [vmem:[#allocation2] sm:$0x1] %v116
  $region1: #{tpu_custom_call.1} parent=0
    #allocation3 [shape = 'u8[512]{0}', space=vmem, size = 0x400, scoped, tag = 'input window, operand 34, single buffered']
    #allocation4 [shape = 's32[2]{0}', space=sflag, size = 0x8, scoped, tag = 'scoped memory for tpu_custom_call.1']
    #allocation5 [shape = 's32[2]{0}', space=sflag, size = 0x8, scoped, tag = 'scoped memory for tpu_custom_call.1']
    #allocation6 [shape = 'u8[512]{0}', space=vmem, size = 0x400, scoped, tag = 'input window, operand 35, single buffered']
    #allocation7 [shape = 's32[1]{0}', space=sflag, size = 0x4, scoped, tag = 'scoped memory for tpu_custom_call.1']
    #allocation8 [shape = 'u8[512]{0}', space=vmem, size = 0x400, scoped, tag = 'input window, operand 36, single buffered']
    #allocation9 [shape = 'u8[512]{0}', space=vmem, size = 0x400, scoped, tag = 'input window, operand 38, single buffered']
    #allocation10 [shape = 's32[1]{0}', space=sflag, size = 0x4, scoped, tag = 'scoped memory for tpu_custom_call.1']
    #allocation11 [shape = 'u8[512]{0}', space=vmem, size = 0x400, scoped, tag = 'input window, operand 40, single buffered']
    #allocation12 [shape = 'u8[512]{0}', space=vmem, size = 0x400, scoped, tag = 'input window, operand 42, single buffered']
    #allocation13 [shape = 's32[1]{0}', space=sflag, size = 0x4, scoped, tag = 'scoped memory for tpu_custom_call.1']
    #allocation14 [shape = 'u8[512]{0}', space=vmem, size = 0x400, scoped, tag = 'input window, operand 43, single buffered']
    #allocation15 [shape = 'u8[512]{0}', space=vmem, size = 0x400, scoped, tag = 'input window, operand 44, single buffered']
    #allocation16 [shape = 's32[1]{0}', space=sflag, size = 0x4, scoped, tag = 'scoped memory for tpu_custom_call.1']
    #allocation17 [shape = 'u8[512]{0}', space=vmem, size = 0x400, scoped, tag = 'input window, operand 48, single buffered']
    #allocation18 [shape = 'u8[512]{0}', space=vmem, size = 0x400, scoped, tag = 'input window, operand 49, single buffered']
    #allocation19 [shape = 's32[1]{0}', space=sflag, size = 0x4, scoped, tag = 'scoped memory for tpu_custom_call.1']
    #allocation20 [shape = 'u8[512]{0}', space=vmem, size = 0x400, scoped, tag = 'input window, operand 50, single buffered']
    #allocation21 [shape = 'u8[512]{0}', space=vmem, size = 0x400, scoped, tag = 'input window, operand 52, single buffered']
    #allocation22 [shape = 's32[1]{0}', space=sflag, size = 0x4, scoped, tag = 'scoped memory for tpu_custom_call.1']
    #allocation23 [shape = 'u8[512]{0}', space=vmem, size = 0x400, scoped, tag = 'input window, operand 53, single buffered']
    #allocation24 [shape = 'u8[1024]{0}', space=vmem, size = 0x400, scoped, tag = 'output window, operand 0']
    %118 = vsyncpa [#allocation4], 0
    %119 = vsyncpa [#allocation7], 0
    %120 = vsyncpa [#allocation10], 0
    %121 = vsyncpa [#allocation13], 0
    %122 = vsyncpa [#allocation16], 0
    %123 = vsyncpa [#allocation19], 0
    %124 = vsyncpa [#allocation22], 0
    %125 = vsyncpa [#allocation5], 0
    %s126 = scalar_lea.sflag [#allocation5], 1
    %127 = vsyncpa %s126, 0
    loop: start=0, step=1, limit=4
    $region2: #{tpu_custom_call.1} parent=1 // loop_pre_header
      _
    $region3: #{tpu_custom_call.1} parent=1 // loop_header
      %s129 = sphi 0, %s133
      %p130 = scmp.ge.s32.totalorder %s129, 4
      %s139 = sphi 0, %s141
      %s142 = sphi 0, %s139
      %s143 = sphi 0, %s142
      %s159 = sphi 0, %s143
      %s163 = sphi 0, %s163
      %s165 = sphi 0, %s163
      %s166 = sphi 0, %s165
      %s180 = sphi 0, %s166
      %s186 = sphi 0, %s188
      %s189 = sphi 0, %s186
      %s190 = sphi 0, %s189
      %s206 = sphi 0, %s190
      %s210 = sphi 0, %s210
      %s212 = sphi 0, %s210
      %s213 = sphi 0, %s212
      %s227 = sphi 0, %s213
      %s231 = sphi 0, %s231
      %s233 = sphi 0, %s231
      %s234 = sphi 0, %s233
      %s248 = sphi 0, %s234
      %s252 = sphi 0, %s252
      %s254 = sphi 0, %s252
      %s255 = sphi 0, %s254
      %s269 = sphi 0, %s255
      %s273 = sphi 0, %s273
      %s275 = sphi 0, %s273
      %s276 = sphi 0, %s275
      %s290 = sphi 0, %s276
      %s294 = sphi 0, %s294
      %s296 = sphi 0, %s294
      %s297 = sphi 0, %s296
      %s311 = sphi 0, %s297
      %s315 = sphi 0, %s315
      %s317 = sphi 0, %s315
      %s318 = sphi 0, %s317
      %s332 = sphi 0, %s318
      %s336 = sphi 0, %s336
      %s338 = sphi 0, %s336
      %s339 = sphi 0, %s338
      %s353 = sphi 0, %s339
      %s357 = sphi 0, %s357
      %s359 = sphi 0, %s357
      %s360 = sphi 0, %s359
      %s374 = sphi 0, %s360
      %s378 = sphi 0, %s378
      %s380 = sphi 0, %s378
      %s381 = sphi 0, %s380
      %s395 = sphi 0, %s381
      %s399 = sphi 0, %s399
      %s401 = sphi 0, %s399
      %s402 = sphi 0, %s401
      %s416 = sphi 0, %s402
      %s420 = sphi 0, %s420
      %s422 = sphi 0, %s420
      %s423 = sphi 0, %s422
      %s437 = sphi 0, %s423
      %s441 = sphi 0, %s441
      %s443 = sphi 0, %s441
      %s444 = sphi 0, %s443
      %s458 = sphi 0, %s444
      %s462 = sphi 0, %s462
      %s464 = sphi 0, %s462
      %s465 = sphi 0, %s464
      %s479 = sphi 0, %s465
      %s483 = sphi 0, %s483
      %s485 = sphi 0, %s483
      %s486 = sphi 0, %s485
      %s500 = sphi 0, %s486
      %s504 = sphi 0, %s504
      %s506 = sphi 0, %s504
      %s507 = sphi 0, %s506
      %s521 = sphi 0, %s507
      %s525 = sphi 0, %s525
      %s527 = sphi 0, %s525
      %s528 = sphi 0, %s527
      %s542 = sphi 0, %s528
      %s546 = sphi 0, %s546
      %s548 = sphi 0, %s546
      %s549 = sphi 0, %s548
      %s563 = sphi 0, %s549
      %s567 = sphi 0, %s567
      %s569 = sphi 0, %s567
      %s570 = sphi 0, %s569
      %s584 = sphi 0, %s570
      %s588 = sphi 0, %s588
      %s590 = sphi 0, %s588
      %s591 = sphi 0, %s590
      %s605 = sphi 0, %s591
      %s609 = sphi 0, %s609
      %s611 = sphi 0, %s609
      %s612 = sphi 0, %s611
      %s626 = sphi 0, %s612
      %s630 = sphi 0, %s630
      %s632 = sphi 0, %s630
      %s633 = sphi 0, %s632
      %s647 = sphi 0, %s633
      %s651 = sphi 0, %s651
      %s653 = sphi 0, %s651
      %s654 = sphi 0, %s653
      %s668 = sphi 0, %s654
      %s672 = sphi 0, %s672
      %s674 = sphi 0, %s672
      %s675 = sphi 0, %s674
      %s689 = sphi 0, %s675
      %s693 = sphi 0, %s693
      %s695 = sphi 0, %s693
      %s696 = sphi 0, %s695
      %s710 = sphi 0, %s696
      %s714 = sphi 0, %s714
      %s716 = sphi 0, %s714
      %s717 = sphi 0, %s716
      %s731 = sphi 0, %s717
      %s735 = sphi 0, %s735
      %s737 = sphi 0, %s735
      %s738 = sphi 0, %s737
      %s752 = sphi 0, %s738
      %s756 = sphi 0, %s756
      %s758 = sphi 0, %s756
      %s759 = sphi 0, %s758
      %s773 = sphi 0, %s759
      %s777 = sphi 0, %s777
      %s779 = sphi 0, %s777
      %s780 = sphi 0, %s779
      %s794 = sphi 0, %s780
      %s798 = sphi 0, %s798
      %s800 = sphi 0, %s798
      %s801 = sphi 0, %s800
      %s815 = sphi 0, %s801
      %s819 = sphi 0, %s819
      %s821 = sphi 0, %s819
      %s822 = sphi 0, %s821
      %s836 = sphi 0, %s822
      %s840 = sphi 0, %s840
      %s842 = sphi 0, %s840
      %s843 = sphi 0, %s842
      %s857 = sphi 0, %s843
      %s861 = sphi 0, %s861
      %s863 = sphi 0, %s861
      %s864 = sphi 0, %s863
      %s878 = sphi 0, %s864
      %s882 = sphi 0, %s882
      %s884 = sphi 0, %s882
      %s885 = sphi 0, %s884
      %s899 = sphi 0, %s885
      %s903 = sphi 0, %s903
      %s905 = sphi 0, %s903
      %s906 = sphi 0, %s905
      %s920 = sphi 0, %s906
      %s924 = sphi 0, %s924
      %s926 = sphi 0, %s924
      %s927 = sphi 0, %s926
      %s941 = sphi 0, %s927
      %s945 = sphi 0, %s945
      %s947 = sphi 0, %s945
      %s948 = sphi 0, %s947
      %s962 = sphi 0, %s948
      %s966 = sphi 0, %s966
      %s968 = sphi 0, %s966
      %s969 = sphi 0, %s968
      %s983 = sphi 0, %s969
      %s987 = sphi 0, %s987
      %s989 = sphi 0, %s987
      %s990 = sphi 0, %s989
      %s1004 = sphi 0, %s990
      %s1008 = sphi 0, %s1008
      %s1010 = sphi 0, %s1008
      %s1011 = sphi 0, %s1010
      %s1025 = sphi 0, %s1011
      %s1029 = sphi 0, %s1029
      %s1031 = sphi 0, %s1029
      %s1032 = sphi 0, %s1031
      %s1046 = sphi 0, %s1032
      %s1050 = sphi 0, %s1050
      %s1052 = sphi 0, %s1050
      %s1053 = sphi 0, %s1052
      %s1067 = sphi 0, %s1053
      %s1071 = sphi 0, %s1071
      %s1073 = sphi 0, %s1071
      %s1074 = sphi 0, %s1073
      %s1088 = sphi 0, %s1074
      %s1092 = sphi 0, %s1092
      %s1094 = sphi 0, %s1092
      %s1095 = sphi 0, %s1094
      %s1109 = sphi 0, %s1095
      %s1113 = sphi 0, %s1113
      %s1115 = sphi 0, %s1113
      %s1116 = sphi 0, %s1115
      %s1130 = sphi 0, %s1116
      %s1134 = sphi 0, %s1134
      %s1136 = sphi 0, %s1134
      %s1137 = sphi 0, %s1136
      %s1151 = sphi 0, %s1137
      %s1155 = sphi 0, %s1155
      %s1157 = sphi 0, %s1155
      %s1158 = sphi 0, %s1157
      %s1172 = sphi 0, %s1158
      %s1176 = sphi 0, %s1176
      %s1178 = sphi 0, %s1176
      %s1179 = sphi 0, %s1178
      %s1193 = sphi 0, %s1179
      %s1197 = sphi 0, %s1197
      %s1199 = sphi 0, %s1197
      %s1200 = sphi 0, %s1199
      %s1214 = sphi 0, %s1200
      %s1218 = sphi 0, %s1218
      %s1220 = sphi 0, %s1218
      %s1221 = sphi 0, %s1220
      %s1235 = sphi 0, %s1221
      %s1239 = sphi 0, %s1239
      %s1241 = sphi 0, %s1239
      %s1242 = sphi 0, %s1241
      %s1256 = sphi 0, %s1242
      %s1260 = sphi 0, %s1260
      %s1262 = sphi 0, %s1260
      %s1263 = sphi 0, %s1262
      %s1277 = sphi 0, %s1263
      %s1281 = sphi 0, %s1281
      %s1283 = sphi 0, %s1281
      %s1284 = sphi 0, %s1283
      %s1298 = sphi 0, %s1284
      %s1304 = sphi 0, %s1306
      %s1307 = sphi 0, %s1304
      %s1308 = sphi 0, %s1307
      %s1324 = sphi 0, %s1308
    $region4: #{tpu_custom_call.1} parent=1 // loop_header_branch
      %132 = sbr.rel (%p130) target = $region8
    $region5: #{tpu_custom_call.1} parent=1 // loop_body
      %s134 = ssub.s32 %s129, 1
      %s135 = ssub.s32 %s129, 2
      %s136 = sadd.s32 %s129, 1
      %s137 = ssub.s32 %s129, %s136
      %p138 = scmp.eq.s32.totalorder %s137, 0
      %s140 = sadd.s32 %s139, 1
      %s141 = scalar_select %p138, %s139, %s140
      %p144 = pneg %p138
      %p145 = scmp.eq.s32.totalorder %s129, 1
      %p146 = por %p144, %p145
      %p147 = scmp.ne.s32.totalorder %s139, %s142
      %p148 = scmp.eq.s32.totalorder %s129, 0
      %p149 = por %p147, %p148
      %p150 = scmp.ne.s32.totalorder %s139, %s142
      %p151 = scmp.eq.s32.totalorder %s134, 1
      %p152 = por %p150, %p151
      %p153 = scmp.ne.s32.totalorder %s142, %s143
      %p154 = scmp.eq.s32.totalorder %s134, 0
      %p155 = por %p153, %p154
      %p156 = scmp.ne.s32.totalorder %s142, %s143
      %p157 = scmp.eq.s32.totalorder %s135, 1
      %p158 = por %p156, %p157
      %p160 = scmp.ne.s32.totalorder %s143, %s159
      %p161 = scmp.eq.s32.totalorder %s135, 0
      %p162 = por %p160, %p161
      %s164 = sadd.s32 %s163, 1
      %p167 = scmp.eq.s32.totalorder %s129, 1
      %p168 = scmp.ne.s32.totalorder %s163, %s165
      %p169 = scmp.eq.s32.totalorder %s129, 0
      %p170 = por %p168, %p169
      %p171 = scmp.ne.s32.totalorder %s163, %s165
      %p172 = scmp.eq.s32.totalorder %s134, 1
      %p173 = por %p171, %p172
      %p174 = scmp.ne.s32.totalorder %s165, %s166
      %p175 = scmp.eq.s32.totalorder %s134, 0
      %p176 = por %p174, %p175
      %p177 = scmp.ne.s32.totalorder %s165, %s166
      %p178 = scmp.eq.s32.totalorder %s135, 1
      %p179 = por %p177, %p178
      %p181 = scmp.ne.s32.totalorder %s166, %s180
      %p182 = scmp.eq.s32.totalorder %s135, 0
      %p183 = por %p181, %p182
      %s184 = ssub.s32 %s129, %s136
      %p185 = scmp.eq.s32.totalorder %s184, 0
      %s187 = sadd.s32 %s186, 1
      %s188 = scalar_select %p185, %s186, %s187
      %p191 = pneg %p185
      %p192 = scmp.eq.s32.totalorder %s129, 1
      %p193 = por %p191, %p192
      %p194 = scmp.ne.s32.totalorder %s186, %s189
      %p195 = scmp.eq.s32.totalorder %s129, 0
      %p196 = por %p194, %p195
      %p197 = scmp.ne.s32.totalorder %s186, %s189
      %p198 = scmp.eq.s32.totalorder %s134, 1
      %p199 = por %p197, %p198
      %p200 = scmp.ne.s32.totalorder %s189, %s190
      %p201 = scmp.eq.s32.totalorder %s134, 0
      %p202 = por %p200, %p201
      %p203 = scmp.ne.s32.totalorder %s189, %s190
      %p204 = scmp.eq.s32.totalorder %s135, 1
      %p205 = por %p203, %p204
      %p207 = scmp.ne.s32.totalorder %s190, %s206
      %p208 = scmp.eq.s32.totalorder %s135, 0
      %p209 = por %p207, %p208
      %s211 = sadd.s32 %s210, 1
      %p214 = scmp.eq.s32.totalorder %s129, 1
      %p215 = scmp.ne.s32.totalorder %s210, %s212
      %p216 = scmp.eq.s32.totalorder %s129, 0
      %p217 = por %p215, %p216
      %p218 = scmp.ne.s32.totalorder %s210, %s212
      %p219 = scmp.eq.s32.totalorder %s134, 1
      %p220 = por %p218, %p219
      %p221 = scmp.ne.s32.totalorder %s212, %s213
      %p222 = scmp.eq.s32.totalorder %s134, 0
      %p223 = por %p221, %p222
      %p224 = scmp.ne.s32.totalorder %s212, %s213
      %p225 = scmp.eq.s32.totalorder %s135, 1
      %p226 = por %p224, %p225
      %p228 = scmp.ne.s32.totalorder %s213, %s227
      %p229 = scmp.eq.s32.totalorder %s135, 0
      %p230 = por %p228, %p229
      %s232 = sadd.s32 %s231, 1
      %p235 = scmp.eq.s32.totalorder %s129, 1
      %p236 = scmp.ne.s32.totalorder %s231, %s233
      %p237 = scmp.eq.s32.totalorder %s129, 0
      %p238 = por %p236, %p237
      %p239 = scmp.ne.s32.totalorder %s231, %s233
      %p240 = scmp.eq.s32.totalorder %s134, 1
      %p241 = por %p239, %p240
      %p242 = scmp.ne.s32.totalorder %s233, %s234
      %p243 = scmp.eq.s32.totalorder %s134, 0
      %p244 = por %p242, %p243
      %p245 = scmp.ne.s32.totalorder %s233, %s234
      %p246 = scmp.eq.s32.totalorder %s135, 1
      %p247 = por %p245, %p246
      %p249 = scmp.ne.s32.totalorder %s234, %s248
      %p250 = scmp.eq.s32.totalorder %s135, 0
      %p251 = por %p249, %p250
      %s253 = sadd.s32 %s252, 1
      %p256 = scmp.eq.s32.totalorder %s129, 1
      %p257 = scmp.ne.s32.totalorder %s252, %s254
      %p258 = scmp.eq.s32.totalorder %s129, 0
      %p259 = por %p257, %p258
      %p260 = scmp.ne.s32.totalorder %s252, %s254
      %p261 = scmp.eq.s32.totalorder %s134, 1
      %p262 = por %p260, %p261
      %p263 = scmp.ne.s32.totalorder %s254, %s255
      %p264 = scmp.eq.s32.totalorder %s134, 0
      %p265 = por %p263, %p264
      %p266 = scmp.ne.s32.totalorder %s254, %s255
      %p267 = scmp.eq.s32.totalorder %s135, 1
      %p268 = por %p266, %p267
      %p270 = scmp.ne.s32.totalorder %s255, %s269
      %p271 = scmp.eq.s32.totalorder %s135, 0
      %p272 = por %p270, %p271
      %s274 = sadd.s32 %s273, 1
      %p277 = scmp.eq.s32.totalorder %s129, 1
      %p278 = scmp.ne.s32.totalorder %s273, %s275
      %p279 = scmp.eq.s32.totalorder %s129, 0
      %p280 = por %p278, %p279
      %p281 = scmp.ne.s32.totalorder %s273, %s275
      %p282 = scmp.eq.s32.totalorder %s134, 1
      %p283 = por %p281, %p282
      %p284 = scmp.ne.s32.totalorder %s275, %s276
      %p285 = scmp.eq.s32.totalorder %s134, 0
      %p286 = por %p284, %p285
      %p287 = scmp.ne.s32.totalorder %s275, %s276
      %p288 = scmp.eq.s32.totalorder %s135, 1
      %p289 = por %p287, %p288
      %p291 = scmp.ne.s32.totalorder %s276, %s290
      %p292 = scmp.eq.s32.totalorder %s135, 0
      %p293 = por %p291, %p292
      %s295 = sadd.s32 %s294, 1
      %p298 = scmp.eq.s32.totalorder %s129, 1
      %p299 = scmp.ne.s32.totalorder %s294, %s296
      %p300 = scmp.eq.s32.totalorder %s129, 0
      %p301 = por %p299, %p300
      %p302 = scmp.ne.s32.totalorder %s294, %s296
      %p303 = scmp.eq.s32.totalorder %s134, 1
      %p304 = por %p302, %p303
      %p305 = scmp.ne.s32.totalorder %s296, %s297
      %p306 = scmp.eq.s32.totalorder %s134, 0
      %p307 = por %p305, %p306
      %p308 = scmp.ne.s32.totalorder %s296, %s297
      %p309 = scmp.eq.s32.totalorder %s135, 1
      %p310 = por %p308, %p309
      %p312 = scmp.ne.s32.totalorder %s297, %s311
      %p313 = scmp.eq.s32.totalorder %s135, 0
      %p314 = por %p312, %p313
      %s316 = sadd.s32 %s315, 1
      %p319 = scmp.eq.s32.totalorder %s129, 1
      %p320 = scmp.ne.s32.totalorder %s315, %s317
      %p321 = scmp.eq.s32.totalorder %s129, 0
      %p322 = por %p320, %p321
      %p323 = scmp.ne.s32.totalorder %s315, %s317
      %p324 = scmp.eq.s32.totalorder %s134, 1
      %p325 = por %p323, %p324
      %p326 = scmp.ne.s32.totalorder %s317, %s318
      %p327 = scmp.eq.s32.totalorder %s134, 0
      %p328 = por %p326, %p327
      %p329 = scmp.ne.s32.totalorder %s317, %s318
      %p330 = scmp.eq.s32.totalorder %s135, 1
      %p331 = por %p329, %p330
      %p333 = scmp.ne.s32.totalorder %s318, %s332
      %p334 = scmp.eq.s32.totalorder %s135, 0
      %p335 = por %p333, %p334
      %s337 = sadd.s32 %s336, 1
      %p340 = scmp.eq.s32.totalorder %s129, 1
      %p341 = scmp.ne.s32.totalorder %s336, %s338
      %p342 = scmp.eq.s32.totalorder %s129, 0
      %p343 = por %p341, %p342
      %p344 = scmp.ne.s32.totalorder %s336, %s338
      %p345 = scmp.eq.s32.totalorder %s134, 1
      %p346 = por %p344, %p345
      %p347 = scmp.ne.s32.totalorder %s338, %s339
      %p348 = scmp.eq.s32.totalorder %s134, 0
      %p349 = por %p347, %p348
      %p350 = scmp.ne.s32.totalorder %s338, %s339
      %p351 = scmp.eq.s32.totalorder %s135, 1
      %p352 = por %p350, %p351
      %p354 = scmp.ne.s32.totalorder %s339, %s353
      %p355 = scmp.eq.s32.totalorder %s135, 0
      %p356 = por %p354, %p355
      %s358 = sadd.s32 %s357, 1
      %p361 = scmp.eq.s32.totalorder %s129, 1
      %p362 = scmp.ne.s32.totalorder %s357, %s359
      %p363 = scmp.eq.s32.totalorder %s129, 0
      %p364 = por %p362, %p363
      %p365 = scmp.ne.s32.totalorder %s357, %s359
      %p366 = scmp.eq.s32.totalorder %s134, 1
      %p367 = por %p365, %p366
      %p368 = scmp.ne.s32.totalorder %s359, %s360
      %p369 = scmp.eq.s32.totalorder %s134, 0
      %p370 = por %p368, %p369
      %p371 = scmp.ne.s32.totalorder %s359, %s360
      %p372 = scmp.eq.s32.totalorder %s135, 1
      %p373 = por %p371, %p372
      %p375 = scmp.ne.s32.totalorder %s360, %s374
      %p376 = scmp.eq.s32.totalorder %s135, 0
      %p377 = por %p375, %p376
      %s379 = sadd.s32 %s378, 1
      %p382 = scmp.eq.s32.totalorder %s129, 1
      %p383 = scmp.ne.s32.totalorder %s378, %s380
      %p384 = scmp.eq.s32.totalorder %s129, 0
      %p385 = por %p383, %p384
      %p386 = scmp.ne.s32.totalorder %s378, %s380
      %p387 = scmp.eq.s32.totalorder %s134, 1
      %p388 = por %p386, %p387
      %p389 = scmp.ne.s32.totalorder %s380, %s381
      %p390 = scmp.eq.s32.totalorder %s134, 0
      %p391 = por %p389, %p390
      %p392 = scmp.ne.s32.totalorder %s380, %s381
      %p393 = scmp.eq.s32.totalorder %s135, 1
      %p394 = por %p392, %p393
      %p396 = scmp.ne.s32.totalorder %s381, %s395
      %p397 = scmp.eq.s32.totalorder %s135, 0
      %p398 = por %p396, %p397
      %s400 = sadd.s32 %s399, 1
      %p403 = scmp.eq.s32.totalorder %s129, 1
      %p404 = scmp.ne.s32.totalorder %s399, %s401
      %p405 = scmp.eq.s32.totalorder %s129, 0
      %p406 = por %p404, %p405
      %p407 = scmp.ne.s32.totalorder %s399, %s401
      %p408 = scmp.eq.s32.totalorder %s134, 1
      %p409 = por %p407, %p408
      %p410 = scmp.ne.s32.totalorder %s401, %s402
      %p411 = scmp.eq.s32.totalorder %s134, 0
      %p412 = por %p410, %p411
      %p413 = scmp.ne.s32.totalorder %s401, %s402
      %p414 = scmp.eq.s32.totalorder %s135, 1
      %p415 = por %p413, %p414
      %p417 = scmp.ne.s32.totalorder %s402, %s416
      %p418 = scmp.eq.s32.totalorder %s135, 0
      %p419 = por %p417, %p418
      %s421 = sadd.s32 %s420, 1
      %p424 = scmp.eq.s32.totalorder %s129, 1
      %p425 = scmp.ne.s32.totalorder %s420, %s422
      %p426 = scmp.eq.s32.totalorder %s129, 0
      %p427 = por %p425, %p426
      %p428 = scmp.ne.s32.totalorder %s420, %s422
      %p429 = scmp.eq.s32.totalorder %s134, 1
      %p430 = por %p428, %p429
      %p431 = scmp.ne.s32.totalorder %s422, %s423
      %p432 = scmp.eq.s32.totalorder %s134, 0
      %p433 = por %p431, %p432
      %p434 = scmp.ne.s32.totalorder %s422, %s423
      %p435 = scmp.eq.s32.totalorder %s135, 1
      %p436 = por %p434, %p435
      %p438 = scmp.ne.s32.totalorder %s423, %s437
      %p439 = scmp.eq.s32.totalorder %s135, 0
      %p440 = por %p438, %p439
      %s442 = sadd.s32 %s441, 1
      %p445 = scmp.eq.s32.totalorder %s129, 1
      %p446 = scmp.ne.s32.totalorder %s441, %s443
      %p447 = scmp.eq.s32.totalorder %s129, 0
      %p448 = por %p446, %p447
      %p449 = scmp.ne.s32.totalorder %s441, %s443
      %p450 = scmp.eq.s32.totalorder %s134, 1
      %p451 = por %p449, %p450
      %p452 = scmp.ne.s32.totalorder %s443, %s444
      %p453 = scmp.eq.s32.totalorder %s134, 0
      %p454 = por %p452, %p453
      %p455 = scmp.ne.s32.totalorder %s443, %s444
      %p456 = scmp.eq.s32.totalorder %s135, 1
      %p457 = por %p455, %p456
      %p459 = scmp.ne.s32.totalorder %s444, %s458
      %p460 = scmp.eq.s32.totalorder %s135, 0
      %p461 = por %p459, %p460
      %s463 = sadd.s32 %s462, 1
      %p466 = scmp.eq.s32.totalorder %s129, 1
      %p467 = scmp.ne.s32.totalorder %s462, %s464
      %p468 = scmp.eq.s32.totalorder %s129, 0
      %p469 = por %p467, %p468
      %p470 = scmp.ne.s32.totalorder %s462, %s464
      %p471 = scmp.eq.s32.totalorder %s134, 1
      %p472 = por %p470, %p471
      %p473 = scmp.ne.s32.totalorder %s464, %s465
      %p474 = scmp.eq.s32.totalorder %s134, 0
      %p475 = por %p473, %p474
      %p476 = scmp.ne.s32.totalorder %s464, %s465
      %p477 = scmp.eq.s32.totalorder %s135, 1
      %p478 = por %p476, %p477
      %p480 = scmp.ne.s32.totalorder %s465, %s479
      %p481 = scmp.eq.s32.totalorder %s135, 0
      %p482 = por %p480, %p481
      %s484 = sadd.s32 %s483, 1
      %p487 = scmp.eq.s32.totalorder %s129, 1
      %p488 = scmp.ne.s32.totalorder %s483, %s485
      %p489 = scmp.eq.s32.totalorder %s129, 0
      %p490 = por %p488, %p489
      %p491 = scmp.ne.s32.totalorder %s483, %s485
      %p492 = scmp.eq.s32.totalorder %s134, 1
      %p493 = por %p491, %p492
      %p494 = scmp.ne.s32.totalorder %s485, %s486
      %p495 = scmp.eq.s32.totalorder %s134, 0
      %p496 = por %p494, %p495
      %p497 = scmp.ne.s32.totalorder %s485, %s486
      %p498 = scmp.eq.s32.totalorder %s135, 1
      %p499 = por %p497, %p498
      %p501 = scmp.ne.s32.totalorder %s486, %s500
      %p502 = scmp.eq.s32.totalorder %s135, 0
      %p503 = por %p501, %p502
      %s505 = sadd.s32 %s504, 1
      %p508 = scmp.eq.s32.totalorder %s129, 1
      %p509 = scmp.ne.s32.totalorder %s504, %s506
      %p510 = scmp.eq.s32.totalorder %s129, 0
      %p511 = por %p509, %p510
      %p512 = scmp.ne.s32.totalorder %s504, %s506
      %p513 = scmp.eq.s32.totalorder %s134, 1
      %p514 = por %p512, %p513
      %p515 = scmp.ne.s32.totalorder %s506, %s507
      %p516 = scmp.eq.s32.totalorder %s134, 0
      %p517 = por %p515, %p516
      %p518 = scmp.ne.s32.totalorder %s506, %s507
      %p519 = scmp.eq.s32.totalorder %s135, 1
      %p520 = por %p518, %p519
      %p522 = scmp.ne.s32.totalorder %s507, %s521
      %p523 = scmp.eq.s32.totalorder %s135, 0
      %p524 = por %p522, %p523
      %s526 = sadd.s32 %s525, 1
      %p529 = scmp.eq.s32.totalorder %s129, 1
      %p530 = scmp.ne.s32.totalorder %s525, %s527
      %p531 = scmp.eq.s32.totalorder %s129, 0
      %p532 = por %p530, %p531
      %p533 = scmp.ne.s32.totalorder %s525, %s527
      %p534 = scmp.eq.s32.totalorder %s134, 1
      %p535 = por %p533, %p534
      %p536 = scmp.ne.s32.totalorder %s527, %s528
      %p537 = scmp.eq.s32.totalorder %s134, 0
      %p538 = por %p536, %p537
      %p539 = scmp.ne.s32.totalorder %s527, %s528
      %p540 = scmp.eq.s32.totalorder %s135, 1
      %p541 = por %p539, %p540
      %p543 = scmp.ne.s32.totalorder %s528, %s542
      %p544 = scmp.eq.s32.totalorder %s135, 0
      %p545 = por %p543, %p544
      %s547 = sadd.s32 %s546, 1
      %p550 = scmp.eq.s32.totalorder %s129, 1
      %p551 = scmp.ne.s32.totalorder %s546, %s548
      %p552 = scmp.eq.s32.totalorder %s129, 0
      %p553 = por %p551, %p552
      %p554 = scmp.ne.s32.totalorder %s546, %s548
      %p555 = scmp.eq.s32.totalorder %s134, 1
      %p556 = por %p554, %p555
      %p557 = scmp.ne.s32.totalorder %s548, %s549
      %p558 = scmp.eq.s32.totalorder %s134, 0
      %p559 = por %p557, %p558
      %p560 = scmp.ne.s32.totalorder %s548, %s549
      %p561 = scmp.eq.s32.totalorder %s135, 1
      %p562 = por %p560, %p561
      %p564 = scmp.ne.s32.totalorder %s549, %s563
      %p565 = scmp.eq.s32.totalorder %s135, 0
      %p566 = por %p564, %p565
      %s568 = sadd.s32 %s567, 1
      %p571 = scmp.eq.s32.totalorder %s129, 1
      %p572 = scmp.ne.s32.totalorder %s567, %s569
      %p573 = scmp.eq.s32.totalorder %s129, 0
      %p574 = por %p572, %p573
      %p575 = scmp.ne.s32.totalorder %s567, %s569
      %p576 = scmp.eq.s32.totalorder %s134, 1
      %p577 = por %p575, %p576
      %p578 = scmp.ne.s32.totalorder %s569, %s570
      %p579 = scmp.eq.s32.totalorder %s134, 0
      %p580 = por %p578, %p579
      %p581 = scmp.ne.s32.totalorder %s569, %s570
      %p582 = scmp.eq.s32.totalorder %s135, 1
      %p583 = por %p581, %p582
      %p585 = scmp.ne.s32.totalorder %s570, %s584
      %p586 = scmp.eq.s32.totalorder %s135, 0
      %p587 = por %p585, %p586
      %s589 = sadd.s32 %s588, 1
      %p592 = scmp.eq.s32.totalorder %s129, 1
      %p593 = scmp.ne.s32.totalorder %s588, %s590
      %p594 = scmp.eq.s32.totalorder %s129, 0
      %p595 = por %p593, %p594
      %p596 = scmp.ne.s32.totalorder %s588, %s590
      %p597 = scmp.eq.s32.totalorder %s134, 1
      %p598 = por %p596, %p597
      %p599 = scmp.ne.s32.totalorder %s590, %s591
      %p600 = scmp.eq.s32.totalorder %s134, 0
      %p601 = por %p599, %p600
      %p602 = scmp.ne.s32.totalorder %s590, %s591
      %p603 = scmp.eq.s32.totalorder %s135, 1
      %p604 = por %p602, %p603
      %p606 = scmp.ne.s32.totalorder %s591, %s605
      %p607 = scmp.eq.s32.totalorder %s135, 0
      %p608 = por %p606, %p607
      %s610 = sadd.s32 %s609, 1
      %p613 = scmp.eq.s32.totalorder %s129, 1
      %p614 = scmp.ne.s32.totalorder %s609, %s611
      %p615 = scmp.eq.s32.totalorder %s129, 0
      %p616 = por %p614, %p615
      %p617 = scmp.ne.s32.totalorder %s609, %s611
      %p618 = scmp.eq.s32.totalorder %s134, 1
      %p619 = por %p617, %p618
      %p620 = scmp.ne.s32.totalorder %s611, %s612
      %p621 = scmp.eq.s32.totalorder %s134, 0
      %p622 = por %p620, %p621
      %p623 = scmp.ne.s32.totalorder %s611, %s612
      %p624 = scmp.eq.s32.totalorder %s135, 1
      %p625 = por %p623, %p624
      %p627 = scmp.ne.s32.totalorder %s612, %s626
      %p628 = scmp.eq.s32.totalorder %s135, 0
      %p629 = por %p627, %p628
      %s631 = sadd.s32 %s630, 1
      %p634 = scmp.eq.s32.totalorder %s129, 1
      %p635 = scmp.ne.s32.totalorder %s630, %s632
      %p636 = scmp.eq.s32.totalorder %s129, 0
      %p637 = por %p635, %p636
      %p638 = scmp.ne.s32.totalorder %s630, %s632
      %p639 = scmp.eq.s32.totalorder %s134, 1
      %p640 = por %p638, %p639
      %p641 = scmp.ne.s32.totalorder %s632, %s633
      %p642 = scmp.eq.s32.totalorder %s134, 0
      %p643 = por %p641, %p642
      %p644 = scmp.ne.s32.totalorder %s632, %s633
      %p645 = scmp.eq.s32.totalorder %s135, 1
      %p646 = por %p644, %p645
      %p648 = scmp.ne.s32.totalorder %s633, %s647
      %p649 = scmp.eq.s32.totalorder %s135, 0
      %p650 = por %p648, %p649
      %s652 = sadd.s32 %s651, 1
      %p655 = scmp.eq.s32.totalorder %s129, 1
      %p656 = scmp.ne.s32.totalorder %s651, %s653
      %p657 = scmp.eq.s32.totalorder %s129, 0
      %p658 = por %p656, %p657
      %p659 = scmp.ne.s32.totalorder %s651, %s653
      %p660 = scmp.eq.s32.totalorder %s134, 1
      %p661 = por %p659, %p660
      %p662 = scmp.ne.s32.totalorder %s653, %s654
      %p663 = scmp.eq.s32.totalorder %s134, 0
      %p664 = por %p662, %p663
      %p665 = scmp.ne.s32.totalorder %s653, %s654
      %p666 = scmp.eq.s32.totalorder %s135, 1
      %p667 = por %p665, %p666
      %p669 = scmp.ne.s32.totalorder %s654, %s668
      %p670 = scmp.eq.s32.totalorder %s135, 0
      %p671 = por %p669, %p670
      %s673 = sadd.s32 %s672, 1
      %p676 = scmp.eq.s32.totalorder %s129, 1
      %p677 = scmp.ne.s32.totalorder %s672, %s674
      %p678 = scmp.eq.s32.totalorder %s129, 0
      %p679 = por %p677, %p678
      %p680 = scmp.ne.s32.totalorder %s672, %s674
      %p681 = scmp.eq.s32.totalorder %s134, 1
      %p682 = por %p680, %p681
      %p683 = scmp.ne.s32.totalorder %s674, %s675
      %p684 = scmp.eq.s32.totalorder %s134, 0
      %p685 = por %p683, %p684
      %p686 = scmp.ne.s32.totalorder %s674, %s675
      %p687 = scmp.eq.s32.totalorder %s135, 1
      %p688 = por %p686, %p687
      %p690 = scmp.ne.s32.totalorder %s675, %s689
      %p691 = scmp.eq.s32.totalorder %s135, 0
      %p692 = por %p690, %p691
      %s694 = sadd.s32 %s693, 1
      %p697 = scmp.eq.s32.totalorder %s129, 1
      %p698 = scmp.ne.s32.totalorder %s693, %s695
      %p699 = scmp.eq.s32.totalorder %s129, 0
      %p700 = por %p698, %p699
      %p701 = scmp.ne.s32.totalorder %s693, %s695
      %p702 = scmp.eq.s32.totalorder %s134, 1
      %p703 = por %p701, %p702
      %p704 = scmp.ne.s32.totalorder %s695, %s696
      %p705 = scmp.eq.s32.totalorder %s134, 0
      %p706 = por %p704, %p705
      %p707 = scmp.ne.s32.totalorder %s695, %s696
      %p708 = scmp.eq.s32.totalorder %s135, 1
      %p709 = por %p707, %p708
      %p711 = scmp.ne.s32.totalorder %s696, %s710
      %p712 = scmp.eq.s32.totalorder %s135, 0
      %p713 = por %p711, %p712
      %s715 = sadd.s32 %s714, 1
      %p718 = scmp.eq.s32.totalorder %s129, 1
      %p719 = scmp.ne.s32.totalorder %s714, %s716
      %p720 = scmp.eq.s32.totalorder %s129, 0
      %p721 = por %p719, %p720
      %p722 = scmp.ne.s32.totalorder %s714, %s716
      %p723 = scmp.eq.s32.totalorder %s134, 1
      %p724 = por %p722, %p723
      %p725 = scmp.ne.s32.totalorder %s716, %s717
      %p726 = scmp.eq.s32.totalorder %s134, 0
      %p727 = por %p725, %p726
      %p728 = scmp.ne.s32.totalorder %s716, %s717
      %p729 = scmp.eq.s32.totalorder %s135, 1
      %p730 = por %p728, %p729
      %p732 = scmp.ne.s32.totalorder %s717, %s731
      %p733 = scmp.eq.s32.totalorder %s135, 0
      %p734 = por %p732, %p733
      %s736 = sadd.s32 %s735, 1
      %p739 = scmp.eq.s32.totalorder %s129, 1
      %p740 = scmp.ne.s32.totalorder %s735, %s737
      %p741 = scmp.eq.s32.totalorder %s129, 0
      %p742 = por %p740, %p741
      %p743 = scmp.ne.s32.totalorder %s735, %s737
      %p744 = scmp.eq.s32.totalorder %s134, 1
      %p745 = por %p743, %p744
      %p746 = scmp.ne.s32.totalorder %s737, %s738
      %p747 = scmp.eq.s32.totalorder %s134, 0
      %p748 = por %p746, %p747
      %p749 = scmp.ne.s32.totalorder %s737, %s738
      %p750 = scmp.eq.s32.totalorder %s135, 1
      %p751 = por %p749, %p750
      %p753 = scmp.ne.s32.totalorder %s738, %s752
      %p754 = scmp.eq.s32.totalorder %s135, 0
      %p755 = por %p753, %p754
      %s757 = sadd.s32 %s756, 1
      %p760 = scmp.eq.s32.totalorder %s129, 1
      %p761 = scmp.ne.s32.totalorder %s756, %s758
      %p762 = scmp.eq.s32.totalorder %s129, 0
      %p763 = por %p761, %p762
      %p764 = scmp.ne.s32.totalorder %s756, %s758
      %p765 = scmp.eq.s32.totalorder %s134, 1
      %p766 = por %p764, %p765
      %p767 = scmp.ne.s32.totalorder %s758, %s759
      %p768 = scmp.eq.s32.totalorder %s134, 0
      %p769 = por %p767, %p768
      %p770 = scmp.ne.s32.totalorder %s758, %s759
      %p771 = scmp.eq.s32.totalorder %s135, 1
      %p772 = por %p770, %p771
      %p774 = scmp.ne.s32.totalorder %s759, %s773
      %p775 = scmp.eq.s32.totalorder %s135, 0
      %p776 = por %p774, %p775
      %s778 = sadd.s32 %s777, 1
      %p781 = scmp.eq.s32.totalorder %s129, 1
      %p782 = scmp.ne.s32.totalorder %s777, %s779
      %p783 = scmp.eq.s32.totalorder %s129, 0
      %p784 = por %p782, %p783
      %p785 = scmp.ne.s32.totalorder %s777, %s779
      %p786 = scmp.eq.s32.totalorder %s134, 1
      %p787 = por %p785, %p786
      %p788 = scmp.ne.s32.totalorder %s779, %s780
      %p789 = scmp.eq.s32.totalorder %s134, 0
      %p790 = por %p788, %p789
      %p791 = scmp.ne.s32.totalorder %s779, %s780
      %p792 = scmp.eq.s32.totalorder %s135, 1
      %p793 = por %p791, %p792
      %p795 = scmp.ne.s32.totalorder %s780, %s794
      %p796 = scmp.eq.s32.totalorder %s135, 0
      %p797 = por %p795, %p796
      %s799 = sadd.s32 %s798, 1
      %p802 = scmp.eq.s32.totalorder %s129, 1
      %p803 = scmp.ne.s32.totalorder %s798, %s800
      %p804 = scmp.eq.s32.totalorder %s129, 0
      %p805 = por %p803, %p804
      %p806 = scmp.ne.s32.totalorder %s798, %s800
      %p807 = scmp.eq.s32.totalorder %s134, 1
      %p808 = por %p806, %p807
      %p809 = scmp.ne.s32.totalorder %s800, %s801
      %p810 = scmp.eq.s32.totalorder %s134, 0
      %p811 = por %p809, %p810
      %p812 = scmp.ne.s32.totalorder %s800, %s801
      %p813 = scmp.eq.s32.totalorder %s135, 1
      %p814 = por %p812, %p813
      %p816 = scmp.ne.s32.totalorder %s801, %s815
      %p817 = scmp.eq.s32.totalorder %s135, 0
      %p818 = por %p816, %p817
      %s820 = sadd.s32 %s819, 1
      %p823 = scmp.eq.s32.totalorder %s129, 1
      %p824 = scmp.ne.s32.totalorder %s819, %s821
      %p825 = scmp.eq.s32.totalorder %s129, 0
      %p826 = por %p824, %p825
      %p827 = scmp.ne.s32.totalorder %s819, %s821
      %p828 = scmp.eq.s32.totalorder %s134, 1
      %p829 = por %p827, %p828
      %p830 = scmp.ne.s32.totalorder %s821, %s822
      %p831 = scmp.eq.s32.totalorder %s134, 0
      %p832 = por %p830, %p831
      %p833 = scmp.ne.s32.totalorder %s821, %s822
      %p834 = scmp.eq.s32.totalorder %s135, 1
      %p835 = por %p833, %p834
      %p837 = scmp.ne.s32.totalorder %s822, %s836
      %p838 = scmp.eq.s32.totalorder %s135, 0
      %p839 = por %p837, %p838
      %s841 = sadd.s32 %s840, 1
      %p844 = scmp.eq.s32.totalorder %s129, 1
      %p845 = scmp.ne.s32.totalorder %s840, %s842
      %p846 = scmp.eq.s32.totalorder %s129, 0
      %p847 = por %p845, %p846
      %p848 = scmp.ne.s32.totalorder %s840, %s842
      %p849 = scmp.eq.s32.totalorder %s134, 1
      %p850 = por %p848, %p849
      %p851 = scmp.ne.s32.totalorder %s842, %s843
      %p852 = scmp.eq.s32.totalorder %s134, 0
      %p853 = por %p851, %p852
      %p854 = scmp.ne.s32.totalorder %s842, %s843
      %p855 = scmp.eq.s32.totalorder %s135, 1
      %p856 = por %p854, %p855
      %p858 = scmp.ne.s32.totalorder %s843, %s857
      %p859 = scmp.eq.s32.totalorder %s135, 0
      %p860 = por %p858, %p859
      %s862 = sadd.s32 %s861, 1
      %p865 = scmp.eq.s32.totalorder %s129, 1
      %p866 = scmp.ne.s32.totalorder %s861, %s863
      %p867 = scmp.eq.s32.totalorder %s129, 0
      %p868 = por %p866, %p867
      %p869 = scmp.ne.s32.totalorder %s861, %s863
      %p870 = scmp.eq.s32.totalorder %s134, 1
      %p871 = por %p869, %p870
      %p872 = scmp.ne.s32.totalorder %s863, %s864
      %p873 = scmp.eq.s32.totalorder %s134, 0
      %p874 = por %p872, %p873
      %p875 = scmp.ne.s32.totalorder %s863, %s864
      %p876 = scmp.eq.s32.totalorder %s135, 1
      %p877 = por %p875, %p876
      %p879 = scmp.ne.s32.totalorder %s864, %s878
      %p880 = scmp.eq.s32.totalorder %s135, 0
      %p881 = por %p879, %p880
      %s883 = sadd.s32 %s882, 1
      %p886 = scmp.eq.s32.totalorder %s129, 1
      %p887 = scmp.ne.s32.totalorder %s882, %s884
      %p888 = scmp.eq.s32.totalorder %s129, 0
      %p889 = por %p887, %p888
      %p890 = scmp.ne.s32.totalorder %s882, %s884
      %p891 = scmp.eq.s32.totalorder %s134, 1
      %p892 = por %p890, %p891
      %p893 = scmp.ne.s32.totalorder %s884, %s885
      %p894 = scmp.eq.s32.totalorder %s134, 0
      %p895 = por %p893, %p894
      %p896 = scmp.ne.s32.totalorder %s884, %s885
      %p897 = scmp.eq.s32.totalorder %s135, 1
      %p898 = por %p896, %p897
      %p900 = scmp.ne.s32.totalorder %s885, %s899
      %p901 = scmp.eq.s32.totalorder %s135, 0
      %p902 = por %p900, %p901
      %s904 = sadd.s32 %s903, 1
      %p907 = scmp.eq.s32.totalorder %s129, 1
      %p908 = scmp.ne.s32.totalorder %s903, %s905
      %p909 = scmp.eq.s32.totalorder %s129, 0
      %p910 = por %p908, %p909
      %p911 = scmp.ne.s32.totalorder %s903, %s905
      %p912 = scmp.eq.s32.totalorder %s134, 1
      %p913 = por %p911, %p912
      %p914 = scmp.ne.s32.totalorder %s905, %s906
      %p915 = scmp.eq.s32.totalorder %s134, 0
      %p916 = por %p914, %p915
      %p917 = scmp.ne.s32.totalorder %s905, %s906
      %p918 = scmp.eq.s32.totalorder %s135, 1
      %p919 = por %p917, %p918
      %p921 = scmp.ne.s32.totalorder %s906, %s920
      %p922 = scmp.eq.s32.totalorder %s135, 0
      %p923 = por %p921, %p922
      %s925 = sadd.s32 %s924, 1
      %p928 = scmp.eq.s32.totalorder %s129, 1
      %p929 = scmp.ne.s32.totalorder %s924, %s926
      %p930 = scmp.eq.s32.totalorder %s129, 0
      %p931 = por %p929, %p930
      %p932 = scmp.ne.s32.totalorder %s924, %s926
      %p933 = scmp.eq.s32.totalorder %s134, 1
      %p934 = por %p932, %p933
      %p935 = scmp.ne.s32.totalorder %s926, %s927
      %p936 = scmp.eq.s32.totalorder %s134, 0
      %p937 = por %p935, %p936
      %p938 = scmp.ne.s32.totalorder %s926, %s927
      %p939 = scmp.eq.s32.totalorder %s135, 1
      %p940 = por %p938, %p939
      %p942 = scmp.ne.s32.totalorder %s927, %s941
      %p943 = scmp.eq.s32.totalorder %s135, 0
      %p944 = por %p942, %p943
      %s946 = sadd.s32 %s945, 1
      %p949 = scmp.eq.s32.totalorder %s129, 1
      %p950 = scmp.ne.s32.totalorder %s945, %s947
      %p951 = scmp.eq.s32.totalorder %s129, 0
      %p952 = por %p950, %p951
      %p953 = scmp.ne.s32.totalorder %s945, %s947
      %p954 = scmp.eq.s32.totalorder %s134, 1
      %p955 = por %p953, %p954
      %p956 = scmp.ne.s32.totalorder %s947, %s948
      %p957 = scmp.eq.s32.totalorder %s134, 0
      %p958 = por %p956, %p957
      %p959 = scmp.ne.s32.totalorder %s947, %s948
      %p960 = scmp.eq.s32.totalorder %s135, 1
      %p961 = por %p959, %p960
      %p963 = scmp.ne.s32.totalorder %s948, %s962
      %p964 = scmp.eq.s32.totalorder %s135, 0
      %p965 = por %p963, %p964
      %s967 = sadd.s32 %s966, 1
      %p970 = scmp.eq.s32.totalorder %s129, 1
      %p971 = scmp.ne.s32.totalorder %s966, %s968
      %p972 = scmp.eq.s32.totalorder %s129, 0
      %p973 = por %p971, %p972
      %p974 = scmp.ne.s32.totalorder %s966, %s968
      %p975 = scmp.eq.s32.totalorder %s134, 1
      %p976 = por %p974, %p975
      %p977 = scmp.ne.s32.totalorder %s968, %s969
      %p978 = scmp.eq.s32.totalorder %s134, 0
      %p979 = por %p977, %p978
      %p980 = scmp.ne.s32.totalorder %s968, %s969
      %p981 = scmp.eq.s32.totalorder %s135, 1
      %p982 = por %p980, %p981
      %p984 = scmp.ne.s32.totalorder %s969, %s983
      %p985 = scmp.eq.s32.totalorder %s135, 0
      %p986 = por %p984, %p985
      %s988 = sadd.s32 %s987, 1
      %p991 = scmp.eq.s32.totalorder %s129, 1
      %p992 = scmp.ne.s32.totalorder %s987, %s989
      %p993 = scmp.eq.s32.totalorder %s129, 0
      %p994 = por %p992, %p993
      %p995 = scmp.ne.s32.totalorder %s987, %s989
      %p996 = scmp.eq.s32.totalorder %s134, 1
      %p997 = por %p995, %p996
      %p998 = scmp.ne.s32.totalorder %s989, %s990
      %p999 = scmp.eq.s32.totalorder %s134, 0
      %p1000 = por %p998, %p999
      %p1001 = scmp.ne.s32.totalorder %s989, %s990
      %p1002 = scmp.eq.s32.totalorder %s135, 1
      %p1003 = por %p1001, %p1002
      %p1005 = scmp.ne.s32.totalorder %s990, %s1004
      %p1006 = scmp.eq.s32.totalorder %s135, 0
      %p1007 = por %p1005, %p1006
      %s1009 = sadd.s32 %s1008, 1
      %p1012 = scmp.eq.s32.totalorder %s129, 1
      %p1013 = scmp.ne.s32.totalorder %s1008, %s1010
      %p1014 = scmp.eq.s32.totalorder %s129, 0
      %p1015 = por %p1013, %p1014
      %p1016 = scmp.ne.s32.totalorder %s1008, %s1010
      %p1017 = scmp.eq.s32.totalorder %s134, 1
      %p1018 = por %p1016, %p1017
      %p1019 = scmp.ne.s32.totalorder %s1010, %s1011
      %p1020 = scmp.eq.s32.totalorder %s134, 0
      %p1021 = por %p1019, %p1020
      %p1022 = scmp.ne.s32.totalorder %s1010, %s1011
      %p1023 = scmp.eq.s32.totalorder %s135, 1
      %p1024 = por %p1022, %p1023
      %p1026 = scmp.ne.s32.totalorder %s1011, %s1025
      %p1027 = scmp.eq.s32.totalorder %s135, 0
      %p1028 = por %p1026, %p1027
      %s1030 = sadd.s32 %s1029, 1
      %p1033 = scmp.eq.s32.totalorder %s129, 1
      %p1034 = scmp.ne.s32.totalorder %s1029, %s1031
      %p1035 = scmp.eq.s32.totalorder %s129, 0
      %p1036 = por %p1034, %p1035
      %p1037 = scmp.ne.s32.totalorder %s1029, %s1031
      %p1038 = scmp.eq.s32.totalorder %s134, 1
      %p1039 = por %p1037, %p1038
      %p1040 = scmp.ne.s32.totalorder %s1031, %s1032
      %p1041 = scmp.eq.s32.totalorder %s134, 0
      %p1042 = por %p1040, %p1041
      %p1043 = scmp.ne.s32.totalorder %s1031, %s1032
      %p1044 = scmp.eq.s32.totalorder %s135, 1
      %p1045 = por %p1043, %p1044
      %p1047 = scmp.ne.s32.totalorder %s1032, %s1046
      %p1048 = scmp.eq.s32.totalorder %s135, 0
      %p1049 = por %p1047, %p1048
      %s1051 = sadd.s32 %s1050, 1
      %p1054 = scmp.eq.s32.totalorder %s129, 1
      %p1055 = scmp.ne.s32.totalorder %s1050, %s1052
      %p1056 = scmp.eq.s32.totalorder %s129, 0
      %p1057 = por %p1055, %p1056
      %p1058 = scmp.ne.s32.totalorder %s1050, %s1052
      %p1059 = scmp.eq.s32.totalorder %s134, 1
      %p1060 = por %p1058, %p1059
      %p1061 = scmp.ne.s32.totalorder %s1052, %s1053
      %p1062 = scmp.eq.s32.totalorder %s134, 0
      %p1063 = por %p1061, %p1062
      %p1064 = scmp.ne.s32.totalorder %s1052, %s1053
      %p1065 = scmp.eq.s32.totalorder %s135, 1
      %p1066 = por %p1064, %p1065
      %p1068 = scmp.ne.s32.totalorder %s1053, %s1067
      %p1069 = scmp.eq.s32.totalorder %s135, 0
      %p1070 = por %p1068, %p1069
      %s1072 = sadd.s32 %s1071, 1
      %p1075 = scmp.eq.s32.totalorder %s129, 1
      %p1076 = scmp.ne.s32.totalorder %s1071, %s1073
      %p1077 = scmp.eq.s32.totalorder %s129, 0
      %p1078 = por %p1076, %p1077
      %p1079 = scmp.ne.s32.totalorder %s1071, %s1073
      %p1080 = scmp.eq.s32.totalorder %s134, 1
      %p1081 = por %p1079, %p1080
      %p1082 = scmp.ne.s32.totalorder %s1073, %s1074
      %p1083 = scmp.eq.s32.totalorder %s134, 0
      %p1084 = por %p1082, %p1083
      %p1085 = scmp.ne.s32.totalorder %s1073, %s1074
      %p1086 = scmp.eq.s32.totalorder %s135, 1
      %p1087 = por %p1085, %p1086
      %p1089 = scmp.ne.s32.totalorder %s1074, %s1088
      %p1090 = scmp.eq.s32.totalorder %s135, 0
      %p1091 = por %p1089, %p1090
      %s1093 = sadd.s32 %s1092, 1
      %p1096 = scmp.eq.s32.totalorder %s129, 1
      %p1097 = scmp.ne.s32.totalorder %s1092, %s1094
      %p1098 = scmp.eq.s32.totalorder %s129, 0
      %p1099 = por %p1097, %p1098
      %p1100 = scmp.ne.s32.totalorder %s1092, %s1094
      %p1101 = scmp.eq.s32.totalorder %s134, 1
      %p1102 = por %p1100, %p1101
      %p1103 = scmp.ne.s32.totalorder %s1094, %s1095
      %p1104 = scmp.eq.s32.totalorder %s134, 0
      %p1105 = por %p1103, %p1104
      %p1106 = scmp.ne.s32.totalorder %s1094, %s1095
      %p1107 = scmp.eq.s32.totalorder %s135, 1
      %p1108 = por %p1106, %p1107
      %p1110 = scmp.ne.s32.totalorder %s1095, %s1109
      %p1111 = scmp.eq.s32.totalorder %s135, 0
      %p1112 = por %p1110, %p1111
      %s1114 = sadd.s32 %s1113, 1
      %p1117 = scmp.eq.s32.totalorder %s129, 1
      %p1118 = scmp.ne.s32.totalorder %s1113, %s1115
      %p1119 = scmp.eq.s32.totalorder %s129, 0
      %p1120 = por %p1118, %p1119
      %p1121 = scmp.ne.s32.totalorder %s1113, %s1115
      %p1122 = scmp.eq.s32.totalorder %s134, 1
      %p1123 = por %p1121, %p1122
      %p1124 = scmp.ne.s32.totalorder %s1115, %s1116
      %p1125 = scmp.eq.s32.totalorder %s134, 0
      %p1126 = por %p1124, %p1125
      %p1127 = scmp.ne.s32.totalorder %s1115, %s1116
      %p1128 = scmp.eq.s32.totalorder %s135, 1
      %p1129 = por %p1127, %p1128
      %p1131 = scmp.ne.s32.totalorder %s1116, %s1130
      %p1132 = scmp.eq.s32.totalorder %s135, 0
      %p1133 = por %p1131, %p1132
      %s1135 = sadd.s32 %s1134, 1
      %p1138 = scmp.eq.s32.totalorder %s129, 1
      %p1139 = scmp.ne.s32.totalorder %s1134, %s1136
      %p1140 = scmp.eq.s32.totalorder %s129, 0
      %p1141 = por %p1139, %p1140
      %p1142 = scmp.ne.s32.totalorder %s1134, %s1136
      %p1143 = scmp.eq.s32.totalorder %s134, 1
      %p1144 = por %p1142, %p1143
      %p1145 = scmp.ne.s32.totalorder %s1136, %s1137
      %p1146 = scmp.eq.s32.totalorder %s134, 0
      %p1147 = por %p1145, %p1146
      %p1148 = scmp.ne.s32.totalorder %s1136, %s1137
      %p1149 = scmp.eq.s32.totalorder %s135, 1
      %p1150 = por %p1148, %p1149
      %p1152 = scmp.ne.s32.totalorder %s1137, %s1151
      %p1153 = scmp.eq.s32.totalorder %s135, 0
      %p1154 = por %p1152, %p1153
      %s1156 = sadd.s32 %s1155, 1
      %p1159 = scmp.eq.s32.totalorder %s129, 1
      %p1160 = scmp.ne.s32.totalorder %s1155, %s1157
      %p1161 = scmp.eq.s32.totalorder %s129, 0
      %p1162 = por %p1160, %p1161
      %p1163 = scmp.ne.s32.totalorder %s1155, %s1157
      %p1164 = scmp.eq.s32.totalorder %s134, 1
      %p1165 = por %p1163, %p1164
      %p1166 = scmp.ne.s32.totalorder %s1157, %s1158
      %p1167 = scmp.eq.s32.totalorder %s134, 0
      %p1168 = por %p1166, %p1167
      %p1169 = scmp.ne.s32.totalorder %s1157, %s1158
      %p1170 = scmp.eq.s32.totalorder %s135, 1
      %p1171 = por %p1169, %p1170
      %p1173 = scmp.ne.s32.totalorder %s1158, %s1172
      %p1174 = scmp.eq.s32.totalorder %s135, 0
      %p1175 = por %p1173, %p1174
      %s1177 = sadd.s32 %s1176, 1
      %p1180 = scmp.eq.s32.totalorder %s129, 1
      %p1181 = scmp.ne.s32.totalorder %s1176, %s1178
      %p1182 = scmp.eq.s32.totalorder %s129, 0
      %p1183 = por %p1181, %p1182
      %p1184 = scmp.ne.s32.totalorder %s1176, %s1178
      %p1185 = scmp.eq.s32.totalorder %s134, 1
      %p1186 = por %p1184, %p1185
      %p1187 = scmp.ne.s32.totalorder %s1178, %s1179
      %p1188 = scmp.eq.s32.totalorder %s134, 0
      %p1189 = por %p1187, %p1188
      %p1190 = scmp.ne.s32.totalorder %s1178, %s1179
      %p1191 = scmp.eq.s32.totalorder %s135, 1
      %p1192 = por %p1190, %p1191
      %p1194 = scmp.ne.s32.totalorder %s1179, %s1193
      %p1195 = scmp.eq.s32.totalorder %s135, 0
      %p1196 = por %p1194, %p1195
      %s1198 = sadd.s32 %s1197, 1
      %p1201 = scmp.eq.s32.totalorder %s129, 1
      %p1202 = scmp.ne.s32.totalorder %s1197, %s1199
      %p1203 = scmp.eq.s32.totalorder %s129, 0
      %p1204 = por %p1202, %p1203
      %p1205 = scmp.ne.s32.totalorder %s1197, %s1199
      %p1206 = scmp.eq.s32.totalorder %s134, 1
      %p1207 = por %p1205, %p1206
      %p1208 = scmp.ne.s32.totalorder %s1199, %s1200
      %p1209 = scmp.eq.s32.totalorder %s134, 0
      %p1210 = por %p1208, %p1209
      %p1211 = scmp.ne.s32.totalorder %s1199, %s1200
      %p1212 = scmp.eq.s32.totalorder %s135, 1
      %p1213 = por %p1211, %p1212
      %p1215 = scmp.ne.s32.totalorder %s1200, %s1214
      %p1216 = scmp.eq.s32.totalorder %s135, 0
      %p1217 = por %p1215, %p1216
      %s1219 = sadd.s32 %s1218, 1
      %p1222 = scmp.eq.s32.totalorder %s129, 1
      %p1223 = scmp.ne.s32.totalorder %s1218, %s1220
      %p1224 = scmp.eq.s32.totalorder %s129, 0
      %p1225 = por %p1223, %p1224
      %p1226 = scmp.ne.s32.totalorder %s1218, %s1220
      %p1227 = scmp.eq.s32.totalorder %s134, 1
      %p1228 = por %p1226, %p1227
      %p1229 = scmp.ne.s32.totalorder %s1220, %s1221
      %p1230 = scmp.eq.s32.totalorder %s134, 0
      %p1231 = por %p1229, %p1230
      %p1232 = scmp.ne.s32.totalorder %s1220, %s1221
      %p1233 = scmp.eq.s32.totalorder %s135, 1
      %p1234 = por %p1232, %p1233
      %p1236 = scmp.ne.s32.totalorder %s1221, %s1235
      %p1237 = scmp.eq.s32.totalorder %s135, 0
      %p1238 = por %p1236, %p1237
      %s1240 = sadd.s32 %s1239, 1
      %p1243 = scmp.eq.s32.totalorder %s129, 1
      %p1244 = scmp.ne.s32.totalorder %s1239, %s1241
      %p1245 = scmp.eq.s32.totalorder %s129, 0
      %p1246 = por %p1244, %p1245
      %p1247 = scmp.ne.s32.totalorder %s1239, %s1241
      %p1248 = scmp.eq.s32.totalorder %s134, 1
      %p1249 = por %p1247, %p1248
      %p1250 = scmp.ne.s32.totalorder %s1241, %s1242
      %p1251 = scmp.eq.s32.totalorder %s134, 0
      %p1252 = por %p1250, %p1251
      %p1253 = scmp.ne.s32.totalorder %s1241, %s1242
      %p1254 = scmp.eq.s32.totalorder %s135, 1
      %p1255 = por %p1253, %p1254
      %p1257 = scmp.ne.s32.totalorder %s1242, %s1256
      %p1258 = scmp.eq.s32.totalorder %s135, 0
      %p1259 = por %p1257, %p1258
      %s1261 = sadd.s32 %s1260, 1
      %p1264 = scmp.eq.s32.totalorder %s129, 1
      %p1265 = scmp.ne.s32.totalorder %s1260, %s1262
      %p1266 = scmp.eq.s32.totalorder %s129, 0
      %p1267 = por %p1265, %p1266
      %p1268 = scmp.ne.s32.totalorder %s1260, %s1262
      %p1269 = scmp.eq.s32.totalorder %s134, 1
      %p1270 = por %p1268, %p1269
      %p1271 = scmp.ne.s32.totalorder %s1262, %s1263
      %p1272 = scmp.eq.s32.totalorder %s134, 0
      %p1273 = por %p1271, %p1272
      %p1274 = scmp.ne.s32.totalorder %s1262, %s1263
      %p1275 = scmp.eq.s32.totalorder %s135, 1
      %p1276 = por %p1274, %p1275
      %p1278 = scmp.ne.s32.totalorder %s1263, %s1277
      %p1279 = scmp.eq.s32.totalorder %s135, 0
      %p1280 = por %p1278, %p1279
      %s1282 = sadd.s32 %s1281, 1
      %p1285 = scmp.eq.s32.totalorder %s129, 1
      %p1286 = scmp.ne.s32.totalorder %s1281, %s1283
      %p1287 = scmp.eq.s32.totalorder %s129, 0
      %p1288 = por %p1286, %p1287
      %p1289 = scmp.ne.s32.totalorder %s1281, %s1283
      %p1290 = scmp.eq.s32.totalorder %s134, 1
      %p1291 = por %p1289, %p1290
      %p1292 = scmp.ne.s32.totalorder %s1283, %s1284
      %p1293 = scmp.eq.s32.totalorder %s134, 0
      %p1294 = por %p1292, %p1293
      %p1295 = scmp.ne.s32.totalorder %s1283, %s1284
      %p1296 = scmp.eq.s32.totalorder %s135, 1
      %p1297 = por %p1295, %p1296
      %p1299 = scmp.ne.s32.totalorder %s1284, %s1298
      %p1300 = scmp.eq.s32.totalorder %s135, 0
      %p1301 = por %p1299, %p1300
      %s1302 = ssub.s32 %s129, %s136
      %p1303 = scmp.eq.s32.totalorder %s1302, 0
      %s1305 = sadd.s32 %s1304, 1
      %s1306 = scalar_select %p1303, %s1304, %s1305
      %p1309 = pneg %p1303
      %p1310 = scmp.eq.s32.totalorder %s129, 1
      %p1311 = por %p1309, %p1310
      %p1312 = scmp.ne.s32.totalorder %s1304, %s1307
      %p1313 = scmp.eq.s32.totalorder %s129, 0
      %p1314 = por %p1312, %p1313
      %p1315 = scmp.ne.s32.totalorder %s1304, %s1307
      %p1316 = scmp.eq.s32.totalorder %s134, 1
      %p1317 = por %p1315, %p1316
      %p1318 = scmp.ne.s32.totalorder %s1307, %s1308
      %p1319 = scmp.eq.s32.totalorder %s134, 0
      %p1320 = por %p1318, %p1319
      %p1321 = scmp.ne.s32.totalorder %s1307, %s1308
      %p1322 = scmp.eq.s32.totalorder %s135, 1
      %p1323 = por %p1321, %p1322
      %p1325 = scmp.ne.s32.totalorder %s1308, %s1324
      %p1326 = scmp.eq.s32.totalorder %s135, 0
      %p1327 = por %p1325, %p1326
      %p1328 = scmp.le.s32.totalorder 1, %s129
      %p1329 = scmp.lt.s32.totalorder %s129, 3
      %p1330 = pnand %p1328, %p1329
      %p1331 = pneg %p1330
      // Predicated region
      $region9: #{tpu_custom_call.1} parent=5 // pred_check
        _
      $region10: #{tpu_custom_call.1} parent=5 // pred_check_branch
        %1333 = sbr.rel (%p1330) target = $region12
      $region11: #{tpu_custom_call.1} parent=5 // pred_region
        %s1334 = ssub.s32 %s129, 1
        // Predicated region
        $region13: #{tpu_custom_call.1} parent=11 // pred_check
          %p1335 = pneg %p176
        $region14: #{tpu_custom_call.1} parent=11 // pred_check_branch
          %1337 = sbr.rel (%p1335) target = $region16
        $region15: #{tpu_custom_call.1} parent=11 // pred_region
          _
        $region16: #{tpu_custom_call.1} parent=11 // pred_fallthru
          _
        // Predicated region
        $region17: #{tpu_custom_call.1} parent=11 // pred_check
          %p1338 = pneg %p223
        $region18: #{tpu_custom_call.1} parent=11 // pred_check_branch
          %1340 = sbr.rel (%p1338) target = $region20
        $region19: #{tpu_custom_call.1} parent=11 // pred_region
          _
        $region20: #{tpu_custom_call.1} parent=11 // pred_fallthru
          _
        // Predicated region
        $region21: #{tpu_custom_call.1} parent=11 // pred_check
          %p1341 = pneg %p244
        $region22: #{tpu_custom_call.1} parent=11 // pred_check_branch
          %1343 = sbr.rel (%p1341) target = $region24
        $region23: #{tpu_custom_call.1} parent=11 // pred_region
          _
        $region24: #{tpu_custom_call.1} parent=11 // pred_fallthru
          _
        // Predicated region
        $region25: #{tpu_custom_call.1} parent=11 // pred_check
          %p1344 = pneg %p265
        $region26: #{tpu_custom_call.1} parent=11 // pred_check_branch
          %1346 = sbr.rel (%p1344) target = $region28
        $region27: #{tpu_custom_call.1} parent=11 // pred_region
          _
        $region28: #{tpu_custom_call.1} parent=11 // pred_fallthru
          _
        // Predicated region
        $region29: #{tpu_custom_call.1} parent=11 // pred_check
          %p1347 = pneg %p286
        $region30: #{tpu_custom_call.1} parent=11 // pred_check_branch
          %1349 = sbr.rel (%p1347) target = $region32
        $region31: #{tpu_custom_call.1} parent=11 // pred_region
          _
        $region32: #{tpu_custom_call.1} parent=11 // pred_fallthru
          _
        // Predicated region
        $region33: #{tpu_custom_call.1} parent=11 // pred_check
          %p1350 = pneg %p307
        $region34: #{tpu_custom_call.1} parent=11 // pred_check_branch
          %1352 = sbr.rel (%p1350) target = $region36
        $region35: #{tpu_custom_call.1} parent=11 // pred_region
          _
        $region36: #{tpu_custom_call.1} parent=11 // pred_fallthru
          _
        // Predicated region
        $region37: #{tpu_custom_call.1} parent=11 // pred_check
          %p1353 = pneg %p328
        $region38: #{tpu_custom_call.1} parent=11 // pred_check_branch
          %1355 = sbr.rel (%p1353) target = $region40
        $region39: #{tpu_custom_call.1} parent=11 // pred_region
          _
        $region40: #{tpu_custom_call.1} parent=11 // pred_fallthru
          _
        // Predicated region
        $region41: #{tpu_custom_call.1} parent=11 // pred_check
          %p1356 = pneg %p349
        $region42: #{tpu_custom_call.1} parent=11 // pred_check_branch
          %1358 = sbr.rel (%p1356) target = $region44
        $region43: #{tpu_custom_call.1} parent=11 // pred_region
          _
        $region44: #{tpu_custom_call.1} parent=11 // pred_fallthru
          _
        // Predicated region
        $region45: #{tpu_custom_call.1} parent=11 // pred_check
          %p1359 = pneg %p370
        $region46: #{tpu_custom_call.1} parent=11 // pred_check_branch
          %1361 = sbr.rel (%p1359) target = $region48
        $region47: #{tpu_custom_call.1} parent=11 // pred_region
          _
        $region48: #{tpu_custom_call.1} parent=11 // pred_fallthru
          _
        // Predicated region
        $region49: #{tpu_custom_call.1} parent=11 // pred_check
          %p1362 = pneg %p391
        $region50: #{tpu_custom_call.1} parent=11 // pred_check_branch
          %1364 = sbr.rel (%p1362) target = $region52
        $region51: #{tpu_custom_call.1} parent=11 // pred_region
          _
        $region52: #{tpu_custom_call.1} parent=11 // pred_fallthru
          _
        // Predicated region
        $region53: #{tpu_custom_call.1} parent=11 // pred_check
          %p1365 = pneg %p412
        $region54: #{tpu_custom_call.1} parent=11 // pred_check_branch
          %1367 = sbr.rel (%p1365) target = $region56
        $region55: #{tpu_custom_call.1} parent=11 // pred_region
          _
        $region56: #{tpu_custom_call.1} parent=11 // pred_fallthru
          _
        // Predicated region
        $region57: #{tpu_custom_call.1} parent=11 // pred_check
          %p1368 = pneg %p433
        $region58: #{tpu_custom_call.1} parent=11 // pred_check_branch
          %1370 = sbr.rel (%p1368) target = $region60
        $region59: #{tpu_custom_call.1} parent=11 // pred_region
          _
        $region60: #{tpu_custom_call.1} parent=11 // pred_fallthru
          _
        // Predicated region
        $region61: #{tpu_custom_call.1} parent=11 // pred_check
          %p1371 = pneg %p454
        $region62: #{tpu_custom_call.1} parent=11 // pred_check_branch
          %1373 = sbr.rel (%p1371) target = $region64
        $region63: #{tpu_custom_call.1} parent=11 // pred_region
          _
        $region64: #{tpu_custom_call.1} parent=11 // pred_fallthru
          _
        // Predicated region
        $region65: #{tpu_custom_call.1} parent=11 // pred_check
          %p1374 = pneg %p475
        $region66: #{tpu_custom_call.1} parent=11 // pred_check_branch
          %1376 = sbr.rel (%p1374) target = $region68
        $region67: #{tpu_custom_call.1} parent=11 // pred_region
          _
        $region68: #{tpu_custom_call.1} parent=11 // pred_fallthru
          _
        // Predicated region
        $region69: #{tpu_custom_call.1} parent=11 // pred_check
          %p1377 = pneg %p496
        $region70: #{tpu_custom_call.1} parent=11 // pred_check_branch
          %1379 = sbr.rel (%p1377) target = $region72
        $region71: #{tpu_custom_call.1} parent=11 // pred_region
          _
        $region72: #{tpu_custom_call.1} parent=11 // pred_fallthru
          _
        // Predicated region
        $region73: #{tpu_custom_call.1} parent=11 // pred_check
          %p1380 = pneg %p517
        $region74: #{tpu_custom_call.1} parent=11 // pred_check_branch
          %1382 = sbr.rel (%p1380) target = $region76
        $region75: #{tpu_custom_call.1} parent=11 // pred_region
          _
        $region76: #{tpu_custom_call.1} parent=11 // pred_fallthru
          _
        // Predicated region
        $region77: #{tpu_custom_call.1} parent=11 // pred_check
          %p1383 = pneg %p538
        $region78: #{tpu_custom_call.1} parent=11 // pred_check_branch
          %1385 = sbr.rel (%p1383) target = $region80
        $region79: #{tpu_custom_call.1} parent=11 // pred_region
          _
        $region80: #{tpu_custom_call.1} parent=11 // pred_fallthru
          _
        // Predicated region
        $region81: #{tpu_custom_call.1} parent=11 // pred_check
          %p1386 = pneg %p559
        $region82: #{tpu_custom_call.1} parent=11 // pred_check_branch
          %1388 = sbr.rel (%p1386) target = $region84
        $region83: #{tpu_custom_call.1} parent=11 // pred_region
          _
        $region84: #{tpu_custom_call.1} parent=11 // pred_fallthru
          _
        // Predicated region
        $region85: #{tpu_custom_call.1} parent=11 // pred_check
          %p1389 = pneg %p580
        $region86: #{tpu_custom_call.1} parent=11 // pred_check_branch
          %1391 = sbr.rel (%p1389) target = $region88
        $region87: #{tpu_custom_call.1} parent=11 // pred_region
          _
        $region88: #{tpu_custom_call.1} parent=11 // pred_fallthru
          _
        // Predicated region
        $region89: #{tpu_custom_call.1} parent=11 // pred_check
          %p1392 = pneg %p601
        $region90: #{tpu_custom_call.1} parent=11 // pred_check_branch
          %1394 = sbr.rel (%p1392) target = $region92
        $region91: #{tpu_custom_call.1} parent=11 // pred_region
          _
        $region92: #{tpu_custom_call.1} parent=11 // pred_fallthru
          _
        // Predicated region
        $region93: #{tpu_custom_call.1} parent=11 // pred_check
          %p1395 = pneg %p622
        $region94: #{tpu_custom_call.1} parent=11 // pred_check_branch
          %1397 = sbr.rel (%p1395) target = $region96
        $region95: #{tpu_custom_call.1} parent=11 // pred_region
          _
        $region96: #{tpu_custom_call.1} parent=11 // pred_fallthru
          _
        // Predicated region
        $region97: #{tpu_custom_call.1} parent=11 // pred_check
          %p1398 = pneg %p643
        $region98: #{tpu_custom_call.1} parent=11 // pred_check_branch
          %1400 = sbr.rel (%p1398) target = $region100
        $region99: #{tpu_custom_call.1} parent=11 // pred_region
          _
        $region100: #{tpu_custom_call.1} parent=11 // pred_fallthru
          _
        // Predicated region
        $region101: #{tpu_custom_call.1} parent=11 // pred_check
          %p1401 = pneg %p664
        $region102: #{tpu_custom_call.1} parent=11 // pred_check_branch
          %1403 = sbr.rel (%p1401) target = $region104
        $region103: #{tpu_custom_call.1} parent=11 // pred_region
          _
        $region104: #{tpu_custom_call.1} parent=11 // pred_fallthru
          _
        // Predicated region
        $region105: #{tpu_custom_call.1} parent=11 // pred_check
          %p1404 = pneg %p685
        $region106: #{tpu_custom_call.1} parent=11 // pred_check_branch
          %1406 = sbr.rel (%p1404) target = $region108
        $region107: #{tpu_custom_call.1} parent=11 // pred_region
          _
        $region108: #{tpu_custom_call.1} parent=11 // pred_fallthru
          _
        // Predicated region
        $region109: #{tpu_custom_call.1} parent=11 // pred_check
          %p1407 = pneg %p706
        $region110: #{tpu_custom_call.1} parent=11 // pred_check_branch
          %1409 = sbr.rel (%p1407) target = $region112
        $region111: #{tpu_custom_call.1} parent=11 // pred_region
          _
        $region112: #{tpu_custom_call.1} parent=11 // pred_fallthru
          _
        // Predicated region
        $region113: #{tpu_custom_call.1} parent=11 // pred_check
          %p1410 = pneg %p727
        $region114: #{tpu_custom_call.1} parent=11 // pred_check_branch
          %1412 = sbr.rel (%p1410) target = $region116
        $region115: #{tpu_custom_call.1} parent=11 // pred_region
          _
        $region116: #{tpu_custom_call.1} parent=11 // pred_fallthru
          _
        // Predicated region
        $region117: #{tpu_custom_call.1} parent=11 // pred_check
          %p1413 = pneg %p748
        $region118: #{tpu_custom_call.1} parent=11 // pred_check_branch
          %1415 = sbr.rel (%p1413) target = $region120
        $region119: #{tpu_custom_call.1} parent=11 // pred_region
          _
        $region120: #{tpu_custom_call.1} parent=11 // pred_fallthru
          _
        // Predicated region
        $region121: #{tpu_custom_call.1} parent=11 // pred_check
          %p1416 = pneg %p769
        $region122: #{tpu_custom_call.1} parent=11 // pred_check_branch
          %1418 = sbr.rel (%p1416) target = $region124
        $region123: #{tpu_custom_call.1} parent=11 // pred_region
          _
        $region124: #{tpu_custom_call.1} parent=11 // pred_fallthru
          _
        // Predicated region
        $region125: #{tpu_custom_call.1} parent=11 // pred_check
          %p1419 = pneg %p790
        $region126: #{tpu_custom_call.1} parent=11 // pred_check_branch
          %1421 = sbr.rel (%p1419) target = $region128
        $region127: #{tpu_custom_call.1} parent=11 // pred_region
          _
        $region128: #{tpu_custom_call.1} parent=11 // pred_fallthru
          _
        // Predicated region
        $region129: #{tpu_custom_call.1} parent=11 // pred_check
          %p1422 = pneg %p811
        $region130: #{tpu_custom_call.1} parent=11 // pred_check_branch
          %1424 = sbr.rel (%p1422) target = $region132
        $region131: #{tpu_custom_call.1} parent=11 // pred_region
          _
        $region132: #{tpu_custom_call.1} parent=11 // pred_fallthru
          _
        // Predicated region
        $region133: #{tpu_custom_call.1} parent=11 // pred_check
          %p1425 = pneg %p832
        $region134: #{tpu_custom_call.1} parent=11 // pred_check_branch
          %1427 = sbr.rel (%p1425) target = $region136
        $region135: #{tpu_custom_call.1} parent=11 // pred_region
          _
        $region136: #{tpu_custom_call.1} parent=11 // pred_fallthru
          _
        // Predicated region
        $region137: #{tpu_custom_call.1} parent=11 // pred_check
          %p1428 = pneg %p853
        $region138: #{tpu_custom_call.1} parent=11 // pred_check_branch
          %1430 = sbr.rel (%p1428) target = $region140
        $region139: #{tpu_custom_call.1} parent=11 // pred_region
          _
        $region140: #{tpu_custom_call.1} parent=11 // pred_fallthru
          _
        // Predicated region
        $region141: #{tpu_custom_call.1} parent=11 // pred_check
          %p1431 = pneg %p874
        $region142: #{tpu_custom_call.1} parent=11 // pred_check_branch
          %1433 = sbr.rel (%p1431) target = $region144
        $region143: #{tpu_custom_call.1} parent=11 // pred_region
          %s1435 = ssub.s32 16, 16
          %1436 = vsyncadd [#allocation4], %s1435
          %s1438 = sshll.u32 [#allocation3], 4
          %s1439 = int_to_ptr.vmem [resolvable:$true] %s1438
          %1441 = dma.hbm_to_vmem [thread:$0]  %s69, 16, %s1439, [#allocation4]
        $region144: #{tpu_custom_call.1} parent=11 // pred_fallthru
          _
        // Predicated region
        $region145: #{tpu_custom_call.1} parent=11 // pred_check
          %p1442 = pneg %p895
        $region146: #{tpu_custom_call.1} parent=11 // pred_check_branch
          %1444 = sbr.rel (%p1442) target = $region148
        $region147: #{tpu_custom_call.1} parent=11 // pred_region
          %s1446 = ssub.s32 16, 16
          %1447 = vsyncadd [#allocation7], %s1446
          %s1449 = sshll.u32 [#allocation6], 4
          %s1450 = int_to_ptr.vmem [resolvable:$true] %s1449
          %1452 = dma.hbm_to_vmem [thread:$0]  %s71, 16, %s1450, [#allocation7]
        $region148: #{tpu_custom_call.1} parent=11 // pred_fallthru
          _
        // Predicated region
        $region149: #{tpu_custom_call.1} parent=11 // pred_check
          %p1453 = pneg %p916
        $region150: #{tpu_custom_call.1} parent=11 // pred_check_branch
          %1455 = sbr.rel (%p1453) target = $region152
        $region151: #{tpu_custom_call.1} parent=11 // pred_region
          %s1457 = ssub.s32 16, 16
          %1458 = vsyncadd [#allocation7], %s1457
          %s1460 = sshll.u32 [#allocation8], 4
          %s1461 = int_to_ptr.vmem [resolvable:$true] %s1460
          %1463 = dma.hbm_to_vmem [thread:$0]  %s73, 16, %s1461, [#allocation7]
        $region152: #{tpu_custom_call.1} parent=11 // pred_fallthru
          _
        // Predicated region
        $region153: #{tpu_custom_call.1} parent=11 // pred_check
          %p1464 = pneg %p937
        $region154: #{tpu_custom_call.1} parent=11 // pred_check_branch
          %1466 = sbr.rel (%p1464) target = $region156
        $region155: #{tpu_custom_call.1} parent=11 // pred_region
          _
        $region156: #{tpu_custom_call.1} parent=11 // pred_fallthru
          _
        // Predicated region
        $region157: #{tpu_custom_call.1} parent=11 // pred_check
          %p1467 = pneg %p958
        $region158: #{tpu_custom_call.1} parent=11 // pred_check_branch
          %1469 = sbr.rel (%p1467) target = $region160
        $region159: #{tpu_custom_call.1} parent=11 // pred_region
          %s1471 = ssub.s32 16, 16
          %1472 = vsyncadd [#allocation10], %s1471
          %s1474 = sshll.u32 [#allocation9], 4
          %s1475 = int_to_ptr.vmem [resolvable:$true] %s1474
          %1477 = dma.hbm_to_vmem [thread:$0]  %s77, 16, %s1475, [#allocation10]
        $region160: #{tpu_custom_call.1} parent=11 // pred_fallthru
          _
        // Predicated region
        $region161: #{tpu_custom_call.1} parent=11 // pred_check
          %p1478 = pneg %p979
        $region162: #{tpu_custom_call.1} parent=11 // pred_check_branch
          %1480 = sbr.rel (%p1478) target = $region164
        $region163: #{tpu_custom_call.1} parent=11 // pred_region
          _
        $region164: #{tpu_custom_call.1} parent=11 // pred_fallthru
          _
        // Predicated region
        $region165: #{tpu_custom_call.1} parent=11 // pred_check
          %p1481 = pneg %p1000
        $region166: #{tpu_custom_call.1} parent=11 // pred_check_branch
          %1483 = sbr.rel (%p1481) target = $region168
        $region167: #{tpu_custom_call.1} parent=11 // pred_region
          %s1485 = ssub.s32 16, 16
          %1486 = vsyncadd [#allocation10], %s1485
          %s1488 = sshll.u32 [#allocation11], 4
          %s1489 = int_to_ptr.vmem [resolvable:$true] %s1488
          %1491 = dma.hbm_to_vmem [thread:$0]  %s81, 16, %s1489, [#allocation10]
        $region168: #{tpu_custom_call.1} parent=11 // pred_fallthru
          _
        // Predicated region
        $region169: #{tpu_custom_call.1} parent=11 // pred_check
          %p1492 = pneg %p1021
        $region170: #{tpu_custom_call.1} parent=11 // pred_check_branch
          %1494 = sbr.rel (%p1492) target = $region172
        $region171: #{tpu_custom_call.1} parent=11 // pred_region
          _
        $region172: #{tpu_custom_call.1} parent=11 // pred_fallthru
          _
        // Predicated region
        $region173: #{tpu_custom_call.1} parent=11 // pred_check
          %p1495 = pneg %p1042
        $region174: #{tpu_custom_call.1} parent=11 // pred_check_branch
          %1497 = sbr.rel (%p1495) target = $region176
        $region175: #{tpu_custom_call.1} parent=11 // pred_region
          %s1499 = ssub.s32 16, 16
          %1500 = vsyncadd [#allocation13], %s1499
          %s1502 = sshll.u32 [#allocation12], 4
          %s1503 = int_to_ptr.vmem [resolvable:$true] %s1502
          %1505 = dma.hbm_to_vmem [thread:$0]  %s85, 16, %s1503, [#allocation13]
        $region176: #{tpu_custom_call.1} parent=11 // pred_fallthru
          _
        // Predicated region
        $region177: #{tpu_custom_call.1} parent=11 // pred_check
          %p1506 = pneg %p1063
        $region178: #{tpu_custom_call.1} parent=11 // pred_check_branch
          %1508 = sbr.rel (%p1506) target = $region180
        $region179: #{tpu_custom_call.1} parent=11 // pred_region
          %s1510 = ssub.s32 16, 16
          %1511 = vsyncadd [#allocation13], %s1510
          %s1513 = sshll.u32 [#allocation14], 4
          %s1514 = int_to_ptr.vmem [resolvable:$true] %s1513
          %1516 = dma.hbm_to_vmem [thread:$0]  %s87, 16, %s1514, [#allocation13]
        $region180: #{tpu_custom_call.1} parent=11 // pred_fallthru
          _
        // Predicated region
        $region181: #{tpu_custom_call.1} parent=11 // pred_check
          %p1517 = pneg %p1084
        $region182: #{tpu_custom_call.1} parent=11 // pred_check_branch
          %1519 = sbr.rel (%p1517) target = $region184
        $region183: #{tpu_custom_call.1} parent=11 // pred_region
          %s1521 = ssub.s32 16, 16
          %1522 = vsyncadd [#allocation16], %s1521
          %s1524 = sshll.u32 [#allocation15], 4
          %s1525 = int_to_ptr.vmem [resolvable:$true] %s1524
          %1527 = dma.hbm_to_vmem [thread:$0]  %s89, 16, %s1525, [#allocation16]
        $region184: #{tpu_custom_call.1} parent=11 // pred_fallthru
          _
        // Predicated region
        $region185: #{tpu_custom_call.1} parent=11 // pred_check
          %p1528 = pneg %p1105
        $region186: #{tpu_custom_call.1} parent=11 // pred_check_branch
          %1530 = sbr.rel (%p1528) target = $region188
        $region187: #{tpu_custom_call.1} parent=11 // pred_region
          _
        $region188: #{tpu_custom_call.1} parent=11 // pred_fallthru
          _
        // Predicated region
        $region189: #{tpu_custom_call.1} parent=11 // pred_check
          %p1531 = pneg %p1126
        $region190: #{tpu_custom_call.1} parent=11 // pred_check_branch
          %1533 = sbr.rel (%p1531) target = $region192
        $region191: #{tpu_custom_call.1} parent=11 // pred_region
          _
        $region192: #{tpu_custom_call.1} parent=11 // pred_fallthru
          _
        // Predicated region
        $region193: #{tpu_custom_call.1} parent=11 // pred_check
          %p1534 = pneg %p1147
        $region194: #{tpu_custom_call.1} parent=11 // pred_check_branch
          %1536 = sbr.rel (%p1534) target = $region196
        $region195: #{tpu_custom_call.1} parent=11 // pred_region
          _
        $region196: #{tpu_custom_call.1} parent=11 // pred_fallthru
          _
        // Predicated region
        $region197: #{tpu_custom_call.1} parent=11 // pred_check
          %p1537 = pneg %p1168
        $region198: #{tpu_custom_call.1} parent=11 // pred_check_branch
          %1539 = sbr.rel (%p1537) target = $region200
        $region199: #{tpu_custom_call.1} parent=11 // pred_region
          %s1541 = ssub.s32 16, 16
          %1542 = vsyncadd [#allocation16], %s1541
          %s1544 = sshll.u32 [#allocation17], 4
          %s1545 = int_to_ptr.vmem [resolvable:$true] %s1544
          %1547 = dma.hbm_to_vmem [thread:$0]  %s97, 16, %s1545, [#allocation16]
        $region200: #{tpu_custom_call.1} parent=11 // pred_fallthru
          _
        // Predicated region
        $region201: #{tpu_custom_call.1} parent=11 // pred_check
          %p1548 = pneg %p1189
        $region202: #{tpu_custom_call.1} parent=11 // pred_check_branch
          %1550 = sbr.rel (%p1548) target = $region204
        $region203: #{tpu_custom_call.1} parent=11 // pred_region
          %s1552 = ssub.s32 16, 16
          %1553 = vsyncadd [#allocation19], %s1552
          %s1555 = sshll.u32 [#allocation18], 4
          %s1556 = int_to_ptr.vmem [resolvable:$true] %s1555
          %1558 = dma.hbm_to_vmem [thread:$0]  %s99, 16, %s1556, [#allocation19]
        $region204: #{tpu_custom_call.1} parent=11 // pred_fallthru
          _
        // Predicated region
        $region205: #{tpu_custom_call.1} parent=11 // pred_check
          %p1559 = pneg %p1210
        $region206: #{tpu_custom_call.1} parent=11 // pred_check_branch
          %1561 = sbr.rel (%p1559) target = $region208
        $region207: #{tpu_custom_call.1} parent=11 // pred_region
          %s1563 = ssub.s32 16, 16
          %1564 = vsyncadd [#allocation19], %s1563
          %s1566 = sshll.u32 [#allocation20], 4
          %s1567 = int_to_ptr.vmem [resolvable:$true] %s1566
          %1569 = dma.hbm_to_vmem [thread:$0]  %s101, 16, %s1567, [#allocation19]
        $region208: #{tpu_custom_call.1} parent=11 // pred_fallthru
          _
        // Predicated region
        $region209: #{tpu_custom_call.1} parent=11 // pred_check
          %p1570 = pneg %p1231
        $region210: #{tpu_custom_call.1} parent=11 // pred_check_branch
          %1572 = sbr.rel (%p1570) target = $region212
        $region211: #{tpu_custom_call.1} parent=11 // pred_region
          _
        $region212: #{tpu_custom_call.1} parent=11 // pred_fallthru
          _
        // Predicated region
        $region213: #{tpu_custom_call.1} parent=11 // pred_check
          %p1573 = pneg %p1252
        $region214: #{tpu_custom_call.1} parent=11 // pred_check_branch
          %1575 = sbr.rel (%p1573) target = $region216
        $region215: #{tpu_custom_call.1} parent=11 // pred_region
          %s1577 = ssub.s32 16, 16
          %1578 = vsyncadd [#allocation22], %s1577
          %s1580 = sshll.u32 [#allocation21], 4
          %s1581 = int_to_ptr.vmem [resolvable:$true] %s1580
          %1583 = dma.hbm_to_vmem [thread:$0]  %s105, 16, %s1581, [#allocation22]
        $region216: #{tpu_custom_call.1} parent=11 // pred_fallthru
          _
        // Predicated region
        $region217: #{tpu_custom_call.1} parent=11 // pred_check
          %p1584 = pneg %p1273
        $region218: #{tpu_custom_call.1} parent=11 // pred_check_branch
          %1586 = sbr.rel (%p1584) target = $region220
        $region219: #{tpu_custom_call.1} parent=11 // pred_region
          %s1588 = ssub.s32 16, 16
          %1589 = vsyncadd [#allocation22], %s1588
          %s1591 = sshll.u32 [#allocation23], 4
          %s1592 = int_to_ptr.vmem [resolvable:$true] %s1591
          %1594 = dma.hbm_to_vmem [thread:$0]  %s107, 16, %s1592, [#allocation22]
        $region220: #{tpu_custom_call.1} parent=11 // pred_fallthru
          _
        // Predicated region
        $region221: #{tpu_custom_call.1} parent=11 // pred_check
          %p1595 = pneg %p1294
        $region222: #{tpu_custom_call.1} parent=11 // pred_check_branch
          %1597 = sbr.rel (%p1595) target = $region224
        $region223: #{tpu_custom_call.1} parent=11 // pred_region
          _
        $region224: #{tpu_custom_call.1} parent=11 // pred_fallthru
          _
      $region12: #{tpu_custom_call.1} parent=5 // pred_fallthru
        _
      %p1598 = scmp.lt.s32.totalorder %s129, 2
      // Predicated region
      $region225: #{tpu_custom_call.1} parent=5 // pred_check
        %p1599 = pneg %p1598
      $region226: #{tpu_custom_call.1} parent=5 // pred_check_branch
        %1601 = sbr.rel (%p1599) target = $region228
      $region227: #{tpu_custom_call.1} parent=5 // pred_region
        // Predicated region
        $region229: #{tpu_custom_call.1} parent=227 // pred_check
          %p1602 = pneg %p149
        $region230: #{tpu_custom_call.1} parent=227 // pred_check_branch
          %1604 = sbr.rel (%p1602) target = $region232
        $region231: #{tpu_custom_call.1} parent=227 // pred_region
          %p1605 = scmp.lt.s32.totalorder %s129, 1
          %s1606 = scalar_select %p1605, %s129, 1
          %s1607 = smul.addr %s1606, 8
          %s1608 = scalar_lea.vmem %s1, %s1607
        $region232: #{tpu_custom_call.1} parent=227 // pred_fallthru
          _
        // Predicated region
        $region233: #{tpu_custom_call.1} parent=227 // pred_check
          %p1609 = pneg %p196
        $region234: #{tpu_custom_call.1} parent=227 // pred_check_branch
          %1611 = sbr.rel (%p1609) target = $region236
        $region235: #{tpu_custom_call.1} parent=227 // pred_region
          %p1612 = scmp.lt.s32.totalorder %s129, 1
          %s1613 = scalar_select %p1612, %s129, 1
          %s1614 = scalar_lea.vmem %s5, %s1613
        $region236: #{tpu_custom_call.1} parent=227 // pred_fallthru
          _
      $region228: #{tpu_custom_call.1} parent=5 // pred_fallthru
        _
      %p1615 = scmp.le.s32.totalorder 1, %s129
      %p1616 = scmp.lt.s32.totalorder %s129, 3
      %p1617 = pnand %p1615, %p1616
      %p1618 = pneg %p1617
      // Predicated region
      $region237: #{tpu_custom_call.1} parent=5 // pred_check
        _
      $region238: #{tpu_custom_call.1} parent=5 // pred_check_branch
        %1620 = sbr.rel (%p1617) target = $region240
      $region239: #{tpu_custom_call.1} parent=5 // pred_region
        %s1621 = ssub.s32 %s129, 1
        // Predicated region
        $region241: #{tpu_custom_call.1} parent=239 // pred_check
          %p1622 = pneg %p874
        $region242: #{tpu_custom_call.1} parent=239 // pred_check_branch
          %1624 = sbr.rel (%p1622) target = $region244
        $region243: #{tpu_custom_call.1} parent=239 // pred_region
          %1625 = dma.done [#allocation4], 16
        $region244: #{tpu_custom_call.1} parent=239 // pred_fallthru
          _
        // Predicated region
        $region245: #{tpu_custom_call.1} parent=239 // pred_check
          %p1626 = pneg %p895
        $region246: #{tpu_custom_call.1} parent=239 // pred_check_branch
          %1628 = sbr.rel (%p1626) target = $region248
        $region247: #{tpu_custom_call.1} parent=239 // pred_region
          %1629 = dma.done [#allocation7], 16
        $region248: #{tpu_custom_call.1} parent=239 // pred_fallthru
          _
        // Predicated region
        $region249: #{tpu_custom_call.1} parent=239 // pred_check
          %p1630 = pneg %p916
        $region250: #{tpu_custom_call.1} parent=239 // pred_check_branch
          %1632 = sbr.rel (%p1630) target = $region252
        $region251: #{tpu_custom_call.1} parent=239 // pred_region
          %1633 = dma.done [#allocation7], 16
        $region252: #{tpu_custom_call.1} parent=239 // pred_fallthru
          _
        // Predicated region
        $region253: #{tpu_custom_call.1} parent=239 // pred_check
          %p1634 = pneg %p958
        $region254: #{tpu_custom_call.1} parent=239 // pred_check_branch
          %1636 = sbr.rel (%p1634) target = $region256
        $region255: #{tpu_custom_call.1} parent=239 // pred_region
          %1637 = dma.done [#allocation10], 16
        $region256: #{tpu_custom_call.1} parent=239 // pred_fallthru
          _
        // Predicated region
        $region257: #{tpu_custom_call.1} parent=239 // pred_check
          %p1638 = pneg %p1000
        $region258: #{tpu_custom_call.1} parent=239 // pred_check_branch
          %1640 = sbr.rel (%p1638) target = $region260
        $region259: #{tpu_custom_call.1} parent=239 // pred_region
          %1641 = dma.done [#allocation10], 16
        $region260: #{tpu_custom_call.1} parent=239 // pred_fallthru
          _
        // Predicated region
        $region261: #{tpu_custom_call.1} parent=239 // pred_check
          %p1642 = pneg %p1042
        $region262: #{tpu_custom_call.1} parent=239 // pred_check_branch
          %1644 = sbr.rel (%p1642) target = $region264
        $region263: #{tpu_custom_call.1} parent=239 // pred_region
          %1645 = dma.done [#allocation13], 16
        $region264: #{tpu_custom_call.1} parent=239 // pred_fallthru
          _
        // Predicated region
        $region265: #{tpu_custom_call.1} parent=239 // pred_check
          %p1646 = pneg %p1063
        $region266: #{tpu_custom_call.1} parent=239 // pred_check_branch
          %1648 = sbr.rel (%p1646) target = $region268
        $region267: #{tpu_custom_call.1} parent=239 // pred_region
          %1649 = dma.done [#allocation13], 16
        $region268: #{tpu_custom_call.1} parent=239 // pred_fallthru
          _
        // Predicated region
        $region269: #{tpu_custom_call.1} parent=239 // pred_check
          %p1650 = pneg %p1084
        $region270: #{tpu_custom_call.1} parent=239 // pred_check_branch
          %1652 = sbr.rel (%p1650) target = $region272
        $region271: #{tpu_custom_call.1} parent=239 // pred_region
          %1653 = dma.done [#allocation16], 16
        $region272: #{tpu_custom_call.1} parent=239 // pred_fallthru
          _
        // Predicated region
        $region273: #{tpu_custom_call.1} parent=239 // pred_check
          %p1654 = pneg %p1168
        $region274: #{tpu_custom_call.1} parent=239 // pred_check_branch
          %1656 = sbr.rel (%p1654) target = $region276
        $region275: #{tpu_custom_call.1} parent=239 // pred_region
          %1657 = dma.done [#allocation16], 16
        $region276: #{tpu_custom_call.1} parent=239 // pred_fallthru
          _
        // Predicated region
        $region277: #{tpu_custom_call.1} parent=239 // pred_check
          %p1658 = pneg %p1189
        $region278: #{tpu_custom_call.1} parent=239 // pred_check_branch
          %1660 = sbr.rel (%p1658) target = $region280
        $region279: #{tpu_custom_call.1} parent=239 // pred_region
          %1661 = dma.done [#allocation19], 16
        $region280: #{tpu_custom_call.1} parent=239 // pred_fallthru
          _
        // Predicated region
        $region281: #{tpu_custom_call.1} parent=239 // pred_check
          %p1662 = pneg %p1210
        $region282: #{tpu_custom_call.1} parent=239 // pred_check_branch
          %1664 = sbr.rel (%p1662) target = $region284
        $region283: #{tpu_custom_call.1} parent=239 // pred_region
          %1665 = dma.done [#allocation19], 16
        $region284: #{tpu_custom_call.1} parent=239 // pred_fallthru
          _
        // Predicated region
        $region285: #{tpu_custom_call.1} parent=239 // pred_check
          %p1666 = pneg %p1252
        $region286: #{tpu_custom_call.1} parent=239 // pred_check_branch
          %1668 = sbr.rel (%p1666) target = $region288
        $region287: #{tpu_custom_call.1} parent=239 // pred_region
          %1669 = dma.done [#allocation22], 16
        $region288: #{tpu_custom_call.1} parent=239 // pred_fallthru
          _
        // Predicated region
        $region289: #{tpu_custom_call.1} parent=239 // pred_check
          %p1670 = pneg %p1273
        $region290: #{tpu_custom_call.1} parent=239 // pred_check_branch
          %1672 = sbr.rel (%p1670) target = $region292
        $region291: #{tpu_custom_call.1} parent=239 // pred_region
          %1673 = dma.done [#allocation22], 16
        $region292: #{tpu_custom_call.1} parent=239 // pred_fallthru
          _
        %p1674 = scmp.lt.s32.totalorder %s134, 1
        %s1675 = scalar_select %p1674, %s134, 1
        %s1676 = smul.addr %s1675, 8
        %s1677 = scalar_lea.vmem %s1, %s1676
        %p1678 = pneg %p155
        %p1679 = pneg %p152
        %p1680 = pneg %p176
        %p1681 = pneg %p173
        %p1682 = scmp.lt.s32.totalorder %s134, 1
        %s1683 = scalar_select %p1682, %s134, 1
        %s1684 = scalar_lea.vmem %s5, %s1683
        %p1685 = pneg %p202
        %p1686 = pneg %p199
        %p1687 = pneg %p223
        %p1688 = pneg %p220
        %p1689 = pneg %p244
        %p1690 = pneg %p241
        %p1691 = pneg %p265
        %p1692 = pneg %p262
        %p1693 = pneg %p286
        %p1694 = pneg %p283
        %p1695 = pneg %p307
        %p1696 = pneg %p304
        %p1697 = pneg %p328
        %p1698 = pneg %p325
        %p1699 = pneg %p349
        %p1700 = pneg %p346
        %p1701 = pneg %p370
        %p1702 = pneg %p367
        %p1703 = pneg %p391
        %p1704 = pneg %p388
        %p1705 = pneg %p412
        %p1706 = pneg %p409
        %p1707 = pneg %p433
        %p1708 = pneg %p430
        %p1709 = pneg %p454
        %p1710 = pneg %p451
        %p1711 = pneg %p475
        %p1712 = pneg %p472
        %p1713 = pneg %p496
        %p1714 = pneg %p493
        %p1715 = pneg %p517
        %p1716 = pneg %p514
        %p1717 = pneg %p538
        %p1718 = pneg %p535
        %p1719 = pneg %p559
        %p1720 = pneg %p556
        %p1721 = pneg %p580
        %p1722 = pneg %p577
        %p1723 = pneg %p601
        %p1724 = pneg %p598
        %p1725 = pneg %p622
        %p1726 = pneg %p619
        %p1727 = pneg %p643
        %p1728 = pneg %p640
        %p1729 = pneg %p664
        %p1730 = pneg %p661
        %p1731 = pneg %p685
        %p1732 = pneg %p682
        %p1733 = pneg %p706
        %p1734 = pneg %p703
        %p1735 = pneg %p727
        %p1736 = pneg %p724
        %p1737 = pneg %p748
        %p1738 = pneg %p745
        %p1739 = pneg %p769
        %p1740 = pneg %p766
        %p1741 = pneg %p790
        %p1742 = pneg %p787
        %p1743 = pneg %p811
        %p1744 = pneg %p808
        %p1745 = pneg %p832
        %p1746 = pneg %p829
        %p1747 = pneg %p853
        %p1748 = pneg %p850
        %p1749 = pneg %p874
        %p1750 = pneg %p871
        %p1751 = pneg %p895
        %p1752 = pneg %p892
        %p1753 = pneg %p916
        %p1754 = pneg %p913
        %p1755 = pneg %p937
        %p1756 = pneg %p934
        %p1757 = pneg %p958
        %p1758 = pneg %p955
        %p1759 = pneg %p979
        %p1760 = pneg %p976
        %p1761 = pneg %p1000
        %p1762 = pneg %p997
        %p1763 = pneg %p1021
        %p1764 = pneg %p1018
        %p1765 = pneg %p1042
        %p1766 = pneg %p1039
        %p1767 = pneg %p1063
        %p1768 = pneg %p1060
        %p1769 = pneg %p1084
        %p1770 = pneg %p1081
        %p1771 = pneg %p1105
        %p1772 = pneg %p1102
        %p1773 = pneg %p1126
        %p1774 = pneg %p1123
        %p1775 = pneg %p1147
        %p1776 = pneg %p1144
        %p1777 = pneg %p1168
        %p1778 = pneg %p1165
        %p1779 = pneg %p1189
        %p1780 = pneg %p1186
        %p1781 = pneg %p1210
        %p1782 = pneg %p1207
        %p1783 = pneg %p1231
        %p1784 = pneg %p1228
        %p1785 = pneg %p1252
        %p1786 = pneg %p1249
        %p1787 = pneg %p1273
        %p1788 = pneg %p1270
        %p1789 = pneg %p1294
        %p1790 = pneg %p1291
        %p1791 = pneg %p1320
        %p1792 = pneg %p1317
        %s1793 = sand.u32 %s1307, 1
        %s1794 = scalar_lea.sflag [#allocation5], %s1793
        %s1795 = sand.u32 %s1307, 1
        %s1796 = scalar_lea.vmem [#allocation24], %s1795
        %p1797 = scmp.lt.s32.totalorder %s134, 1
        %s1798 = scalar_select %p1797, %s134, 1
        %s1799 = smul.addr %s1798, 8
        %s1800 = scalar_lea.vmem %s1, %s1799
        %p1801 = scmp.lt.s32.totalorder %s134, 1
        %s1802 = scalar_select %p1801, %s134, 1
        %s1803 = scalar_lea.vmem %s5, %s1802
        %v1804 = vld [vmem:[%s1800] sm:$0xff]
        %v1805 = vld [vmem:[%s7] sm:$0xff]
        %v1806 = vld [vmem:[%s7 + $0x8] sm:$0xff]
        %v1807 = vld [vmem:[%s9] sm:$0x1]
        %v1809 = vlaneseq
        %v1810 = vshrl.u32 %v1809, 7
        %v1811 = vsub.s32 0, %v1810
        %v1812 = vrot.slane %v1807, %v1811
        %vm1814 = vcmask 130048
        %v1816 = vsel %vm1814, %v1804, 0
        %1818 = vmatprep.subr.mxu0 0.0
        %1819 = vmatpush1.msra.mxu0 %v1805
        %1820 = vmatprep.subr.mxu0 0.0
        %1821 = vmatpush1.msra.mxu0 %v1806
        %1822 = vmatprep.subr.mxu0 0.0
        %1823 = vmatpush1.msra.mxu0 0.0
        %1824 = vmatprep.subr.mxu0 0.0
        %1825 = vmatpush1.msra.mxu0 0.0
        %1826 = vmatprep.subr.mxu0 0.0
        %1827 = vmatpush1.msra.mxu0 0.0
        %1828 = vmatprep.subr.mxu0 0.0
        %1829 = vmatpush1.msra.mxu0 0.0
        %1830 = vmatprep.subr.mxu0 0.0
        %1831 = vmatpush1.msra.mxu0 0.0
        %1832 = vmatprep.subr.mxu0 0.0
        %1833 = vmatpush1.msra.mxu0 0.0
        %1834 = vmatprep.subr.mxu0 0.0
        %1835 = vmatpush1.msra.mxu0 0.0
        %1836 = vmatprep.subr.mxu0 0.0
        %1837 = vmatpush1.msra.mxu0 0.0
        %1838 = vmatprep.subr.mxu0 0.0
        %1839 = vmatpush1.msra.mxu0 0.0
        %1840 = vmatprep.subr.mxu0 0.0
        %1841 = vmatpush1.msra.mxu0 0.0
        %1842 = vmatprep.subr.mxu0 0.0
        %1843 = vmatpush1.msra.mxu0 0.0
        %1844 = vmatprep.subr.mxu0 0.0
        %1845 = vmatpush1.msra.mxu0 0.0
        %1846 = vmatprep.subr.mxu0 0.0
        %1847 = vmatpush1.msra.mxu0 0.0
        %1848 = vmatprep.subr.mxu0 0.0
        %1849 = vmatpush1.msra.mxu0 0.0
        %1850 = vmatprep.subr.mxu0 0.0
        %1851 = vmatpush1.msra.mxu0 0.0
        %1852 = vmatprep.subr.mxu0 0.0
        %1853 = vmatpush1.msra.mxu0 0.0
        %1854 = vmatprep.subr.mxu0 0.0
        %1855 = vmatpush1.msra.mxu0 0.0
        %1856 = vmatprep.subr.mxu0 0.0
        %1857 = vmatpush1.msra.mxu0 0.0
        %1858 = vmatprep.subr.mxu0 0.0
        %1859 = vmatpush1.msra.mxu0 0.0
        %1860 = vmatprep.subr.mxu0 0.0
        %1861 = vmatpush1.msra.mxu0 0.0
        %1862 = vmatprep.subr.mxu0 0.0
        %1863 = vmatpush1.msra.mxu0 0.0
        %1864 = vmatprep.subr.mxu0 0.0
        %1865 = vmatpush1.msra.mxu0 0.0
        %1866 = vmatprep.subr.mxu0 0.0
        %1867 = vmatpush1.msra.mxu0 0.0
        %1868 = vmatprep.subr.mxu0 0.0
        %1869 = vmatpush1.msra.mxu0 0.0
        %1870 = vmatprep.subr.mxu0 0.0
        %1871 = vmatpush1.msra.mxu0 0.0
        %1872 = vmatprep.subr.mxu0 0.0
        %1873 = vmatpush1.msra.mxu0 0.0
        %1874 = vmatprep.subr.mxu0 0.0
        %1875 = vmatpush1.msra.mxu0 0.0
        %1876 = vmatprep.subr.mxu0 0.0
        %1877 = vmatpush1.msra.mxu0 0.0
        %1878 = vmatprep.subr.mxu0 0.0
        %1879 = vmatpush1.msra.mxu0 0.0
        %1880 = vmatprep.subr.mxu0 0.0
        %1881 = vmatpush1.msra.mxu0 0.0
        %1882 = vmatprep.mubr.f32.mxu0 0.0
        %1883 = vmatmul.mubr.f32.gmra.mrb[0].mxu0 %v1816
        %v1884 = vpop.f32.mrb[0].mxu0
        %v1885 = vadd.f32 %v1812, %v1884
        %v1886 = vpop.f32.mrb[0].mxu0
        %1887 = vdwg.mxu0
        %vm1888 = vcmask 261120
        %v1889 = vsel %vm1888, %v1885, 0.0
        %v1890 = vrot.slane %v1889, 4
        %v1891 = vadd.f32 %v1889, %v1890
        %v1892 = vrot.slane %v1891, 2
        %v1893 = vadd.f32 %v1891, %v1892
        %v1894 = vrot.slane %v1893, 1
        %v1895 = vadd.f32 %v1893, %v1894
        %v1896 = vld [vmem:[%s3] sm:$0xff]
        %v1897 = vld [vmem:[%s3 + $0x8] sm:$0xff]
        %v1898 = vld [vmem:[%s11] sm:$0xff]
        %v1899 = vld [vmem:[%s11 + $0x8] sm:$0xff]
        %v1900 = vld [vmem:[%s11 + $0x10] sm:$0xff]
        %v1901 = vld [vmem:[%s11 + $0x18] sm:$0xff]
        %v1902 = vld [vmem:[%s11 + $0x20] sm:$0xff]
        %v1903 = vld [vmem:[%s11 + $0x28] sm:$0xff]
        %v1904 = vld [vmem:[%s11 + $0x30] sm:$0xff]
        %v1905 = vld [vmem:[%s11 + $0x38] sm:$0xff]
        %v1906 = vld [vmem:[%s13] sm:$0x1]
        %v1908 = vlaneseq
        %v1909 = vshrl.u32 %v1908, 7
        %v1910 = vsub.s32 0, %v1909
        %v1911 = vrot.slane %v1906, %v1910
        %vm1913 = vcmask 523264
        %v1915 = vsel %vm1913, %v1896, 0
        %v1918 = vsel %vm1913, %v1897, 0
        %1920 = vmatprep.subr.mxu0 0.0
        %1921 = vmatpush1.msra.mxu0 %v1898
        %1922 = vmatprep.subr.mxu0 0.0
        %1923 = vmatpush1.msra.mxu0 %v1899
        %1924 = vmatprep.subr.mxu0 0.0
        %1925 = vmatpush1.msra.mxu0 %v1900
        %1926 = vmatprep.subr.mxu0 0.0
        %1927 = vmatpush1.msra.mxu0 %v1901
        %1928 = vmatprep.subr.mxu0 0.0
        %1929 = vmatpush1.msra.mxu0 %v1902
        %1930 = vmatprep.subr.mxu0 0.0
        %1931 = vmatpush1.msra.mxu0 %v1903
        %1932 = vmatprep.subr.mxu0 0.0
        %1933 = vmatpush1.msra.mxu0 %v1904
        %1934 = vmatprep.subr.mxu0 0.0
        %1935 = vmatpush1.msra.mxu0 %v1905
        %1936 = vmatprep.subr.mxu0 0.0
        %1937 = vmatpush1.msra.mxu0 0.0
        %1938 = vmatprep.subr.mxu0 0.0
        %1939 = vmatpush1.msra.mxu0 0.0
        %1940 = vmatprep.subr.mxu0 0.0
        %1941 = vmatpush1.msra.mxu0 0.0
        %1942 = vmatprep.subr.mxu0 0.0
        %1943 = vmatpush1.msra.mxu0 0.0
        %1944 = vmatprep.subr.mxu0 0.0
        %1945 = vmatpush1.msra.mxu0 0.0
        %1946 = vmatprep.subr.mxu0 0.0
        %1947 = vmatpush1.msra.mxu0 0.0
        %1948 = vmatprep.subr.mxu0 0.0
        %1949 = vmatpush1.msra.mxu0 0.0
        %1950 = vmatprep.subr.mxu0 0.0
        %1951 = vmatpush1.msra.mxu0 0.0
        %1952 = vmatprep.subr.mxu0 0.0
        %1953 = vmatpush1.msra.mxu0 0.0
        %1954 = vmatprep.subr.mxu0 0.0
        %1955 = vmatpush1.msra.mxu0 0.0
        %1956 = vmatprep.subr.mxu0 0.0
        %1957 = vmatpush1.msra.mxu0 0.0
        %1958 = vmatprep.subr.mxu0 0.0
        %1959 = vmatpush1.msra.mxu0 0.0
        %1960 = vmatprep.subr.mxu0 0.0
        %1961 = vmatpush1.msra.mxu0 0.0
        %1962 = vmatprep.subr.mxu0 0.0
        %1963 = vmatpush1.msra.mxu0 0.0
        %1964 = vmatprep.subr.mxu0 0.0
        %1965 = vmatpush1.msra.mxu0 0.0
        %1966 = vmatprep.subr.mxu0 0.0
        %1967 = vmatpush1.msra.mxu0 0.0
        %1968 = vmatprep.subr.mxu0 0.0
        %1969 = vmatpush1.msra.mxu0 0.0
        %1970 = vmatprep.subr.mxu0 0.0
        %1971 = vmatpush1.msra.mxu0 0.0
        %1972 = vmatprep.subr.mxu0 0.0
        %1973 = vmatpush1.msra.mxu0 0.0
        %1974 = vmatprep.subr.mxu0 0.0
        %1975 = vmatpush1.msra.mxu0 0.0
        %1976 = vmatprep.subr.mxu0 0.0
        %1977 = vmatpush1.msra.mxu0 0.0
        %1978 = vmatprep.subr.mxu0 0.0
        %1979 = vmatpush1.msra.mxu0 0.0
        %1980 = vmatprep.subr.mxu0 0.0
        %1981 = vmatpush1.msra.mxu0 0.0
        %1982 = vmatprep.subr.mxu0 0.0
        %1983 = vmatpush1.msra.mxu0 0.0
        %1984 = vmatprep.mubr.f32.mxu0 0.0
        %1985 = vmatmul.mubr.f32.gmra.mrb[0].mxu0 %v1915
        %v1986 = vpop.f32.mrb[0].mxu0
        %v1987 = vadd.f32 %v1911, %v1986
        %v1988 = vpop.f32.mrb[0].mxu0
        %1989 = vmatprep.mubr.f32.mxu0 0.0
        %1990 = vmatmul.mubr.f32.gmra.mrb[0].mxu0 %v1918
        %v1991 = vpop.f32.mrb[0].mxu0
        %v1992 = vadd.f32 %v1911, %v1991
        %v1993 = vpop.f32.mrb[0].mxu0
        %1994 = vdwg.mxu0
        %v1995 = vld [vmem:[%s1803] sm:$0x1]
        %v1996 = vld [vmem:[%s15] sm:$0xff]
        %v1997 = vld [vmem:[%s15 + $0x8] sm:$0xff]
        %v1998 = vld [vmem:[%s15 + $0x10] sm:$0xff]
        %v1999 = vld [vmem:[%s15 + $0x18] sm:$0xff]
        %v2000 = vld [vmem:[%s17] sm:$0x1]
        %v2001 = vld [vmem:[%s19] sm:$0xff]
        %v2002 = vld [vmem:[%s19 + $0x8] sm:$0xff]
        %v2003 = vld [vmem:[%s19 + $0x10] sm:$0xff]
        %v2004 = vld [vmem:[%s19 + $0x18] sm:$0xff]
        %v2005 = vld [vmem:[%s21] sm:$0x1]
        %v2006 = vld [vmem:[%s23] sm:$0xff]
        %v2007 = vld [vmem:[%s23 + $0x8] sm:$0xff]
        %v2008 = vld [vmem:[%s23 + $0x10] sm:$0xff]
        %v2009 = vld [vmem:[%s23 + $0x18] sm:$0xff]
        %v2010 = vld [vmem:[%s25] sm:$0x1]
        %v2012 = vlaneseq
        %v2013 = vshrl.u32 %v2012, 7
        %v2014 = vsub.s32 0, %v2013
        %v2015 = vrot.slane %v2000, %v2014
        %v2018 = vsel %vm1888, %v1987, 0
        %v2021 = vsel %vm1888, %v1992, 0
        %2023 = vmatprep.subr.mxu0 0.0
        %2024 = vmatpush1.msra.mxu0 %v1996
        %2025 = vmatprep.subr.mxu0 0.0
        %2026 = vmatpush1.msra.mxu0 %v1997
        %2027 = vmatprep.subr.mxu0 0.0
        %2028 = vmatpush1.msra.mxu0 %v1998
        %2029 = vmatprep.subr.mxu0 0.0
        %2030 = vmatpush1.msra.mxu0 %v1999
        %2031 = vmatprep.subr.mxu0 0.0
        %2032 = vmatpush1.msra.mxu0 0.0
        %2033 = vmatprep.subr.mxu0 0.0
        %2034 = vmatpush1.msra.mxu0 0.0
        %2035 = vmatprep.subr.mxu0 0.0
        %2036 = vmatpush1.msra.mxu0 0.0
        %2037 = vmatprep.subr.mxu0 0.0
        %2038 = vmatpush1.msra.mxu0 0.0
        %2039 = vmatprep.subr.mxu0 0.0
        %2040 = vmatpush1.msra.mxu0 0.0
        %2041 = vmatprep.subr.mxu0 0.0
        %2042 = vmatpush1.msra.mxu0 0.0
        %2043 = vmatprep.subr.mxu0 0.0
        %2044 = vmatpush1.msra.mxu0 0.0
        %2045 = vmatprep.subr.mxu0 0.0
        %2046 = vmatpush1.msra.mxu0 0.0
        %2047 = vmatprep.subr.mxu0 0.0
        %2048 = vmatpush1.msra.mxu0 0.0
        %2049 = vmatprep.subr.mxu0 0.0
        %2050 = vmatpush1.msra.mxu0 0.0
        %2051 = vmatprep.subr.mxu0 0.0
        %2052 = vmatpush1.msra.mxu0 0.0
        %2053 = vmatprep.subr.mxu0 0.0
        %2054 = vmatpush1.msra.mxu0 0.0
        %2055 = vmatprep.subr.mxu0 0.0
        %2056 = vmatpush1.msra.mxu0 0.0
        %2057 = vmatprep.subr.mxu0 0.0
        %2058 = vmatpush1.msra.mxu0 0.0
        %2059 = vmatprep.subr.mxu0 0.0
        %2060 = vmatpush1.msra.mxu0 0.0
        %2061 = vmatprep.subr.mxu0 0.0
        %2062 = vmatpush1.msra.mxu0 0.0
        %2063 = vmatprep.subr.mxu0 0.0
        %2064 = vmatpush1.msra.mxu0 0.0
        %2065 = vmatprep.subr.mxu0 0.0
        %2066 = vmatpush1.msra.mxu0 0.0
        %2067 = vmatprep.subr.mxu0 0.0
        %2068 = vmatpush1.msra.mxu0 0.0
        %2069 = vmatprep.subr.mxu0 0.0
        %2070 = vmatpush1.msra.mxu0 0.0
        %2071 = vmatprep.subr.mxu0 0.0
        %2072 = vmatpush1.msra.mxu0 0.0
        %2073 = vmatprep.subr.mxu0 0.0
        %2074 = vmatpush1.msra.mxu0 0.0
        %2075 = vmatprep.subr.mxu0 0.0
        %2076 = vmatpush1.msra.mxu0 0.0
        %2077 = vmatprep.subr.mxu0 0.0
        %2078 = vmatpush1.msra.mxu0 0.0
        %2079 = vmatprep.subr.mxu0 0.0
        %2080 = vmatpush1.msra.mxu0 0.0
        %2081 = vmatprep.subr.mxu0 0.0
        %2082 = vmatpush1.msra.mxu0 0.0
        %2083 = vmatprep.subr.mxu0 0.0
        %2084 = vmatpush1.msra.mxu0 0.0
        %2085 = vmatprep.subr.mxu0 0.0
        %2086 = vmatpush1.msra.mxu0 0.0
        %2087 = vmatprep.mubr.f32.mxu0 0.0
        %2088 = vmatmul.mubr.f32.gmra.mrb[0].mxu0 %v2018
        %v2089 = vpop.f32.mrb[0].mxu0
        %v2090 = vadd.f32 %v2015, %v2089
        %v2091 = vpop.f32.mrb[0].mxu0
        %2092 = vmatprep.mubr.f32.mxu0 0.0
        %2093 = vmatmul.mubr.f32.gmra.mrb[0].mxu0 %v2021
        %v2094 = vpop.f32.mrb[0].mxu0
        %v2095 = vadd.f32 %v2015, %v2094
        %v2096 = vpop.f32.mrb[0].mxu0
        %2097 = vdwg.mxu0
        %v2099 = vlaneseq
        %v2100 = vshrl.u32 %v2099, 7
        %v2101 = vsub.s32 0, %v2100
        %v2102 = vrot.slane %v2005, %v2101
        %2104 = vmatprep.subr.mxu0 0.0
        %2105 = vmatpush1.msra.mxu0 %v2001
        %2106 = vmatprep.subr.mxu0 0.0
        %2107 = vmatpush1.msra.mxu0 %v2002
        %2108 = vmatprep.subr.mxu0 0.0
        %2109 = vmatpush1.msra.mxu0 %v2003
        %2110 = vmatprep.subr.mxu0 0.0
        %2111 = vmatpush1.msra.mxu0 %v2004
        %2112 = vmatprep.subr.mxu0 0.0
        %2113 = vmatpush1.msra.mxu0 0.0
        %2114 = vmatprep.subr.mxu0 0.0
        %2115 = vmatpush1.msra.mxu0 0.0
        %2116 = vmatprep.subr.mxu0 0.0
        %2117 = vmatpush1.msra.mxu0 0.0
        %2118 = vmatprep.subr.mxu0 0.0
        %2119 = vmatpush1.msra.mxu0 0.0
        %2120 = vmatprep.subr.mxu0 0.0
        %2121 = vmatpush1.msra.mxu0 0.0
        %2122 = vmatprep.subr.mxu0 0.0
        %2123 = vmatpush1.msra.mxu0 0.0
        %2124 = vmatprep.subr.mxu0 0.0
        %2125 = vmatpush1.msra.mxu0 0.0
        %2126 = vmatprep.subr.mxu0 0.0
        %2127 = vmatpush1.msra.mxu0 0.0
        %2128 = vmatprep.subr.mxu0 0.0
        %2129 = vmatpush1.msra.mxu0 0.0
        %2130 = vmatprep.subr.mxu0 0.0
        %2131 = vmatpush1.msra.mxu0 0.0
        %2132 = vmatprep.subr.mxu0 0.0
        %2133 = vmatpush1.msra.mxu0 0.0
        %2134 = vmatprep.subr.mxu0 0.0
        %2135 = vmatpush1.msra.mxu0 0.0
        %2136 = vmatprep.subr.mxu0 0.0
        %2137 = vmatpush1.msra.mxu0 0.0
        %2138 = vmatprep.subr.mxu0 0.0
        %2139 = vmatpush1.msra.mxu0 0.0
        %2140 = vmatprep.subr.mxu0 0.0
        %2141 = vmatpush1.msra.mxu0 0.0
        %2142 = vmatprep.subr.mxu0 0.0
        %2143 = vmatpush1.msra.mxu0 0.0
        %2144 = vmatprep.subr.mxu0 0.0
        %2145 = vmatpush1.msra.mxu0 0.0
        %2146 = vmatprep.subr.mxu0 0.0
        %2147 = vmatpush1.msra.mxu0 0.0
        %2148 = vmatprep.subr.mxu0 0.0
        %2149 = vmatpush1.msra.mxu0 0.0
        %2150 = vmatprep.subr.mxu0 0.0
        %2151 = vmatpush1.msra.mxu0 0.0
        %2152 = vmatprep.subr.mxu0 0.0
        %2153 = vmatpush1.msra.mxu0 0.0
        %2154 = vmatprep.subr.mxu0 0.0
        %2155 = vmatpush1.msra.mxu0 0.0
        %2156 = vmatprep.subr.mxu0 0.0
        %2157 = vmatpush1.msra.mxu0 0.0
        %2158 = vmatprep.subr.mxu0 0.0
        %2159 = vmatpush1.msra.mxu0 0.0
        %2160 = vmatprep.subr.mxu0 0.0
        %2161 = vmatpush1.msra.mxu0 0.0
        %2162 = vmatprep.subr.mxu0 0.0
        %2163 = vmatpush1.msra.mxu0 0.0
        %2164 = vmatprep.subr.mxu0 0.0
        %2165 = vmatpush1.msra.mxu0 0.0
        %2166 = vmatprep.subr.mxu0 0.0
        %2167 = vmatpush1.msra.mxu0 0.0
        %2168 = vmatprep.mubr.f32.mxu0 0.0
        %2169 = vmatmul.mubr.f32.gmra.mrb[0].mxu0 %v2018
        %v2170 = vpop.f32.mrb[0].mxu0
        %v2171 = vadd.f32 %v2102, %v2170
        %v2172 = vpop.f32.mrb[0].mxu0
        %2173 = vmatprep.mubr.f32.mxu0 0.0
        %2174 = vmatmul.mubr.f32.gmra.mrb[0].mxu0 %v2021
        %v2175 = vpop.f32.mrb[0].mxu0
        %v2176 = vadd.f32 %v2102, %v2175
        %v2177 = vpop.f32.mrb[0].mxu0
        %2178 = vdwg.mxu0
        %2181 = vrot.lane.b32.xlu0 %v2090, 120
        %v2182 = vpop.permute.xlu0 %2181
        %2183 = vrot.lane.b32.xlu0 %v2095, 120
        %v2184 = vpop.permute.xlu0 %2183
        %2185 = vrot.lane.b32.xlu0 %v2090, 112
        %v2186 = vpop.permute.xlu0 %2185
        %2187 = vrot.lane.b32.xlu0 %v2095, 112
        %v2188 = vpop.permute.xlu0 %2187
        %2189 = vrot.lane.b32.xlu0 %v2090, 104
        %v2190 = vpop.permute.xlu0 %2189
        %2191 = vrot.lane.b32.xlu0 %v2095, 104
        %v2192 = vpop.permute.xlu0 %2191
        %2195 = vrot.lane.b32.xlu0 %v2171, 120
        %v2196 = vpop.permute.xlu0 %2195
        %2197 = vrot.lane.b32.xlu0 %v2176, 120
        %v2198 = vpop.permute.xlu0 %2197
        %2199 = vrot.lane.b32.xlu0 %v2171, 112
        %v2200 = vpop.permute.xlu0 %2199
        %2201 = vrot.lane.b32.xlu0 %v2176, 112
        %v2202 = vpop.permute.xlu0 %2201
        %2203 = vrot.lane.b32.xlu0 %v2171, 104
        %v2204 = vpop.permute.xlu0 %2203
        %2205 = vrot.lane.b32.xlu0 %v2176, 104
        %v2206 = vpop.permute.xlu0 %2205
        %vm2207 = vcmask 64512
        %v2208 = vsel %vm2207, %v2090, 0
        %v2210 = vsel %vm2207, %v2095, 0
        %v2212 = vsel %vm2207, %v2171, 0
        %v2214 = vsel %vm2207, %v2176, 0
        %2216 = vmatprep.subr.mxu0 0.0
        %2217 = vmatpush1.xpose.msra.mxu0 %v2212
        %2218 = vmatprep.subr.mxu0 0.0
        %2219 = vmatpush1.xpose.msra.mxu0 %v2214
        %2220 = vmatprep.subr.mxu0 0.0
        %2221 = vmatpush1.xpose.msra.mxu0 0.0
        %2222 = vmatprep.subr.mxu0 0.0
        %2223 = vmatpush1.xpose.msra.mxu0 0.0
        %2224 = vmatprep.subr.mxu0 0.0
        %2225 = vmatpush1.xpose.msra.mxu0 0.0
        %2226 = vmatprep.subr.mxu0 0.0
        %2227 = vmatpush1.xpose.msra.mxu0 0.0
        %2228 = vmatprep.subr.mxu0 0.0
        %2229 = vmatpush1.xpose.msra.mxu0 0.0
        %2230 = vmatprep.subr.mxu0 0.0
        %2231 = vmatpush1.xpose.msra.mxu0 0.0
        %2232 = vmatprep.subr.mxu0 0.0
        %2233 = vmatpush1.xpose.msra.mxu0 0.0
        %2234 = vmatprep.subr.mxu0 0.0
        %2235 = vmatpush1.xpose.msra.mxu0 0.0
        %2236 = vmatprep.subr.mxu0 0.0
        %2237 = vmatpush1.xpose.msra.mxu0 0.0
        %2238 = vmatprep.subr.mxu0 0.0
        %2239 = vmatpush1.xpose.msra.mxu0 0.0
        %2240 = vmatprep.subr.mxu0 0.0
        %2241 = vmatpush1.xpose.msra.mxu0 0.0
        %2242 = vmatprep.subr.mxu0 0.0
        %2243 = vmatpush1.xpose.msra.mxu0 0.0
        %2244 = vmatprep.subr.mxu0 0.0
        %2245 = vmatpush1.xpose.msra.mxu0 0.0
        %2246 = vmatprep.subr.mxu0 0.0
        %2247 = vmatpush1.xpose.msra.mxu0 0.0
        %2248 = vmatprep.subr.mxu0 0.0
        %2249 = vmatpush1.xpose.msra.mxu0 0.0
        %2250 = vmatprep.subr.mxu0 0.0
        %2251 = vmatpush1.xpose.msra.mxu0 0.0
        %2252 = vmatprep.subr.mxu0 0.0
        %2253 = vmatpush1.xpose.msra.mxu0 0.0
        %2254 = vmatprep.subr.mxu0 0.0
        %2255 = vmatpush1.xpose.msra.mxu0 0.0
        %2256 = vmatprep.subr.mxu0 0.0
        %2257 = vmatpush1.xpose.msra.mxu0 0.0
        %2258 = vmatprep.subr.mxu0 0.0
        %2259 = vmatpush1.xpose.msra.mxu0 0.0
        %2260 = vmatprep.subr.mxu0 0.0
        %2261 = vmatpush1.xpose.msra.mxu0 0.0
        %2262 = vmatprep.subr.mxu0 0.0
        %2263 = vmatpush1.xpose.msra.mxu0 0.0
        %2264 = vmatprep.subr.mxu0 0.0
        %2265 = vmatpush1.xpose.msra.mxu0 0.0
        %2266 = vmatprep.subr.mxu0 0.0
        %2267 = vmatpush1.xpose.msra.mxu0 0.0
        %2268 = vmatprep.subr.mxu0 0.0
        %2269 = vmatpush1.xpose.msra.mxu0 0.0
        %2270 = vmatprep.subr.mxu0 0.0
        %2271 = vmatpush1.xpose.msra.mxu0 0.0
        %2272 = vmatprep.subr.mxu0 0.0
        %2273 = vmatpush1.xpose.msra.mxu0 0.0
        %2274 = vmatprep.subr.mxu0 0.0
        %2275 = vmatpush1.xpose.msra.mxu0 0.0
        %2276 = vmatprep.subr.mxu0 0.0
        %2277 = vmatpush1.xpose.msra.mxu0 0.0
        %2278 = vmatprep.subr.mxu0 0.0
        %2279 = vmatpush1.xpose.msra.mxu0 0.0
        %2280 = vmatprep.mubr.f32.mxu0 0.0
        %2281 = vmatmul.mubr.f32.gmra.mrb[0].mxu0 %v2208
        %v2282 = vpop.f32.mrb[0].mxu0
        %v2283 = vadd.f32 0.0, %v2282
        %v2284 = vpop.f32.mrb[0].mxu0
        %2285 = vmatprep.mubr.f32.mxu0 0.0
        %2286 = vmatmul.mubr.f32.gmra.mrb[0].mxu0 %v2210
        %v2287 = vpop.f32.mrb[0].mxu0
        %v2288 = vadd.f32 0.0, %v2287
        %v2289 = vpop.f32.mrb[0].mxu0
        %2290 = vdwg.mxu0
        %v2291 = vsel %vm2207, %v2182, 0
        %v2293 = vsel %vm2207, %v2184, 0
        %v2295 = vsel %vm2207, %v2196, 0
        %v2297 = vsel %vm2207, %v2198, 0
        %2299 = vmatprep.subr.mxu0 0.0
        %2300 = vmatpush1.xpose.msra.mxu0 %v2295
        %2301 = vmatprep.subr.mxu0 0.0
        %2302 = vmatpush1.xpose.msra.mxu0 %v2297
        %2303 = vmatprep.subr.mxu0 0.0
        %2304 = vmatpush1.xpose.msra.mxu0 0.0
        %2305 = vmatprep.subr.mxu0 0.0
        %2306 = vmatpush1.xpose.msra.mxu0 0.0
        %2307 = vmatprep.subr.mxu0 0.0
        %2308 = vmatpush1.xpose.msra.mxu0 0.0
        %2309 = vmatprep.subr.mxu0 0.0
        %2310 = vmatpush1.xpose.msra.mxu0 0.0
        %2311 = vmatprep.subr.mxu0 0.0
        %2312 = vmatpush1.xpose.msra.mxu0 0.0
        %2313 = vmatprep.subr.mxu0 0.0
        %2314 = vmatpush1.xpose.msra.mxu0 0.0
        %2315 = vmatprep.subr.mxu0 0.0
        %2316 = vmatpush1.xpose.msra.mxu0 0.0
        %2317 = vmatprep.subr.mxu0 0.0
        %2318 = vmatpush1.xpose.msra.mxu0 0.0
        %2319 = vmatprep.subr.mxu0 0.0
        %2320 = vmatpush1.xpose.msra.mxu0 0.0
        %2321 = vmatprep.subr.mxu0 0.0
        %2322 = vmatpush1.xpose.msra.mxu0 0.0
        %2323 = vmatprep.subr.mxu0 0.0
        %2324 = vmatpush1.xpose.msra.mxu0 0.0
        %2325 = vmatprep.subr.mxu0 0.0
        %2326 = vmatpush1.xpose.msra.mxu0 0.0
        %2327 = vmatprep.subr.mxu0 0.0
        %2328 = vmatpush1.xpose.msra.mxu0 0.0
        %2329 = vmatprep.subr.mxu0 0.0
        %2330 = vmatpush1.xpose.msra.mxu0 0.0
        %2331 = vmatprep.subr.mxu0 0.0
        %2332 = vmatpush1.xpose.msra.mxu0 0.0
        %2333 = vmatprep.subr.mxu0 0.0
        %2334 = vmatpush1.xpose.msra.mxu0 0.0
        %2335 = vmatprep.subr.mxu0 0.0
        %2336 = vmatpush1.xpose.msra.mxu0 0.0
        %2337 = vmatprep.subr.mxu0 0.0
        %2338 = vmatpush1.xpose.msra.mxu0 0.0
        %2339 = vmatprep.subr.mxu0 0.0
        %2340 = vmatpush1.xpose.msra.mxu0 0.0
        %2341 = vmatprep.subr.mxu0 0.0
        %2342 = vmatpush1.xpose.msra.mxu0 0.0
        %2343 = vmatprep.subr.mxu0 0.0
        %2344 = vmatpush1.xpose.msra.mxu0 0.0
        %2345 = vmatprep.subr.mxu0 0.0
        %2346 = vmatpush1.xpose.msra.mxu0 0.0
        %2347 = vmatprep.subr.mxu0 0.0
        %2348 = vmatpush1.xpose.msra.mxu0 0.0
        %2349 = vmatprep.subr.mxu0 0.0
        %2350 = vmatpush1.xpose.msra.mxu0 0.0
        %2351 = vmatprep.subr.mxu0 0.0
        %2352 = vmatpush1.xpose.msra.mxu0 0.0
        %2353 = vmatprep.subr.mxu0 0.0
        %2354 = vmatpush1.xpose.msra.mxu0 0.0
        %2355 = vmatprep.subr.mxu0 0.0
        %2356 = vmatpush1.xpose.msra.mxu0 0.0
        %2357 = vmatprep.subr.mxu0 0.0
        %2358 = vmatpush1.xpose.msra.mxu0 0.0
        %2359 = vmatprep.subr.mxu0 0.0
        %2360 = vmatpush1.xpose.msra.mxu0 0.0
        %2361 = vmatprep.subr.mxu0 0.0
        %2362 = vmatpush1.xpose.msra.mxu0 0.0
        %2363 = vmatprep.mubr.f32.mxu0 0.0
        %2364 = vmatmul.mubr.f32.gmra.mrb[0].mxu0 %v2291
        %v2365 = vpop.f32.mrb[0].mxu0
        %v2366 = vadd.f32 0.0, %v2365
        %v2367 = vpop.f32.mrb[0].mxu0
        %2368 = vmatprep.mubr.f32.mxu0 0.0
        %2369 = vmatmul.mubr.f32.gmra.mrb[0].mxu0 %v2293
        %v2370 = vpop.f32.mrb[0].mxu0
        %v2371 = vadd.f32 0.0, %v2370
        %v2372 = vpop.f32.mrb[0].mxu0
        %2373 = vdwg.mxu0
        %v2374 = vsel %vm2207, %v2186, 0
        %v2376 = vsel %vm2207, %v2188, 0
        %v2378 = vsel %vm2207, %v2200, 0
        %v2380 = vsel %vm2207, %v2202, 0
        %2382 = vmatprep.subr.mxu0 0.0
        %2383 = vmatpush1.xpose.msra.mxu0 %v2378
        %2384 = vmatprep.subr.mxu0 0.0
        %2385 = vmatpush1.xpose.msra.mxu0 %v2380
        %2386 = vmatprep.subr.mxu0 0.0
        %2387 = vmatpush1.xpose.msra.mxu0 0.0
        %2388 = vmatprep.subr.mxu0 0.0
        %2389 = vmatpush1.xpose.msra.mxu0 0.0
        %2390 = vmatprep.subr.mxu0 0.0
        %2391 = vmatpush1.xpose.msra.mxu0 0.0
        %2392 = vmatprep.subr.mxu0 0.0
        %2393 = vmatpush1.xpose.msra.mxu0 0.0
        %2394 = vmatprep.subr.mxu0 0.0
        %2395 = vmatpush1.xpose.msra.mxu0 0.0
        %2396 = vmatprep.subr.mxu0 0.0
        %2397 = vmatpush1.xpose.msra.mxu0 0.0
        %2398 = vmatprep.subr.mxu0 0.0
        %2399 = vmatpush1.xpose.msra.mxu0 0.0
        %2400 = vmatprep.subr.mxu0 0.0
        %2401 = vmatpush1.xpose.msra.mxu0 0.0
        %2402 = vmatprep.subr.mxu0 0.0
        %2403 = vmatpush1.xpose.msra.mxu0 0.0
        %2404 = vmatprep.subr.mxu0 0.0
        %2405 = vmatpush1.xpose.msra.mxu0 0.0
        %2406 = vmatprep.subr.mxu0 0.0
        %2407 = vmatpush1.xpose.msra.mxu0 0.0
        %2408 = vmatprep.subr.mxu0 0.0
        %2409 = vmatpush1.xpose.msra.mxu0 0.0
        %2410 = vmatprep.subr.mxu0 0.0
        %2411 = vmatpush1.xpose.msra.mxu0 0.0
        %2412 = vmatprep.subr.mxu0 0.0
        %2413 = vmatpush1.xpose.msra.mxu0 0.0
        %2414 = vmatprep.subr.mxu0 0.0
        %2415 = vmatpush1.xpose.msra.mxu0 0.0
        %2416 = vmatprep.subr.mxu0 0.0
        %2417 = vmatpush1.xpose.msra.mxu0 0.0
        %2418 = vmatprep.subr.mxu0 0.0
        %2419 = vmatpush1.xpose.msra.mxu0 0.0
        %2420 = vmatprep.subr.mxu0 0.0
        %2421 = vmatpush1.xpose.msra.mxu0 0.0
        %2422 = vmatprep.subr.mxu0 0.0
        %2423 = vmatpush1.xpose.msra.mxu0 0.0
        %2424 = vmatprep.subr.mxu0 0.0
        %2425 = vmatpush1.xpose.msra.mxu0 0.0
        %2426 = vmatprep.subr.mxu0 0.0
        %2427 = vmatpush1.xpose.msra.mxu0 0.0
        %2428 = vmatprep.subr.mxu0 0.0
        %2429 = vmatpush1.xpose.msra.mxu0 0.0
        %2430 = vmatprep.subr.mxu0 0.0
        %2431 = vmatpush1.xpose.msra.mxu0 0.0
        %2432 = vmatprep.subr.mxu0 0.0
        %2433 = vmatpush1.xpose.msra.mxu0 0.0
        %2434 = vmatprep.subr.mxu0 0.0
        %2435 = vmatpush1.xpose.msra.mxu0 0.0
        %2436 = vmatprep.subr.mxu0 0.0
        %2437 = vmatpush1.xpose.msra.mxu0 0.0
        %2438 = vmatprep.subr.mxu0 0.0
        %2439 = vmatpush1.xpose.msra.mxu0 0.0
        %2440 = vmatprep.subr.mxu0 0.0
        %2441 = vmatpush1.xpose.msra.mxu0 0.0
        %2442 = vmatprep.subr.mxu0 0.0
        %2443 = vmatpush1.xpose.msra.mxu0 0.0
        %2444 = vmatprep.subr.mxu0 0.0
        %2445 = vmatpush1.xpose.msra.mxu0 0.0
        %2446 = vmatprep.mubr.f32.mxu0 0.0
        %2447 = vmatmul.mubr.f32.gmra.mrb[0].mxu0 %v2374
        %v2448 = vpop.f32.mrb[0].mxu0
        %v2449 = vadd.f32 0.0, %v2448
        %v2450 = vpop.f32.mrb[0].mxu0
        %2451 = vmatprep.mubr.f32.mxu0 0.0
        %2452 = vmatmul.mubr.f32.gmra.mrb[0].mxu0 %v2376
        %v2453 = vpop.f32.mrb[0].mxu0
        %v2454 = vadd.f32 0.0, %v2453
        %v2455 = vpop.f32.mrb[0].mxu0
        %2456 = vdwg.mxu0
        %v2457 = vsel %vm2207, %v2190, 0
        %v2459 = vsel %vm2207, %v2192, 0
        %v2461 = vsel %vm2207, %v2204, 0
        %v2463 = vsel %vm2207, %v2206, 0
        %2465 = vmatprep.subr.mxu0 0.0
        %2466 = vmatpush1.xpose.msra.mxu0 %v2461
        %2467 = vmatprep.subr.mxu0 0.0
        %2468 = vmatpush1.xpose.msra.mxu0 %v2463
        %2469 = vmatprep.subr.mxu0 0.0
        %2470 = vmatpush1.xpose.msra.mxu0 0.0
        %2471 = vmatprep.subr.mxu0 0.0
        %2472 = vmatpush1.xpose.msra.mxu0 0.0
        %2473 = vmatprep.subr.mxu0 0.0
        %2474 = vmatpush1.xpose.msra.mxu0 0.0
        %2475 = vmatprep.subr.mxu0 0.0
        %2476 = vmatpush1.xpose.msra.mxu0 0.0
        %2477 = vmatprep.subr.mxu0 0.0
        %2478 = vmatpush1.xpose.msra.mxu0 0.0
        %2479 = vmatprep.subr.mxu0 0.0
        %2480 = vmatpush1.xpose.msra.mxu0 0.0
        %2481 = vmatprep.subr.mxu0 0.0
        %2482 = vmatpush1.xpose.msra.mxu0 0.0
        %2483 = vmatprep.subr.mxu0 0.0
        %2484 = vmatpush1.xpose.msra.mxu0 0.0
        %2485 = vmatprep.subr.mxu0 0.0
        %2486 = vmatpush1.xpose.msra.mxu0 0.0
        %2487 = vmatprep.subr.mxu0 0.0
        %2488 = vmatpush1.xpose.msra.mxu0 0.0
        %2489 = vmatprep.subr.mxu0 0.0
        %2490 = vmatpush1.xpose.msra.mxu0 0.0
        %2491 = vmatprep.subr.mxu0 0.0
        %2492 = vmatpush1.xpose.msra.mxu0 0.0
        %2493 = vmatprep.subr.mxu0 0.0
        %2494 = vmatpush1.xpose.msra.mxu0 0.0
        %2495 = vmatprep.subr.mxu0 0.0
        %2496 = vmatpush1.xpose.msra.mxu0 0.0
        %2497 = vmatprep.subr.mxu0 0.0
        %2498 = vmatpush1.xpose.msra.mxu0 0.0
        %2499 = vmatprep.subr.mxu0 0.0
        %2500 = vmatpush1.xpose.msra.mxu0 0.0
        %2501 = vmatprep.subr.mxu0 0.0
        %2502 = vmatpush1.xpose.msra.mxu0 0.0
        %2503 = vmatprep.subr.mxu0 0.0
        %2504 = vmatpush1.xpose.msra.mxu0 0.0
        %2505 = vmatprep.subr.mxu0 0.0
        %2506 = vmatpush1.xpose.msra.mxu0 0.0
        %2507 = vmatprep.subr.mxu0 0.0
        %2508 = vmatpush1.xpose.msra.mxu0 0.0
        %2509 = vmatprep.subr.mxu0 0.0
        %2510 = vmatpush1.xpose.msra.mxu0 0.0
        %2511 = vmatprep.subr.mxu0 0.0
        %2512 = vmatpush1.xpose.msra.mxu0 0.0
        %2513 = vmatprep.subr.mxu0 0.0
        %2514 = vmatpush1.xpose.msra.mxu0 0.0
        %2515 = vmatprep.subr.mxu0 0.0
        %2516 = vmatpush1.xpose.msra.mxu0 0.0
        %2517 = vmatprep.subr.mxu0 0.0
        %2518 = vmatpush1.xpose.msra.mxu0 0.0
        %2519 = vmatprep.subr.mxu0 0.0
        %2520 = vmatpush1.xpose.msra.mxu0 0.0
        %2521 = vmatprep.subr.mxu0 0.0
        %2522 = vmatpush1.xpose.msra.mxu0 0.0
        %2523 = vmatprep.subr.mxu0 0.0
        %2524 = vmatpush1.xpose.msra.mxu0 0.0
        %2525 = vmatprep.subr.mxu0 0.0
        %2526 = vmatpush1.xpose.msra.mxu0 0.0
        %2527 = vmatprep.subr.mxu0 0.0
        %2528 = vmatpush1.xpose.msra.mxu0 0.0
        %2529 = vmatprep.mubr.f32.mxu0 0.0
        %2530 = vmatmul.mubr.f32.gmra.mrb[0].mxu0 %v2457
        %v2531 = vpop.f32.mrb[0].mxu0
        %v2532 = vadd.f32 0.0, %v2531
        %v2533 = vpop.f32.mrb[0].mxu0
        %2534 = vmatprep.mubr.f32.mxu0 0.0
        %2535 = vmatmul.mubr.f32.gmra.mrb[0].mxu0 %v2459
        %v2536 = vpop.f32.mrb[0].mxu0
        %v2537 = vadd.f32 0.0, %v2536
        %v2538 = vpop.f32.mrb[0].mxu0
        %2539 = vdwg.mxu0
        %v2540 = vsel %vm1814, %v2283, -inf
        %2541 = vmax.xlane.f32.xlu0 %v2540
        %v2542 = vpop.xlane.xlu0 %2541
        %v2543 = vsel %vm1814, %v2288, -inf
        %2544 = vmax.xlane.f32.xlu0 %v2543
        %v2545 = vpop.xlane.xlu0 %2544
        %v2546 = vsel %vm1814, %v2366, -inf
        %2547 = vmax.xlane.f32.xlu0 %v2546
        %v2548 = vpop.xlane.xlu0 %2547
        %v2549 = vsel %vm1814, %v2371, -inf
        %2550 = vmax.xlane.f32.xlu0 %v2549
        %v2551 = vpop.xlane.xlu0 %2550
        %v2552 = vsel %vm1814, %v2449, -inf
        %2553 = vmax.xlane.f32.xlu0 %v2552
        %v2554 = vpop.xlane.xlu0 %2553
        %v2555 = vsel %vm1814, %v2454, -inf
        %2556 = vmax.xlane.f32.xlu0 %v2555
        %v2557 = vpop.xlane.xlu0 %2556
        %v2558 = vsel %vm1814, %v2532, -inf
        %2559 = vmax.xlane.f32.xlu0 %v2558
        %v2560 = vpop.xlane.xlu0 %2559
        %v2561 = vsel %vm1814, %v2537, -inf
        %2562 = vmax.xlane.f32.xlu0 %v2561
        %v2563 = vpop.xlane.xlu0 %2562
        %v2564 = vsub.f32 %v2283, %v2542
        %v2565 = vsub.f32 %v2288, %v2545
        %v2566 = vsub.f32 %v2366, %v2548
        %v2567 = vsub.f32 %v2371, %v2551
        %v2568 = vsub.f32 %v2449, %v2554
        %v2569 = vsub.f32 %v2454, %v2557
        %v2570 = vsub.f32 %v2532, %v2560
        %v2571 = vsub.f32 %v2537, %v2563
        %v2572 = vmul.f32 %v2564, 1.442695
        %v2573 = vpow.pop %v2572
        %v2574 = vmul.f32 %v2565, 1.442695
        %v2575 = vpow.pop %v2574
        %v2576 = vmul.f32 %v2566, 1.442695
        %v2577 = vpow.pop %v2576
        %v2578 = vmul.f32 %v2567, 1.442695
        %v2579 = vpow.pop %v2578
        %v2580 = vmul.f32 %v2568, 1.442695
        %v2581 = vpow.pop %v2580
        %v2582 = vmul.f32 %v2569, 1.442695
        %v2583 = vpow.pop %v2582
        %v2584 = vmul.f32 %v2570, 1.442695
        %v2585 = vpow.pop %v2584
        %v2586 = vmul.f32 %v2571, 1.442695
        %v2587 = vpow.pop %v2586
        %v2588 = vsel %vm1814, %v2573, 0.0
        %2589 = vadd.xlane.f32.xlu0 %v2588
        %v2590 = vpop.xlane.xlu0 %2589
        %v2591 = vsel %vm1814, %v2575, 0.0
        %2592 = vadd.xlane.f32.xlu0 %v2591
        %v2593 = vpop.xlane.xlu0 %2592
        %v2594 = vsel %vm1814, %v2577, 0.0
        %2595 = vadd.xlane.f32.xlu0 %v2594
        %v2596 = vpop.xlane.xlu0 %2595
        %v2597 = vsel %vm1814, %v2579, 0.0
        %2598 = vadd.xlane.f32.xlu0 %v2597
        %v2599 = vpop.xlane.xlu0 %2598
        %v2600 = vsel %vm1814, %v2581, 0.0
        %2601 = vadd.xlane.f32.xlu0 %v2600
        %v2602 = vpop.xlane.xlu0 %2601
        %v2603 = vsel %vm1814, %v2583, 0.0
        %2604 = vadd.xlane.f32.xlu0 %v2603
        %v2605 = vpop.xlane.xlu0 %2604
        %v2606 = vsel %vm1814, %v2585, 0.0
        %2607 = vadd.xlane.f32.xlu0 %v2606
        %v2608 = vpop.xlane.xlu0 %2607
        %v2609 = vsel %vm1814, %v2587, 0.0
        %2610 = vadd.xlane.f32.xlu0 %v2609
        %v2611 = vpop.xlane.xlu0 %2610
        %v2612 = vrcp.pop %v2590
        %v2613 = vrcp.pop %v2593
        %v2614 = vrcp.pop %v2596
        %v2615 = vrcp.pop %v2599
        %v2616 = vrcp.pop %v2602
        %v2617 = vrcp.pop %v2605
        %v2618 = vrcp.pop %v2608
        %v2619 = vrcp.pop %v2611
        %v2620 = vmul.f32 %v2573, %v2612
        %v2621 = vmul.f32 %v2575, %v2613
        %v2622 = vmul.f32 %v2577, %v2614
        %v2623 = vmul.f32 %v2579, %v2615
        %v2624 = vmul.f32 %v2581, %v2616
        %v2625 = vmul.f32 %v2583, %v2617
        %v2626 = vmul.f32 %v2585, %v2618
        %v2627 = vmul.f32 %v2587, %v2619
        %2628 = vrot.lane.b32.xlu0 %v2171, 96
        %v2629 = vpop.permute.xlu0 %2628
        %2630 = vrot.lane.b32.xlu0 %v2176, 96
        %v2631 = vpop.permute.xlu0 %2630
        %v2635 = vsel %vm1814, %v2620, 0
        %v2638 = vsel %vm1814, %v2621, 0
        %2640 = vmatprep.subr.mxu0 0.0
        %2641 = vmatpush1.msra.mxu0 %v2629
        %2642 = vmatprep.subr.mxu0 0.0
        %2643 = vmatpush1.msra.mxu0 %v2631
        %2644 = vmatprep.subr.mxu0 0.0
        %2645 = vmatpush1.msra.mxu0 0.0
        %2646 = vmatprep.subr.mxu0 0.0
        %2647 = vmatpush1.msra.mxu0 0.0
        %2648 = vmatprep.subr.mxu0 0.0
        %2649 = vmatpush1.msra.mxu0 0.0
        %2650 = vmatprep.subr.mxu0 0.0
        %2651 = vmatpush1.msra.mxu0 0.0
        %2652 = vmatprep.subr.mxu0 0.0
        %2653 = vmatpush1.msra.mxu0 0.0
        %2654 = vmatprep.subr.mxu0 0.0
        %2655 = vmatpush1.msra.mxu0 0.0
        %2656 = vmatprep.subr.mxu0 0.0
        %2657 = vmatpush1.msra.mxu0 0.0
        %2658 = vmatprep.subr.mxu0 0.0
        %2659 = vmatpush1.msra.mxu0 0.0
        %2660 = vmatprep.subr.mxu0 0.0
        %2661 = vmatpush1.msra.mxu0 0.0
        %2662 = vmatprep.subr.mxu0 0.0
        %2663 = vmatpush1.msra.mxu0 0.0
        %2664 = vmatprep.subr.mxu0 0.0
        %2665 = vmatpush1.msra.mxu0 0.0
        %2666 = vmatprep.subr.mxu0 0.0
        %2667 = vmatpush1.msra.mxu0 0.0
        %2668 = vmatprep.subr.mxu0 0.0
        %2669 = vmatpush1.msra.mxu0 0.0
        %2670 = vmatprep.subr.mxu0 0.0
        %2671 = vmatpush1.msra.mxu0 0.0
        %2672 = vmatprep.subr.mxu0 0.0
        %2673 = vmatpush1.msra.mxu0 0.0
        %2674 = vmatprep.subr.mxu0 0.0
        %2675 = vmatpush1.msra.mxu0 0.0
        %2676 = vmatprep.subr.mxu0 0.0
        %2677 = vmatpush1.msra.mxu0 0.0
        %2678 = vmatprep.subr.mxu0 0.0
        %2679 = vmatpush1.msra.mxu0 0.0
        %2680 = vmatprep.subr.mxu0 0.0
        %2681 = vmatpush1.msra.mxu0 0.0
        %2682 = vmatprep.subr.mxu0 0.0
        %2683 = vmatpush1.msra.mxu0 0.0
        %2684 = vmatprep.subr.mxu0 0.0
        %2685 = vmatpush1.msra.mxu0 0.0
        %2686 = vmatprep.subr.mxu0 0.0
        %2687 = vmatpush1.msra.mxu0 0.0
        %2688 = vmatprep.subr.mxu0 0.0
        %2689 = vmatpush1.msra.mxu0 0.0
        %2690 = vmatprep.subr.mxu0 0.0
        %2691 = vmatpush1.msra.mxu0 0.0
        %2692 = vmatprep.subr.mxu0 0.0
        %2693 = vmatpush1.msra.mxu0 0.0
        %2694 = vmatprep.subr.mxu0 0.0
        %2695 = vmatpush1.msra.mxu0 0.0
        %2696 = vmatprep.subr.mxu0 0.0
        %2697 = vmatpush1.msra.mxu0 0.0
        %2698 = vmatprep.subr.mxu0 0.0
        %2699 = vmatpush1.msra.mxu0 0.0
        %2700 = vmatprep.subr.mxu0 0.0
        %2701 = vmatpush1.msra.mxu0 0.0
        %2702 = vmatprep.subr.mxu0 0.0
        %2703 = vmatpush1.msra.mxu0 0.0
        %2704 = vmatprep.mubr.f32.mxu0 0.0
        %2705 = vmatmul.mubr.f32.gmra.mrb[0].mxu0 %v2635
        %v2706 = vpop.f32.mrb[0].mxu0
        %v2707 = vadd.f32 0.0, %v2706
        %v2708 = vpop.f32.mrb[0].mxu0
        %2709 = vmatprep.mubr.f32.mxu0 0.0
        %2710 = vmatmul.mubr.f32.gmra.mrb[0].mxu0 %v2638
        %v2711 = vpop.f32.mrb[0].mxu0
        %v2712 = vadd.f32 0.0, %v2711
        %v2713 = vpop.f32.mrb[0].mxu0
        %2714 = vdwg.mxu0
        %2715 = vrot.lane.b32.xlu0 %v2196, 96
        %v2716 = vpop.permute.xlu0 %2715
        %2717 = vrot.lane.b32.xlu0 %v2198, 96
        %v2718 = vpop.permute.xlu0 %2717
        %v2722 = vsel %vm1814, %v2622, 0
        %v2725 = vsel %vm1814, %v2623, 0
        %2727 = vmatprep.subr.mxu0 0.0
        %2728 = vmatpush1.msra.mxu0 %v2716
        %2729 = vmatprep.subr.mxu0 0.0
        %2730 = vmatpush1.msra.mxu0 %v2718
        %2731 = vmatprep.subr.mxu0 0.0
        %2732 = vmatpush1.msra.mxu0 0.0
        %2733 = vmatprep.subr.mxu0 0.0
        %2734 = vmatpush1.msra.mxu0 0.0
        %2735 = vmatprep.subr.mxu0 0.0
        %2736 = vmatpush1.msra.mxu0 0.0
        %2737 = vmatprep.subr.mxu0 0.0
        %2738 = vmatpush1.msra.mxu0 0.0
        %2739 = vmatprep.subr.mxu0 0.0
        %2740 = vmatpush1.msra.mxu0 0.0
        %2741 = vmatprep.subr.mxu0 0.0
        %2742 = vmatpush1.msra.mxu0 0.0
        %2743 = vmatprep.subr.mxu0 0.0
        %2744 = vmatpush1.msra.mxu0 0.0
        %2745 = vmatprep.subr.mxu0 0.0
        %2746 = vmatpush1.msra.mxu0 0.0
        %2747 = vmatprep.subr.mxu0 0.0
        %2748 = vmatpush1.msra.mxu0 0.0
        %2749 = vmatprep.subr.mxu0 0.0
        %2750 = vmatpush1.msra.mxu0 0.0
        %2751 = vmatprep.subr.mxu0 0.0
        %2752 = vmatpush1.msra.mxu0 0.0
        %2753 = vmatprep.subr.mxu0 0.0
        %2754 = vmatpush1.msra.mxu0 0.0
        %2755 = vmatprep.subr.mxu0 0.0
        %2756 = vmatpush1.msra.mxu0 0.0
        %2757 = vmatprep.subr.mxu0 0.0
        %2758 = vmatpush1.msra.mxu0 0.0
        %2759 = vmatprep.subr.mxu0 0.0
        %2760 = vmatpush1.msra.mxu0 0.0
        %2761 = vmatprep.subr.mxu0 0.0
        %2762 = vmatpush1.msra.mxu0 0.0
        %2763 = vmatprep.subr.mxu0 0.0
        %2764 = vmatpush1.msra.mxu0 0.0
        %2765 = vmatprep.subr.mxu0 0.0
        %2766 = vmatpush1.msra.mxu0 0.0
        %2767 = vmatprep.subr.mxu0 0.0
        %2768 = vmatpush1.msra.mxu0 0.0
        %2769 = vmatprep.subr.mxu0 0.0
        %2770 = vmatpush1.msra.mxu0 0.0
        %2771 = vmatprep.subr.mxu0 0.0
        %2772 = vmatpush1.msra.mxu0 0.0
        %2773 = vmatprep.subr.mxu0 0.0
        %2774 = vmatpush1.msra.mxu0 0.0
        %2775 = vmatprep.subr.mxu0 0.0
        %2776 = vmatpush1.msra.mxu0 0.0
        %2777 = vmatprep.subr.mxu0 0.0
        %2778 = vmatpush1.msra.mxu0 0.0
        %2779 = vmatprep.subr.mxu0 0.0
        %2780 = vmatpush1.msra.mxu0 0.0
        %2781 = vmatprep.subr.mxu0 0.0
        %2782 = vmatpush1.msra.mxu0 0.0
        %2783 = vmatprep.subr.mxu0 0.0
        %2784 = vmatpush1.msra.mxu0 0.0
        %2785 = vmatprep.subr.mxu0 0.0
        %2786 = vmatpush1.msra.mxu0 0.0
        %2787 = vmatprep.subr.mxu0 0.0
        %2788 = vmatpush1.msra.mxu0 0.0
        %2789 = vmatprep.subr.mxu0 0.0
        %2790 = vmatpush1.msra.mxu0 0.0
        %2791 = vmatprep.mubr.f32.mxu0 0.0
        %2792 = vmatmul.mubr.f32.gmra.mrb[0].mxu0 %v2722
        %v2793 = vpop.f32.mrb[0].mxu0
        %v2794 = vadd.f32 0.0, %v2793
        %v2795 = vpop.f32.mrb[0].mxu0
        %2796 = vmatprep.mubr.f32.mxu0 0.0
        %2797 = vmatmul.mubr.f32.gmra.mrb[0].mxu0 %v2725
        %v2798 = vpop.f32.mrb[0].mxu0
        %v2799 = vadd.f32 0.0, %v2798
        %v2800 = vpop.f32.mrb[0].mxu0
        %2801 = vdwg.mxu0
        %2802 = vrot.lane.b32.xlu0 %v2200, 96
        %v2803 = vpop.permute.xlu0 %2802
        %2804 = vrot.lane.b32.xlu0 %v2202, 96
        %v2805 = vpop.permute.xlu0 %2804
        %v2809 = vsel %vm1814, %v2624, 0
        %v2812 = vsel %vm1814, %v2625, 0
        %2814 = vmatprep.subr.mxu0 0.0
        %2815 = vmatpush1.msra.mxu0 %v2803
        %2816 = vmatprep.subr.mxu0 0.0
        %2817 = vmatpush1.msra.mxu0 %v2805
        %2818 = vmatprep.subr.mxu0 0.0
        %2819 = vmatpush1.msra.mxu0 0.0
        %2820 = vmatprep.subr.mxu0 0.0
        %2821 = vmatpush1.msra.mxu0 0.0
        %2822 = vmatprep.subr.mxu0 0.0
        %2823 = vmatpush1.msra.mxu0 0.0
        %2824 = vmatprep.subr.mxu0 0.0
        %2825 = vmatpush1.msra.mxu0 0.0
        %2826 = vmatprep.subr.mxu0 0.0
        %2827 = vmatpush1.msra.mxu0 0.0
        %2828 = vmatprep.subr.mxu0 0.0
        %2829 = vmatpush1.msra.mxu0 0.0
        %2830 = vmatprep.subr.mxu0 0.0
        %2831 = vmatpush1.msra.mxu0 0.0
        %2832 = vmatprep.subr.mxu0 0.0
        %2833 = vmatpush1.msra.mxu0 0.0
        %2834 = vmatprep.subr.mxu0 0.0
        %2835 = vmatpush1.msra.mxu0 0.0
        %2836 = vmatprep.subr.mxu0 0.0
        %2837 = vmatpush1.msra.mxu0 0.0
        %2838 = vmatprep.subr.mxu0 0.0
        %2839 = vmatpush1.msra.mxu0 0.0
        %2840 = vmatprep.subr.mxu0 0.0
        %2841 = vmatpush1.msra.mxu0 0.0
        %2842 = vmatprep.subr.mxu0 0.0
        %2843 = vmatpush1.msra.mxu0 0.0
        %2844 = vmatprep.subr.mxu0 0.0
        %2845 = vmatpush1.msra.mxu0 0.0
        %2846 = vmatprep.subr.mxu0 0.0
        %2847 = vmatpush1.msra.mxu0 0.0
        %2848 = vmatprep.subr.mxu0 0.0
        %2849 = vmatpush1.msra.mxu0 0.0
        %2850 = vmatprep.subr.mxu0 0.0
        %2851 = vmatpush1.msra.mxu0 0.0
        %2852 = vmatprep.subr.mxu0 0.0
        %2853 = vmatpush1.msra.mxu0 0.0
        %2854 = vmatprep.subr.mxu0 0.0
        %2855 = vmatpush1.msra.mxu0 0.0
        %2856 = vmatprep.subr.mxu0 0.0
        %2857 = vmatpush1.msra.mxu0 0.0
        %2858 = vmatprep.subr.mxu0 0.0
        %2859 = vmatpush1.msra.mxu0 0.0
        %2860 = vmatprep.subr.mxu0 0.0
        %2861 = vmatpush1.msra.mxu0 0.0
        %2862 = vmatprep.subr.mxu0 0.0
        %2863 = vmatpush1.msra.mxu0 0.0
        %2864 = vmatprep.subr.mxu0 0.0
        %2865 = vmatpush1.msra.mxu0 0.0
        %2866 = vmatprep.subr.mxu0 0.0
        %2867 = vmatpush1.msra.mxu0 0.0
        %2868 = vmatprep.subr.mxu0 0.0
        %2869 = vmatpush1.msra.mxu0 0.0
        %2870 = vmatprep.subr.mxu0 0.0
        %2871 = vmatpush1.msra.mxu0 0.0
        %2872 = vmatprep.subr.mxu0 0.0
        %2873 = vmatpush1.msra.mxu0 0.0
        %2874 = vmatprep.subr.mxu0 0.0
        %2875 = vmatpush1.msra.mxu0 0.0
        %2876 = vmatprep.subr.mxu0 0.0
        %2877 = vmatpush1.msra.mxu0 0.0
        %2878 = vmatprep.mubr.f32.mxu0 0.0
        %2879 = vmatmul.mubr.f32.gmra.mrb[0].mxu0 %v2809
        %v2880 = vpop.f32.mrb[0].mxu0
        %v2881 = vadd.f32 0.0, %v2880
        %v2882 = vpop.f32.mrb[0].mxu0
        %2883 = vmatprep.mubr.f32.mxu0 0.0
        %2884 = vmatmul.mubr.f32.gmra.mrb[0].mxu0 %v2812
        %v2885 = vpop.f32.mrb[0].mxu0
        %v2886 = vadd.f32 0.0, %v2885
        %v2887 = vpop.f32.mrb[0].mxu0
        %2888 = vdwg.mxu0
        %2889 = vrot.lane.b32.xlu0 %v2204, 96
        %v2890 = vpop.permute.xlu0 %2889
        %2891 = vrot.lane.b32.xlu0 %v2206, 96
        %v2892 = vpop.permute.xlu0 %2891
        %v2896 = vsel %vm1814, %v2626, 0
        %v2899 = vsel %vm1814, %v2627, 0
        %2901 = vmatprep.subr.mxu0 0.0
        %2902 = vmatpush1.msra.mxu0 %v2890
        %2903 = vmatprep.subr.mxu0 0.0
        %2904 = vmatpush1.msra.mxu0 %v2892
        %2905 = vmatprep.subr.mxu0 0.0
        %2906 = vmatpush1.msra.mxu0 0.0
        %2907 = vmatprep.subr.mxu0 0.0
        %2908 = vmatpush1.msra.mxu0 0.0
        %2909 = vmatprep.subr.mxu0 0.0
        %2910 = vmatpush1.msra.mxu0 0.0
        %2911 = vmatprep.subr.mxu0 0.0
        %2912 = vmatpush1.msra.mxu0 0.0
        %2913 = vmatprep.subr.mxu0 0.0
        %2914 = vmatpush1.msra.mxu0 0.0
        %2915 = vmatprep.subr.mxu0 0.0
        %2916 = vmatpush1.msra.mxu0 0.0
        %2917 = vmatprep.subr.mxu0 0.0
        %2918 = vmatpush1.msra.mxu0 0.0
        %2919 = vmatprep.subr.mxu0 0.0
        %2920 = vmatpush1.msra.mxu0 0.0
        %2921 = vmatprep.subr.mxu0 0.0
        %2922 = vmatpush1.msra.mxu0 0.0
        %2923 = vmatprep.subr.mxu0 0.0
        %2924 = vmatpush1.msra.mxu0 0.0
        %2925 = vmatprep.subr.mxu0 0.0
        %2926 = vmatpush1.msra.mxu0 0.0
        %2927 = vmatprep.subr.mxu0 0.0
        %2928 = vmatpush1.msra.mxu0 0.0
        %2929 = vmatprep.subr.mxu0 0.0
        %2930 = vmatpush1.msra.mxu0 0.0
        %2931 = vmatprep.subr.mxu0 0.0
        %2932 = vmatpush1.msra.mxu0 0.0
        %2933 = vmatprep.subr.mxu0 0.0
        %2934 = vmatpush1.msra.mxu0 0.0
        %2935 = vmatprep.subr.mxu0 0.0
        %2936 = vmatpush1.msra.mxu0 0.0
        %2937 = vmatprep.subr.mxu0 0.0
        %2938 = vmatpush1.msra.mxu0 0.0
        %2939 = vmatprep.subr.mxu0 0.0
        %2940 = vmatpush1.msra.mxu0 0.0
        %2941 = vmatprep.subr.mxu0 0.0
        %2942 = vmatpush1.msra.mxu0 0.0
        %2943 = vmatprep.subr.mxu0 0.0
        %2944 = vmatpush1.msra.mxu0 0.0
        %2945 = vmatprep.subr.mxu0 0.0
        %2946 = vmatpush1.msra.mxu0 0.0
        %2947 = vmatprep.subr.mxu0 0.0
        %2948 = vmatpush1.msra.mxu0 0.0
        %2949 = vmatprep.subr.mxu0 0.0
        %2950 = vmatpush1.msra.mxu0 0.0
        %2951 = vmatprep.subr.mxu0 0.0
        %2952 = vmatpush1.msra.mxu0 0.0
        %2953 = vmatprep.subr.mxu0 0.0
        %2954 = vmatpush1.msra.mxu0 0.0
        %2955 = vmatprep.subr.mxu0 0.0
        %2956 = vmatpush1.msra.mxu0 0.0
        %2957 = vmatprep.subr.mxu0 0.0
        %2958 = vmatpush1.msra.mxu0 0.0
        %2959 = vmatprep.subr.mxu0 0.0
        %2960 = vmatpush1.msra.mxu0 0.0
        %2961 = vmatprep.subr.mxu0 0.0
        %2962 = vmatpush1.msra.mxu0 0.0
        %2963 = vmatprep.subr.mxu0 0.0
        %2964 = vmatpush1.msra.mxu0 0.0
        %2965 = vmatprep.mubr.f32.mxu0 0.0
        %2966 = vmatmul.mubr.f32.gmra.mrb[0].mxu0 %v2896
        %v2967 = vpop.f32.mrb[0].mxu0
        %v2968 = vadd.f32 0.0, %v2967
        %v2969 = vpop.f32.mrb[0].mxu0
        %2970 = vmatprep.mubr.f32.mxu0 0.0
        %2971 = vmatmul.mubr.f32.gmra.mrb[0].mxu0 %v2899
        %v2972 = vpop.f32.mrb[0].mxu0
        %v2973 = vadd.f32 0.0, %v2972
        %v2974 = vpop.f32.mrb[0].mxu0
        %2975 = vdwg.mxu0
        %2978 = vrot.lane.b32.xlu0 %v2794, 8
        %v2979 = vpop.permute.xlu0 %2978
        %2980 = vrot.lane.b32.xlu0 %v2799, 8
        %v2981 = vpop.permute.xlu0 %2980
        %2986 = vrot.lane.b32.xlu0 %v2881, 16
        %v2987 = vpop.permute.xlu0 %2986
        %2988 = vrot.lane.b32.xlu0 %v2886, 16
        %v2989 = vpop.permute.xlu0 %2988
        %2994 = vrot.lane.b32.xlu0 %v2968, 24
        %v2995 = vpop.permute.xlu0 %2994
        %2996 = vrot.lane.b32.xlu0 %v2973, 24
        %v2997 = vpop.permute.xlu0 %2996
        %v3000 = vsel %vm2207, %v2707, %v2979
        %v3001 = vsel %vm2207, %v2712, %v2981
        %v3002 = vsel %vm1814, %v3000, %v2987
        %v3003 = vsel %vm1814, %v3001, %v2989
        %vm3004 = vcmask 195584
        %v3005 = vsel %vm3004, %v3002, %v2995
        %v3006 = vsel %vm3004, %v3003, %v2997
        %v3008 = vlaneseq
        %v3009 = vshrl.u32 %v3008, 7
        %v3010 = vsub.s32 0, %v3009
        %v3011 = vrot.slane %v2010, %v3010
        %v3014 = vsel %vm1888, %v3005, 0
        %v3017 = vsel %vm1888, %v3006, 0
        %3019 = vmatprep.subr.mxu0 0.0
        %3020 = vmatpush1.msra.mxu0 %v2006
        %3021 = vmatprep.subr.mxu0 0.0
        %3022 = vmatpush1.msra.mxu0 %v2007
        %3023 = vmatprep.subr.mxu0 0.0
        %3024 = vmatpush1.msra.mxu0 %v2008
        %3025 = vmatprep.subr.mxu0 0.0
        %3026 = vmatpush1.msra.mxu0 %v2009
        %3027 = vmatprep.subr.mxu0 0.0
        %3028 = vmatpush1.msra.mxu0 0.0
        %3029 = vmatprep.subr.mxu0 0.0
        %3030 = vmatpush1.msra.mxu0 0.0
        %3031 = vmatprep.subr.mxu0 0.0
        %3032 = vmatpush1.msra.mxu0 0.0
        %3033 = vmatprep.subr.mxu0 0.0
        %3034 = vmatpush1.msra.mxu0 0.0
        %3035 = vmatprep.subr.mxu0 0.0
        %3036 = vmatpush1.msra.mxu0 0.0
        %3037 = vmatprep.subr.mxu0 0.0
        %3038 = vmatpush1.msra.mxu0 0.0
        %3039 = vmatprep.subr.mxu0 0.0
        %3040 = vmatpush1.msra.mxu0 0.0
        %3041 = vmatprep.subr.mxu0 0.0
        %3042 = vmatpush1.msra.mxu0 0.0
        %3043 = vmatprep.subr.mxu0 0.0
        %3044 = vmatpush1.msra.mxu0 0.0
        %3045 = vmatprep.subr.mxu0 0.0
        %3046 = vmatpush1.msra.mxu0 0.0
        %3047 = vmatprep.subr.mxu0 0.0
        %3048 = vmatpush1.msra.mxu0 0.0
        %3049 = vmatprep.subr.mxu0 0.0
        %3050 = vmatpush1.msra.mxu0 0.0
        %3051 = vmatprep.subr.mxu0 0.0
        %3052 = vmatpush1.msra.mxu0 0.0
        %3053 = vmatprep.subr.mxu0 0.0
        %3054 = vmatpush1.msra.mxu0 0.0
        %3055 = vmatprep.subr.mxu0 0.0
        %3056 = vmatpush1.msra.mxu0 0.0
        %3057 = vmatprep.subr.mxu0 0.0
        %3058 = vmatpush1.msra.mxu0 0.0
        %3059 = vmatprep.subr.mxu0 0.0
        %3060 = vmatpush1.msra.mxu0 0.0
        %3061 = vmatprep.subr.mxu0 0.0
        %3062 = vmatpush1.msra.mxu0 0.0
        %3063 = vmatprep.subr.mxu0 0.0
        %3064 = vmatpush1.msra.mxu0 0.0
        %3065 = vmatprep.subr.mxu0 0.0
        %3066 = vmatpush1.msra.mxu0 0.0
        %3067 = vmatprep.subr.mxu0 0.0
        %3068 = vmatpush1.msra.mxu0 0.0
        %3069 = vmatprep.subr.mxu0 0.0
        %3070 = vmatpush1.msra.mxu0 0.0
        %3071 = vmatprep.subr.mxu0 0.0
        %3072 = vmatpush1.msra.mxu0 0.0
        %3073 = vmatprep.subr.mxu0 0.0
        %3074 = vmatpush1.msra.mxu0 0.0
        %3075 = vmatprep.subr.mxu0 0.0
        %3076 = vmatpush1.msra.mxu0 0.0
        %3077 = vmatprep.subr.mxu0 0.0
        %3078 = vmatpush1.msra.mxu0 0.0
        %3079 = vmatprep.subr.mxu0 0.0
        %3080 = vmatpush1.msra.mxu0 0.0
        %3081 = vmatprep.subr.mxu0 0.0
        %3082 = vmatpush1.msra.mxu0 0.0
        %3083 = vmatprep.mubr.f32.mxu0 0.0
        %3084 = vmatmul.mubr.f32.gmra.mrb[0].mxu0 %v3014
        %v3085 = vpop.f32.mrb[0].mxu0
        %v3086 = vadd.f32 %v3011, %v3085
        %v3087 = vpop.f32.mrb[0].mxu0
        %3088 = vmatprep.mubr.f32.mxu0 0.0
        %3089 = vmatmul.mubr.f32.gmra.mrb[0].mxu0 %v3017
        %v3090 = vpop.f32.mrb[0].mxu0
        %v3091 = vadd.f32 %v3011, %v3090
        %v3092 = vpop.f32.mrb[0].mxu0
        %3093 = vdwg.mxu0
        %v3094 = vld [vmem:[%s27] sm:$0x1]
        %v3095 = vld [vmem:[%s29] sm:$0x1]
        %v3096 = vadd.f32 %v1987, %v3086
        %v3097 = vadd.f32 %v1992, %v3091
        %v3098 = vsel %vm1888, %v3096, 0.0
        %3099 = vadd.xlane.f32.xlu0 %v3098
        %v3100 = vpop.xlane.xlu0 %3099
        %v3101 = vsel %vm1888, %v3097, 0.0
        %3102 = vadd.xlane.f32.xlu0 %v3101
        %v3103 = vpop.xlane.xlu0 %3102
        %v3104 = vrcp.pop 32.0
        %v3105 = vmul.f32 %v3100, %v3104
        %v3106 = vmul.f32 %v3103, %v3104
        %v3107 = vsub.f32 %v3096, %v3105
        %v3108 = vsub.f32 %v3097, %v3106
        %v3109 = vmul.f32 %v3107, %v3107
        %v3110 = vmul.f32 %v3108, %v3108
        %v3111 = vsel %vm1888, %v3109, 0.0
        %3112 = vadd.xlane.f32.xlu0 %v3111
        %v3113 = vpop.xlane.xlu0 %3112
        %v3114 = vsel %vm1888, %v3110, 0.0
        %3115 = vadd.xlane.f32.xlu0 %v3114
        %v3116 = vpop.xlane.xlu0 %3115
        %v3117 = vmul.f32 %v3113, %v3104
        %v3118 = vmul.f32 %v3116, %v3104
        %v3119 = vadd.f32 %v3117, 1e-05
        %v3120 = vadd.f32 %v3118, 1e-05
        %v3121 = vrsqrt.pop %v3119
        %v3122 = vrsqrt.pop %v3120
        %v3123 = vmul.f32 %v3107, %v3121
        %v3124 = vmul.f32 %v3108, %v3122
        %v3126 = vlaneseq
        %v3127 = vshrl.u32 %v3126, 7
        %v3128 = vsub.s32 0, %v3127
        %v3129 = vrot.slane %v3094, %v3128
        %v3131 = vmul.f32 %v3123, %v3129
        %v3132 = vmul.f32 %v3124, %v3129
        %v3134 = vlaneseq
        %v3135 = vshrl.u32 %v3134, 7
        %v3136 = vsub.s32 0, %v3135
        %v3137 = vrot.slane %v3095, %v3136
        %v3139 = vadd.f32 %v3131, %v3137
        %v3140 = vadd.f32 %v3132, %v3137
        %v3141 = vld [vmem:[%s31] sm:$0xff]
        %v3142 = vld [vmem:[%s31 + $0x8] sm:$0xff]
        %v3143 = vld [vmem:[%s31 + $0x10] sm:$0xff]
        %v3144 = vld [vmem:[%s31 + $0x18] sm:$0xff]
        %v3145 = vld [vmem:[%s33] sm:$0x1]
        %v3146 = vld [vmem:[%s35] sm:$0xff]
        %v3147 = vld [vmem:[%s35 + $0x8] sm:$0xff]
        %v3148 = vld [vmem:[%s35 + $0x10] sm:$0xff]
        %v3149 = vld [vmem:[%s35 + $0x18] sm:$0xff]
        %v3150 = vld [vmem:[%s37] sm:$0x1]
        %v3151 = vld [vmem:[%s39] sm:$0xff]
        %v3152 = vld [vmem:[%s39 + $0x8] sm:$0xff]
        %v3153 = vld [vmem:[%s39 + $0x10] sm:$0xff]
        %v3154 = vld [vmem:[%s39 + $0x18] sm:$0xff]
        %v3155 = vld [vmem:[%s41] sm:$0x1]
        %v3157 = vlaneseq
        %v3158 = vshrl.u32 %v3157, 7
        %v3159 = vsub.s32 0, %v3158
        %v3160 = vrot.slane %v3145, %v3159
        %v3163 = vsel %vm1888, %v3139, 0
        %v3166 = vsel %vm1888, %v3140, 0
        %3168 = vmatprep.subr.mxu0 0.0
        %3169 = vmatpush1.msra.mxu0 %v3141
        %3170 = vmatprep.subr.mxu0 0.0
        %3171 = vmatpush1.msra.mxu0 %v3142
        %3172 = vmatprep.subr.mxu0 0.0
        %3173 = vmatpush1.msra.mxu0 %v3143
        %3174 = vmatprep.subr.mxu0 0.0
        %3175 = vmatpush1.msra.mxu0 %v3144
        %3176 = vmatprep.subr.mxu0 0.0
        %3177 = vmatpush1.msra.mxu0 0.0
        %3178 = vmatprep.subr.mxu0 0.0
        %3179 = vmatpush1.msra.mxu0 0.0
        %3180 = vmatprep.subr.mxu0 0.0
        %3181 = vmatpush1.msra.mxu0 0.0
        %3182 = vmatprep.subr.mxu0 0.0
        %3183 = vmatpush1.msra.mxu0 0.0
        %3184 = vmatprep.subr.mxu0 0.0
        %3185 = vmatpush1.msra.mxu0 0.0
        %3186 = vmatprep.subr.mxu0 0.0
        %3187 = vmatpush1.msra.mxu0 0.0
        %3188 = vmatprep.subr.mxu0 0.0
        %3189 = vmatpush1.msra.mxu0 0.0
        %3190 = vmatprep.subr.mxu0 0.0
        %3191 = vmatpush1.msra.mxu0 0.0
        %3192 = vmatprep.subr.mxu0 0.0
        %3193 = vmatpush1.msra.mxu0 0.0
        %3194 = vmatprep.subr.mxu0 0.0
        %3195 = vmatpush1.msra.mxu0 0.0
        %3196 = vmatprep.subr.mxu0 0.0
        %3197 = vmatpush1.msra.mxu0 0.0
        %3198 = vmatprep.subr.mxu0 0.0
        %3199 = vmatpush1.msra.mxu0 0.0
        %3200 = vmatprep.subr.mxu0 0.0
        %3201 = vmatpush1.msra.mxu0 0.0
        %3202 = vmatprep.subr.mxu0 0.0
        %3203 = vmatpush1.msra.mxu0 0.0
        %3204 = vmatprep.subr.mxu0 0.0
        %3205 = vmatpush1.msra.mxu0 0.0
        %3206 = vmatprep.subr.mxu0 0.0
        %3207 = vmatpush1.msra.mxu0 0.0
        %3208 = vmatprep.subr.mxu0 0.0
        %3209 = vmatpush1.msra.mxu0 0.0
        %3210 = vmatprep.subr.mxu0 0.0
        %3211 = vmatpush1.msra.mxu0 0.0
        %3212 = vmatprep.subr.mxu0 0.0
        %3213 = vmatpush1.msra.mxu0 0.0
        %3214 = vmatprep.subr.mxu0 0.0
        %3215 = vmatpush1.msra.mxu0 0.0
        %3216 = vmatprep.subr.mxu0 0.0
        %3217 = vmatpush1.msra.mxu0 0.0
        %3218 = vmatprep.subr.mxu0 0.0
        %3219 = vmatpush1.msra.mxu0 0.0
        %3220 = vmatprep.subr.mxu0 0.0
        %3221 = vmatpush1.msra.mxu0 0.0
        %3222 = vmatprep.subr.mxu0 0.0
        %3223 = vmatpush1.msra.mxu0 0.0
        %3224 = vmatprep.subr.mxu0 0.0
        %3225 = vmatpush1.msra.mxu0 0.0
        %3226 = vmatprep.subr.mxu0 0.0
        %3227 = vmatpush1.msra.mxu0 0.0
        %3228 = vmatprep.subr.mxu0 0.0
        %3229 = vmatpush1.msra.mxu0 0.0
        %3230 = vmatprep.subr.mxu0 0.0
        %3231 = vmatpush1.msra.mxu0 0.0
        %3232 = vmatprep.mubr.f32.mxu0 0.0
        %3233 = vmatmul.mubr.f32.gmra.mrb[0].mxu0 %v3163
        %v3234 = vpop.f32.mrb[0].mxu0
        %v3235 = vadd.f32 %v3160, %v3234
        %v3236 = vpop.f32.mrb[0].mxu0
        %3237 = vmatprep.mubr.f32.mxu0 0.0
        %3238 = vmatmul.mubr.f32.gmra.mrb[0].mxu0 %v3166
        %v3239 = vpop.f32.mrb[0].mxu0
        %v3240 = vadd.f32 %v3160, %v3239
        %v3241 = vpop.f32.mrb[0].mxu0
        %3242 = vdwg.mxu0
        %v3244 = vlaneseq
        %v3245 = vshrl.u32 %v3244, 7
        %v3246 = vsub.s32 0, %v3245
        %v3247 = vrot.slane %v3150, %v3246
        %v3250 = vsel %vm1888, %v1885, 0
        %3252 = vmatprep.subr.mxu0 0.0
        %3253 = vmatpush1.msra.mxu0 %v3146
        %3254 = vmatprep.subr.mxu0 0.0
        %3255 = vmatpush1.msra.mxu0 %v3147
        %3256 = vmatprep.subr.mxu0 0.0
        %3257 = vmatpush1.msra.mxu0 %v3148
        %3258 = vmatprep.subr.mxu0 0.0
        %3259 = vmatpush1.msra.mxu0 %v3149
        %3260 = vmatprep.subr.mxu0 0.0
        %3261 = vmatpush1.msra.mxu0 0.0
        %3262 = vmatprep.subr.mxu0 0.0
        %3263 = vmatpush1.msra.mxu0 0.0
        %3264 = vmatprep.subr.mxu0 0.0
        %3265 = vmatpush1.msra.mxu0 0.0
        %3266 = vmatprep.subr.mxu0 0.0
        %3267 = vmatpush1.msra.mxu0 0.0
        %3268 = vmatprep.subr.mxu0 0.0
        %3269 = vmatpush1.msra.mxu0 0.0
        %3270 = vmatprep.subr.mxu0 0.0
        %3271 = vmatpush1.msra.mxu0 0.0
        %3272 = vmatprep.subr.mxu0 0.0
        %3273 = vmatpush1.msra.mxu0 0.0
        %3274 = vmatprep.subr.mxu0 0.0
        %3275 = vmatpush1.msra.mxu0 0.0
        %3276 = vmatprep.subr.mxu0 0.0
        %3277 = vmatpush1.msra.mxu0 0.0
        %3278 = vmatprep.subr.mxu0 0.0
        %3279 = vmatpush1.msra.mxu0 0.0
        %3280 = vmatprep.subr.mxu0 0.0
        %3281 = vmatpush1.msra.mxu0 0.0
        %3282 = vmatprep.subr.mxu0 0.0
        %3283 = vmatpush1.msra.mxu0 0.0
        %3284 = vmatprep.subr.mxu0 0.0
        %3285 = vmatpush1.msra.mxu0 0.0
        %3286 = vmatprep.subr.mxu0 0.0
        %3287 = vmatpush1.msra.mxu0 0.0
        %3288 = vmatprep.subr.mxu0 0.0
        %3289 = vmatpush1.msra.mxu0 0.0
        %3290 = vmatprep.subr.mxu0 0.0
        %3291 = vmatpush1.msra.mxu0 0.0
        %3292 = vmatprep.subr.mxu0 0.0
        %3293 = vmatpush1.msra.mxu0 0.0
        %3294 = vmatprep.subr.mxu0 0.0
        %3295 = vmatpush1.msra.mxu0 0.0
        %3296 = vmatprep.subr.mxu0 0.0
        %3297 = vmatpush1.msra.mxu0 0.0
        %3298 = vmatprep.subr.mxu0 0.0
        %3299 = vmatpush1.msra.mxu0 0.0
        %3300 = vmatprep.subr.mxu0 0.0
        %3301 = vmatpush1.msra.mxu0 0.0
        %3302 = vmatprep.subr.mxu0 0.0
        %3303 = vmatpush1.msra.mxu0 0.0
        %3304 = vmatprep.subr.mxu0 0.0
        %3305 = vmatpush1.msra.mxu0 0.0
        %3306 = vmatprep.subr.mxu0 0.0
        %3307 = vmatpush1.msra.mxu0 0.0
        %3308 = vmatprep.subr.mxu0 0.0
        %3309 = vmatpush1.msra.mxu0 0.0
        %3310 = vmatprep.subr.mxu0 0.0
        %3311 = vmatpush1.msra.mxu0 0.0
        %3312 = vmatprep.subr.mxu0 0.0
        %3313 = vmatpush1.msra.mxu0 0.0
        %3314 = vmatprep.subr.mxu0 0.0
        %3315 = vmatpush1.msra.mxu0 0.0
        %3316 = vmatprep.mubr.f32.mxu0 0.0
        %3317 = vmatmul.mubr.f32.gmra.mrb[0].mxu0 %v3250
        %v3318 = vpop.f32.mrb[0].mxu0
        %v3319 = vadd.f32 %v3247, %v3318
        %v3320 = vpop.f32.mrb[0].mxu0
        %3321 = vdwg.mxu0
        %3324 = vrot.lane.b32.xlu0 %v3235, 120
        %v3325 = vpop.permute.xlu0 %3324
        %3326 = vrot.lane.b32.xlu0 %v3240, 120
        %v3327 = vpop.permute.xlu0 %3326
        %3328 = vrot.lane.b32.xlu0 %v3235, 112
        %v3329 = vpop.permute.xlu0 %3328
        %3330 = vrot.lane.b32.xlu0 %v3240, 112
        %v3331 = vpop.permute.xlu0 %3330
        %3332 = vrot.lane.b32.xlu0 %v3235, 104
        %v3333 = vpop.permute.xlu0 %3332
        %3334 = vrot.lane.b32.xlu0 %v3240, 104
        %v3335 = vpop.permute.xlu0 %3334
        %3337 = vrot.lane.b32.xlu0 %v3319, 120
        %v3338 = vpop.permute.xlu0 %3337
        %3339 = vrot.lane.b32.xlu0 %v3319, 112
        %v3340 = vpop.permute.xlu0 %3339
        %3341 = vrot.lane.b32.xlu0 %v3319, 104
        %v3342 = vpop.permute.xlu0 %3341
        %v3343 = vsel %vm2207, %v3235, 0
        %v3345 = vsel %vm2207, %v3240, 0
        %v3347 = vsel %vm2207, %v3319, 0
        %3349 = vmatprep.subr.mxu0 0.0
        %3350 = vmatpush1.xpose.msra.mxu0 %v3347
        %3351 = vmatprep.subr.mxu0 0.0
        %3352 = vmatpush1.xpose.msra.mxu0 0.0
        %3353 = vmatprep.subr.mxu0 0.0
        %3354 = vmatpush1.xpose.msra.mxu0 0.0
        %3355 = vmatprep.subr.mxu0 0.0
        %3356 = vmatpush1.xpose.msra.mxu0 0.0
        %3357 = vmatprep.subr.mxu0 0.0
        %3358 = vmatpush1.xpose.msra.mxu0 0.0
        %3359 = vmatprep.subr.mxu0 0.0
        %3360 = vmatpush1.xpose.msra.mxu0 0.0
        %3361 = vmatprep.subr.mxu0 0.0
        %3362 = vmatpush1.xpose.msra.mxu0 0.0
        %3363 = vmatprep.subr.mxu0 0.0
        %3364 = vmatpush1.xpose.msra.mxu0 0.0
        %3365 = vmatprep.subr.mxu0 0.0
        %3366 = vmatpush1.xpose.msra.mxu0 0.0
        %3367 = vmatprep.subr.mxu0 0.0
        %3368 = vmatpush1.xpose.msra.mxu0 0.0
        %3369 = vmatprep.subr.mxu0 0.0
        %3370 = vmatpush1.xpose.msra.mxu0 0.0
        %3371 = vmatprep.subr.mxu0 0.0
        %3372 = vmatpush1.xpose.msra.mxu0 0.0
        %3373 = vmatprep.subr.mxu0 0.0
        %3374 = vmatpush1.xpose.msra.mxu0 0.0
        %3375 = vmatprep.subr.mxu0 0.0
        %3376 = vmatpush1.xpose.msra.mxu0 0.0
        %3377 = vmatprep.subr.mxu0 0.0
        %3378 = vmatpush1.xpose.msra.mxu0 0.0
        %3379 = vmatprep.subr.mxu0 0.0
        %3380 = vmatpush1.xpose.msra.mxu0 0.0
        %3381 = vmatprep.subr.mxu0 0.0
        %3382 = vmatpush1.xpose.msra.mxu0 0.0
        %3383 = vmatprep.subr.mxu0 0.0
        %3384 = vmatpush1.xpose.msra.mxu0 0.0
        %3385 = vmatprep.subr.mxu0 0.0
        %3386 = vmatpush1.xpose.msra.mxu0 0.0
        %3387 = vmatprep.subr.mxu0 0.0
        %3388 = vmatpush1.xpose.msra.mxu0 0.0
        %3389 = vmatprep.subr.mxu0 0.0
        %3390 = vmatpush1.xpose.msra.mxu0 0.0
        %3391 = vmatprep.subr.mxu0 0.0
        %3392 = vmatpush1.xpose.msra.mxu0 0.0
        %3393 = vmatprep.subr.mxu0 0.0
        %3394 = vmatpush1.xpose.msra.mxu0 0.0
        %3395 = vmatprep.subr.mxu0 0.0
        %3396 = vmatpush1.xpose.msra.mxu0 0.0
        %3397 = vmatprep.subr.mxu0 0.0
        %3398 = vmatpush1.xpose.msra.mxu0 0.0
        %3399 = vmatprep.subr.mxu0 0.0
        %3400 = vmatpush1.xpose.msra.mxu0 0.0
        %3401 = vmatprep.subr.mxu0 0.0
        %3402 = vmatpush1.xpose.msra.mxu0 0.0
        %3403 = vmatprep.subr.mxu0 0.0
        %3404 = vmatpush1.xpose.msra.mxu0 0.0
        %3405 = vmatprep.subr.mxu0 0.0
        %3406 = vmatpush1.xpose.msra.mxu0 0.0
        %3407 = vmatprep.subr.mxu0 0.0
        %3408 = vmatpush1.xpose.msra.mxu0 0.0
        %3409 = vmatprep.subr.mxu0 0.0
        %3410 = vmatpush1.xpose.msra.mxu0 0.0
        %3411 = vmatprep.subr.mxu0 0.0
        %3412 = vmatpush1.xpose.msra.mxu0 0.0
        %3413 = vmatprep.mubr.f32.mxu0 0.0
        %3414 = vmatmul.mubr.f32.gmra.mrb[0].mxu0 %v3343
        %v3415 = vpop.f32.mrb[0].mxu0
        %v3416 = vadd.f32 0.0, %v3415
        %v3417 = vpop.f32.mrb[0].mxu0
        %3418 = vmatprep.mubr.f32.mxu0 0.0
        %3419 = vmatmul.mubr.f32.gmra.mrb[0].mxu0 %v3345
        %v3420 = vpop.f32.mrb[0].mxu0
        %v3421 = vadd.f32 0.0, %v3420
        %v3422 = vpop.f32.mrb[0].mxu0
        %3423 = vdwg.mxu0
        %v3424 = vsel %vm2207, %v3325, 0
        %v3426 = vsel %vm2207, %v3327, 0
        %v3428 = vsel %vm2207, %v3338, 0
        %3430 = vmatprep.subr.mxu0 0.0
        %3431 = vmatpush1.xpose.msra.mxu0 %v3428
        %3432 = vmatprep.subr.mxu0 0.0
        %3433 = vmatpush1.xpose.msra.mxu0 0.0
        %3434 = vmatprep.subr.mxu0 0.0
        %3435 = vmatpush1.xpose.msra.mxu0 0.0
        %3436 = vmatprep.subr.mxu0 0.0
        %3437 = vmatpush1.xpose.msra.mxu0 0.0
        %3438 = vmatprep.subr.mxu0 0.0
        %3439 = vmatpush1.xpose.msra.mxu0 0.0
        %3440 = vmatprep.subr.mxu0 0.0
        %3441 = vmatpush1.xpose.msra.mxu0 0.0
        %3442 = vmatprep.subr.mxu0 0.0
        %3443 = vmatpush1.xpose.msra.mxu0 0.0
        %3444 = vmatprep.subr.mxu0 0.0
        %3445 = vmatpush1.xpose.msra.mxu0 0.0
        %3446 = vmatprep.subr.mxu0 0.0
        %3447 = vmatpush1.xpose.msra.mxu0 0.0
        %3448 = vmatprep.subr.mxu0 0.0
        %3449 = vmatpush1.xpose.msra.mxu0 0.0
        %3450 = vmatprep.subr.mxu0 0.0
        %3451 = vmatpush1.xpose.msra.mxu0 0.0
        %3452 = vmatprep.subr.mxu0 0.0
        %3453 = vmatpush1.xpose.msra.mxu0 0.0
        %3454 = vmatprep.subr.mxu0 0.0
        %3455 = vmatpush1.xpose.msra.mxu0 0.0
        %3456 = vmatprep.subr.mxu0 0.0
        %3457 = vmatpush1.xpose.msra.mxu0 0.0
        %3458 = vmatprep.subr.mxu0 0.0
        %3459 = vmatpush1.xpose.msra.mxu0 0.0
        %3460 = vmatprep.subr.mxu0 0.0
        %3461 = vmatpush1.xpose.msra.mxu0 0.0
        %3462 = vmatprep.subr.mxu0 0.0
        %3463 = vmatpush1.xpose.msra.mxu0 0.0
        %3464 = vmatprep.subr.mxu0 0.0
        %3465 = vmatpush1.xpose.msra.mxu0 0.0
        %3466 = vmatprep.subr.mxu0 0.0
        %3467 = vmatpush1.xpose.msra.mxu0 0.0
        %3468 = vmatprep.subr.mxu0 0.0
        %3469 = vmatpush1.xpose.msra.mxu0 0.0
        %3470 = vmatprep.subr.mxu0 0.0
        %3471 = vmatpush1.xpose.msra.mxu0 0.0
        %3472 = vmatprep.subr.mxu0 0.0
        %3473 = vmatpush1.xpose.msra.mxu0 0.0
        %3474 = vmatprep.subr.mxu0 0.0
        %3475 = vmatpush1.xpose.msra.mxu0 0.0
        %3476 = vmatprep.subr.mxu0 0.0
        %3477 = vmatpush1.xpose.msra.mxu0 0.0
        %3478 = vmatprep.subr.mxu0 0.0
        %3479 = vmatpush1.xpose.msra.mxu0 0.0
        %3480 = vmatprep.subr.mxu0 0.0
        %3481 = vmatpush1.xpose.msra.mxu0 0.0
        %3482 = vmatprep.subr.mxu0 0.0
        %3483 = vmatpush1.xpose.msra.mxu0 0.0
        %3484 = vmatprep.subr.mxu0 0.0
        %3485 = vmatpush1.xpose.msra.mxu0 0.0
        %3486 = vmatprep.subr.mxu0 0.0
        %3487 = vmatpush1.xpose.msra.mxu0 0.0
        %3488 = vmatprep.subr.mxu0 0.0
        %3489 = vmatpush1.xpose.msra.mxu0 0.0
        %3490 = vmatprep.subr.mxu0 0.0
        %3491 = vmatpush1.xpose.msra.mxu0 0.0
        %3492 = vmatprep.subr.mxu0 0.0
        %3493 = vmatpush1.xpose.msra.mxu0 0.0
        %3494 = vmatprep.mubr.f32.mxu0 0.0
        %3495 = vmatmul.mubr.f32.gmra.mrb[0].mxu0 %v3424
        %v3496 = vpop.f32.mrb[0].mxu0
        %v3497 = vadd.f32 0.0, %v3496
        %v3498 = vpop.f32.mrb[0].mxu0
        %3499 = vmatprep.mubr.f32.mxu0 0.0
        %3500 = vmatmul.mubr.f32.gmra.mrb[0].mxu0 %v3426
        %v3501 = vpop.f32.mrb[0].mxu0
        %v3502 = vadd.f32 0.0, %v3501
        %v3503 = vpop.f32.mrb[0].mxu0
        %3504 = vdwg.mxu0
        %v3505 = vsel %vm2207, %v3329, 0
        %v3507 = vsel %vm2207, %v3331, 0
        %v3509 = vsel %vm2207, %v3340, 0
        %3511 = vmatprep.subr.mxu0 0.0
        %3512 = vmatpush1.xpose.msra.mxu0 %v3509
        %3513 = vmatprep.subr.mxu0 0.0
        %3514 = vmatpush1.xpose.msra.mxu0 0.0
        %3515 = vmatprep.subr.mxu0 0.0
        %3516 = vmatpush1.xpose.msra.mxu0 0.0
        %3517 = vmatprep.subr.mxu0 0.0
        %3518 = vmatpush1.xpose.msra.mxu0 0.0
        %3519 = vmatprep.subr.mxu0 0.0
        %3520 = vmatpush1.xpose.msra.mxu0 0.0
        %3521 = vmatprep.subr.mxu0 0.0
        %3522 = vmatpush1.xpose.msra.mxu0 0.0
        %3523 = vmatprep.subr.mxu0 0.0
        %3524 = vmatpush1.xpose.msra.mxu0 0.0
        %3525 = vmatprep.subr.mxu0 0.0
        %3526 = vmatpush1.xpose.msra.mxu0 0.0
        %3527 = vmatprep.subr.mxu0 0.0
        %3528 = vmatpush1.xpose.msra.mxu0 0.0
        %3529 = vmatprep.subr.mxu0 0.0
        %3530 = vmatpush1.xpose.msra.mxu0 0.0
        %3531 = vmatprep.subr.mxu0 0.0
        %3532 = vmatpush1.xpose.msra.mxu0 0.0
        %3533 = vmatprep.subr.mxu0 0.0
        %3534 = vmatpush1.xpose.msra.mxu0 0.0
        %3535 = vmatprep.subr.mxu0 0.0
        %3536 = vmatpush1.xpose.msra.mxu0 0.0
        %3537 = vmatprep.subr.mxu0 0.0
        %3538 = vmatpush1.xpose.msra.mxu0 0.0
        %3539 = vmatprep.subr.mxu0 0.0
        %3540 = vmatpush1.xpose.msra.mxu0 0.0
        %3541 = vmatprep.subr.mxu0 0.0
        %3542 = vmatpush1.xpose.msra.mxu0 0.0
        %3543 = vmatprep.subr.mxu0 0.0
        %3544 = vmatpush1.xpose.msra.mxu0 0.0
        %3545 = vmatprep.subr.mxu0 0.0
        %3546 = vmatpush1.xpose.msra.mxu0 0.0
        %3547 = vmatprep.subr.mxu0 0.0
        %3548 = vmatpush1.xpose.msra.mxu0 0.0
        %3549 = vmatprep.subr.mxu0 0.0
        %3550 = vmatpush1.xpose.msra.mxu0 0.0
        %3551 = vmatprep.subr.mxu0 0.0
        %3552 = vmatpush1.xpose.msra.mxu0 0.0
        %3553 = vmatprep.subr.mxu0 0.0
        %3554 = vmatpush1.xpose.msra.mxu0 0.0
        %3555 = vmatprep.subr.mxu0 0.0
        %3556 = vmatpush1.xpose.msra.mxu0 0.0
        %3557 = vmatprep.subr.mxu0 0.0
        %3558 = vmatpush1.xpose.msra.mxu0 0.0
        %3559 = vmatprep.subr.mxu0 0.0
        %3560 = vmatpush1.xpose.msra.mxu0 0.0
        %3561 = vmatprep.subr.mxu0 0.0
        %3562 = vmatpush1.xpose.msra.mxu0 0.0
        %3563 = vmatprep.subr.mxu0 0.0
        %3564 = vmatpush1.xpose.msra.mxu0 0.0
        %3565 = vmatprep.subr.mxu0 0.0
        %3566 = vmatpush1.xpose.msra.mxu0 0.0
        %3567 = vmatprep.subr.mxu0 0.0
        %3568 = vmatpush1.xpose.msra.mxu0 0.0
        %3569 = vmatprep.subr.mxu0 0.0
        %3570 = vmatpush1.xpose.msra.mxu0 0.0
        %3571 = vmatprep.subr.mxu0 0.0
        %3572 = vmatpush1.xpose.msra.mxu0 0.0
        %3573 = vmatprep.subr.mxu0 0.0
        %3574 = vmatpush1.xpose.msra.mxu0 0.0
        %3575 = vmatprep.mubr.f32.mxu0 0.0
        %3576 = vmatmul.mubr.f32.gmra.mrb[0].mxu0 %v3505
        %v3577 = vpop.f32.mrb[0].mxu0
        %v3578 = vadd.f32 0.0, %v3577
        %v3579 = vpop.f32.mrb[0].mxu0
        %3580 = vmatprep.mubr.f32.mxu0 0.0
        %3581 = vmatmul.mubr.f32.gmra.mrb[0].mxu0 %v3507
        %v3582 = vpop.f32.mrb[0].mxu0
        %v3583 = vadd.f32 0.0, %v3582
        %v3584 = vpop.f32.mrb[0].mxu0
        %3585 = vdwg.mxu0
        %v3586 = vsel %vm2207, %v3333, 0
        %v3588 = vsel %vm2207, %v3335, 0
        %v3590 = vsel %vm2207, %v3342, 0
        %3592 = vmatprep.subr.mxu0 0.0
        %3593 = vmatpush1.xpose.msra.mxu0 %v3590
        %3594 = vmatprep.subr.mxu0 0.0
        %3595 = vmatpush1.xpose.msra.mxu0 0.0
        %3596 = vmatprep.subr.mxu0 0.0
        %3597 = vmatpush1.xpose.msra.mxu0 0.0
        %3598 = vmatprep.subr.mxu0 0.0
        %3599 = vmatpush1.xpose.msra.mxu0 0.0
        %3600 = vmatprep.subr.mxu0 0.0
        %3601 = vmatpush1.xpose.msra.mxu0 0.0
        %3602 = vmatprep.subr.mxu0 0.0
        %3603 = vmatpush1.xpose.msra.mxu0 0.0
        %3604 = vmatprep.subr.mxu0 0.0
        %3605 = vmatpush1.xpose.msra.mxu0 0.0
        %3606 = vmatprep.subr.mxu0 0.0
        %3607 = vmatpush1.xpose.msra.mxu0 0.0
        %3608 = vmatprep.subr.mxu0 0.0
        %3609 = vmatpush1.xpose.msra.mxu0 0.0
        %3610 = vmatprep.subr.mxu0 0.0
        %3611 = vmatpush1.xpose.msra.mxu0 0.0
        %3612 = vmatprep.subr.mxu0 0.0
        %3613 = vmatpush1.xpose.msra.mxu0 0.0
        %3614 = vmatprep.subr.mxu0 0.0
        %3615 = vmatpush1.xpose.msra.mxu0 0.0
        %3616 = vmatprep.subr.mxu0 0.0
        %3617 = vmatpush1.xpose.msra.mxu0 0.0
        %3618 = vmatprep.subr.mxu0 0.0
        %3619 = vmatpush1.xpose.msra.mxu0 0.0
        %3620 = vmatprep.subr.mxu0 0.0
        %3621 = vmatpush1.xpose.msra.mxu0 0.0
        %3622 = vmatprep.subr.mxu0 0.0
        %3623 = vmatpush1.xpose.msra.mxu0 0.0
        %3624 = vmatprep.subr.mxu0 0.0
        %3625 = vmatpush1.xpose.msra.mxu0 0.0
        %3626 = vmatprep.subr.mxu0 0.0
        %3627 = vmatpush1.xpose.msra.mxu0 0.0
        %3628 = vmatprep.subr.mxu0 0.0
        %3629 = vmatpush1.xpose.msra.mxu0 0.0
        %3630 = vmatprep.subr.mxu0 0.0
        %3631 = vmatpush1.xpose.msra.mxu0 0.0
        %3632 = vmatprep.subr.mxu0 0.0
        %3633 = vmatpush1.xpose.msra.mxu0 0.0
        %3634 = vmatprep.subr.mxu0 0.0
        %3635 = vmatpush1.xpose.msra.mxu0 0.0
        %3636 = vmatprep.subr.mxu0 0.0
        %3637 = vmatpush1.xpose.msra.mxu0 0.0
        %3638 = vmatprep.subr.mxu0 0.0
        %3639 = vmatpush1.xpose.msra.mxu0 0.0
        %3640 = vmatprep.subr.mxu0 0.0
        %3641 = vmatpush1.xpose.msra.mxu0 0.0
        %3642 = vmatprep.subr.mxu0 0.0
        %3643 = vmatpush1.xpose.msra.mxu0 0.0
        %3644 = vmatprep.subr.mxu0 0.0
        %3645 = vmatpush1.xpose.msra.mxu0 0.0
        %3646 = vmatprep.subr.mxu0 0.0
        %3647 = vmatpush1.xpose.msra.mxu0 0.0
        %3648 = vmatprep.subr.mxu0 0.0
        %3649 = vmatpush1.xpose.msra.mxu0 0.0
        %3650 = vmatprep.subr.mxu0 0.0
        %3651 = vmatpush1.xpose.msra.mxu0 0.0
        %3652 = vmatprep.subr.mxu0 0.0
        %3653 = vmatpush1.xpose.msra.mxu0 0.0
        %3654 = vmatprep.subr.mxu0 0.0
        %3655 = vmatpush1.xpose.msra.mxu0 0.0
        %3656 = vmatprep.mubr.f32.mxu0 0.0
        %3657 = vmatmul.mubr.f32.gmra.mrb[0].mxu0 %v3586
        %v3658 = vpop.f32.mrb[0].mxu0
        %v3659 = vadd.f32 0.0, %v3658
        %v3660 = vpop.f32.mrb[0].mxu0
        %3661 = vmatprep.mubr.f32.mxu0 0.0
        %3662 = vmatmul.mubr.f32.gmra.mrb[0].mxu0 %v3588
        %v3663 = vpop.f32.mrb[0].mxu0
        %v3664 = vadd.f32 0.0, %v3663
        %v3665 = vpop.f32.mrb[0].mxu0
        %3666 = vdwg.mxu0
        %vm3667 = vcmp.eq.f32.partialorder %v1995, 0.0
        %v3668 = vsel %vm3667, 1, 0
        %v3669 = vlaneseq
        %v3670 = vshrl.u32 %v3669, 7
        %v3671 = vsub.s32 0, %v3670
        %v3672 = vrot.slane %v3668, %v3671
        %vm3673 = vcmp.eq.s32.totalorder %v3672, 1
        %v3674 = vsel %vm3673, -1e+10, %v3416
        %v3675 = vsel %vm3673, -1e+10, %v3421
        %v3676 = vsel %vm3673, -1e+10, %v3497
        %v3677 = vsel %vm3673, -1e+10, %v3502
        %v3678 = vsel %vm3673, -1e+10, %v3578
        %v3679 = vsel %vm3673, -1e+10, %v3583
        %v3680 = vsel %vm3673, -1e+10, %v3659
        %v3681 = vsel %vm3673, -1e+10, %v3664
        %v3682 = vsel %vm2207, %v3674, -inf
        %3683 = vmax.xlane.f32.xlu0 %v3682
        %v3684 = vpop.xlane.xlu0 %3683
        %v3685 = vsel %vm2207, %v3675, -inf
        %3686 = vmax.xlane.f32.xlu0 %v3685
        %v3687 = vpop.xlane.xlu0 %3686
        %v3688 = vsel %vm2207, %v3676, -inf
        %3689 = vmax.xlane.f32.xlu0 %v3688
        %v3690 = vpop.xlane.xlu0 %3689
        %v3691 = vsel %vm2207, %v3677, -inf
        %3692 = vmax.xlane.f32.xlu0 %v3691
        %v3693 = vpop.xlane.xlu0 %3692
        %v3694 = vsel %vm2207, %v3678, -inf
        %3695 = vmax.xlane.f32.xlu0 %v3694
        %v3696 = vpop.xlane.xlu0 %3695
        %v3697 = vsel %vm2207, %v3679, -inf
        %3698 = vmax.xlane.f32.xlu0 %v3697
        %v3699 = vpop.xlane.xlu0 %3698
        %v3700 = vsel %vm2207, %v3680, -inf
        %3701 = vmax.xlane.f32.xlu0 %v3700
        %v3702 = vpop.xlane.xlu0 %3701
        %v3703 = vsel %vm2207, %v3681, -inf
        %3704 = vmax.xlane.f32.xlu0 %v3703
        %v3705 = vpop.xlane.xlu0 %3704
        %v3706 = vsub.f32 %v3674, %v3684
        %v3707 = vsub.f32 %v3675, %v3687
        %v3708 = vsub.f32 %v3676, %v3690
        %v3709 = vsub.f32 %v3677, %v3693
        %v3710 = vsub.f32 %v3678, %v3696
        %v3711 = vsub.f32 %v3679, %v3699
        %v3712 = vsub.f32 %v3680, %v3702
        %v3713 = vsub.f32 %v3681, %v3705
        %v3714 = vmul.f32 %v3706, 1.442695
        %v3715 = vpow.pop %v3714
        %v3716 = vmul.f32 %v3707, 1.442695
        %v3717 = vpow.pop %v3716
        %v3718 = vmul.f32 %v3708, 1.442695
        %v3719 = vpow.pop %v3718
        %v3720 = vmul.f32 %v3709, 1.442695
        %v3721 = vpow.pop %v3720
        %v3722 = vmul.f32 %v3710, 1.442695
        %v3723 = vpow.pop %v3722
        %v3724 = vmul.f32 %v3711, 1.442695
        %v3725 = vpow.pop %v3724
        %v3726 = vmul.f32 %v3712, 1.442695
        %v3727 = vpow.pop %v3726
        %v3728 = vmul.f32 %v3713, 1.442695
        %v3729 = vpow.pop %v3728
        %v3730 = vsel %vm2207, %v3715, 0.0
        %3731 = vadd.xlane.f32.xlu0 %v3730
        %v3732 = vpop.xlane.xlu0 %3731
        %v3733 = vsel %vm2207, %v3717, 0.0
        %3734 = vadd.xlane.f32.xlu0 %v3733
        %v3735 = vpop.xlane.xlu0 %3734
        %v3736 = vsel %vm2207, %v3719, 0.0
        %3737 = vadd.xlane.f32.xlu0 %v3736
        %v3738 = vpop.xlane.xlu0 %3737
        %v3739 = vsel %vm2207, %v3721, 0.0
        %3740 = vadd.xlane.f32.xlu0 %v3739
        %v3741 = vpop.xlane.xlu0 %3740
        %v3742 = vsel %vm2207, %v3723, 0.0
        %3743 = vadd.xlane.f32.xlu0 %v3742
        %v3744 = vpop.xlane.xlu0 %3743
        %v3745 = vsel %vm2207, %v3725, 0.0
        %3746 = vadd.xlane.f32.xlu0 %v3745
        %v3747 = vpop.xlane.xlu0 %3746
        %v3748 = vsel %vm2207, %v3727, 0.0
        %3749 = vadd.xlane.f32.xlu0 %v3748
        %v3750 = vpop.xlane.xlu0 %3749
        %v3751 = vsel %vm2207, %v3729, 0.0
        %3752 = vadd.xlane.f32.xlu0 %v3751
        %v3753 = vpop.xlane.xlu0 %3752
        %v3754 = vrcp.pop %v3732
        %v3755 = vrcp.pop %v3735
        %v3756 = vrcp.pop %v3738
        %v3757 = vrcp.pop %v3741
        %v3758 = vrcp.pop %v3744
        %v3759 = vrcp.pop %v3747
        %v3760 = vrcp.pop %v3750
        %v3761 = vrcp.pop %v3753
        %v3762 = vmul.f32 %v3715, %v3754
        %v3763 = vmul.f32 %v3717, %v3755
        %v3764 = vmul.f32 %v3719, %v3756
        %v3765 = vmul.f32 %v3721, %v3757
        %v3766 = vmul.f32 %v3723, %v3758
        %v3767 = vmul.f32 %v3725, %v3759
        %v3768 = vmul.f32 %v3727, %v3760
        %v3769 = vmul.f32 %v3729, %v3761
        %3770 = vrot.lane.b32.xlu0 %v3319, 96
        %v3771 = vpop.permute.xlu0 %3770
        %v3774 = vsel %vm2207, %v3762, 0
        %v3777 = vsel %vm2207, %v3763, 0
        %3779 = vmatprep.subr.mxu0 0.0
        %3780 = vmatpush1.msra.mxu0 %v3771
        %3781 = vmatprep.subr.mxu0 0.0
        %3782 = vmatpush1.msra.mxu0 0.0
        %3783 = vmatprep.subr.mxu0 0.0
        %3784 = vmatpush1.msra.mxu0 0.0
        %3785 = vmatprep.subr.mxu0 0.0
        %3786 = vmatpush1.msra.mxu0 0.0
        %3787 = vmatprep.subr.mxu0 0.0
        %3788 = vmatpush1.msra.mxu0 0.0
        %3789 = vmatprep.subr.mxu0 0.0
        %3790 = vmatpush1.msra.mxu0 0.0
        %3791 = vmatprep.subr.mxu0 0.0
        %3792 = vmatpush1.msra.mxu0 0.0
        %3793 = vmatprep.subr.mxu0 0.0
        %3794 = vmatpush1.msra.mxu0 0.0
        %3795 = vmatprep.subr.mxu0 0.0
        %3796 = vmatpush1.msra.mxu0 0.0
        %3797 = vmatprep.subr.mxu0 0.0
        %3798 = vmatpush1.msra.mxu0 0.0
        %3799 = vmatprep.subr.mxu0 0.0
        %3800 = vmatpush1.msra.mxu0 0.0
        %3801 = vmatprep.subr.mxu0 0.0
        %3802 = vmatpush1.msra.mxu0 0.0
        %3803 = vmatprep.subr.mxu0 0.0
        %3804 = vmatpush1.msra.mxu0 0.0
        %3805 = vmatprep.subr.mxu0 0.0
        %3806 = vmatpush1.msra.mxu0 0.0
        %3807 = vmatprep.subr.mxu0 0.0
        %3808 = vmatpush1.msra.mxu0 0.0
        %3809 = vmatprep.subr.mxu0 0.0
        %3810 = vmatpush1.msra.mxu0 0.0
        %3811 = vmatprep.subr.mxu0 0.0
        %3812 = vmatpush1.msra.mxu0 0.0
        %3813 = vmatprep.subr.mxu0 0.0
        %3814 = vmatpush1.msra.mxu0 0.0
        %3815 = vmatprep.subr.mxu0 0.0
        %3816 = vmatpush1.msra.mxu0 0.0
        %3817 = vmatprep.subr.mxu0 0.0
        %3818 = vmatpush1.msra.mxu0 0.0
        %3819 = vmatprep.subr.mxu0 0.0
        %3820 = vmatpush1.msra.mxu0 0.0
        %3821 = vmatprep.subr.mxu0 0.0
        %3822 = vmatpush1.msra.mxu0 0.0
        %3823 = vmatprep.subr.mxu0 0.0
        %3824 = vmatpush1.msra.mxu0 0.0
        %3825 = vmatprep.subr.mxu0 0.0
        %3826 = vmatpush1.msra.mxu0 0.0
        %3827 = vmatprep.subr.mxu0 0.0
        %3828 = vmatpush1.msra.mxu0 0.0
        %3829 = vmatprep.subr.mxu0 0.0
        %3830 = vmatpush1.msra.mxu0 0.0
        %3831 = vmatprep.subr.mxu0 0.0
        %3832 = vmatpush1.msra.mxu0 0.0
        %3833 = vmatprep.subr.mxu0 0.0
        %3834 = vmatpush1.msra.mxu0 0.0
        %3835 = vmatprep.subr.mxu0 0.0
        %3836 = vmatpush1.msra.mxu0 0.0
        %3837 = vmatprep.subr.mxu0 0.0
        %3838 = vmatpush1.msra.mxu0 0.0
        %3839 = vmatprep.subr.mxu0 0.0
        %3840 = vmatpush1.msra.mxu0 0.0
        %3841 = vmatprep.subr.mxu0 0.0
        %3842 = vmatpush1.msra.mxu0 0.0
        %3843 = vmatprep.mubr.f32.mxu0 0.0
        %3844 = vmatmul.mubr.f32.gmra.mrb[0].mxu0 %v3774
        %v3845 = vpop.f32.mrb[0].mxu0
        %v3846 = vadd.f32 0.0, %v3845
        %v3847 = vpop.f32.mrb[0].mxu0
        %3848 = vmatprep.mubr.f32.mxu0 0.0
        %3849 = vmatmul.mubr.f32.gmra.mrb[0].mxu0 %v3777
        %v3850 = vpop.f32.mrb[0].mxu0
        %v3851 = vadd.f32 0.0, %v3850
        %v3852 = vpop.f32.mrb[0].mxu0
        %3853 = vdwg.mxu0
        %3854 = vrot.lane.b32.xlu0 %v3338, 96
        %v3855 = vpop.permute.xlu0 %3854
        %v3858 = vsel %vm2207, %v3764, 0
        %v3861 = vsel %vm2207, %v3765, 0
        %3863 = vmatprep.subr.mxu0 0.0
        %3864 = vmatpush1.msra.mxu0 %v3855
        %3865 = vmatprep.subr.mxu0 0.0
        %3866 = vmatpush1.msra.mxu0 0.0
        %3867 = vmatprep.subr.mxu0 0.0
        %3868 = vmatpush1.msra.mxu0 0.0
        %3869 = vmatprep.subr.mxu0 0.0
        %3870 = vmatpush1.msra.mxu0 0.0
        %3871 = vmatprep.subr.mxu0 0.0
        %3872 = vmatpush1.msra.mxu0 0.0
        %3873 = vmatprep.subr.mxu0 0.0
        %3874 = vmatpush1.msra.mxu0 0.0
        %3875 = vmatprep.subr.mxu0 0.0
        %3876 = vmatpush1.msra.mxu0 0.0
        %3877 = vmatprep.subr.mxu0 0.0
        %3878 = vmatpush1.msra.mxu0 0.0
        %3879 = vmatprep.subr.mxu0 0.0
        %3880 = vmatpush1.msra.mxu0 0.0
        %3881 = vmatprep.subr.mxu0 0.0
        %3882 = vmatpush1.msra.mxu0 0.0
        %3883 = vmatprep.subr.mxu0 0.0
        %3884 = vmatpush1.msra.mxu0 0.0
        %3885 = vmatprep.subr.mxu0 0.0
        %3886 = vmatpush1.msra.mxu0 0.0
        %3887 = vmatprep.subr.mxu0 0.0
        %3888 = vmatpush1.msra.mxu0 0.0
        %3889 = vmatprep.subr.mxu0 0.0
        %3890 = vmatpush1.msra.mxu0 0.0
        %3891 = vmatprep.subr.mxu0 0.0
        %3892 = vmatpush1.msra.mxu0 0.0
        %3893 = vmatprep.subr.mxu0 0.0
        %3894 = vmatpush1.msra.mxu0 0.0
        %3895 = vmatprep.subr.mxu0 0.0
        %3896 = vmatpush1.msra.mxu0 0.0
        %3897 = vmatprep.subr.mxu0 0.0
        %3898 = vmatpush1.msra.mxu0 0.0
        %3899 = vmatprep.subr.mxu0 0.0
        %3900 = vmatpush1.msra.mxu0 0.0
        %3901 = vmatprep.subr.mxu0 0.0
        %3902 = vmatpush1.msra.mxu0 0.0
        %3903 = vmatprep.subr.mxu0 0.0
        %3904 = vmatpush1.msra.mxu0 0.0
        %3905 = vmatprep.subr.mxu0 0.0
        %3906 = vmatpush1.msra.mxu0 0.0
        %3907 = vmatprep.subr.mxu0 0.0
        %3908 = vmatpush1.msra.mxu0 0.0
        %3909 = vmatprep.subr.mxu0 0.0
        %3910 = vmatpush1.msra.mxu0 0.0
        %3911 = vmatprep.subr.mxu0 0.0
        %3912 = vmatpush1.msra.mxu0 0.0
        %3913 = vmatprep.subr.mxu0 0.0
        %3914 = vmatpush1.msra.mxu0 0.0
        %3915 = vmatprep.subr.mxu0 0.0
        %3916 = vmatpush1.msra.mxu0 0.0
        %3917 = vmatprep.subr.mxu0 0.0
        %3918 = vmatpush1.msra.mxu0 0.0
        %3919 = vmatprep.subr.mxu0 0.0
        %3920 = vmatpush1.msra.mxu0 0.0
        %3921 = vmatprep.subr.mxu0 0.0
        %3922 = vmatpush1.msra.mxu0 0.0
        %3923 = vmatprep.subr.mxu0 0.0
        %3924 = vmatpush1.msra.mxu0 0.0
        %3925 = vmatprep.subr.mxu0 0.0
        %3926 = vmatpush1.msra.mxu0 0.0
        %3927 = vmatprep.mubr.f32.mxu0 0.0
        %3928 = vmatmul.mubr.f32.gmra.mrb[0].mxu0 %v3858
        %v3929 = vpop.f32.mrb[0].mxu0
        %v3930 = vadd.f32 0.0, %v3929
        %v3931 = vpop.f32.mrb[0].mxu0
        %3932 = vmatprep.mubr.f32.mxu0 0.0
        %3933 = vmatmul.mubr.f32.gmra.mrb[0].mxu0 %v3861
        %v3934 = vpop.f32.mrb[0].mxu0
        %v3935 = vadd.f32 0.0, %v3934
        %v3936 = vpop.f32.mrb[0].mxu0
        %3937 = vdwg.mxu0
        %3938 = vrot.lane.b32.xlu0 %v3340, 96
        %v3939 = vpop.permute.xlu0 %3938
        %v3942 = vsel %vm2207, %v3766, 0
        %v3945 = vsel %vm2207, %v3767, 0
        %3947 = vmatprep.subr.mxu0 0.0
        %3948 = vmatpush1.msra.mxu0 %v3939
        %3949 = vmatprep.subr.mxu0 0.0
        %3950 = vmatpush1.msra.mxu0 0.0
        %3951 = vmatprep.subr.mxu0 0.0
        %3952 = vmatpush1.msra.mxu0 0.0
        %3953 = vmatprep.subr.mxu0 0.0
        %3954 = vmatpush1.msra.mxu0 0.0
        %3955 = vmatprep.subr.mxu0 0.0
        %3956 = vmatpush1.msra.mxu0 0.0
        %3957 = vmatprep.subr.mxu0 0.0
        %3958 = vmatpush1.msra.mxu0 0.0
        %3959 = vmatprep.subr.mxu0 0.0
        %3960 = vmatpush1.msra.mxu0 0.0
        %3961 = vmatprep.subr.mxu0 0.0
        %3962 = vmatpush1.msra.mxu0 0.0
        %3963 = vmatprep.subr.mxu0 0.0
        %3964 = vmatpush1.msra.mxu0 0.0
        %3965 = vmatprep.subr.mxu0 0.0
        %3966 = vmatpush1.msra.mxu0 0.0
        %3967 = vmatprep.subr.mxu0 0.0
        %3968 = vmatpush1.msra.mxu0 0.0
        %3969 = vmatprep.subr.mxu0 0.0
        %3970 = vmatpush1.msra.mxu0 0.0
        %3971 = vmatprep.subr.mxu0 0.0
        %3972 = vmatpush1.msra.mxu0 0.0
        %3973 = vmatprep.subr.mxu0 0.0
        %3974 = vmatpush1.msra.mxu0 0.0
        %3975 = vmatprep.subr.mxu0 0.0
        %3976 = vmatpush1.msra.mxu0 0.0
        %3977 = vmatprep.subr.mxu0 0.0
        %3978 = vmatpush1.msra.mxu0 0.0
        %3979 = vmatprep.subr.mxu0 0.0
        %3980 = vmatpush1.msra.mxu0 0.0
        %3981 = vmatprep.subr.mxu0 0.0
        %3982 = vmatpush1.msra.mxu0 0.0
        %3983 = vmatprep.subr.mxu0 0.0
        %3984 = vmatpush1.msra.mxu0 0.0
        %3985 = vmatprep.subr.mxu0 0.0
        %3986 = vmatpush1.msra.mxu0 0.0
        %3987 = vmatprep.subr.mxu0 0.0
        %3988 = vmatpush1.msra.mxu0 0.0
        %3989 = vmatprep.subr.mxu0 0.0
        %3990 = vmatpush1.msra.mxu0 0.0
        %3991 = vmatprep.subr.mxu0 0.0
        %3992 = vmatpush1.msra.mxu0 0.0
        %3993 = vmatprep.subr.mxu0 0.0
        %3994 = vmatpush1.msra.mxu0 0.0
        %3995 = vmatprep.subr.mxu0 0.0
        %3996 = vmatpush1.msra.mxu0 0.0
        %3997 = vmatprep.subr.mxu0 0.0
        %3998 = vmatpush1.msra.mxu0 0.0
        %3999 = vmatprep.subr.mxu0 0.0
        %4000 = vmatpush1.msra.mxu0 0.0
        %4001 = vmatprep.subr.mxu0 0.0
        %4002 = vmatpush1.msra.mxu0 0.0
        %4003 = vmatprep.subr.mxu0 0.0
        %4004 = vmatpush1.msra.mxu0 0.0
        %4005 = vmatprep.subr.mxu0 0.0
        %4006 = vmatpush1.msra.mxu0 0.0
        %4007 = vmatprep.subr.mxu0 0.0
        %4008 = vmatpush1.msra.mxu0 0.0
        %4009 = vmatprep.subr.mxu0 0.0
        %4010 = vmatpush1.msra.mxu0 0.0
        %4011 = vmatprep.mubr.f32.mxu0 0.0
        %4012 = vmatmul.mubr.f32.gmra.mrb[0].mxu0 %v3942
        %v4013 = vpop.f32.mrb[0].mxu0
        %v4014 = vadd.f32 0.0, %v4013
        %v4015 = vpop.f32.mrb[0].mxu0
        %4016 = vmatprep.mubr.f32.mxu0 0.0
        %4017 = vmatmul.mubr.f32.gmra.mrb[0].mxu0 %v3945
        %v4018 = vpop.f32.mrb[0].mxu0
        %v4019 = vadd.f32 0.0, %v4018
        %v4020 = vpop.f32.mrb[0].mxu0
        %4021 = vdwg.mxu0
        %4022 = vrot.lane.b32.xlu0 %v3342, 96
        %v4023 = vpop.permute.xlu0 %4022
        %v4026 = vsel %vm2207, %v3768, 0
        %v4029 = vsel %vm2207, %v3769, 0
        %4031 = vmatprep.subr.mxu0 0.0
        %4032 = vmatpush1.msra.mxu0 %v4023
        %4033 = vmatprep.subr.mxu0 0.0
        %4034 = vmatpush1.msra.mxu0 0.0
        %4035 = vmatprep.subr.mxu0 0.0
        %4036 = vmatpush1.msra.mxu0 0.0
        %4037 = vmatprep.subr.mxu0 0.0
        %4038 = vmatpush1.msra.mxu0 0.0
        %4039 = vmatprep.subr.mxu0 0.0
        %4040 = vmatpush1.msra.mxu0 0.0
        %4041 = vmatprep.subr.mxu0 0.0
        %4042 = vmatpush1.msra.mxu0 0.0
        %4043 = vmatprep.subr.mxu0 0.0
        %4044 = vmatpush1.msra.mxu0 0.0
        %4045 = vmatprep.subr.mxu0 0.0
        %4046 = vmatpush1.msra.mxu0 0.0
        %4047 = vmatprep.subr.mxu0 0.0
        %4048 = vmatpush1.msra.mxu0 0.0
        %4049 = vmatprep.subr.mxu0 0.0
        %4050 = vmatpush1.msra.mxu0 0.0
        %4051 = vmatprep.subr.mxu0 0.0
        %4052 = vmatpush1.msra.mxu0 0.0
        %4053 = vmatprep.subr.mxu0 0.0
        %4054 = vmatpush1.msra.mxu0 0.0
        %4055 = vmatprep.subr.mxu0 0.0
        %4056 = vmatpush1.msra.mxu0 0.0
        %4057 = vmatprep.subr.mxu0 0.0
        %4058 = vmatpush1.msra.mxu0 0.0
        %4059 = vmatprep.subr.mxu0 0.0
        %4060 = vmatpush1.msra.mxu0 0.0
        %4061 = vmatprep.subr.mxu0 0.0
        %4062 = vmatpush1.msra.mxu0 0.0
        %4063 = vmatprep.subr.mxu0 0.0
        %4064 = vmatpush1.msra.mxu0 0.0
        %4065 = vmatprep.subr.mxu0 0.0
        %4066 = vmatpush1.msra.mxu0 0.0
        %4067 = vmatprep.subr.mxu0 0.0
        %4068 = vmatpush1.msra.mxu0 0.0
        %4069 = vmatprep.subr.mxu0 0.0
        %4070 = vmatpush1.msra.mxu0 0.0
        %4071 = vmatprep.subr.mxu0 0.0
        %4072 = vmatpush1.msra.mxu0 0.0
        %4073 = vmatprep.subr.mxu0 0.0
        %4074 = vmatpush1.msra.mxu0 0.0
        %4075 = vmatprep.subr.mxu0 0.0
        %4076 = vmatpush1.msra.mxu0 0.0
        %4077 = vmatprep.subr.mxu0 0.0
        %4078 = vmatpush1.msra.mxu0 0.0
        %4079 = vmatprep.subr.mxu0 0.0
        %4080 = vmatpush1.msra.mxu0 0.0
        %4081 = vmatprep.subr.mxu0 0.0
        %4082 = vmatpush1.msra.mxu0 0.0
        %4083 = vmatprep.subr.mxu0 0.0
        %4084 = vmatpush1.msra.mxu0 0.0
        %4085 = vmatprep.subr.mxu0 0.0
        %4086 = vmatpush1.msra.mxu0 0.0
        %4087 = vmatprep.subr.mxu0 0.0
        %4088 = vmatpush1.msra.mxu0 0.0
        %4089 = vmatprep.subr.mxu0 0.0
        %4090 = vmatpush1.msra.mxu0 0.0
        %4091 = vmatprep.subr.mxu0 0.0
        %4092 = vmatpush1.msra.mxu0 0.0
        %4093 = vmatprep.subr.mxu0 0.0
        %4094 = vmatpush1.msra.mxu0 0.0
        %4095 = vmatprep.mubr.f32.mxu0 0.0
        %4096 = vmatmul.mubr.f32.gmra.mrb[0].mxu0 %v4026
        %v4097 = vpop.f32.mrb[0].mxu0
        %v4098 = vadd.f32 0.0, %v4097
        %v4099 = vpop.f32.mrb[0].mxu0
        %4100 = vmatprep.mubr.f32.mxu0 0.0
        %4101 = vmatmul.mubr.f32.gmra.mrb[0].mxu0 %v4029
        %v4102 = vpop.f32.mrb[0].mxu0
        %v4103 = vadd.f32 0.0, %v4102
        %v4104 = vpop.f32.mrb[0].mxu0
        %4105 = vdwg.mxu0
        %4108 = vrot.lane.b32.xlu0 %v3930, 8
        %v4109 = vpop.permute.xlu0 %4108
        %4110 = vrot.lane.b32.xlu0 %v3935, 8
        %v4111 = vpop.permute.xlu0 %4110
        %4116 = vrot.lane.b32.xlu0 %v4014, 16
        %v4117 = vpop.permute.xlu0 %4116
        %4118 = vrot.lane.b32.xlu0 %v4019, 16
        %v4119 = vpop.permute.xlu0 %4118
        %4124 = vrot.lane.b32.xlu0 %v4098, 24
        %v4125 = vpop.permute.xlu0 %4124
        %4126 = vrot.lane.b32.xlu0 %v4103, 24
        %v4127 = vpop.permute.xlu0 %4126
        %v4130 = vsel %vm2207, %v3846, %v4109
        %v4131 = vsel %vm2207, %v3851, %v4111
        %v4132 = vsel %vm1814, %v4130, %v4117
        %v4133 = vsel %vm1814, %v4131, %v4119
        %v4134 = vsel %vm3004, %v4132, %v4125
        %v4135 = vsel %vm3004, %v4133, %v4127
        %v4137 = vlaneseq
        %v4138 = vshrl.u32 %v4137, 7
        %v4139 = vsub.s32 0, %v4138
        %v4140 = vrot.slane %v3155, %v4139
        %v4143 = vsel %vm1888, %v4134, 0
        %v4146 = vsel %vm1888, %v4135, 0
        %4148 = vmatprep.subr.mxu0 0.0
        %4149 = vmatpush1.msra.mxu0 %v3151
        %4150 = vmatprep.subr.mxu0 0.0
        %4151 = vmatpush1.msra.mxu0 %v3152
        %4152 = vmatprep.subr.mxu0 0.0
        %4153 = vmatpush1.msra.mxu0 %v3153
        %4154 = vmatprep.subr.mxu0 0.0
        %4155 = vmatpush1.msra.mxu0 %v3154
        %4156 = vmatprep.subr.mxu0 0.0
        %4157 = vmatpush1.msra.mxu0 0.0
        %4158 = vmatprep.subr.mxu0 0.0
        %4159 = vmatpush1.msra.mxu0 0.0
        %4160 = vmatprep.subr.mxu0 0.0
        %4161 = vmatpush1.msra.mxu0 0.0
        %4162 = vmatprep.subr.mxu0 0.0
        %4163 = vmatpush1.msra.mxu0 0.0
        %4164 = vmatprep.subr.mxu0 0.0
        %4165 = vmatpush1.msra.mxu0 0.0
        %4166 = vmatprep.subr.mxu0 0.0
        %4167 = vmatpush1.msra.mxu0 0.0
        %4168 = vmatprep.subr.mxu0 0.0
        %4169 = vmatpush1.msra.mxu0 0.0
        %4170 = vmatprep.subr.mxu0 0.0
        %4171 = vmatpush1.msra.mxu0 0.0
        %4172 = vmatprep.subr.mxu0 0.0
        %4173 = vmatpush1.msra.mxu0 0.0
        %4174 = vmatprep.subr.mxu0 0.0
        %4175 = vmatpush1.msra.mxu0 0.0
        %4176 = vmatprep.subr.mxu0 0.0
        %4177 = vmatpush1.msra.mxu0 0.0
        %4178 = vmatprep.subr.mxu0 0.0
        %4179 = vmatpush1.msra.mxu0 0.0
        %4180 = vmatprep.subr.mxu0 0.0
        %4181 = vmatpush1.msra.mxu0 0.0
        %4182 = vmatprep.subr.mxu0 0.0
        %4183 = vmatpush1.msra.mxu0 0.0
        %4184 = vmatprep.subr.mxu0 0.0
        %4185 = vmatpush1.msra.mxu0 0.0
        %4186 = vmatprep.subr.mxu0 0.0
        %4187 = vmatpush1.msra.mxu0 0.0
        %4188 = vmatprep.subr.mxu0 0.0
        %4189 = vmatpush1.msra.mxu0 0.0
        %4190 = vmatprep.subr.mxu0 0.0
        %4191 = vmatpush1.msra.mxu0 0.0
        %4192 = vmatprep.subr.mxu0 0.0
        %4193 = vmatpush1.msra.mxu0 0.0
        %4194 = vmatprep.subr.mxu0 0.0
        %4195 = vmatpush1.msra.mxu0 0.0
        %4196 = vmatprep.subr.mxu0 0.0
        %4197 = vmatpush1.msra.mxu0 0.0
        %4198 = vmatprep.subr.mxu0 0.0
        %4199 = vmatpush1.msra.mxu0 0.0
        %4200 = vmatprep.subr.mxu0 0.0
        %4201 = vmatpush1.msra.mxu0 0.0
        %4202 = vmatprep.subr.mxu0 0.0
        %4203 = vmatpush1.msra.mxu0 0.0
        %4204 = vmatprep.subr.mxu0 0.0
        %4205 = vmatpush1.msra.mxu0 0.0
        %4206 = vmatprep.subr.mxu0 0.0
        %4207 = vmatpush1.msra.mxu0 0.0
        %4208 = vmatprep.subr.mxu0 0.0
        %4209 = vmatpush1.msra.mxu0 0.0
        %4210 = vmatprep.subr.mxu0 0.0
        %4211 = vmatpush1.msra.mxu0 0.0
        %4212 = vmatprep.mubr.f32.mxu0 0.0
        %4213 = vmatmul.mubr.f32.gmra.mrb[0].mxu0 %v4143
        %v4214 = vpop.f32.mrb[0].mxu0
        %v4215 = vadd.f32 %v4140, %v4214
        %v4216 = vpop.f32.mrb[0].mxu0
        %4217 = vmatprep.mubr.f32.mxu0 0.0
        %4218 = vmatmul.mubr.f32.gmra.mrb[0].mxu0 %v4146
        %v4219 = vpop.f32.mrb[0].mxu0
        %v4220 = vadd.f32 %v4140, %v4219
        %v4221 = vpop.f32.mrb[0].mxu0
        %4222 = vdwg.mxu0
        %v4223 = vld [vmem:[%s43] sm:$0x1]
        %v4224 = vld [vmem:[%s45] sm:$0x1]
        %v4225 = vadd.f32 %v3139, %v4215
        %v4226 = vadd.f32 %v3140, %v4220
        %v4227 = vsel %vm1888, %v4225, 0.0
        %4228 = vadd.xlane.f32.xlu0 %v4227
        %v4229 = vpop.xlane.xlu0 %4228
        %v4230 = vsel %vm1888, %v4226, 0.0
        %4231 = vadd.xlane.f32.xlu0 %v4230
        %v4232 = vpop.xlane.xlu0 %4231
        %v4233 = vmul.f32 %v4229, %v3104
        %v4234 = vmul.f32 %v4232, %v3104
        %v4235 = vsub.f32 %v4225, %v4233
        %v4236 = vsub.f32 %v4226, %v4234
        %v4237 = vmul.f32 %v4235, %v4235
        %v4238 = vmul.f32 %v4236, %v4236
        %v4239 = vsel %vm1888, %v4237, 0.0
        %4240 = vadd.xlane.f32.xlu0 %v4239
        %v4241 = vpop.xlane.xlu0 %4240
        %v4242 = vsel %vm1888, %v4238, 0.0
        %4243 = vadd.xlane.f32.xlu0 %v4242
        %v4244 = vpop.xlane.xlu0 %4243
        %v4245 = vmul.f32 %v4241, %v3104
        %v4246 = vmul.f32 %v4244, %v3104
        %v4247 = vadd.f32 %v4245, 1e-05
        %v4248 = vadd.f32 %v4246, 1e-05
        %v4249 = vrsqrt.pop %v4247
        %v4250 = vrsqrt.pop %v4248
        %v4251 = vmul.f32 %v4235, %v4249
        %v4252 = vmul.f32 %v4236, %v4250
        %v4254 = vlaneseq
        %v4255 = vshrl.u32 %v4254, 7
        %v4256 = vsub.s32 0, %v4255
        %v4257 = vrot.slane %v4223, %v4256
        %v4259 = vmul.f32 %v4251, %v4257
        %v4260 = vmul.f32 %v4252, %v4257
        %v4262 = vlaneseq
        %v4263 = vshrl.u32 %v4262, 7
        %v4264 = vsub.s32 0, %v4263
        %v4265 = vrot.slane %v4224, %v4264
        %v4267 = vadd.f32 %v4259, %v4265
        %v4268 = vadd.f32 %v4260, %v4265
        %v4269 = vld [vmem:[%s47] sm:$0xff]
        %v4270 = vld [vmem:[%s47 + $0x8] sm:$0xff]
        %v4271 = vld [vmem:[%s47 + $0x10] sm:$0xff]
        %v4272 = vld [vmem:[%s47 + $0x18] sm:$0xff]
        %v4273 = vld [vmem:[%s47 + $0x20] sm:$0xff]
        %v4274 = vld [vmem:[%s47 + $0x28] sm:$0xff]
        %v4275 = vld [vmem:[%s47 + $0x30] sm:$0xff]
        %v4276 = vld [vmem:[%s47 + $0x38] sm:$0xff]
        %v4277 = vld [vmem:[%s47 + $0x40] sm:$0xff]
        %v4278 = vld [vmem:[%s47 + $0x48] sm:$0xff]
        %v4279 = vld [vmem:[%s47 + $0x50] sm:$0xff]
        %v4280 = vld [vmem:[%s47 + $0x58] sm:$0xff]
        %v4281 = vld [vmem:[%s47 + $0x60] sm:$0xff]
        %v4282 = vld [vmem:[%s47 + $0x68] sm:$0xff]
        %v4283 = vld [vmem:[%s47 + $0x70] sm:$0xff]
        %v4284 = vld [vmem:[%s47 + $0x78] sm:$0xff]
        %v4285 = vld [vmem:[%s49] sm:$0xf]
        %v4287 = vlaneseq
        %v4288 = vshrl.u32 %v4287, 7
        %v4289 = vsub.s32 0, %v4288
        %v4290 = vrot.slane %v4285, %v4289
        %v4291 = vlaneseq
        %v4292 = vshrl.u32 %v4291, 7
        %v4293 = vsub.s32 1, %v4292
        %v4294 = vrot.slane %v4285, %v4293
        %v4295 = vlaneseq
        %v4296 = vshrl.u32 %v4295, 7
        %v4297 = vsub.s32 2, %v4296
        %v4298 = vrot.slane %v4285, %v4297
        %v4299 = vlaneseq
        %v4300 = vshrl.u32 %v4299, 7
        %v4301 = vsub.s32 3, %v4300
        %v4302 = vrot.slane %v4285, %v4301
        %v4308 = vsel %vm1888, %v4267, 0
        %v4311 = vsel %vm1888, %v4268, 0
        %4313 = vmatprep.subr.mxu0 %v4270
        %4314 = vmatpush1.msra.mxu0 %v4269
        %4315 = vmatprep.subr.mxu0 %v4274
        %4316 = vmatpush1.msra.mxu0 %v4273
        %4317 = vmatprep.subr.mxu0 %v4278
        %4318 = vmatpush1.msra.mxu0 %v4277
        %4319 = vmatprep.subr.mxu0 %v4282
        %4320 = vmatpush1.msra.mxu0 %v4281
        %4321 = vmatprep.subr.mxu0 0.0
        %4322 = vmatpush1.msra.mxu0 0.0
        %4323 = vmatprep.subr.mxu0 0.0
        %4324 = vmatpush1.msra.mxu0 0.0
        %4325 = vmatprep.subr.mxu0 0.0
        %4326 = vmatpush1.msra.mxu0 0.0
        %4327 = vmatprep.subr.mxu0 0.0
        %4328 = vmatpush1.msra.mxu0 0.0
        %4329 = vmatprep.subr.mxu0 0.0
        %4330 = vmatpush1.msra.mxu0 0.0
        %4331 = vmatprep.subr.mxu0 0.0
        %4332 = vmatpush1.msra.mxu0 0.0
        %4333 = vmatprep.subr.mxu0 0.0
        %4334 = vmatpush1.msra.mxu0 0.0
        %4335 = vmatprep.subr.mxu0 0.0
        %4336 = vmatpush1.msra.mxu0 0.0
        %4337 = vmatprep.subr.mxu0 0.0
        %4338 = vmatpush1.msra.mxu0 0.0
        %4339 = vmatprep.subr.mxu0 0.0
        %4340 = vmatpush1.msra.mxu0 0.0
        %4341 = vmatprep.subr.mxu0 0.0
        %4342 = vmatpush1.msra.mxu0 0.0
        %4343 = vmatprep.subr.mxu0 0.0
        %4344 = vmatpush1.msra.mxu0 0.0
        %4345 = vmatprep.subr.mxu0 0.0
        %4346 = vmatpush1.msra.mxu0 0.0
        %4347 = vmatprep.subr.mxu0 0.0
        %4348 = vmatpush1.msra.mxu0 0.0
        %4349 = vmatprep.subr.mxu0 0.0
        %4350 = vmatpush1.msra.mxu0 0.0
        %4351 = vmatprep.subr.mxu0 0.0
        %4352 = vmatpush1.msra.mxu0 0.0
        %4353 = vmatprep.subr.mxu0 0.0
        %4354 = vmatpush1.msra.mxu0 0.0
        %4355 = vmatprep.subr.mxu0 0.0
        %4356 = vmatpush1.msra.mxu0 0.0
        %4357 = vmatprep.subr.mxu0 0.0
        %4358 = vmatpush1.msra.mxu0 0.0
        %4359 = vmatprep.subr.mxu0 0.0
        %4360 = vmatpush1.msra.mxu0 0.0
        %4361 = vmatprep.subr.mxu0 0.0
        %4362 = vmatpush1.msra.mxu0 0.0
        %4363 = vmatprep.subr.mxu0 0.0
        %4364 = vmatpush1.msra.mxu0 0.0
        %4365 = vmatprep.subr.mxu0 0.0
        %4366 = vmatpush1.msra.mxu0 0.0
        %4367 = vmatprep.subr.mxu0 0.0
        %4368 = vmatpush1.msra.mxu0 0.0
        %4369 = vmatprep.subr.mxu0 0.0
        %4370 = vmatpush1.msra.mxu0 0.0
        %4371 = vmatprep.subr.mxu0 0.0
        %4372 = vmatpush1.msra.mxu0 0.0
        %4373 = vmatprep.subr.mxu0 0.0
        %4374 = vmatpush1.msra.mxu0 0.0
        %4375 = vmatprep.subr.mxu0 0.0
        %4376 = vmatpush1.msra.mxu0 0.0
        %4377 = vmatprep.mubr.f32.mxu0 0.0
        %4378 = vmatmul.mubr.f32.gmra.mrb[0].mxu0 %v4308
        %v4379 = vpop.f32.mrb[0].mxu0
        %v4380 = vadd.f32 %v4290, %v4379
        %v4381 = vpop.f32.mrb[0].mxu0
        %v4382 = vadd.f32 %v4294, %v4381
        %4383 = vmatprep.mubr.f32.mxu0 0.0
        %4384 = vmatmul.mubr.f32.gmra.mrb[0].mxu0 %v4311
        %v4385 = vpop.f32.mrb[0].mxu0
        %v4386 = vadd.f32 %v4290, %v4385
        %v4387 = vpop.f32.mrb[0].mxu0
        %v4388 = vadd.f32 %v4294, %v4387
        %4389 = vdwg.mxu0
        %4390 = vmatprep.subr.mxu0 %v4272
        %4391 = vmatpush1.msra.mxu0 %v4271
        %4392 = vmatprep.subr.mxu0 %v4276
        %4393 = vmatpush1.msra.mxu0 %v4275
        %4394 = vmatprep.subr.mxu0 %v4280
        %4395 = vmatpush1.msra.mxu0 %v4279
        %4396 = vmatprep.subr.mxu0 %v4284
        %4397 = vmatpush1.msra.mxu0 %v4283
        %4398 = vmatprep.subr.mxu0 0.0
        %4399 = vmatpush1.msra.mxu0 0.0
        %4400 = vmatprep.subr.mxu0 0.0
        %4401 = vmatpush1.msra.mxu0 0.0
        %4402 = vmatprep.subr.mxu0 0.0
        %4403 = vmatpush1.msra.mxu0 0.0
        %4404 = vmatprep.subr.mxu0 0.0
        %4405 = vmatpush1.msra.mxu0 0.0
        %4406 = vmatprep.subr.mxu0 0.0
        %4407 = vmatpush1.msra.mxu0 0.0
        %4408 = vmatprep.subr.mxu0 0.0
        %4409 = vmatpush1.msra.mxu0 0.0
        %4410 = vmatprep.subr.mxu0 0.0
        %4411 = vmatpush1.msra.mxu0 0.0
        %4412 = vmatprep.subr.mxu0 0.0
        %4413 = vmatpush1.msra.mxu0 0.0
        %4414 = vmatprep.subr.mxu0 0.0
        %4415 = vmatpush1.msra.mxu0 0.0
        %4416 = vmatprep.subr.mxu0 0.0
        %4417 = vmatpush1.msra.mxu0 0.0
        %4418 = vmatprep.subr.mxu0 0.0
        %4419 = vmatpush1.msra.mxu0 0.0
        %4420 = vmatprep.subr.mxu0 0.0
        %4421 = vmatpush1.msra.mxu0 0.0
        %4422 = vmatprep.subr.mxu0 0.0
        %4423 = vmatpush1.msra.mxu0 0.0
        %4424 = vmatprep.subr.mxu0 0.0
        %4425 = vmatpush1.msra.mxu0 0.0
        %4426 = vmatprep.subr.mxu0 0.0
        %4427 = vmatpush1.msra.mxu0 0.0
        %4428 = vmatprep.subr.mxu0 0.0
        %4429 = vmatpush1.msra.mxu0 0.0
        %4430 = vmatprep.subr.mxu0 0.0
        %4431 = vmatpush1.msra.mxu0 0.0
        %4432 = vmatprep.subr.mxu0 0.0
        %4433 = vmatpush1.msra.mxu0 0.0
        %4434 = vmatprep.subr.mxu0 0.0
        %4435 = vmatpush1.msra.mxu0 0.0
        %4436 = vmatprep.subr.mxu0 0.0
        %4437 = vmatpush1.msra.mxu0 0.0
        %4438 = vmatprep.subr.mxu0 0.0
        %4439 = vmatpush1.msra.mxu0 0.0
        %4440 = vmatprep.subr.mxu0 0.0
        %4441 = vmatpush1.msra.mxu0 0.0
        %4442 = vmatprep.subr.mxu0 0.0
        %4443 = vmatpush1.msra.mxu0 0.0
        %4444 = vmatprep.subr.mxu0 0.0
        %4445 = vmatpush1.msra.mxu0 0.0
        %4446 = vmatprep.subr.mxu0 0.0
        %4447 = vmatpush1.msra.mxu0 0.0
        %4448 = vmatprep.subr.mxu0 0.0
        %4449 = vmatpush1.msra.mxu0 0.0
        %4450 = vmatprep.subr.mxu0 0.0
        %4451 = vmatpush1.msra.mxu0 0.0
        %4452 = vmatprep.subr.mxu0 0.0
        %4453 = vmatpush1.msra.mxu0 0.0
        %4454 = vmatprep.mubr.f32.mxu0 0.0
        %4455 = vmatmul.mubr.f32.gmra.mrb[0].mxu0 %v4308
        %v4456 = vpop.f32.mrb[0].mxu0
        %v4457 = vadd.f32 %v4298, %v4456
        %v4458 = vpop.f32.mrb[0].mxu0
        %v4459 = vadd.f32 %v4302, %v4458
        %4460 = vmatprep.mubr.f32.mxu0 0.0
        %4461 = vmatmul.mubr.f32.gmra.mrb[0].mxu0 %v4311
        %v4462 = vpop.f32.mrb[0].mxu0
        %v4463 = vadd.f32 %v4298, %v4462
        %v4464 = vpop.f32.mrb[0].mxu0
        %v4465 = vadd.f32 %v4302, %v4464
        %4466 = vdwg.mxu0
        %v4467 = vmax.f32 %v4380, 0.0
        %v4468 = vmax.f32 %v4382, 0.0
        %v4469 = vmax.f32 %v4457, 0.0
        %v4470 = vmax.f32 %v4459, 0.0
        %v4471 = vmax.f32 %v4386, 0.0
        %v4472 = vmax.f32 %v4388, 0.0
        %v4473 = vmax.f32 %v4463, 0.0
        %v4474 = vmax.f32 %v4465, 0.0
        %v4475 = vld [vmem:[%s51] sm:$0xff]
        %v4476 = vld [vmem:[%s51 + $0x8] sm:$0xff]
        %v4477 = vld [vmem:[%s51 + $0x10] sm:$0xff]
        %v4478 = vld [vmem:[%s51 + $0x18] sm:$0xff]
        %v4479 = vld [vmem:[%s51 + $0x20] sm:$0xff]
        %v4480 = vld [vmem:[%s51 + $0x28] sm:$0xff]
        %v4481 = vld [vmem:[%s51 + $0x30] sm:$0xff]
        %v4482 = vld [vmem:[%s51 + $0x38] sm:$0xff]
        %v4483 = vld [vmem:[%s51 + $0x40] sm:$0xff]
        %v4484 = vld [vmem:[%s51 + $0x48] sm:$0xff]
        %v4485 = vld [vmem:[%s51 + $0x50] sm:$0xff]
        %v4486 = vld [vmem:[%s51 + $0x58] sm:$0xff]
        %v4487 = vld [vmem:[%s51 + $0x60] sm:$0xff]
        %v4488 = vld [vmem:[%s51 + $0x68] sm:$0xff]
        %v4489 = vld [vmem:[%s51 + $0x70] sm:$0xff]
        %v4490 = vld [vmem:[%s51 + $0x78] sm:$0xff]
        %v4491 = vld [vmem:[%s51 + $0x80] sm:$0xff]
        %v4492 = vld [vmem:[%s51 + $0x88] sm:$0xff]
        %v4493 = vld [vmem:[%s51 + $0x90] sm:$0xff]
        %v4494 = vld [vmem:[%s51 + $0x98] sm:$0xff]
        %v4495 = vld [vmem:[%s51 + $0xa0] sm:$0xff]
        %v4496 = vld [vmem:[%s51 + $0xa8] sm:$0xff]
        %v4497 = vld [vmem:[%s51 + $0xb0] sm:$0xff]
        %v4498 = vld [vmem:[%s51 + $0xb8] sm:$0xff]
        %v4499 = vld [vmem:[%s51 + $0xc0] sm:$0xff]
        %v4500 = vld [vmem:[%s51 + $0xc8] sm:$0xff]
        %v4501 = vld [vmem:[%s51 + $0xd0] sm:$0xff]
        %v4502 = vld [vmem:[%s51 + $0xd8] sm:$0xff]
        %v4503 = vld [vmem:[%s51 + $0xe0] sm:$0xff]
        %v4504 = vld [vmem:[%s51 + $0xe8] sm:$0xff]
        %v4505 = vld [vmem:[%s51 + $0xf0] sm:$0xff]
        %v4506 = vld [vmem:[%s51 + $0xf8] sm:$0xff]
        %v4507 = vld [vmem:[%s51 + $0x100] sm:$0xff]
        %v4508 = vld [vmem:[%s51 + $0x108] sm:$0xff]
        %v4509 = vld [vmem:[%s51 + $0x110] sm:$0xff]
        %v4510 = vld [vmem:[%s51 + $0x118] sm:$0xff]
        %v4511 = vld [vmem:[%s51 + $0x120] sm:$0xff]
        %v4512 = vld [vmem:[%s51 + $0x128] sm:$0xff]
        %v4513 = vld [vmem:[%s51 + $0x130] sm:$0xff]
        %v4514 = vld [vmem:[%s51 + $0x138] sm:$0xff]
        %v4515 = vld [vmem:[%s51 + $0x140] sm:$0xff]
        %v4516 = vld [vmem:[%s51 + $0x148] sm:$0xff]
        %v4517 = vld [vmem:[%s51 + $0x150] sm:$0xff]
        %v4518 = vld [vmem:[%s51 + $0x158] sm:$0xff]
        %v4519 = vld [vmem:[%s51 + $0x160] sm:$0xff]
        %v4520 = vld [vmem:[%s51 + $0x168] sm:$0xff]
        %v4521 = vld [vmem:[%s51 + $0x170] sm:$0xff]
        %v4522 = vld [vmem:[%s51 + $0x178] sm:$0xff]
        %v4523 = vld [vmem:[%s51 + $0x180] sm:$0xff]
        %v4524 = vld [vmem:[%s51 + $0x188] sm:$0xff]
        %v4525 = vld [vmem:[%s51 + $0x190] sm:$0xff]
        %v4526 = vld [vmem:[%s51 + $0x198] sm:$0xff]
        %v4527 = vld [vmem:[%s51 + $0x1a0] sm:$0xff]
        %v4528 = vld [vmem:[%s51 + $0x1a8] sm:$0xff]
        %v4529 = vld [vmem:[%s51 + $0x1b0] sm:$0xff]
        %v4530 = vld [vmem:[%s51 + $0x1b8] sm:$0xff]
        %v4531 = vld [vmem:[%s51 + $0x1c0] sm:$0xff]
        %v4532 = vld [vmem:[%s51 + $0x1c8] sm:$0xff]
        %v4533 = vld [vmem:[%s51 + $0x1d0] sm:$0xff]
        %v4534 = vld [vmem:[%s51 + $0x1d8] sm:$0xff]
        %v4535 = vld [vmem:[%s51 + $0x1e0] sm:$0xff]
        %v4536 = vld [vmem:[%s51 + $0x1e8] sm:$0xff]
        %v4537 = vld [vmem:[%s51 + $0x1f0] sm:$0xff]
        %v4538 = vld [vmem:[%s51 + $0x1f8] sm:$0xff]
        %v4539 = vld [vmem:[%s53] sm:$0x1]
        %v4541 = vlaneseq
        %v4542 = vshrl.u32 %v4541, 7
        %v4543 = vsub.s32 0, %v4542
        %v4544 = vrot.slane %v4539, %v4543
        %4546 = vmatprep.subr.mxu0 0.0
        %4547 = vmatpush1.msra.mxu0 %v4475
        %4548 = vmatprep.subr.mxu0 0.0
        %4549 = vmatpush1.msra.mxu0 %v4476
        %4550 = vmatprep.subr.mxu0 0.0
        %4551 = vmatpush1.msra.mxu0 %v4477
        %4552 = vmatprep.subr.mxu0 0.0
        %4553 = vmatpush1.msra.mxu0 %v4478
        %4554 = vmatprep.subr.mxu0 0.0
        %4555 = vmatpush1.msra.mxu0 %v4479
        %4556 = vmatprep.subr.mxu0 0.0
        %4557 = vmatpush1.msra.mxu0 %v4480
        %4558 = vmatprep.subr.mxu0 0.0
        %4559 = vmatpush1.msra.mxu0 %v4481
        %4560 = vmatprep.subr.mxu0 0.0
        %4561 = vmatpush1.msra.mxu0 %v4482
        %4562 = vmatprep.subr.mxu0 0.0
        %4563 = vmatpush1.msra.mxu0 %v4483
        %4564 = vmatprep.subr.mxu0 0.0
        %4565 = vmatpush1.msra.mxu0 %v4484
        %4566 = vmatprep.subr.mxu0 0.0
        %4567 = vmatpush1.msra.mxu0 %v4485
        %4568 = vmatprep.subr.mxu0 0.0
        %4569 = vmatpush1.msra.mxu0 %v4486
        %4570 = vmatprep.subr.mxu0 0.0
        %4571 = vmatpush1.msra.mxu0 %v4487
        %4572 = vmatprep.subr.mxu0 0.0
        %4573 = vmatpush1.msra.mxu0 %v4488
        %4574 = vmatprep.subr.mxu0 0.0
        %4575 = vmatpush1.msra.mxu0 %v4489
        %4576 = vmatprep.subr.mxu0 0.0
        %4577 = vmatpush1.msra.mxu0 %v4490
        %4578 = vmatprep.subr.mxu0 0.0
        %4579 = vmatpush1.msra.mxu0 %v4491
        %4580 = vmatprep.subr.mxu0 0.0
        %4581 = vmatpush1.msra.mxu0 %v4492
        %4582 = vmatprep.subr.mxu0 0.0
        %4583 = vmatpush1.msra.mxu0 %v4493
        %4584 = vmatprep.subr.mxu0 0.0
        %4585 = vmatpush1.msra.mxu0 %v4494
        %4586 = vmatprep.subr.mxu0 0.0
        %4587 = vmatpush1.msra.mxu0 %v4495
        %4588 = vmatprep.subr.mxu0 0.0
        %4589 = vmatpush1.msra.mxu0 %v4496
        %4590 = vmatprep.subr.mxu0 0.0
        %4591 = vmatpush1.msra.mxu0 %v4497
        %4592 = vmatprep.subr.mxu0 0.0
        %4593 = vmatpush1.msra.mxu0 %v4498
        %4594 = vmatprep.subr.mxu0 0.0
        %4595 = vmatpush1.msra.mxu0 %v4499
        %4596 = vmatprep.subr.mxu0 0.0
        %4597 = vmatpush1.msra.mxu0 %v4500
        %4598 = vmatprep.subr.mxu0 0.0
        %4599 = vmatpush1.msra.mxu0 %v4501
        %4600 = vmatprep.subr.mxu0 0.0
        %4601 = vmatpush1.msra.mxu0 %v4502
        %4602 = vmatprep.subr.mxu0 0.0
        %4603 = vmatpush1.msra.mxu0 %v4503
        %4604 = vmatprep.subr.mxu0 0.0
        %4605 = vmatpush1.msra.mxu0 %v4504
        %4606 = vmatprep.subr.mxu0 0.0
        %4607 = vmatpush1.msra.mxu0 %v4505
        %4608 = vmatprep.subr.mxu0 0.0
        %4609 = vmatpush1.msra.mxu0 %v4506
        %4610 = vmatprep.mubr.f32.mxu0 %v4468
        %4611 = vmatmul.mubr.f32.gmra.mrb[0].mxu0 %v4467
        %v4612 = vpop.f32.mrb[0].mxu0
        %v4613 = vadd.f32 %v4544, %v4612
        %v4614 = vpop.f32.mrb[0].mxu0
        %4615 = vmatprep.mubr.f32.mxu0 %v4472
        %4616 = vmatmul.mubr.f32.gmra.mrb[0].mxu0 %v4471
        %v4617 = vpop.f32.mrb[0].mxu0
        %v4618 = vadd.f32 %v4544, %v4617
        %v4619 = vpop.f32.mrb[0].mxu0
        %4620 = vdwg.mxu0
        %4621 = vmatprep.subr.mxu0 0.0
        %4622 = vmatpush1.msra.mxu0 %v4507
        %4623 = vmatprep.subr.mxu0 0.0
        %4624 = vmatpush1.msra.mxu0 %v4508
        %4625 = vmatprep.subr.mxu0 0.0
        %4626 = vmatpush1.msra.mxu0 %v4509
        %4627 = vmatprep.subr.mxu0 0.0
        %4628 = vmatpush1.msra.mxu0 %v4510
        %4629 = vmatprep.subr.mxu0 0.0
        %4630 = vmatpush1.msra.mxu0 %v4511
        %4631 = vmatprep.subr.mxu0 0.0
        %4632 = vmatpush1.msra.mxu0 %v4512
        %4633 = vmatprep.subr.mxu0 0.0
        %4634 = vmatpush1.msra.mxu0 %v4513
        %4635 = vmatprep.subr.mxu0 0.0
        %4636 = vmatpush1.msra.mxu0 %v4514
        %4637 = vmatprep.subr.mxu0 0.0
        %4638 = vmatpush1.msra.mxu0 %v4515
        %4639 = vmatprep.subr.mxu0 0.0
        %4640 = vmatpush1.msra.mxu0 %v4516
        %4641 = vmatprep.subr.mxu0 0.0
        %4642 = vmatpush1.msra.mxu0 %v4517
        %4643 = vmatprep.subr.mxu0 0.0
        %4644 = vmatpush1.msra.mxu0 %v4518
        %4645 = vmatprep.subr.mxu0 0.0
        %4646 = vmatpush1.msra.mxu0 %v4519
        %4647 = vmatprep.subr.mxu0 0.0
        %4648 = vmatpush1.msra.mxu0 %v4520
        %4649 = vmatprep.subr.mxu0 0.0
        %4650 = vmatpush1.msra.mxu0 %v4521
        %4651 = vmatprep.subr.mxu0 0.0
        %4652 = vmatpush1.msra.mxu0 %v4522
        %4653 = vmatprep.subr.mxu0 0.0
        %4654 = vmatpush1.msra.mxu0 %v4523
        %4655 = vmatprep.subr.mxu0 0.0
        %4656 = vmatpush1.msra.mxu0 %v4524
        %4657 = vmatprep.subr.mxu0 0.0
        %4658 = vmatpush1.msra.mxu0 %v4525
        %4659 = vmatprep.subr.mxu0 0.0
        %4660 = vmatpush1.msra.mxu0 %v4526
        %4661 = vmatprep.subr.mxu0 0.0
        %4662 = vmatpush1.msra.mxu0 %v4527
        %4663 = vmatprep.subr.mxu0 0.0
        %4664 = vmatpush1.msra.mxu0 %v4528
        %4665 = vmatprep.subr.mxu0 0.0
        %4666 = vmatpush1.msra.mxu0 %v4529
        %4667 = vmatprep.subr.mxu0 0.0
        %4668 = vmatpush1.msra.mxu0 %v4530
        %4669 = vmatprep.subr.mxu0 0.0
        %4670 = vmatpush1.msra.mxu0 %v4531
        %4671 = vmatprep.subr.mxu0 0.0
        %4672 = vmatpush1.msra.mxu0 %v4532
        %4673 = vmatprep.subr.mxu0 0.0
        %4674 = vmatpush1.msra.mxu0 %v4533
        %4675 = vmatprep.subr.mxu0 0.0
        %4676 = vmatpush1.msra.mxu0 %v4534
        %4677 = vmatprep.subr.mxu0 0.0
        %4678 = vmatpush1.msra.mxu0 %v4535
        %4679 = vmatprep.subr.mxu0 0.0
        %4680 = vmatpush1.msra.mxu0 %v4536
        %4681 = vmatprep.subr.mxu0 0.0
        %4682 = vmatpush1.msra.mxu0 %v4537
        %4683 = vmatprep.subr.mxu0 0.0
        %4684 = vmatpush1.msra.mxu0 %v4538
        %4685 = vmatprep.mubr.f32.mxu0 %v4470
        %4686 = vmatmul.mubr.f32.gmra.mrb[0].mxu0 %v4469
        %v4687 = vpop.f32.mrb[0].mxu0
        %v4688 = vadd.f32 %v4613, %v4687
        %v4689 = vpop.f32.mrb[0].mxu0
        %4690 = vmatprep.mubr.f32.mxu0 %v4474
        %4691 = vmatmul.mubr.f32.gmra.mrb[0].mxu0 %v4473
        %v4692 = vpop.f32.mrb[0].mxu0
        %v4693 = vadd.f32 %v4618, %v4692
        %v4694 = vpop.f32.mrb[0].mxu0
        %4695 = vdwg.mxu0
        %v4696 = vld [vmem:[%s55] sm:$0x1]
        %v4697 = vld [vmem:[%s57] sm:$0x1]
        %v4698 = vadd.f32 %v4267, %v4688
        %v4699 = vadd.f32 %v4268, %v4693
        %v4700 = vsel %vm1888, %v4698, 0.0
        %4701 = vadd.xlane.f32.xlu0 %v4700
        %v4702 = vpop.xlane.xlu0 %4701
        %v4703 = vsel %vm1888, %v4699, 0.0
        %4704 = vadd.xlane.f32.xlu0 %v4703
        %v4705 = vpop.xlane.xlu0 %4704
        %v4706 = vmul.f32 %v4702, %v3104
        %v4707 = vmul.f32 %v4705, %v3104
        %v4708 = vsub.f32 %v4698, %v4706
        %v4709 = vsub.f32 %v4699, %v4707
        %v4710 = vmul.f32 %v4708, %v4708
        %v4711 = vmul.f32 %v4709, %v4709
        %v4712 = vsel %vm1888, %v4710, 0.0
        %4713 = vadd.xlane.f32.xlu0 %v4712
        %v4714 = vpop.xlane.xlu0 %4713
        %v4715 = vsel %vm1888, %v4711, 0.0
        %4716 = vadd.xlane.f32.xlu0 %v4715
        %v4717 = vpop.xlane.xlu0 %4716
        %v4718 = vmul.f32 %v4714, %v3104
        %v4719 = vmul.f32 %v4717, %v3104
        %v4720 = vadd.f32 %v4718, 1e-05
        %v4721 = vadd.f32 %v4719, 1e-05
        %v4722 = vrsqrt.pop %v4720
        %v4723 = vrsqrt.pop %v4721
        %v4724 = vmul.f32 %v4708, %v4722
        %v4725 = vmul.f32 %v4709, %v4723
        %v4727 = vlaneseq
        %v4728 = vshrl.u32 %v4727, 7
        %v4729 = vsub.s32 0, %v4728
        %v4730 = vrot.slane %v4696, %v4729
        %v4732 = vmul.f32 %v4724, %v4730
        %v4733 = vmul.f32 %v4725, %v4730
        %v4735 = vlaneseq
        %v4736 = vshrl.u32 %v4735, 7
        %v4737 = vsub.s32 0, %v4736
        %v4738 = vrot.slane %v4697, %v4737
        %v4740 = vadd.f32 %v4732, %v4738
        %v4741 = vadd.f32 %v4733, %v4738
        %v4742 = vld [vmem:[%s59] sm:$0xff]
        %v4743 = vld [vmem:[%s59 + $0x8] sm:$0xff]
        %v4744 = vld [vmem:[%s59 + $0x10] sm:$0xff]
        %v4745 = vld [vmem:[%s59 + $0x18] sm:$0xff]
        %v4746 = vld [vmem:[%s61] sm:$0x1]
        %v4747 = vld [vmem:[%s63] sm:$0xff]
        %v4748 = vld [vmem:[%s63 + $0x8] sm:$0xff]
        %v4749 = vld [vmem:[%s63 + $0x10] sm:$0xff]
        %v4750 = vld [vmem:[%s63 + $0x18] sm:$0xff]
        %v4751 = vld [vmem:[%s65] sm:$0x1]
        %v4752 = vld [vmem:[%s67] sm:$0xff]
        %v4753 = vld [vmem:[%s67 + $0x8] sm:$0xff]
        %v4754 = vld [vmem:[%s67 + $0x10] sm:$0xff]
        %v4755 = vld [vmem:[%s67 + $0x18] sm:$0xff]
        %v4756 = vld [vmem:[#allocation3] sm:$0x1]
        %v4758 = vlaneseq
        %v4759 = vshrl.u32 %v4758, 7
        %v4760 = vsub.s32 0, %v4759
        %v4761 = vrot.slane %v4746, %v4760
        %v4764 = vsel %vm1888, %v4740, 0
        %v4767 = vsel %vm1888, %v4741, 0
        %4769 = vmatprep.subr.mxu0 0.0
        %4770 = vmatpush1.msra.mxu0 %v4742
        %4771 = vmatprep.subr.mxu0 0.0
        %4772 = vmatpush1.msra.mxu0 %v4743
        %4773 = vmatprep.subr.mxu0 0.0
        %4774 = vmatpush1.msra.mxu0 %v4744
        %4775 = vmatprep.subr.mxu0 0.0
        %4776 = vmatpush1.msra.mxu0 %v4745
        %4777 = vmatprep.subr.mxu0 0.0
        %4778 = vmatpush1.msra.mxu0 0.0
        %4779 = vmatprep.subr.mxu0 0.0
        %4780 = vmatpush1.msra.mxu0 0.0
        %4781 = vmatprep.subr.mxu0 0.0
        %4782 = vmatpush1.msra.mxu0 0.0
        %4783 = vmatprep.subr.mxu0 0.0
        %4784 = vmatpush1.msra.mxu0 0.0
        %4785 = vmatprep.subr.mxu0 0.0
        %4786 = vmatpush1.msra.mxu0 0.0
        %4787 = vmatprep.subr.mxu0 0.0
        %4788 = vmatpush1.msra.mxu0 0.0
        %4789 = vmatprep.subr.mxu0 0.0
        %4790 = vmatpush1.msra.mxu0 0.0
        %4791 = vmatprep.subr.mxu0 0.0
        %4792 = vmatpush1.msra.mxu0 0.0
        %4793 = vmatprep.subr.mxu0 0.0
        %4794 = vmatpush1.msra.mxu0 0.0
        %4795 = vmatprep.subr.mxu0 0.0
        %4796 = vmatpush1.msra.mxu0 0.0
        %4797 = vmatprep.subr.mxu0 0.0
        %4798 = vmatpush1.msra.mxu0 0.0
        %4799 = vmatprep.subr.mxu0 0.0
        %4800 = vmatpush1.msra.mxu0 0.0
        %4801 = vmatprep.subr.mxu0 0.0
        %4802 = vmatpush1.msra.mxu0 0.0
        %4803 = vmatprep.subr.mxu0 0.0
        %4804 = vmatpush1.msra.mxu0 0.0
        %4805 = vmatprep.subr.mxu0 0.0
        %4806 = vmatpush1.msra.mxu0 0.0
        %4807 = vmatprep.subr.mxu0 0.0
        %4808 = vmatpush1.msra.mxu0 0.0
        %4809 = vmatprep.subr.mxu0 0.0
        %4810 = vmatpush1.msra.mxu0 0.0
        %4811 = vmatprep.subr.mxu0 0.0
        %4812 = vmatpush1.msra.mxu0 0.0
        %4813 = vmatprep.subr.mxu0 0.0
        %4814 = vmatpush1.msra.mxu0 0.0
        %4815 = vmatprep.subr.mxu0 0.0
        %4816 = vmatpush1.msra.mxu0 0.0
        %4817 = vmatprep.subr.mxu0 0.0
        %4818 = vmatpush1.msra.mxu0 0.0
        %4819 = vmatprep.subr.mxu0 0.0
        %4820 = vmatpush1.msra.mxu0 0.0
        %4821 = vmatprep.subr.mxu0 0.0
        %4822 = vmatpush1.msra.mxu0 0.0
        %4823 = vmatprep.subr.mxu0 0.0
        %4824 = vmatpush1.msra.mxu0 0.0
        %4825 = vmatprep.subr.mxu0 0.0
        %4826 = vmatpush1.msra.mxu0 0.0
        %4827 = vmatprep.subr.mxu0 0.0
        %4828 = vmatpush1.msra.mxu0 0.0
        %4829 = vmatprep.subr.mxu0 0.0
        %4830 = vmatpush1.msra.mxu0 0.0
        %4831 = vmatprep.subr.mxu0 0.0
        %4832 = vmatpush1.msra.mxu0 0.0
        %4833 = vmatprep.mubr.f32.mxu0 0.0
        %4834 = vmatmul.mubr.f32.gmra.mrb[0].mxu0 %v4764
        %v4835 = vpop.f32.mrb[0].mxu0
        %v4836 = vadd.f32 %v4761, %v4835
        %v4837 = vpop.f32.mrb[0].mxu0
        %4838 = vmatprep.mubr.f32.mxu0 0.0
        %4839 = vmatmul.mubr.f32.gmra.mrb[0].mxu0 %v4767
        %v4840 = vpop.f32.mrb[0].mxu0
        %v4841 = vadd.f32 %v4761, %v4840
        %v4842 = vpop.f32.mrb[0].mxu0
        %4843 = vdwg.mxu0
        %v4845 = vlaneseq
        %v4846 = vshrl.u32 %v4845, 7
        %v4847 = vsub.s32 0, %v4846
        %v4848 = vrot.slane %v4751, %v4847
        %4850 = vmatprep.subr.mxu0 0.0
        %4851 = vmatpush1.msra.mxu0 %v4747
        %4852 = vmatprep.subr.mxu0 0.0
        %4853 = vmatpush1.msra.mxu0 %v4748
        %4854 = vmatprep.subr.mxu0 0.0
        %4855 = vmatpush1.msra.mxu0 %v4749
        %4856 = vmatprep.subr.mxu0 0.0
        %4857 = vmatpush1.msra.mxu0 %v4750
        %4858 = vmatprep.subr.mxu0 0.0
        %4859 = vmatpush1.msra.mxu0 0.0
        %4860 = vmatprep.subr.mxu0 0.0
        %4861 = vmatpush1.msra.mxu0 0.0
        %4862 = vmatprep.subr.mxu0 0.0
        %4863 = vmatpush1.msra.mxu0 0.0
        %4864 = vmatprep.subr.mxu0 0.0
        %4865 = vmatpush1.msra.mxu0 0.0
        %4866 = vmatprep.subr.mxu0 0.0
        %4867 = vmatpush1.msra.mxu0 0.0
        %4868 = vmatprep.subr.mxu0 0.0
        %4869 = vmatpush1.msra.mxu0 0.0
        %4870 = vmatprep.subr.mxu0 0.0
        %4871 = vmatpush1.msra.mxu0 0.0
        %4872 = vmatprep.subr.mxu0 0.0
        %4873 = vmatpush1.msra.mxu0 0.0
        %4874 = vmatprep.subr.mxu0 0.0
        %4875 = vmatpush1.msra.mxu0 0.0
        %4876 = vmatprep.subr.mxu0 0.0
        %4877 = vmatpush1.msra.mxu0 0.0
        %4878 = vmatprep.subr.mxu0 0.0
        %4879 = vmatpush1.msra.mxu0 0.0
        %4880 = vmatprep.subr.mxu0 0.0
        %4881 = vmatpush1.msra.mxu0 0.0
        %4882 = vmatprep.subr.mxu0 0.0
        %4883 = vmatpush1.msra.mxu0 0.0
        %4884 = vmatprep.subr.mxu0 0.0
        %4885 = vmatpush1.msra.mxu0 0.0
        %4886 = vmatprep.subr.mxu0 0.0
        %4887 = vmatpush1.msra.mxu0 0.0
        %4888 = vmatprep.subr.mxu0 0.0
        %4889 = vmatpush1.msra.mxu0 0.0
        %4890 = vmatprep.subr.mxu0 0.0
        %4891 = vmatpush1.msra.mxu0 0.0
        %4892 = vmatprep.subr.mxu0 0.0
        %4893 = vmatpush1.msra.mxu0 0.0
        %4894 = vmatprep.subr.mxu0 0.0
        %4895 = vmatpush1.msra.mxu0 0.0
        %4896 = vmatprep.subr.mxu0 0.0
        %4897 = vmatpush1.msra.mxu0 0.0
        %4898 = vmatprep.subr.mxu0 0.0
        %4899 = vmatpush1.msra.mxu0 0.0
        %4900 = vmatprep.subr.mxu0 0.0
        %4901 = vmatpush1.msra.mxu0 0.0
        %4902 = vmatprep.subr.mxu0 0.0
        %4903 = vmatpush1.msra.mxu0 0.0
        %4904 = vmatprep.subr.mxu0 0.0
        %4905 = vmatpush1.msra.mxu0 0.0
        %4906 = vmatprep.subr.mxu0 0.0
        %4907 = vmatpush1.msra.mxu0 0.0
        %4908 = vmatprep.subr.mxu0 0.0
        %4909 = vmatpush1.msra.mxu0 0.0
        %4910 = vmatprep.subr.mxu0 0.0
        %4911 = vmatpush1.msra.mxu0 0.0
        %4912 = vmatprep.subr.mxu0 0.0
        %4913 = vmatpush1.msra.mxu0 0.0
        %4914 = vmatprep.mubr.f32.mxu0 0.0
        %4915 = vmatmul.mubr.f32.gmra.mrb[0].mxu0 %v4764
        %v4916 = vpop.f32.mrb[0].mxu0
        %v4917 = vadd.f32 %v4848, %v4916
        %v4918 = vpop.f32.mrb[0].mxu0
        %4919 = vmatprep.mubr.f32.mxu0 0.0
        %4920 = vmatmul.mubr.f32.gmra.mrb[0].mxu0 %v4767
        %v4921 = vpop.f32.mrb[0].mxu0
        %v4922 = vadd.f32 %v4848, %v4921
        %v4923 = vpop.f32.mrb[0].mxu0
        %4924 = vdwg.mxu0
        %4927 = vrot.lane.b32.xlu0 %v4836, 120
        %v4928 = vpop.permute.xlu0 %4927
        %4929 = vrot.lane.b32.xlu0 %v4841, 120
        %v4930 = vpop.permute.xlu0 %4929
        %4931 = vrot.lane.b32.xlu0 %v4836, 112
        %v4932 = vpop.permute.xlu0 %4931
        %4933 = vrot.lane.b32.xlu0 %v4841, 112
        %v4934 = vpop.permute.xlu0 %4933
        %4935 = vrot.lane.b32.xlu0 %v4836, 104
        %v4936 = vpop.permute.xlu0 %4935
        %4937 = vrot.lane.b32.xlu0 %v4841, 104
        %v4938 = vpop.permute.xlu0 %4937
        %4941 = vrot.lane.b32.xlu0 %v4917, 120
        %v4942 = vpop.permute.xlu0 %4941
        %4943 = vrot.lane.b32.xlu0 %v4922, 120
        %v4944 = vpop.permute.xlu0 %4943
        %4945 = vrot.lane.b32.xlu0 %v4917, 112
        %v4946 = vpop.permute.xlu0 %4945
        %4947 = vrot.lane.b32.xlu0 %v4922, 112
        %v4948 = vpop.permute.xlu0 %4947
        %4949 = vrot.lane.b32.xlu0 %v4917, 104
        %v4950 = vpop.permute.xlu0 %4949
        %4951 = vrot.lane.b32.xlu0 %v4922, 104
        %v4952 = vpop.permute.xlu0 %4951
        %v4953 = vsel %vm2207, %v4836, 0
        %v4955 = vsel %vm2207, %v4841, 0
        %v4957 = vsel %vm2207, %v4917, 0
        %v4959 = vsel %vm2207, %v4922, 0
        %4961 = vmatprep.subr.mxu0 0.0
        %4962 = vmatpush1.xpose.msra.mxu0 %v4957
        %4963 = vmatprep.subr.mxu0 0.0
        %4964 = vmatpush1.xpose.msra.mxu0 %v4959
        %4965 = vmatprep.subr.mxu0 0.0
        %4966 = vmatpush1.xpose.msra.mxu0 0.0
        %4967 = vmatprep.subr.mxu0 0.0
        %4968 = vmatpush1.xpose.msra.mxu0 0.0
        %4969 = vmatprep.subr.mxu0 0.0
        %4970 = vmatpush1.xpose.msra.mxu0 0.0
        %4971 = vmatprep.subr.mxu0 0.0
        %4972 = vmatpush1.xpose.msra.mxu0 0.0
        %4973 = vmatprep.subr.mxu0 0.0
        %4974 = vmatpush1.xpose.msra.mxu0 0.0
        %4975 = vmatprep.subr.mxu0 0.0
        %4976 = vmatpush1.xpose.msra.mxu0 0.0
        %4977 = vmatprep.subr.mxu0 0.0
        %4978 = vmatpush1.xpose.msra.mxu0 0.0
        %4979 = vmatprep.subr.mxu0 0.0
        %4980 = vmatpush1.xpose.msra.mxu0 0.0
        %4981 = vmatprep.subr.mxu0 0.0
        %4982 = vmatpush1.xpose.msra.mxu0 0.0
        %4983 = vmatprep.subr.mxu0 0.0
        %4984 = vmatpush1.xpose.msra.mxu0 0.0
        %4985 = vmatprep.subr.mxu0 0.0
        %4986 = vmatpush1.xpose.msra.mxu0 0.0
        %4987 = vmatprep.subr.mxu0 0.0
        %4988 = vmatpush1.xpose.msra.mxu0 0.0
        %4989 = vmatprep.subr.mxu0 0.0
        %4990 = vmatpush1.xpose.msra.mxu0 0.0
        %4991 = vmatprep.subr.mxu0 0.0
        %4992 = vmatpush1.xpose.msra.mxu0 0.0
        %4993 = vmatprep.subr.mxu0 0.0
        %4994 = vmatpush1.xpose.msra.mxu0 0.0
        %4995 = vmatprep.subr.mxu0 0.0
        %4996 = vmatpush1.xpose.msra.mxu0 0.0
        %4997 = vmatprep.subr.mxu0 0.0
        %4998 = vmatpush1.xpose.msra.mxu0 0.0
        %4999 = vmatprep.subr.mxu0 0.0
        %5000 = vmatpush1.xpose.msra.mxu0 0.0
        %5001 = vmatprep.subr.mxu0 0.0
        %5002 = vmatpush1.xpose.msra.mxu0 0.0
        %5003 = vmatprep.subr.mxu0 0.0
        %5004 = vmatpush1.xpose.msra.mxu0 0.0
        %5005 = vmatprep.subr.mxu0 0.0
        %5006 = vmatpush1.xpose.msra.mxu0 0.0
        %5007 = vmatprep.subr.mxu0 0.0
        %5008 = vmatpush1.xpose.msra.mxu0 0.0
        %5009 = vmatprep.subr.mxu0 0.0
        %5010 = vmatpush1.xpose.msra.mxu0 0.0
        %5011 = vmatprep.subr.mxu0 0.0
        %5012 = vmatpush1.xpose.msra.mxu0 0.0
        %5013 = vmatprep.subr.mxu0 0.0
        %5014 = vmatpush1.xpose.msra.mxu0 0.0
        %5015 = vmatprep.subr.mxu0 0.0
        %5016 = vmatpush1.xpose.msra.mxu0 0.0
        %5017 = vmatprep.subr.mxu0 0.0
        %5018 = vmatpush1.xpose.msra.mxu0 0.0
        %5019 = vmatprep.subr.mxu0 0.0
        %5020 = vmatpush1.xpose.msra.mxu0 0.0
        %5021 = vmatprep.subr.mxu0 0.0
        %5022 = vmatpush1.xpose.msra.mxu0 0.0
        %5023 = vmatprep.subr.mxu0 0.0
        %5024 = vmatpush1.xpose.msra.mxu0 0.0
        %5025 = vmatprep.mubr.f32.mxu0 0.0
        %5026 = vmatmul.mubr.f32.gmra.mrb[0].mxu0 %v4953
        %v5027 = vpop.f32.mrb[0].mxu0
        %v5028 = vadd.f32 0.0, %v5027
        %v5029 = vpop.f32.mrb[0].mxu0
        %5030 = vmatprep.mubr.f32.mxu0 0.0
        %5031 = vmatmul.mubr.f32.gmra.mrb[0].mxu0 %v4955
        %v5032 = vpop.f32.mrb[0].mxu0
        %v5033 = vadd.f32 0.0, %v5032
        %v5034 = vpop.f32.mrb[0].mxu0
        %5035 = vdwg.mxu0
        %v5036 = vsel %vm2207, %v4928, 0
        %v5038 = vsel %vm2207, %v4930, 0
        %v5040 = vsel %vm2207, %v4942, 0
        %v5042 = vsel %vm2207, %v4944, 0
        %5044 = vmatprep.subr.mxu0 0.0
        %5045 = vmatpush1.xpose.msra.mxu0 %v5040
        %5046 = vmatprep.subr.mxu0 0.0
        %5047 = vmatpush1.xpose.msra.mxu0 %v5042
        %5048 = vmatprep.subr.mxu0 0.0
        %5049 = vmatpush1.xpose.msra.mxu0 0.0
        %5050 = vmatprep.subr.mxu0 0.0
        %5051 = vmatpush1.xpose.msra.mxu0 0.0
        %5052 = vmatprep.subr.mxu0 0.0
        %5053 = vmatpush1.xpose.msra.mxu0 0.0
        %5054 = vmatprep.subr.mxu0 0.0
        %5055 = vmatpush1.xpose.msra.mxu0 0.0
        %5056 = vmatprep.subr.mxu0 0.0
        %5057 = vmatpush1.xpose.msra.mxu0 0.0
        %5058 = vmatprep.subr.mxu0 0.0
        %5059 = vmatpush1.xpose.msra.mxu0 0.0
        %5060 = vmatprep.subr.mxu0 0.0
        %5061 = vmatpush1.xpose.msra.mxu0 0.0
        %5062 = vmatprep.subr.mxu0 0.0
        %5063 = vmatpush1.xpose.msra.mxu0 0.0
        %5064 = vmatprep.subr.mxu0 0.0
        %5065 = vmatpush1.xpose.msra.mxu0 0.0
        %5066 = vmatprep.subr.mxu0 0.0
        %5067 = vmatpush1.xpose.msra.mxu0 0.0
        %5068 = vmatprep.subr.mxu0 0.0
        %5069 = vmatpush1.xpose.msra.mxu0 0.0
        %5070 = vmatprep.subr.mxu0 0.0
        %5071 = vmatpush1.xpose.msra.mxu0 0.0
        %5072 = vmatprep.subr.mxu0 0.0
        %5073 = vmatpush1.xpose.msra.mxu0 0.0
        %5074 = vmatprep.subr.mxu0 0.0
        %5075 = vmatpush1.xpose.msra.mxu0 0.0
        %5076 = vmatprep.subr.mxu0 0.0
        %5077 = vmatpush1.xpose.msra.mxu0 0.0
        %5078 = vmatprep.subr.mxu0 0.0
        %5079 = vmatpush1.xpose.msra.mxu0 0.0
        %5080 = vmatprep.subr.mxu0 0.0
        %5081 = vmatpush1.xpose.msra.mxu0 0.0
        %5082 = vmatprep.subr.mxu0 0.0
        %5083 = vmatpush1.xpose.msra.mxu0 0.0
        %5084 = vmatprep.subr.mxu0 0.0
        %5085 = vmatpush1.xpose.msra.mxu0 0.0
        %5086 = vmatprep.subr.mxu0 0.0
        %5087 = vmatpush1.xpose.msra.mxu0 0.0
        %5088 = vmatprep.subr.mxu0 0.0
        %5089 = vmatpush1.xpose.msra.mxu0 0.0
        %5090 = vmatprep.subr.mxu0 0.0
        %5091 = vmatpush1.xpose.msra.mxu0 0.0
        %5092 = vmatprep.subr.mxu0 0.0
        %5093 = vmatpush1.xpose.msra.mxu0 0.0
        %5094 = vmatprep.subr.mxu0 0.0
        %5095 = vmatpush1.xpose.msra.mxu0 0.0
        %5096 = vmatprep.subr.mxu0 0.0
        %5097 = vmatpush1.xpose.msra.mxu0 0.0
        %5098 = vmatprep.subr.mxu0 0.0
        %5099 = vmatpush1.xpose.msra.mxu0 0.0
        %5100 = vmatprep.subr.mxu0 0.0
        %5101 = vmatpush1.xpose.msra.mxu0 0.0
        %5102 = vmatprep.subr.mxu0 0.0
        %5103 = vmatpush1.xpose.msra.mxu0 0.0
        %5104 = vmatprep.subr.mxu0 0.0
        %5105 = vmatpush1.xpose.msra.mxu0 0.0
        %5106 = vmatprep.subr.mxu0 0.0
        %5107 = vmatpush1.xpose.msra.mxu0 0.0
        %5108 = vmatprep.mubr.f32.mxu0 0.0
        %5109 = vmatmul.mubr.f32.gmra.mrb[0].mxu0 %v5036
        %v5110 = vpop.f32.mrb[0].mxu0
        %v5111 = vadd.f32 0.0, %v5110
        %v5112 = vpop.f32.mrb[0].mxu0
        %5113 = vmatprep.mubr.f32.mxu0 0.0
        %5114 = vmatmul.mubr.f32.gmra.mrb[0].mxu0 %v5038
        %v5115 = vpop.f32.mrb[0].mxu0
        %v5116 = vadd.f32 0.0, %v5115
        %v5117 = vpop.f32.mrb[0].mxu0
        %5118 = vdwg.mxu0
        %v5119 = vsel %vm2207, %v4932, 0
        %v5121 = vsel %vm2207, %v4934, 0
        %v5123 = vsel %vm2207, %v4946, 0
        %v5125 = vsel %vm2207, %v4948, 0
        %5127 = vmatprep.subr.mxu0 0.0
        %5128 = vmatpush1.xpose.msra.mxu0 %v5123
        %5129 = vmatprep.subr.mxu0 0.0
        %5130 = vmatpush1.xpose.msra.mxu0 %v5125
        %5131 = vmatprep.subr.mxu0 0.0
        %5132 = vmatpush1.xpose.msra.mxu0 0.0
        %5133 = vmatprep.subr.mxu0 0.0
        %5134 = vmatpush1.xpose.msra.mxu0 0.0
        %5135 = vmatprep.subr.mxu0 0.0
        %5136 = vmatpush1.xpose.msra.mxu0 0.0
        %5137 = vmatprep.subr.mxu0 0.0
        %5138 = vmatpush1.xpose.msra.mxu0 0.0
        %5139 = vmatprep.subr.mxu0 0.0
        %5140 = vmatpush1.xpose.msra.mxu0 0.0
        %5141 = vmatprep.subr.mxu0 0.0
        %5142 = vmatpush1.xpose.msra.mxu0 0.0
        %5143 = vmatprep.subr.mxu0 0.0
        %5144 = vmatpush1.xpose.msra.mxu0 0.0
        %5145 = vmatprep.subr.mxu0 0.0
        %5146 = vmatpush1.xpose.msra.mxu0 0.0
        %5147 = vmatprep.subr.mxu0 0.0
        %5148 = vmatpush1.xpose.msra.mxu0 0.0
        %5149 = vmatprep.subr.mxu0 0.0
        %5150 = vmatpush1.xpose.msra.mxu0 0.0
        %5151 = vmatprep.subr.mxu0 0.0
        %5152 = vmatpush1.xpose.msra.mxu0 0.0
        %5153 = vmatprep.subr.mxu0 0.0
        %5154 = vmatpush1.xpose.msra.mxu0 0.0
        %5155 = vmatprep.subr.mxu0 0.0
        %5156 = vmatpush1.xpose.msra.mxu0 0.0
        %5157 = vmatprep.subr.mxu0 0.0
        %5158 = vmatpush1.xpose.msra.mxu0 0.0
        %5159 = vmatprep.subr.mxu0 0.0
        %5160 = vmatpush1.xpose.msra.mxu0 0.0
        %5161 = vmatprep.subr.mxu0 0.0
        %5162 = vmatpush1.xpose.msra.mxu0 0.0
        %5163 = vmatprep.subr.mxu0 0.0
        %5164 = vmatpush1.xpose.msra.mxu0 0.0
        %5165 = vmatprep.subr.mxu0 0.0
        %5166 = vmatpush1.xpose.msra.mxu0 0.0
        %5167 = vmatprep.subr.mxu0 0.0
        %5168 = vmatpush1.xpose.msra.mxu0 0.0
        %5169 = vmatprep.subr.mxu0 0.0
        %5170 = vmatpush1.xpose.msra.mxu0 0.0
        %5171 = vmatprep.subr.mxu0 0.0
        %5172 = vmatpush1.xpose.msra.mxu0 0.0
        %5173 = vmatprep.subr.mxu0 0.0
        %5174 = vmatpush1.xpose.msra.mxu0 0.0
        %5175 = vmatprep.subr.mxu0 0.0
        %5176 = vmatpush1.xpose.msra.mxu0 0.0
        %5177 = vmatprep.subr.mxu0 0.0
        %5178 = vmatpush1.xpose.msra.mxu0 0.0
        %5179 = vmatprep.subr.mxu0 0.0
        %5180 = vmatpush1.xpose.msra.mxu0 0.0
        %5181 = vmatprep.subr.mxu0 0.0
        %5182 = vmatpush1.xpose.msra.mxu0 0.0
        %5183 = vmatprep.subr.mxu0 0.0
        %5184 = vmatpush1.xpose.msra.mxu0 0.0
        %5185 = vmatprep.subr.mxu0 0.0
        %5186 = vmatpush1.xpose.msra.mxu0 0.0
        %5187 = vmatprep.subr.mxu0 0.0
        %5188 = vmatpush1.xpose.msra.mxu0 0.0
        %5189 = vmatprep.subr.mxu0 0.0
        %5190 = vmatpush1.xpose.msra.mxu0 0.0
        %5191 = vmatprep.mubr.f32.mxu0 0.0
        %5192 = vmatmul.mubr.f32.gmra.mrb[0].mxu0 %v5119
        %v5193 = vpop.f32.mrb[0].mxu0
        %v5194 = vadd.f32 0.0, %v5193
        %v5195 = vpop.f32.mrb[0].mxu0
        %5196 = vmatprep.mubr.f32.mxu0 0.0
        %5197 = vmatmul.mubr.f32.gmra.mrb[0].mxu0 %v5121
        %v5198 = vpop.f32.mrb[0].mxu0
        %v5199 = vadd.f32 0.0, %v5198
        %v5200 = vpop.f32.mrb[0].mxu0
        %5201 = vdwg.mxu0
        %v5202 = vsel %vm2207, %v4936, 0
        %v5204 = vsel %vm2207, %v4938, 0
        %v5206 = vsel %vm2207, %v4950, 0
        %v5208 = vsel %vm2207, %v4952, 0
        %5210 = vmatprep.subr.mxu0 0.0
        %5211 = vmatpush1.xpose.msra.mxu0 %v5206
        %5212 = vmatprep.subr.mxu0 0.0
        %5213 = vmatpush1.xpose.msra.mxu0 %v5208
        %5214 = vmatprep.subr.mxu0 0.0
        %5215 = vmatpush1.xpose.msra.mxu0 0.0
        %5216 = vmatprep.subr.mxu0 0.0
        %5217 = vmatpush1.xpose.msra.mxu0 0.0
        %5218 = vmatprep.subr.mxu0 0.0
        %5219 = vmatpush1.xpose.msra.mxu0 0.0
        %5220 = vmatprep.subr.mxu0 0.0
        %5221 = vmatpush1.xpose.msra.mxu0 0.0
        %5222 = vmatprep.subr.mxu0 0.0
        %5223 = vmatpush1.xpose.msra.mxu0 0.0
        %5224 = vmatprep.subr.mxu0 0.0
        %5225 = vmatpush1.xpose.msra.mxu0 0.0
        %5226 = vmatprep.subr.mxu0 0.0
        %5227 = vmatpush1.xpose.msra.mxu0 0.0
        %5228 = vmatprep.subr.mxu0 0.0
        %5229 = vmatpush1.xpose.msra.mxu0 0.0
        %5230 = vmatprep.subr.mxu0 0.0
        %5231 = vmatpush1.xpose.msra.mxu0 0.0
        %5232 = vmatprep.subr.mxu0 0.0
        %5233 = vmatpush1.xpose.msra.mxu0 0.0
        %5234 = vmatprep.subr.mxu0 0.0
        %5235 = vmatpush1.xpose.msra.mxu0 0.0
        %5236 = vmatprep.subr.mxu0 0.0
        %5237 = vmatpush1.xpose.msra.mxu0 0.0
        %5238 = vmatprep.subr.mxu0 0.0
        %5239 = vmatpush1.xpose.msra.mxu0 0.0
        %5240 = vmatprep.subr.mxu0 0.0
        %5241 = vmatpush1.xpose.msra.mxu0 0.0
        %5242 = vmatprep.subr.mxu0 0.0
        %5243 = vmatpush1.xpose.msra.mxu0 0.0
        %5244 = vmatprep.subr.mxu0 0.0
        %5245 = vmatpush1.xpose.msra.mxu0 0.0
        %5246 = vmatprep.subr.mxu0 0.0
        %5247 = vmatpush1.xpose.msra.mxu0 0.0
        %5248 = vmatprep.subr.mxu0 0.0
        %5249 = vmatpush1.xpose.msra.mxu0 0.0
        %5250 = vmatprep.subr.mxu0 0.0
        %5251 = vmatpush1.xpose.msra.mxu0 0.0
        %5252 = vmatprep.subr.mxu0 0.0
        %5253 = vmatpush1.xpose.msra.mxu0 0.0
        %5254 = vmatprep.subr.mxu0 0.0
        %5255 = vmatpush1.xpose.msra.mxu0 0.0
        %5256 = vmatprep.subr.mxu0 0.0
        %5257 = vmatpush1.xpose.msra.mxu0 0.0
        %5258 = vmatprep.subr.mxu0 0.0
        %5259 = vmatpush1.xpose.msra.mxu0 0.0
        %5260 = vmatprep.subr.mxu0 0.0
        %5261 = vmatpush1.xpose.msra.mxu0 0.0
        %5262 = vmatprep.subr.mxu0 0.0
        %5263 = vmatpush1.xpose.msra.mxu0 0.0
        %5264 = vmatprep.subr.mxu0 0.0
        %5265 = vmatpush1.xpose.msra.mxu0 0.0
        %5266 = vmatprep.subr.mxu0 0.0
        %5267 = vmatpush1.xpose.msra.mxu0 0.0
        %5268 = vmatprep.subr.mxu0 0.0
        %5269 = vmatpush1.xpose.msra.mxu0 0.0
        %5270 = vmatprep.subr.mxu0 0.0
        %5271 = vmatpush1.xpose.msra.mxu0 0.0
        %5272 = vmatprep.subr.mxu0 0.0
        %5273 = vmatpush1.xpose.msra.mxu0 0.0
        %5274 = vmatprep.mubr.f32.mxu0 0.0
        %5275 = vmatmul.mubr.f32.gmra.mrb[0].mxu0 %v5202
        %v5276 = vpop.f32.mrb[0].mxu0
        %v5277 = vadd.f32 0.0, %v5276
        %v5278 = vpop.f32.mrb[0].mxu0
        %5279 = vmatprep.mubr.f32.mxu0 0.0
        %5280 = vmatmul.mubr.f32.gmra.mrb[0].mxu0 %v5204
        %v5281 = vpop.f32.mrb[0].mxu0
        %v5282 = vadd.f32 0.0, %v5281
        %v5283 = vpop.f32.mrb[0].mxu0
        %5284 = vdwg.mxu0
        %v5285 = vsel %vm1814, %v5028, -inf
        %5286 = vmax.xlane.f32.xlu0 %v5285
        %v5287 = vpop.xlane.xlu0 %5286
        %v5288 = vsel %vm1814, %v5033, -inf
        %5289 = vmax.xlane.f32.xlu0 %v5288
        %v5290 = vpop.xlane.xlu0 %5289
        %v5291 = vsel %vm1814, %v5111, -inf
        %5292 = vmax.xlane.f32.xlu0 %v5291
        %v5293 = vpop.xlane.xlu0 %5292
        %v5294 = vsel %vm1814, %v5116, -inf
        %5295 = vmax.xlane.f32.xlu0 %v5294
        %v5296 = vpop.xlane.xlu0 %5295
        %v5297 = vsel %vm1814, %v5194, -inf
        %5298 = vmax.xlane.f32.xlu0 %v5297
        %v5299 = vpop.xlane.xlu0 %5298
        %v5300 = vsel %vm1814, %v5199, -inf
        %5301 = vmax.xlane.f32.xlu0 %v5300
        %v5302 = vpop.xlane.xlu0 %5301
        %v5303 = vsel %vm1814, %v5277, -inf
        %5304 = vmax.xlane.f32.xlu0 %v5303
        %v5305 = vpop.xlane.xlu0 %5304
        %v5306 = vsel %vm1814, %v5282, -inf
        %5307 = vmax.xlane.f32.xlu0 %v5306
        %v5308 = vpop.xlane.xlu0 %5307
        %v5309 = vsub.f32 %v5028, %v5287
        %v5310 = vsub.f32 %v5033, %v5290
        %v5311 = vsub.f32 %v5111, %v5293
        %v5312 = vsub.f32 %v5116, %v5296
        %v5313 = vsub.f32 %v5194, %v5299
        %v5314 = vsub.f32 %v5199, %v5302
        %v5315 = vsub.f32 %v5277, %v5305
        %v5316 = vsub.f32 %v5282, %v5308
        %v5317 = vmul.f32 %v5309, 1.442695
        %v5318 = vpow.pop %v5317
        %v5319 = vmul.f32 %v5310, 1.442695
        %v5320 = vpow.pop %v5319
        %v5321 = vmul.f32 %v5311, 1.442695
        %v5322 = vpow.pop %v5321
        %v5323 = vmul.f32 %v5312, 1.442695
        %v5324 = vpow.pop %v5323
        %v5325 = vmul.f32 %v5313, 1.442695
        %v5326 = vpow.pop %v5325
        %v5327 = vmul.f32 %v5314, 1.442695
        %v5328 = vpow.pop %v5327
        %v5329 = vmul.f32 %v5315, 1.442695
        %v5330 = vpow.pop %v5329
        %v5331 = vmul.f32 %v5316, 1.442695
        %v5332 = vpow.pop %v5331
        %v5333 = vsel %vm1814, %v5318, 0.0
        %5334 = vadd.xlane.f32.xlu0 %v5333
        %v5335 = vpop.xlane.xlu0 %5334
        %v5336 = vsel %vm1814, %v5320, 0.0
        %5337 = vadd.xlane.f32.xlu0 %v5336
        %v5338 = vpop.xlane.xlu0 %5337
        %v5339 = vsel %vm1814, %v5322, 0.0
        %5340 = vadd.xlane.f32.xlu0 %v5339
        %v5341 = vpop.xlane.xlu0 %5340
        %v5342 = vsel %vm1814, %v5324, 0.0
        %5343 = vadd.xlane.f32.xlu0 %v5342
        %v5344 = vpop.xlane.xlu0 %5343
        %v5345 = vsel %vm1814, %v5326, 0.0
        %5346 = vadd.xlane.f32.xlu0 %v5345
        %v5347 = vpop.xlane.xlu0 %5346
        %v5348 = vsel %vm1814, %v5328, 0.0
        %5349 = vadd.xlane.f32.xlu0 %v5348
        %v5350 = vpop.xlane.xlu0 %5349
        %v5351 = vsel %vm1814, %v5330, 0.0
        %5352 = vadd.xlane.f32.xlu0 %v5351
        %v5353 = vpop.xlane.xlu0 %5352
        %v5354 = vsel %vm1814, %v5332, 0.0
        %5355 = vadd.xlane.f32.xlu0 %v5354
        %v5356 = vpop.xlane.xlu0 %5355
        %v5357 = vrcp.pop %v5335
        %v5358 = vrcp.pop %v5338
        %v5359 = vrcp.pop %v5341
        %v5360 = vrcp.pop %v5344
        %v5361 = vrcp.pop %v5347
        %v5362 = vrcp.pop %v5350
        %v5363 = vrcp.pop %v5353
        %v5364 = vrcp.pop %v5356
        %v5365 = vmul.f32 %v5318, %v5357
        %v5366 = vmul.f32 %v5320, %v5358
        %v5367 = vmul.f32 %v5322, %v5359
        %v5368 = vmul.f32 %v5324, %v5360
        %v5369 = vmul.f32 %v5326, %v5361
        %v5370 = vmul.f32 %v5328, %v5362
        %v5371 = vmul.f32 %v5330, %v5363
        %v5372 = vmul.f32 %v5332, %v5364
        %5373 = vrot.lane.b32.xlu0 %v4917, 96
        %v5374 = vpop.permute.xlu0 %5373
        %5375 = vrot.lane.b32.xlu0 %v4922, 96
        %v5376 = vpop.permute.xlu0 %5375
        %v5380 = vsel %vm1814, %v5365, 0
        %v5383 = vsel %vm1814, %v5366, 0
        %5385 = vmatprep.subr.mxu0 0.0
        %5386 = vmatpush1.msra.mxu0 %v5374
        %5387 = vmatprep.subr.mxu0 0.0
        %5388 = vmatpush1.msra.mxu0 %v5376
        %5389 = vmatprep.subr.mxu0 0.0
        %5390 = vmatpush1.msra.mxu0 0.0
        %5391 = vmatprep.subr.mxu0 0.0
        %5392 = vmatpush1.msra.mxu0 0.0
        %5393 = vmatprep.subr.mxu0 0.0
        %5394 = vmatpush1.msra.mxu0 0.0
        %5395 = vmatprep.subr.mxu0 0.0
        %5396 = vmatpush1.msra.mxu0 0.0
        %5397 = vmatprep.subr.mxu0 0.0
        %5398 = vmatpush1.msra.mxu0 0.0
        %5399 = vmatprep.subr.mxu0 0.0
        %5400 = vmatpush1.msra.mxu0 0.0
        %5401 = vmatprep.subr.mxu0 0.0
        %5402 = vmatpush1.msra.mxu0 0.0
        %5403 = vmatprep.subr.mxu0 0.0
        %5404 = vmatpush1.msra.mxu0 0.0
        %5405 = vmatprep.subr.mxu0 0.0
        %5406 = vmatpush1.msra.mxu0 0.0
        %5407 = vmatprep.subr.mxu0 0.0
        %5408 = vmatpush1.msra.mxu0 0.0
        %5409 = vmatprep.subr.mxu0 0.0
        %5410 = vmatpush1.msra.mxu0 0.0
        %5411 = vmatprep.subr.mxu0 0.0
        %5412 = vmatpush1.msra.mxu0 0.0
        %5413 = vmatprep.subr.mxu0 0.0
        %5414 = vmatpush1.msra.mxu0 0.0
        %5415 = vmatprep.subr.mxu0 0.0
        %5416 = vmatpush1.msra.mxu0 0.0
        %5417 = vmatprep.subr.mxu0 0.0
        %5418 = vmatpush1.msra.mxu0 0.0
        %5419 = vmatprep.subr.mxu0 0.0
        %5420 = vmatpush1.msra.mxu0 0.0
        %5421 = vmatprep.subr.mxu0 0.0
        %5422 = vmatpush1.msra.mxu0 0.0
        %5423 = vmatprep.subr.mxu0 0.0
        %5424 = vmatpush1.msra.mxu0 0.0
        %5425 = vmatprep.subr.mxu0 0.0
        %5426 = vmatpush1.msra.mxu0 0.0
        %5427 = vmatprep.subr.mxu0 0.0
        %5428 = vmatpush1.msra.mxu0 0.0
        %5429 = vmatprep.subr.mxu0 0.0
        %5430 = vmatpush1.msra.mxu0 0.0
        %5431 = vmatprep.subr.mxu0 0.0
        %5432 = vmatpush1.msra.mxu0 0.0
        %5433 = vmatprep.subr.mxu0 0.0
        %5434 = vmatpush1.msra.mxu0 0.0
        %5435 = vmatprep.subr.mxu0 0.0
        %5436 = vmatpush1.msra.mxu0 0.0
        %5437 = vmatprep.subr.mxu0 0.0
        %5438 = vmatpush1.msra.mxu0 0.0
        %5439 = vmatprep.subr.mxu0 0.0
        %5440 = vmatpush1.msra.mxu0 0.0
        %5441 = vmatprep.subr.mxu0 0.0
        %5442 = vmatpush1.msra.mxu0 0.0
        %5443 = vmatprep.subr.mxu0 0.0
        %5444 = vmatpush1.msra.mxu0 0.0
        %5445 = vmatprep.subr.mxu0 0.0
        %5446 = vmatpush1.msra.mxu0 0.0
        %5447 = vmatprep.subr.mxu0 0.0
        %5448 = vmatpush1.msra.mxu0 0.0
        %5449 = vmatprep.mubr.f32.mxu0 0.0
        %5450 = vmatmul.mubr.f32.gmra.mrb[0].mxu0 %v5380
        %v5451 = vpop.f32.mrb[0].mxu0
        %v5452 = vadd.f32 0.0, %v5451
        %v5453 = vpop.f32.mrb[0].mxu0
        %5454 = vmatprep.mubr.f32.mxu0 0.0
        %5455 = vmatmul.mubr.f32.gmra.mrb[0].mxu0 %v5383
        %v5456 = vpop.f32.mrb[0].mxu0
        %v5457 = vadd.f32 0.0, %v5456
        %v5458 = vpop.f32.mrb[0].mxu0
        %5459 = vdwg.mxu0
        %5460 = vrot.lane.b32.xlu0 %v4942, 96
        %v5461 = vpop.permute.xlu0 %5460
        %5462 = vrot.lane.b32.xlu0 %v4944, 96
        %v5463 = vpop.permute.xlu0 %5462
        %v5467 = vsel %vm1814, %v5367, 0
        %v5470 = vsel %vm1814, %v5368, 0
        %5472 = vmatprep.subr.mxu0 0.0
        %5473 = vmatpush1.msra.mxu0 %v5461
        %5474 = vmatprep.subr.mxu0 0.0
        %5475 = vmatpush1.msra.mxu0 %v5463
        %5476 = vmatprep.subr.mxu0 0.0
        %5477 = vmatpush1.msra.mxu0 0.0
        %5478 = vmatprep.subr.mxu0 0.0
        %5479 = vmatpush1.msra.mxu0 0.0
        %5480 = vmatprep.subr.mxu0 0.0
        %5481 = vmatpush1.msra.mxu0 0.0
        %5482 = vmatprep.subr.mxu0 0.0
        %5483 = vmatpush1.msra.mxu0 0.0
        %5484 = vmatprep.subr.mxu0 0.0
        %5485 = vmatpush1.msra.mxu0 0.0
        %5486 = vmatprep.subr.mxu0 0.0
        %5487 = vmatpush1.msra.mxu0 0.0
        %5488 = vmatprep.subr.mxu0 0.0
        %5489 = vmatpush1.msra.mxu0 0.0
        %5490 = vmatprep.subr.mxu0 0.0
        %5491 = vmatpush1.msra.mxu0 0.0
        %5492 = vmatprep.subr.mxu0 0.0
        %5493 = vmatpush1.msra.mxu0 0.0
        %5494 = vmatprep.subr.mxu0 0.0
        %5495 = vmatpush1.msra.mxu0 0.0
        %5496 = vmatprep.subr.mxu0 0.0
        %5497 = vmatpush1.msra.mxu0 0.0
        %5498 = vmatprep.subr.mxu0 0.0
        %5499 = vmatpush1.msra.mxu0 0.0
        %5500 = vmatprep.subr.mxu0 0.0
        %5501 = vmatpush1.msra.mxu0 0.0
        %5502 = vmatprep.subr.mxu0 0.0
        %5503 = vmatpush1.msra.mxu0 0.0
        %5504 = vmatprep.subr.mxu0 0.0
        %5505 = vmatpush1.msra.mxu0 0.0
        %5506 = vmatprep.subr.mxu0 0.0
        %5507 = vmatpush1.msra.mxu0 0.0
        %5508 = vmatprep.subr.mxu0 0.0
        %5509 = vmatpush1.msra.mxu0 0.0
        %5510 = vmatprep.subr.mxu0 0.0
        %5511 = vmatpush1.msra.mxu0 0.0
        %5512 = vmatprep.subr.mxu0 0.0
        %5513 = vmatpush1.msra.mxu0 0.0
        %5514 = vmatprep.subr.mxu0 0.0
        %5515 = vmatpush1.msra.mxu0 0.0
        %5516 = vmatprep.subr.mxu0 0.0
        %5517 = vmatpush1.msra.mxu0 0.0
        %5518 = vmatprep.subr.mxu0 0.0
        %5519 = vmatpush1.msra.mxu0 0.0
        %5520 = vmatprep.subr.mxu0 0.0
        %5521 = vmatpush1.msra.mxu0 0.0
        %5522 = vmatprep.subr.mxu0 0.0
        %5523 = vmatpush1.msra.mxu0 0.0
        %5524 = vmatprep.subr.mxu0 0.0
        %5525 = vmatpush1.msra.mxu0 0.0
        %5526 = vmatprep.subr.mxu0 0.0
        %5527 = vmatpush1.msra.mxu0 0.0
        %5528 = vmatprep.subr.mxu0 0.0
        %5529 = vmatpush1.msra.mxu0 0.0
        %5530 = vmatprep.subr.mxu0 0.0
        %5531 = vmatpush1.msra.mxu0 0.0
        %5532 = vmatprep.subr.mxu0 0.0
        %5533 = vmatpush1.msra.mxu0 0.0
        %5534 = vmatprep.subr.mxu0 0.0
        %5535 = vmatpush1.msra.mxu0 0.0
        %5536 = vmatprep.mubr.f32.mxu0 0.0
        %5537 = vmatmul.mubr.f32.gmra.mrb[0].mxu0 %v5467
        %v5538 = vpop.f32.mrb[0].mxu0
        %v5539 = vadd.f32 0.0, %v5538
        %v5540 = vpop.f32.mrb[0].mxu0
        %5541 = vmatprep.mubr.f32.mxu0 0.0
        %5542 = vmatmul.mubr.f32.gmra.mrb[0].mxu0 %v5470
        %v5543 = vpop.f32.mrb[0].mxu0
        %v5544 = vadd.f32 0.0, %v5543
        %v5545 = vpop.f32.mrb[0].mxu0
        %5546 = vdwg.mxu0
        %5547 = vrot.lane.b32.xlu0 %v4946, 96
        %v5548 = vpop.permute.xlu0 %5547
        %5549 = vrot.lane.b32.xlu0 %v4948, 96
        %v5550 = vpop.permute.xlu0 %5549
        %v5554 = vsel %vm1814, %v5369, 0
        %v5557 = vsel %vm1814, %v5370, 0
        %5559 = vmatprep.subr.mxu0 0.0
        %5560 = vmatpush1.msra.mxu0 %v5548
        %5561 = vmatprep.subr.mxu0 0.0
        %5562 = vmatpush1.msra.mxu0 %v5550
        %5563 = vmatprep.subr.mxu0 0.0
        %5564 = vmatpush1.msra.mxu0 0.0
        %5565 = vmatprep.subr.mxu0 0.0
        %5566 = vmatpush1.msra.mxu0 0.0
        %5567 = vmatprep.subr.mxu0 0.0
        %5568 = vmatpush1.msra.mxu0 0.0
        %5569 = vmatprep.subr.mxu0 0.0
        %5570 = vmatpush1.msra.mxu0 0.0
        %5571 = vmatprep.subr.mxu0 0.0
        %5572 = vmatpush1.msra.mxu0 0.0
        %5573 = vmatprep.subr.mxu0 0.0
        %5574 = vmatpush1.msra.mxu0 0.0
        %5575 = vmatprep.subr.mxu0 0.0
        %5576 = vmatpush1.msra.mxu0 0.0
        %5577 = vmatprep.subr.mxu0 0.0
        %5578 = vmatpush1.msra.mxu0 0.0
        %5579 = vmatprep.subr.mxu0 0.0
        %5580 = vmatpush1.msra.mxu0 0.0
        %5581 = vmatprep.subr.mxu0 0.0
        %5582 = vmatpush1.msra.mxu0 0.0
        %5583 = vmatprep.subr.mxu0 0.0
        %5584 = vmatpush1.msra.mxu0 0.0
        %5585 = vmatprep.subr.mxu0 0.0
        %5586 = vmatpush1.msra.mxu0 0.0
        %5587 = vmatprep.subr.mxu0 0.0
        %5588 = vmatpush1.msra.mxu0 0.0
        %5589 = vmatprep.subr.mxu0 0.0
        %5590 = vmatpush1.msra.mxu0 0.0
        %5591 = vmatprep.subr.mxu0 0.0
        %5592 = vmatpush1.msra.mxu0 0.0
        %5593 = vmatprep.subr.mxu0 0.0
        %5594 = vmatpush1.msra.mxu0 0.0
        %5595 = vmatprep.subr.mxu0 0.0
        %5596 = vmatpush1.msra.mxu0 0.0
        %5597 = vmatprep.subr.mxu0 0.0
        %5598 = vmatpush1.msra.mxu0 0.0
        %5599 = vmatprep.subr.mxu0 0.0
        %5600 = vmatpush1.msra.mxu0 0.0
        %5601 = vmatprep.subr.mxu0 0.0
        %5602 = vmatpush1.msra.mxu0 0.0
        %5603 = vmatprep.subr.mxu0 0.0
        %5604 = vmatpush1.msra.mxu0 0.0
        %5605 = vmatprep.subr.mxu0 0.0
        %5606 = vmatpush1.msra.mxu0 0.0
        %5607 = vmatprep.subr.mxu0 0.0
        %5608 = vmatpush1.msra.mxu0 0.0
        %5609 = vmatprep.subr.mxu0 0.0
        %5610 = vmatpush1.msra.mxu0 0.0
        %5611 = vmatprep.subr.mxu0 0.0
        %5612 = vmatpush1.msra.mxu0 0.0
        %5613 = vmatprep.subr.mxu0 0.0
        %5614 = vmatpush1.msra.mxu0 0.0
        %5615 = vmatprep.subr.mxu0 0.0
        %5616 = vmatpush1.msra.mxu0 0.0
        %5617 = vmatprep.subr.mxu0 0.0
        %5618 = vmatpush1.msra.mxu0 0.0
        %5619 = vmatprep.subr.mxu0 0.0
        %5620 = vmatpush1.msra.mxu0 0.0
        %5621 = vmatprep.subr.mxu0 0.0
        %5622 = vmatpush1.msra.mxu0 0.0
        %5623 = vmatprep.mubr.f32.mxu0 0.0
        %5624 = vmatmul.mubr.f32.gmra.mrb[0].mxu0 %v5554
        %v5625 = vpop.f32.mrb[0].mxu0
        %v5626 = vadd.f32 0.0, %v5625
        %v5627 = vpop.f32.mrb[0].mxu0
        %5628 = vmatprep.mubr.f32.mxu0 0.0
        %5629 = vmatmul.mubr.f32.gmra.mrb[0].mxu0 %v5557
        %v5630 = vpop.f32.mrb[0].mxu0
        %v5631 = vadd.f32 0.0, %v5630
        %v5632 = vpop.f32.mrb[0].mxu0
        %5633 = vdwg.mxu0
        %5634 = vrot.lane.b32.xlu0 %v4950, 96
        %v5635 = vpop.permute.xlu0 %5634
        %5636 = vrot.lane.b32.xlu0 %v4952, 96
        %v5637 = vpop.permute.xlu0 %5636
        %v5641 = vsel %vm1814, %v5371, 0
        %v5644 = vsel %vm1814, %v5372, 0
        %5646 = vmatprep.subr.mxu0 0.0
        %5647 = vmatpush1.msra.mxu0 %v5635
        %5648 = vmatprep.subr.mxu0 0.0
        %5649 = vmatpush1.msra.mxu0 %v5637
        %5650 = vmatprep.subr.mxu0 0.0
        %5651 = vmatpush1.msra.mxu0 0.0
        %5652 = vmatprep.subr.mxu0 0.0
        %5653 = vmatpush1.msra.mxu0 0.0
        %5654 = vmatprep.subr.mxu0 0.0
        %5655 = vmatpush1.msra.mxu0 0.0
        %5656 = vmatprep.subr.mxu0 0.0
        %5657 = vmatpush1.msra.mxu0 0.0
        %5658 = vmatprep.subr.mxu0 0.0
        %5659 = vmatpush1.msra.mxu0 0.0
        %5660 = vmatprep.subr.mxu0 0.0
        %5661 = vmatpush1.msra.mxu0 0.0
        %5662 = vmatprep.subr.mxu0 0.0
        %5663 = vmatpush1.msra.mxu0 0.0
        %5664 = vmatprep.subr.mxu0 0.0
        %5665 = vmatpush1.msra.mxu0 0.0
        %5666 = vmatprep.subr.mxu0 0.0
        %5667 = vmatpush1.msra.mxu0 0.0
        %5668 = vmatprep.subr.mxu0 0.0
        %5669 = vmatpush1.msra.mxu0 0.0
        %5670 = vmatprep.subr.mxu0 0.0
        %5671 = vmatpush1.msra.mxu0 0.0
        %5672 = vmatprep.subr.mxu0 0.0
        %5673 = vmatpush1.msra.mxu0 0.0
        %5674 = vmatprep.subr.mxu0 0.0
        %5675 = vmatpush1.msra.mxu0 0.0
        %5676 = vmatprep.subr.mxu0 0.0
        %5677 = vmatpush1.msra.mxu0 0.0
        %5678 = vmatprep.subr.mxu0 0.0
        %5679 = vmatpush1.msra.mxu0 0.0
        %5680 = vmatprep.subr.mxu0 0.0
        %5681 = vmatpush1.msra.mxu0 0.0
        %5682 = vmatprep.subr.mxu0 0.0
        %5683 = vmatpush1.msra.mxu0 0.0
        %5684 = vmatprep.subr.mxu0 0.0
        %5685 = vmatpush1.msra.mxu0 0.0
        %5686 = vmatprep.subr.mxu0 0.0
        %5687 = vmatpush1.msra.mxu0 0.0
        %5688 = vmatprep.subr.mxu0 0.0
        %5689 = vmatpush1.msra.mxu0 0.0
        %5690 = vmatprep.subr.mxu0 0.0
        %5691 = vmatpush1.msra.mxu0 0.0
        %5692 = vmatprep.subr.mxu0 0.0
        %5693 = vmatpush1.msra.mxu0 0.0
        %5694 = vmatprep.subr.mxu0 0.0
        %5695 = vmatpush1.msra.mxu0 0.0
        %5696 = vmatprep.subr.mxu0 0.0
        %5697 = vmatpush1.msra.mxu0 0.0
        %5698 = vmatprep.subr.mxu0 0.0
        %5699 = vmatpush1.msra.mxu0 0.0
        %5700 = vmatprep.subr.mxu0 0.0
        %5701 = vmatpush1.msra.mxu0 0.0
        %5702 = vmatprep.subr.mxu0 0.0
        %5703 = vmatpush1.msra.mxu0 0.0
        %5704 = vmatprep.subr.mxu0 0.0
        %5705 = vmatpush1.msra.mxu0 0.0
        %5706 = vmatprep.subr.mxu0 0.0
        %5707 = vmatpush1.msra.mxu0 0.0
        %5708 = vmatprep.subr.mxu0 0.0
        %5709 = vmatpush1.msra.mxu0 0.0
        %5710 = vmatprep.mubr.f32.mxu0 0.0
        %5711 = vmatmul.mubr.f32.gmra.mrb[0].mxu0 %v5641
        %v5712 = vpop.f32.mrb[0].mxu0
        %v5713 = vadd.f32 0.0, %v5712
        %v5714 = vpop.f32.mrb[0].mxu0
        %5715 = vmatprep.mubr.f32.mxu0 0.0
        %5716 = vmatmul.mubr.f32.gmra.mrb[0].mxu0 %v5644
        %v5717 = vpop.f32.mrb[0].mxu0
        %v5718 = vadd.f32 0.0, %v5717
        %v5719 = vpop.f32.mrb[0].mxu0
        %5720 = vdwg.mxu0
        %5723 = vrot.lane.b32.xlu0 %v5539, 8
        %v5724 = vpop.permute.xlu0 %5723
        %5725 = vrot.lane.b32.xlu0 %v5544, 8
        %v5726 = vpop.permute.xlu0 %5725
        %5731 = vrot.lane.b32.xlu0 %v5626, 16
        %v5732 = vpop.permute.xlu0 %5731
        %5733 = vrot.lane.b32.xlu0 %v5631, 16
        %v5734 = vpop.permute.xlu0 %5733
        %5739 = vrot.lane.b32.xlu0 %v5713, 24
        %v5740 = vpop.permute.xlu0 %5739
        %5741 = vrot.lane.b32.xlu0 %v5718, 24
        %v5742 = vpop.permute.xlu0 %5741
        %v5745 = vsel %vm2207, %v5452, %v5724
        %v5746 = vsel %vm2207, %v5457, %v5726
        %v5747 = vsel %vm1814, %v5745, %v5732
        %v5748 = vsel %vm1814, %v5746, %v5734
        %v5749 = vsel %vm3004, %v5747, %v5740
        %v5750 = vsel %vm3004, %v5748, %v5742
        %v5752 = vlaneseq
        %v5753 = vshrl.u32 %v5752, 7
        %v5754 = vsub.s32 0, %v5753
        %v5755 = vrot.slane %v4756, %v5754
        %v5758 = vsel %vm1888, %v5749, 0
        %v5761 = vsel %vm1888, %v5750, 0
        %5763 = vmatprep.subr.mxu0 0.0
        %5764 = vmatpush1.msra.mxu0 %v4752
        %5765 = vmatprep.subr.mxu0 0.0
        %5766 = vmatpush1.msra.mxu0 %v4753
        %5767 = vmatprep.subr.mxu0 0.0
        %5768 = vmatpush1.msra.mxu0 %v4754
        %5769 = vmatprep.subr.mxu0 0.0
        %5770 = vmatpush1.msra.mxu0 %v4755
        %5771 = vmatprep.subr.mxu0 0.0
        %5772 = vmatpush1.msra.mxu0 0.0
        %5773 = vmatprep.subr.mxu0 0.0
        %5774 = vmatpush1.msra.mxu0 0.0
        %5775 = vmatprep.subr.mxu0 0.0
        %5776 = vmatpush1.msra.mxu0 0.0
        %5777 = vmatprep.subr.mxu0 0.0
        %5778 = vmatpush1.msra.mxu0 0.0
        %5779 = vmatprep.subr.mxu0 0.0
        %5780 = vmatpush1.msra.mxu0 0.0
        %5781 = vmatprep.subr.mxu0 0.0
        %5782 = vmatpush1.msra.mxu0 0.0
        %5783 = vmatprep.subr.mxu0 0.0
        %5784 = vmatpush1.msra.mxu0 0.0
        %5785 = vmatprep.subr.mxu0 0.0
        %5786 = vmatpush1.msra.mxu0 0.0
        %5787 = vmatprep.subr.mxu0 0.0
        %5788 = vmatpush1.msra.mxu0 0.0
        %5789 = vmatprep.subr.mxu0 0.0
        %5790 = vmatpush1.msra.mxu0 0.0
        %5791 = vmatprep.subr.mxu0 0.0
        %5792 = vmatpush1.msra.mxu0 0.0
        %5793 = vmatprep.subr.mxu0 0.0
        %5794 = vmatpush1.msra.mxu0 0.0
        %5795 = vmatprep.subr.mxu0 0.0
        %5796 = vmatpush1.msra.mxu0 0.0
        %5797 = vmatprep.subr.mxu0 0.0
        %5798 = vmatpush1.msra.mxu0 0.0
        %5799 = vmatprep.subr.mxu0 0.0
        %5800 = vmatpush1.msra.mxu0 0.0
        %5801 = vmatprep.subr.mxu0 0.0
        %5802 = vmatpush1.msra.mxu0 0.0
        %5803 = vmatprep.subr.mxu0 0.0
        %5804 = vmatpush1.msra.mxu0 0.0
        %5805 = vmatprep.subr.mxu0 0.0
        %5806 = vmatpush1.msra.mxu0 0.0
        %5807 = vmatprep.subr.mxu0 0.0
        %5808 = vmatpush1.msra.mxu0 0.0
        %5809 = vmatprep.subr.mxu0 0.0
        %5810 = vmatpush1.msra.mxu0 0.0
        %5811 = vmatprep.subr.mxu0 0.0
        %5812 = vmatpush1.msra.mxu0 0.0
        %5813 = vmatprep.subr.mxu0 0.0
        %5814 = vmatpush1.msra.mxu0 0.0
        %5815 = vmatprep.subr.mxu0 0.0
        %5816 = vmatpush1.msra.mxu0 0.0
        %5817 = vmatprep.subr.mxu0 0.0
        %5818 = vmatpush1.msra.mxu0 0.0
        %5819 = vmatprep.subr.mxu0 0.0
        %5820 = vmatpush1.msra.mxu0 0.0
        %5821 = vmatprep.subr.mxu0 0.0
        %5822 = vmatpush1.msra.mxu0 0.0
        %5823 = vmatprep.subr.mxu0 0.0
        %5824 = vmatpush1.msra.mxu0 0.0
        %5825 = vmatprep.subr.mxu0 0.0
        %5826 = vmatpush1.msra.mxu0 0.0
        %5827 = vmatprep.mubr.f32.mxu0 0.0
        %5828 = vmatmul.mubr.f32.gmra.mrb[0].mxu0 %v5758
        %v5829 = vpop.f32.mrb[0].mxu0
        %v5830 = vadd.f32 %v5755, %v5829
        %v5831 = vpop.f32.mrb[0].mxu0
        %5832 = vmatprep.mubr.f32.mxu0 0.0
        %5833 = vmatmul.mubr.f32.gmra.mrb[0].mxu0 %v5761
        %v5834 = vpop.f32.mrb[0].mxu0
        %v5835 = vadd.f32 %v5755, %v5834
        %v5836 = vpop.f32.mrb[0].mxu0
        %5837 = vdwg.mxu0
        %v5838 = vld [vmem:[#allocation6] sm:$0x1]
        %v5839 = vld [vmem:[#allocation8] sm:$0x1]
        %v5840 = vadd.f32 %v4740, %v5830
        %v5841 = vadd.f32 %v4741, %v5835
        %v5842 = vsel %vm1888, %v5840, 0.0
        %5843 = vadd.xlane.f32.xlu0 %v5842
        %v5844 = vpop.xlane.xlu0 %5843
        %v5845 = vsel %vm1888, %v5841, 0.0
        %5846 = vadd.xlane.f32.xlu0 %v5845
        %v5847 = vpop.xlane.xlu0 %5846
        %v5848 = vmul.f32 %v5844, %v3104
        %v5849 = vmul.f32 %v5847, %v3104
        %v5850 = vsub.f32 %v5840, %v5848
        %v5851 = vsub.f32 %v5841, %v5849
        %v5852 = vmul.f32 %v5850, %v5850
        %v5853 = vmul.f32 %v5851, %v5851
        %v5854 = vsel %vm1888, %v5852, 0.0
        %5855 = vadd.xlane.f32.xlu0 %v5854
        %v5856 = vpop.xlane.xlu0 %5855
        %v5857 = vsel %vm1888, %v5853, 0.0
        %5858 = vadd.xlane.f32.xlu0 %v5857
        %v5859 = vpop.xlane.xlu0 %5858
        %v5860 = vmul.f32 %v5856, %v3104
        %v5861 = vmul.f32 %v5859, %v3104
        %v5862 = vadd.f32 %v5860, 1e-05
        %v5863 = vadd.f32 %v5861, 1e-05
        %v5864 = vrsqrt.pop %v5862
        %v5865 = vrsqrt.pop %v5863
        %v5866 = vmul.f32 %v5850, %v5864
        %v5867 = vmul.f32 %v5851, %v5865
        %v5869 = vlaneseq
        %v5870 = vshrl.u32 %v5869, 7
        %v5871 = vsub.s32 0, %v5870
        %v5872 = vrot.slane %v5838, %v5871
        %v5874 = vmul.f32 %v5866, %v5872
        %v5875 = vmul.f32 %v5867, %v5872
        %v5877 = vlaneseq
        %v5878 = vshrl.u32 %v5877, 7
        %v5879 = vsub.s32 0, %v5878
        %v5880 = vrot.slane %v5839, %v5879
        %v5882 = vadd.f32 %v5874, %v5880
        %v5883 = vadd.f32 %v5875, %v5880
        %v5884 = vld [vmem:[%s75] sm:$0xff]
        %v5885 = vld [vmem:[%s75 + $0x8] sm:$0xff]
        %v5886 = vld [vmem:[%s75 + $0x10] sm:$0xff]
        %v5887 = vld [vmem:[%s75 + $0x18] sm:$0xff]
        %v5888 = vld [vmem:[#allocation9] sm:$0x1]
        %v5889 = vld [vmem:[%s79] sm:$0xff]
        %v5890 = vld [vmem:[%s79 + $0x8] sm:$0xff]
        %v5891 = vld [vmem:[%s79 + $0x10] sm:$0xff]
        %v5892 = vld [vmem:[%s79 + $0x18] sm:$0xff]
        %v5893 = vld [vmem:[#allocation11] sm:$0x1]
        %v5894 = vld [vmem:[%s83] sm:$0xff]
        %v5895 = vld [vmem:[%s83 + $0x8] sm:$0xff]
        %v5896 = vld [vmem:[%s83 + $0x10] sm:$0xff]
        %v5897 = vld [vmem:[%s83 + $0x18] sm:$0xff]
        %v5898 = vld [vmem:[#allocation12] sm:$0x1]
        %v5900 = vlaneseq
        %v5901 = vshrl.u32 %v5900, 7
        %v5902 = vsub.s32 0, %v5901
        %v5903 = vrot.slane %v5888, %v5902
        %v5906 = vsel %vm1888, %v5882, 0
        %v5909 = vsel %vm1888, %v5883, 0
        %5911 = vmatprep.subr.mxu0 0.0
        %5912 = vmatpush1.msra.mxu0 %v5884
        %5913 = vmatprep.subr.mxu0 0.0
        %5914 = vmatpush1.msra.mxu0 %v5885
        %5915 = vmatprep.subr.mxu0 0.0
        %5916 = vmatpush1.msra.mxu0 %v5886
        %5917 = vmatprep.subr.mxu0 0.0
        %5918 = vmatpush1.msra.mxu0 %v5887
        %5919 = vmatprep.subr.mxu0 0.0
        %5920 = vmatpush1.msra.mxu0 0.0
        %5921 = vmatprep.subr.mxu0 0.0
        %5922 = vmatpush1.msra.mxu0 0.0
        %5923 = vmatprep.subr.mxu0 0.0
        %5924 = vmatpush1.msra.mxu0 0.0
        %5925 = vmatprep.subr.mxu0 0.0
        %5926 = vmatpush1.msra.mxu0 0.0
        %5927 = vmatprep.subr.mxu0 0.0
        %5928 = vmatpush1.msra.mxu0 0.0
        %5929 = vmatprep.subr.mxu0 0.0
        %5930 = vmatpush1.msra.mxu0 0.0
        %5931 = vmatprep.subr.mxu0 0.0
        %5932 = vmatpush1.msra.mxu0 0.0
        %5933 = vmatprep.subr.mxu0 0.0
        %5934 = vmatpush1.msra.mxu0 0.0
        %5935 = vmatprep.subr.mxu0 0.0
        %5936 = vmatpush1.msra.mxu0 0.0
        %5937 = vmatprep.subr.mxu0 0.0
        %5938 = vmatpush1.msra.mxu0 0.0
        %5939 = vmatprep.subr.mxu0 0.0
        %5940 = vmatpush1.msra.mxu0 0.0
        %5941 = vmatprep.subr.mxu0 0.0
        %5942 = vmatpush1.msra.mxu0 0.0
        %5943 = vmatprep.subr.mxu0 0.0
        %5944 = vmatpush1.msra.mxu0 0.0
        %5945 = vmatprep.subr.mxu0 0.0
        %5946 = vmatpush1.msra.mxu0 0.0
        %5947 = vmatprep.subr.mxu0 0.0
        %5948 = vmatpush1.msra.mxu0 0.0
        %5949 = vmatprep.subr.mxu0 0.0
        %5950 = vmatpush1.msra.mxu0 0.0
        %5951 = vmatprep.subr.mxu0 0.0
        %5952 = vmatpush1.msra.mxu0 0.0
        %5953 = vmatprep.subr.mxu0 0.0
        %5954 = vmatpush1.msra.mxu0 0.0
        %5955 = vmatprep.subr.mxu0 0.0
        %5956 = vmatpush1.msra.mxu0 0.0
        %5957 = vmatprep.subr.mxu0 0.0
        %5958 = vmatpush1.msra.mxu0 0.0
        %5959 = vmatprep.subr.mxu0 0.0
        %5960 = vmatpush1.msra.mxu0 0.0
        %5961 = vmatprep.subr.mxu0 0.0
        %5962 = vmatpush1.msra.mxu0 0.0
        %5963 = vmatprep.subr.mxu0 0.0
        %5964 = vmatpush1.msra.mxu0 0.0
        %5965 = vmatprep.subr.mxu0 0.0
        %5966 = vmatpush1.msra.mxu0 0.0
        %5967 = vmatprep.subr.mxu0 0.0
        %5968 = vmatpush1.msra.mxu0 0.0
        %5969 = vmatprep.subr.mxu0 0.0
        %5970 = vmatpush1.msra.mxu0 0.0
        %5971 = vmatprep.subr.mxu0 0.0
        %5972 = vmatpush1.msra.mxu0 0.0
        %5973 = vmatprep.subr.mxu0 0.0
        %5974 = vmatpush1.msra.mxu0 0.0
        %5975 = vmatprep.mubr.f32.mxu0 0.0
        %5976 = vmatmul.mubr.f32.gmra.mrb[0].mxu0 %v5906
        %v5977 = vpop.f32.mrb[0].mxu0
        %v5978 = vadd.f32 %v5903, %v5977
        %v5979 = vpop.f32.mrb[0].mxu0
        %5980 = vmatprep.mubr.f32.mxu0 0.0
        %5981 = vmatmul.mubr.f32.gmra.mrb[0].mxu0 %v5909
        %v5982 = vpop.f32.mrb[0].mxu0
        %v5983 = vadd.f32 %v5903, %v5982
        %v5984 = vpop.f32.mrb[0].mxu0
        %5985 = vdwg.mxu0
        %v5987 = vlaneseq
        %v5988 = vshrl.u32 %v5987, 7
        %v5989 = vsub.s32 0, %v5988
        %v5990 = vrot.slane %v5893, %v5989
        %5992 = vmatprep.subr.mxu0 0.0
        %5993 = vmatpush1.msra.mxu0 %v5889
        %5994 = vmatprep.subr.mxu0 0.0
        %5995 = vmatpush1.msra.mxu0 %v5890
        %5996 = vmatprep.subr.mxu0 0.0
        %5997 = vmatpush1.msra.mxu0 %v5891
        %5998 = vmatprep.subr.mxu0 0.0
        %5999 = vmatpush1.msra.mxu0 %v5892
        %6000 = vmatprep.subr.mxu0 0.0
        %6001 = vmatpush1.msra.mxu0 0.0
        %6002 = vmatprep.subr.mxu0 0.0
        %6003 = vmatpush1.msra.mxu0 0.0
        %6004 = vmatprep.subr.mxu0 0.0
        %6005 = vmatpush1.msra.mxu0 0.0
        %6006 = vmatprep.subr.mxu0 0.0
        %6007 = vmatpush1.msra.mxu0 0.0
        %6008 = vmatprep.subr.mxu0 0.0
        %6009 = vmatpush1.msra.mxu0 0.0
        %6010 = vmatprep.subr.mxu0 0.0
        %6011 = vmatpush1.msra.mxu0 0.0
        %6012 = vmatprep.subr.mxu0 0.0
        %6013 = vmatpush1.msra.mxu0 0.0
        %6014 = vmatprep.subr.mxu0 0.0
        %6015 = vmatpush1.msra.mxu0 0.0
        %6016 = vmatprep.subr.mxu0 0.0
        %6017 = vmatpush1.msra.mxu0 0.0
        %6018 = vmatprep.subr.mxu0 0.0
        %6019 = vmatpush1.msra.mxu0 0.0
        %6020 = vmatprep.subr.mxu0 0.0
        %6021 = vmatpush1.msra.mxu0 0.0
        %6022 = vmatprep.subr.mxu0 0.0
        %6023 = vmatpush1.msra.mxu0 0.0
        %6024 = vmatprep.subr.mxu0 0.0
        %6025 = vmatpush1.msra.mxu0 0.0
        %6026 = vmatprep.subr.mxu0 0.0
        %6027 = vmatpush1.msra.mxu0 0.0
        %6028 = vmatprep.subr.mxu0 0.0
        %6029 = vmatpush1.msra.mxu0 0.0
        %6030 = vmatprep.subr.mxu0 0.0
        %6031 = vmatpush1.msra.mxu0 0.0
        %6032 = vmatprep.subr.mxu0 0.0
        %6033 = vmatpush1.msra.mxu0 0.0
        %6034 = vmatprep.subr.mxu0 0.0
        %6035 = vmatpush1.msra.mxu0 0.0
        %6036 = vmatprep.subr.mxu0 0.0
        %6037 = vmatpush1.msra.mxu0 0.0
        %6038 = vmatprep.subr.mxu0 0.0
        %6039 = vmatpush1.msra.mxu0 0.0
        %6040 = vmatprep.subr.mxu0 0.0
        %6041 = vmatpush1.msra.mxu0 0.0
        %6042 = vmatprep.subr.mxu0 0.0
        %6043 = vmatpush1.msra.mxu0 0.0
        %6044 = vmatprep.subr.mxu0 0.0
        %6045 = vmatpush1.msra.mxu0 0.0
        %6046 = vmatprep.subr.mxu0 0.0
        %6047 = vmatpush1.msra.mxu0 0.0
        %6048 = vmatprep.subr.mxu0 0.0
        %6049 = vmatpush1.msra.mxu0 0.0
        %6050 = vmatprep.subr.mxu0 0.0
        %6051 = vmatpush1.msra.mxu0 0.0
        %6052 = vmatprep.subr.mxu0 0.0
        %6053 = vmatpush1.msra.mxu0 0.0
        %6054 = vmatprep.subr.mxu0 0.0
        %6055 = vmatpush1.msra.mxu0 0.0
        %6056 = vmatprep.mubr.f32.mxu0 0.0
        %6057 = vmatmul.mubr.f32.gmra.mrb[0].mxu0 %v3250
        %v6058 = vpop.f32.mrb[0].mxu0
        %v6059 = vadd.f32 %v5990, %v6058
        %v6060 = vpop.f32.mrb[0].mxu0
        %6061 = vdwg.mxu0
        %6064 = vrot.lane.b32.xlu0 %v5978, 120
        %v6065 = vpop.permute.xlu0 %6064
        %6066 = vrot.lane.b32.xlu0 %v5983, 120
        %v6067 = vpop.permute.xlu0 %6066
        %6068 = vrot.lane.b32.xlu0 %v5978, 112
        %v6069 = vpop.permute.xlu0 %6068
        %6070 = vrot.lane.b32.xlu0 %v5983, 112
        %v6071 = vpop.permute.xlu0 %6070
        %6072 = vrot.lane.b32.xlu0 %v5978, 104
        %v6073 = vpop.permute.xlu0 %6072
        %6074 = vrot.lane.b32.xlu0 %v5983, 104
        %v6075 = vpop.permute.xlu0 %6074
        %6077 = vrot.lane.b32.xlu0 %v6059, 120
        %v6078 = vpop.permute.xlu0 %6077
        %6079 = vrot.lane.b32.xlu0 %v6059, 112
        %v6080 = vpop.permute.xlu0 %6079
        %6081 = vrot.lane.b32.xlu0 %v6059, 104
        %v6082 = vpop.permute.xlu0 %6081
        %v6083 = vsel %vm2207, %v5978, 0
        %v6085 = vsel %vm2207, %v5983, 0
        %v6087 = vsel %vm2207, %v6059, 0
        %6089 = vmatprep.subr.mxu0 0.0
        %6090 = vmatpush1.xpose.msra.mxu0 %v6087
        %6091 = vmatprep.subr.mxu0 0.0
        %6092 = vmatpush1.xpose.msra.mxu0 0.0
        %6093 = vmatprep.subr.mxu0 0.0
        %6094 = vmatpush1.xpose.msra.mxu0 0.0
        %6095 = vmatprep.subr.mxu0 0.0
        %6096 = vmatpush1.xpose.msra.mxu0 0.0
        %6097 = vmatprep.subr.mxu0 0.0
        %6098 = vmatpush1.xpose.msra.mxu0 0.0
        %6099 = vmatprep.subr.mxu0 0.0
        %6100 = vmatpush1.xpose.msra.mxu0 0.0
        %6101 = vmatprep.subr.mxu0 0.0
        %6102 = vmatpush1.xpose.msra.mxu0 0.0
        %6103 = vmatprep.subr.mxu0 0.0
        %6104 = vmatpush1.xpose.msra.mxu0 0.0
        %6105 = vmatprep.subr.mxu0 0.0
        %6106 = vmatpush1.xpose.msra.mxu0 0.0
        %6107 = vmatprep.subr.mxu0 0.0
        %6108 = vmatpush1.xpose.msra.mxu0 0.0
        %6109 = vmatprep.subr.mxu0 0.0
        %6110 = vmatpush1.xpose.msra.mxu0 0.0
        %6111 = vmatprep.subr.mxu0 0.0
        %6112 = vmatpush1.xpose.msra.mxu0 0.0
        %6113 = vmatprep.subr.mxu0 0.0
        %6114 = vmatpush1.xpose.msra.mxu0 0.0
        %6115 = vmatprep.subr.mxu0 0.0
        %6116 = vmatpush1.xpose.msra.mxu0 0.0
        %6117 = vmatprep.subr.mxu0 0.0
        %6118 = vmatpush1.xpose.msra.mxu0 0.0
        %6119 = vmatprep.subr.mxu0 0.0
        %6120 = vmatpush1.xpose.msra.mxu0 0.0
        %6121 = vmatprep.subr.mxu0 0.0
        %6122 = vmatpush1.xpose.msra.mxu0 0.0
        %6123 = vmatprep.subr.mxu0 0.0
        %6124 = vmatpush1.xpose.msra.mxu0 0.0
        %6125 = vmatprep.subr.mxu0 0.0
        %6126 = vmatpush1.xpose.msra.mxu0 0.0
        %6127 = vmatprep.subr.mxu0 0.0
        %6128 = vmatpush1.xpose.msra.mxu0 0.0
        %6129 = vmatprep.subr.mxu0 0.0
        %6130 = vmatpush1.xpose.msra.mxu0 0.0
        %6131 = vmatprep.subr.mxu0 0.0
        %6132 = vmatpush1.xpose.msra.mxu0 0.0
        %6133 = vmatprep.subr.mxu0 0.0
        %6134 = vmatpush1.xpose.msra.mxu0 0.0
        %6135 = vmatprep.subr.mxu0 0.0
        %6136 = vmatpush1.xpose.msra.mxu0 0.0
        %6137 = vmatprep.subr.mxu0 0.0
        %6138 = vmatpush1.xpose.msra.mxu0 0.0
        %6139 = vmatprep.subr.mxu0 0.0
        %6140 = vmatpush1.xpose.msra.mxu0 0.0
        %6141 = vmatprep.subr.mxu0 0.0
        %6142 = vmatpush1.xpose.msra.mxu0 0.0
        %6143 = vmatprep.subr.mxu0 0.0
        %6144 = vmatpush1.xpose.msra.mxu0 0.0
        %6145 = vmatprep.subr.mxu0 0.0
        %6146 = vmatpush1.xpose.msra.mxu0 0.0
        %6147 = vmatprep.subr.mxu0 0.0
        %6148 = vmatpush1.xpose.msra.mxu0 0.0
        %6149 = vmatprep.subr.mxu0 0.0
        %6150 = vmatpush1.xpose.msra.mxu0 0.0
        %6151 = vmatprep.subr.mxu0 0.0
        %6152 = vmatpush1.xpose.msra.mxu0 0.0
        %6153 = vmatprep.mubr.f32.mxu0 0.0
        %6154 = vmatmul.mubr.f32.gmra.mrb[0].mxu0 %v6083
        %v6155 = vpop.f32.mrb[0].mxu0
        %v6156 = vadd.f32 0.0, %v6155
        %v6157 = vpop.f32.mrb[0].mxu0
        %6158 = vmatprep.mubr.f32.mxu0 0.0
        %6159 = vmatmul.mubr.f32.gmra.mrb[0].mxu0 %v6085
        %v6160 = vpop.f32.mrb[0].mxu0
        %v6161 = vadd.f32 0.0, %v6160
        %v6162 = vpop.f32.mrb[0].mxu0
        %6163 = vdwg.mxu0
        %v6164 = vsel %vm2207, %v6065, 0
        %v6166 = vsel %vm2207, %v6067, 0
        %v6168 = vsel %vm2207, %v6078, 0
        %6170 = vmatprep.subr.mxu0 0.0
        %6171 = vmatpush1.xpose.msra.mxu0 %v6168
        %6172 = vmatprep.subr.mxu0 0.0
        %6173 = vmatpush1.xpose.msra.mxu0 0.0
        %6174 = vmatprep.subr.mxu0 0.0
        %6175 = vmatpush1.xpose.msra.mxu0 0.0
        %6176 = vmatprep.subr.mxu0 0.0
        %6177 = vmatpush1.xpose.msra.mxu0 0.0
        %6178 = vmatprep.subr.mxu0 0.0
        %6179 = vmatpush1.xpose.msra.mxu0 0.0
        %6180 = vmatprep.subr.mxu0 0.0
        %6181 = vmatpush1.xpose.msra.mxu0 0.0
        %6182 = vmatprep.subr.mxu0 0.0
        %6183 = vmatpush1.xpose.msra.mxu0 0.0
        %6184 = vmatprep.subr.mxu0 0.0
        %6185 = vmatpush1.xpose.msra.mxu0 0.0
        %6186 = vmatprep.subr.mxu0 0.0
        %6187 = vmatpush1.xpose.msra.mxu0 0.0
        %6188 = vmatprep.subr.mxu0 0.0
        %6189 = vmatpush1.xpose.msra.mxu0 0.0
        %6190 = vmatprep.subr.mxu0 0.0
        %6191 = vmatpush1.xpose.msra.mxu0 0.0
        %6192 = vmatprep.subr.mxu0 0.0
        %6193 = vmatpush1.xpose.msra.mxu0 0.0
        %6194 = vmatprep.subr.mxu0 0.0
        %6195 = vmatpush1.xpose.msra.mxu0 0.0
        %6196 = vmatprep.subr.mxu0 0.0
        %6197 = vmatpush1.xpose.msra.mxu0 0.0
        %6198 = vmatprep.subr.mxu0 0.0
        %6199 = vmatpush1.xpose.msra.mxu0 0.0
        %6200 = vmatprep.subr.mxu0 0.0
        %6201 = vmatpush1.xpose.msra.mxu0 0.0
        %6202 = vmatprep.subr.mxu0 0.0
        %6203 = vmatpush1.xpose.msra.mxu0 0.0
        %6204 = vmatprep.subr.mxu0 0.0
        %6205 = vmatpush1.xpose.msra.mxu0 0.0
        %6206 = vmatprep.subr.mxu0 0.0
        %6207 = vmatpush1.xpose.msra.mxu0 0.0
        %6208 = vmatprep.subr.mxu0 0.0
        %6209 = vmatpush1.xpose.msra.mxu0 0.0
        %6210 = vmatprep.subr.mxu0 0.0
        %6211 = vmatpush1.xpose.msra.mxu0 0.0
        %6212 = vmatprep.subr.mxu0 0.0
        %6213 = vmatpush1.xpose.msra.mxu0 0.0
        %6214 = vmatprep.subr.mxu0 0.0
        %6215 = vmatpush1.xpose.msra.mxu0 0.0
        %6216 = vmatprep.subr.mxu0 0.0
        %6217 = vmatpush1.xpose.msra.mxu0 0.0
        %6218 = vmatprep.subr.mxu0 0.0
        %6219 = vmatpush1.xpose.msra.mxu0 0.0
        %6220 = vmatprep.subr.mxu0 0.0
        %6221 = vmatpush1.xpose.msra.mxu0 0.0
        %6222 = vmatprep.subr.mxu0 0.0
        %6223 = vmatpush1.xpose.msra.mxu0 0.0
        %6224 = vmatprep.subr.mxu0 0.0
        %6225 = vmatpush1.xpose.msra.mxu0 0.0
        %6226 = vmatprep.subr.mxu0 0.0
        %6227 = vmatpush1.xpose.msra.mxu0 0.0
        %6228 = vmatprep.subr.mxu0 0.0
        %6229 = vmatpush1.xpose.msra.mxu0 0.0
        %6230 = vmatprep.subr.mxu0 0.0
        %6231 = vmatpush1.xpose.msra.mxu0 0.0
        %6232 = vmatprep.subr.mxu0 0.0
        %6233 = vmatpush1.xpose.msra.mxu0 0.0
        %6234 = vmatprep.mubr.f32.mxu0 0.0
        %6235 = vmatmul.mubr.f32.gmra.mrb[0].mxu0 %v6164
        %v6236 = vpop.f32.mrb[0].mxu0
        %v6237 = vadd.f32 0.0, %v6236
        %v6238 = vpop.f32.mrb[0].mxu0
        %6239 = vmatprep.mubr.f32.mxu0 0.0
        %6240 = vmatmul.mubr.f32.gmra.mrb[0].mxu0 %v6166
        %v6241 = vpop.f32.mrb[0].mxu0
        %v6242 = vadd.f32 0.0, %v6241
        %v6243 = vpop.f32.mrb[0].mxu0
        %6244 = vdwg.mxu0
        %v6245 = vsel %vm2207, %v6069, 0
        %v6247 = vsel %vm2207, %v6071, 0
        %v6249 = vsel %vm2207, %v6080, 0
        %6251 = vmatprep.subr.mxu0 0.0
        %6252 = vmatpush1.xpose.msra.mxu0 %v6249
        %6253 = vmatprep.subr.mxu0 0.0
        %6254 = vmatpush1.xpose.msra.mxu0 0.0
        %6255 = vmatprep.subr.mxu0 0.0
        %6256 = vmatpush1.xpose.msra.mxu0 0.0
        %6257 = vmatprep.subr.mxu0 0.0
        %6258 = vmatpush1.xpose.msra.mxu0 0.0
        %6259 = vmatprep.subr.mxu0 0.0
        %6260 = vmatpush1.xpose.msra.mxu0 0.0
        %6261 = vmatprep.subr.mxu0 0.0
        %6262 = vmatpush1.xpose.msra.mxu0 0.0
        %6263 = vmatprep.subr.mxu0 0.0
        %6264 = vmatpush1.xpose.msra.mxu0 0.0
        %6265 = vmatprep.subr.mxu0 0.0
        %6266 = vmatpush1.xpose.msra.mxu0 0.0
        %6267 = vmatprep.subr.mxu0 0.0
        %6268 = vmatpush1.xpose.msra.mxu0 0.0
        %6269 = vmatprep.subr.mxu0 0.0
        %6270 = vmatpush1.xpose.msra.mxu0 0.0
        %6271 = vmatprep.subr.mxu0 0.0
        %6272 = vmatpush1.xpose.msra.mxu0 0.0
        %6273 = vmatprep.subr.mxu0 0.0
        %6274 = vmatpush1.xpose.msra.mxu0 0.0
        %6275 = vmatprep.subr.mxu0 0.0
        %6276 = vmatpush1.xpose.msra.mxu0 0.0
        %6277 = vmatprep.subr.mxu0 0.0
        %6278 = vmatpush1.xpose.msra.mxu0 0.0
        %6279 = vmatprep.subr.mxu0 0.0
        %6280 = vmatpush1.xpose.msra.mxu0 0.0
        %6281 = vmatprep.subr.mxu0 0.0
        %6282 = vmatpush1.xpose.msra.mxu0 0.0
        %6283 = vmatprep.subr.mxu0 0.0
        %6284 = vmatpush1.xpose.msra.mxu0 0.0
        %6285 = vmatprep.subr.mxu0 0.0
        %6286 = vmatpush1.xpose.msra.mxu0 0.0
        %6287 = vmatprep.subr.mxu0 0.0
        %6288 = vmatpush1.xpose.msra.mxu0 0.0
        %6289 = vmatprep.subr.mxu0 0.0
        %6290 = vmatpush1.xpose.msra.mxu0 0.0
        %6291 = vmatprep.subr.mxu0 0.0
        %6292 = vmatpush1.xpose.msra.mxu0 0.0
        %6293 = vmatprep.subr.mxu0 0.0
        %6294 = vmatpush1.xpose.msra.mxu0 0.0
        %6295 = vmatprep.subr.mxu0 0.0
        %6296 = vmatpush1.xpose.msra.mxu0 0.0
        %6297 = vmatprep.subr.mxu0 0.0
        %6298 = vmatpush1.xpose.msra.mxu0 0.0
        %6299 = vmatprep.subr.mxu0 0.0
        %6300 = vmatpush1.xpose.msra.mxu0 0.0
        %6301 = vmatprep.subr.mxu0 0.0
        %6302 = vmatpush1.xpose.msra.mxu0 0.0
        %6303 = vmatprep.subr.mxu0 0.0
        %6304 = vmatpush1.xpose.msra.mxu0 0.0
        %6305 = vmatprep.subr.mxu0 0.0
        %6306 = vmatpush1.xpose.msra.mxu0 0.0
        %6307 = vmatprep.subr.mxu0 0.0
        %6308 = vmatpush1.xpose.msra.mxu0 0.0
        %6309 = vmatprep.subr.mxu0 0.0
        %6310 = vmatpush1.xpose.msra.mxu0 0.0
        %6311 = vmatprep.subr.mxu0 0.0
        %6312 = vmatpush1.xpose.msra.mxu0 0.0
        %6313 = vmatprep.subr.mxu0 0.0
        %6314 = vmatpush1.xpose.msra.mxu0 0.0
        %6315 = vmatprep.mubr.f32.mxu0 0.0
        %6316 = vmatmul.mubr.f32.gmra.mrb[0].mxu0 %v6245
        %v6317 = vpop.f32.mrb[0].mxu0
        %v6318 = vadd.f32 0.0, %v6317
        %v6319 = vpop.f32.mrb[0].mxu0
        %6320 = vmatprep.mubr.f32.mxu0 0.0
        %6321 = vmatmul.mubr.f32.gmra.mrb[0].mxu0 %v6247
        %v6322 = vpop.f32.mrb[0].mxu0
        %v6323 = vadd.f32 0.0, %v6322
        %v6324 = vpop.f32.mrb[0].mxu0
        %6325 = vdwg.mxu0
        %v6326 = vsel %vm2207, %v6073, 0
        %v6328 = vsel %vm2207, %v6075, 0
        %v6330 = vsel %vm2207, %v6082, 0
        %6332 = vmatprep.subr.mxu0 0.0
        %6333 = vmatpush1.xpose.msra.mxu0 %v6330
        %6334 = vmatprep.subr.mxu0 0.0
        %6335 = vmatpush1.xpose.msra.mxu0 0.0
        %6336 = vmatprep.subr.mxu0 0.0
        %6337 = vmatpush1.xpose.msra.mxu0 0.0
        %6338 = vmatprep.subr.mxu0 0.0
        %6339 = vmatpush1.xpose.msra.mxu0 0.0
        %6340 = vmatprep.subr.mxu0 0.0
        %6341 = vmatpush1.xpose.msra.mxu0 0.0
        %6342 = vmatprep.subr.mxu0 0.0
        %6343 = vmatpush1.xpose.msra.mxu0 0.0
        %6344 = vmatprep.subr.mxu0 0.0
        %6345 = vmatpush1.xpose.msra.mxu0 0.0
        %6346 = vmatprep.subr.mxu0 0.0
        %6347 = vmatpush1.xpose.msra.mxu0 0.0
        %6348 = vmatprep.subr.mxu0 0.0
        %6349 = vmatpush1.xpose.msra.mxu0 0.0
        %6350 = vmatprep.subr.mxu0 0.0
        %6351 = vmatpush1.xpose.msra.mxu0 0.0
        %6352 = vmatprep.subr.mxu0 0.0
        %6353 = vmatpush1.xpose.msra.mxu0 0.0
        %6354 = vmatprep.subr.mxu0 0.0
        %6355 = vmatpush1.xpose.msra.mxu0 0.0
        %6356 = vmatprep.subr.mxu0 0.0
        %6357 = vmatpush1.xpose.msra.mxu0 0.0
        %6358 = vmatprep.subr.mxu0 0.0
        %6359 = vmatpush1.xpose.msra.mxu0 0.0
        %6360 = vmatprep.subr.mxu0 0.0
        %6361 = vmatpush1.xpose.msra.mxu0 0.0
        %6362 = vmatprep.subr.mxu0 0.0
        %6363 = vmatpush1.xpose.msra.mxu0 0.0
        %6364 = vmatprep.subr.mxu0 0.0
        %6365 = vmatpush1.xpose.msra.mxu0 0.0
        %6366 = vmatprep.subr.mxu0 0.0
        %6367 = vmatpush1.xpose.msra.mxu0 0.0
        %6368 = vmatprep.subr.mxu0 0.0
        %6369 = vmatpush1.xpose.msra.mxu0 0.0
        %6370 = vmatprep.subr.mxu0 0.0
        %6371 = vmatpush1.xpose.msra.mxu0 0.0
        %6372 = vmatprep.subr.mxu0 0.0
        %6373 = vmatpush1.xpose.msra.mxu0 0.0
        %6374 = vmatprep.subr.mxu0 0.0
        %6375 = vmatpush1.xpose.msra.mxu0 0.0
        %6376 = vmatprep.subr.mxu0 0.0
        %6377 = vmatpush1.xpose.msra.mxu0 0.0
        %6378 = vmatprep.subr.mxu0 0.0
        %6379 = vmatpush1.xpose.msra.mxu0 0.0
        %6380 = vmatprep.subr.mxu0 0.0
        %6381 = vmatpush1.xpose.msra.mxu0 0.0
        %6382 = vmatprep.subr.mxu0 0.0
        %6383 = vmatpush1.xpose.msra.mxu0 0.0
        %6384 = vmatprep.subr.mxu0 0.0
        %6385 = vmatpush1.xpose.msra.mxu0 0.0
        %6386 = vmatprep.subr.mxu0 0.0
        %6387 = vmatpush1.xpose.msra.mxu0 0.0
        %6388 = vmatprep.subr.mxu0 0.0
        %6389 = vmatpush1.xpose.msra.mxu0 0.0
        %6390 = vmatprep.subr.mxu0 0.0
        %6391 = vmatpush1.xpose.msra.mxu0 0.0
        %6392 = vmatprep.subr.mxu0 0.0
        %6393 = vmatpush1.xpose.msra.mxu0 0.0
        %6394 = vmatprep.subr.mxu0 0.0
        %6395 = vmatpush1.xpose.msra.mxu0 0.0
        %6396 = vmatprep.mubr.f32.mxu0 0.0
        %6397 = vmatmul.mubr.f32.gmra.mrb[0].mxu0 %v6326
        %v6398 = vpop.f32.mrb[0].mxu0
        %v6399 = vadd.f32 0.0, %v6398
        %v6400 = vpop.f32.mrb[0].mxu0
        %6401 = vmatprep.mubr.f32.mxu0 0.0
        %6402 = vmatmul.mubr.f32.gmra.mrb[0].mxu0 %v6328
        %v6403 = vpop.f32.mrb[0].mxu0
        %v6404 = vadd.f32 0.0, %v6403
        %v6405 = vpop.f32.mrb[0].mxu0
        %6406 = vdwg.mxu0
        %v6407 = vsel %vm3673, -1e+10, %v6156
        %v6408 = vsel %vm3673, -1e+10, %v6161
        %v6409 = vsel %vm3673, -1e+10, %v6237
        %v6410 = vsel %vm3673, -1e+10, %v6242
        %v6411 = vsel %vm3673, -1e+10, %v6318
        %v6412 = vsel %vm3673, -1e+10, %v6323
        %v6413 = vsel %vm3673, -1e+10, %v6399
        %v6414 = vsel %vm3673, -1e+10, %v6404
        %v6415 = vsel %vm2207, %v6407, -inf
        %6416 = vmax.xlane.f32.xlu0 %v6415
        %v6417 = vpop.xlane.xlu0 %6416
        %v6418 = vsel %vm2207, %v6408, -inf
        %6419 = vmax.xlane.f32.xlu0 %v6418
        %v6420 = vpop.xlane.xlu0 %6419
        %v6421 = vsel %vm2207, %v6409, -inf
        %6422 = vmax.xlane.f32.xlu0 %v6421
        %v6423 = vpop.xlane.xlu0 %6422
        %v6424 = vsel %vm2207, %v6410, -inf
        %6425 = vmax.xlane.f32.xlu0 %v6424
        %v6426 = vpop.xlane.xlu0 %6425
        %v6427 = vsel %vm2207, %v6411, -inf
        %6428 = vmax.xlane.f32.xlu0 %v6427
        %v6429 = vpop.xlane.xlu0 %6428
        %v6430 = vsel %vm2207, %v6412, -inf
        %6431 = vmax.xlane.f32.xlu0 %v6430
        %v6432 = vpop.xlane.xlu0 %6431
        %v6433 = vsel %vm2207, %v6413, -inf
        %6434 = vmax.xlane.f32.xlu0 %v6433
        %v6435 = vpop.xlane.xlu0 %6434
        %v6436 = vsel %vm2207, %v6414, -inf
        %6437 = vmax.xlane.f32.xlu0 %v6436
        %v6438 = vpop.xlane.xlu0 %6437
        %v6439 = vsub.f32 %v6407, %v6417
        %v6440 = vsub.f32 %v6408, %v6420
        %v6441 = vsub.f32 %v6409, %v6423
        %v6442 = vsub.f32 %v6410, %v6426
        %v6443 = vsub.f32 %v6411, %v6429
        %v6444 = vsub.f32 %v6412, %v6432
        %v6445 = vsub.f32 %v6413, %v6435
        %v6446 = vsub.f32 %v6414, %v6438
        %v6447 = vmul.f32 %v6439, 1.442695
        %v6448 = vpow.pop %v6447
        %v6449 = vmul.f32 %v6440, 1.442695
        %v6450 = vpow.pop %v6449
        %v6451 = vmul.f32 %v6441, 1.442695
        %v6452 = vpow.pop %v6451
        %v6453 = vmul.f32 %v6442, 1.442695
        %v6454 = vpow.pop %v6453
        %v6455 = vmul.f32 %v6443, 1.442695
        %v6456 = vpow.pop %v6455
        %v6457 = vmul.f32 %v6444, 1.442695
        %v6458 = vpow.pop %v6457
        %v6459 = vmul.f32 %v6445, 1.442695
        %v6460 = vpow.pop %v6459
        %v6461 = vmul.f32 %v6446, 1.442695
        %v6462 = vpow.pop %v6461
        %v6463 = vsel %vm2207, %v6448, 0.0
        %6464 = vadd.xlane.f32.xlu0 %v6463
        %v6465 = vpop.xlane.xlu0 %6464
        %v6466 = vsel %vm2207, %v6450, 0.0
        %6467 = vadd.xlane.f32.xlu0 %v6466
        %v6468 = vpop.xlane.xlu0 %6467
        %v6469 = vsel %vm2207, %v6452, 0.0
        %6470 = vadd.xlane.f32.xlu0 %v6469
        %v6471 = vpop.xlane.xlu0 %6470
        %v6472 = vsel %vm2207, %v6454, 0.0
        %6473 = vadd.xlane.f32.xlu0 %v6472
        %v6474 = vpop.xlane.xlu0 %6473
        %v6475 = vsel %vm2207, %v6456, 0.0
        %6476 = vadd.xlane.f32.xlu0 %v6475
        %v6477 = vpop.xlane.xlu0 %6476
        %v6478 = vsel %vm2207, %v6458, 0.0
        %6479 = vadd.xlane.f32.xlu0 %v6478
        %v6480 = vpop.xlane.xlu0 %6479
        %v6481 = vsel %vm2207, %v6460, 0.0
        %6482 = vadd.xlane.f32.xlu0 %v6481
        %v6483 = vpop.xlane.xlu0 %6482
        %v6484 = vsel %vm2207, %v6462, 0.0
        %6485 = vadd.xlane.f32.xlu0 %v6484
        %v6486 = vpop.xlane.xlu0 %6485
        %v6487 = vrcp.pop %v6465
        %v6488 = vrcp.pop %v6468
        %v6489 = vrcp.pop %v6471
        %v6490 = vrcp.pop %v6474
        %v6491 = vrcp.pop %v6477
        %v6492 = vrcp.pop %v6480
        %v6493 = vrcp.pop %v6483
        %v6494 = vrcp.pop %v6486
        %v6495 = vmul.f32 %v6448, %v6487
        %v6496 = vmul.f32 %v6450, %v6488
        %v6497 = vmul.f32 %v6452, %v6489
        %v6498 = vmul.f32 %v6454, %v6490
        %v6499 = vmul.f32 %v6456, %v6491
        %v6500 = vmul.f32 %v6458, %v6492
        %v6501 = vmul.f32 %v6460, %v6493
        %v6502 = vmul.f32 %v6462, %v6494
        %6503 = vrot.lane.b32.xlu0 %v6059, 96
        %v6504 = vpop.permute.xlu0 %6503
        %v6507 = vsel %vm2207, %v6495, 0
        %v6510 = vsel %vm2207, %v6496, 0
        %6512 = vmatprep.subr.mxu0 0.0
        %6513 = vmatpush1.msra.mxu0 %v6504
        %6514 = vmatprep.subr.mxu0 0.0
        %6515 = vmatpush1.msra.mxu0 0.0
        %6516 = vmatprep.subr.mxu0 0.0
        %6517 = vmatpush1.msra.mxu0 0.0
        %6518 = vmatprep.subr.mxu0 0.0
        %6519 = vmatpush1.msra.mxu0 0.0
        %6520 = vmatprep.subr.mxu0 0.0
        %6521 = vmatpush1.msra.mxu0 0.0
        %6522 = vmatprep.subr.mxu0 0.0
        %6523 = vmatpush1.msra.mxu0 0.0
        %6524 = vmatprep.subr.mxu0 0.0
        %6525 = vmatpush1.msra.mxu0 0.0
        %6526 = vmatprep.subr.mxu0 0.0
        %6527 = vmatpush1.msra.mxu0 0.0
        %6528 = vmatprep.subr.mxu0 0.0
        %6529 = vmatpush1.msra.mxu0 0.0
        %6530 = vmatprep.subr.mxu0 0.0
        %6531 = vmatpush1.msra.mxu0 0.0
        %6532 = vmatprep.subr.mxu0 0.0
        %6533 = vmatpush1.msra.mxu0 0.0
        %6534 = vmatprep.subr.mxu0 0.0
        %6535 = vmatpush1.msra.mxu0 0.0
        %6536 = vmatprep.subr.mxu0 0.0
        %6537 = vmatpush1.msra.mxu0 0.0
        %6538 = vmatprep.subr.mxu0 0.0
        %6539 = vmatpush1.msra.mxu0 0.0
        %6540 = vmatprep.subr.mxu0 0.0
        %6541 = vmatpush1.msra.mxu0 0.0
        %6542 = vmatprep.subr.mxu0 0.0
        %6543 = vmatpush1.msra.mxu0 0.0
        %6544 = vmatprep.subr.mxu0 0.0
        %6545 = vmatpush1.msra.mxu0 0.0
        %6546 = vmatprep.subr.mxu0 0.0
        %6547 = vmatpush1.msra.mxu0 0.0
        %6548 = vmatprep.subr.mxu0 0.0
        %6549 = vmatpush1.msra.mxu0 0.0
        %6550 = vmatprep.subr.mxu0 0.0
        %6551 = vmatpush1.msra.mxu0 0.0
        %6552 = vmatprep.subr.mxu0 0.0
        %6553 = vmatpush1.msra.mxu0 0.0
        %6554 = vmatprep.subr.mxu0 0.0
        %6555 = vmatpush1.msra.mxu0 0.0
        %6556 = vmatprep.subr.mxu0 0.0
        %6557 = vmatpush1.msra.mxu0 0.0
        %6558 = vmatprep.subr.mxu0 0.0
        %6559 = vmatpush1.msra.mxu0 0.0
        %6560 = vmatprep.subr.mxu0 0.0
        %6561 = vmatpush1.msra.mxu0 0.0
        %6562 = vmatprep.subr.mxu0 0.0
        %6563 = vmatpush1.msra.mxu0 0.0
        %6564 = vmatprep.subr.mxu0 0.0
        %6565 = vmatpush1.msra.mxu0 0.0
        %6566 = vmatprep.subr.mxu0 0.0
        %6567 = vmatpush1.msra.mxu0 0.0
        %6568 = vmatprep.subr.mxu0 0.0
        %6569 = vmatpush1.msra.mxu0 0.0
        %6570 = vmatprep.subr.mxu0 0.0
        %6571 = vmatpush1.msra.mxu0 0.0
        %6572 = vmatprep.subr.mxu0 0.0
        %6573 = vmatpush1.msra.mxu0 0.0
        %6574 = vmatprep.subr.mxu0 0.0
        %6575 = vmatpush1.msra.mxu0 0.0
        %6576 = vmatprep.mubr.f32.mxu0 0.0
        %6577 = vmatmul.mubr.f32.gmra.mrb[0].mxu0 %v6507
        %v6578 = vpop.f32.mrb[0].mxu0
        %v6579 = vadd.f32 0.0, %v6578
        %v6580 = vpop.f32.mrb[0].mxu0
        %6581 = vmatprep.mubr.f32.mxu0 0.0
        %6582 = vmatmul.mubr.f32.gmra.mrb[0].mxu0 %v6510
        %v6583 = vpop.f32.mrb[0].mxu0
        %v6584 = vadd.f32 0.0, %v6583
        %v6585 = vpop.f32.mrb[0].mxu0
        %6586 = vdwg.mxu0
        %6587 = vrot.lane.b32.xlu0 %v6078, 96
        %v6588 = vpop.permute.xlu0 %6587
        %v6591 = vsel %vm2207, %v6497, 0
        %v6594 = vsel %vm2207, %v6498, 0
        %6596 = vmatprep.subr.mxu0 0.0
        %6597 = vmatpush1.msra.mxu0 %v6588
        %6598 = vmatprep.subr.mxu0 0.0
        %6599 = vmatpush1.msra.mxu0 0.0
        %6600 = vmatprep.subr.mxu0 0.0
        %6601 = vmatpush1.msra.mxu0 0.0
        %6602 = vmatprep.subr.mxu0 0.0
        %6603 = vmatpush1.msra.mxu0 0.0
        %6604 = vmatprep.subr.mxu0 0.0
        %6605 = vmatpush1.msra.mxu0 0.0
        %6606 = vmatprep.subr.mxu0 0.0
        %6607 = vmatpush1.msra.mxu0 0.0
        %6608 = vmatprep.subr.mxu0 0.0
        %6609 = vmatpush1.msra.mxu0 0.0
        %6610 = vmatprep.subr.mxu0 0.0
        %6611 = vmatpush1.msra.mxu0 0.0
        %6612 = vmatprep.subr.mxu0 0.0
        %6613 = vmatpush1.msra.mxu0 0.0
        %6614 = vmatprep.subr.mxu0 0.0
        %6615 = vmatpush1.msra.mxu0 0.0
        %6616 = vmatprep.subr.mxu0 0.0
        %6617 = vmatpush1.msra.mxu0 0.0
        %6618 = vmatprep.subr.mxu0 0.0
        %6619 = vmatpush1.msra.mxu0 0.0
        %6620 = vmatprep.subr.mxu0 0.0
        %6621 = vmatpush1.msra.mxu0 0.0
        %6622 = vmatprep.subr.mxu0 0.0
        %6623 = vmatpush1.msra.mxu0 0.0
        %6624 = vmatprep.subr.mxu0 0.0
        %6625 = vmatpush1.msra.mxu0 0.0
        %6626 = vmatprep.subr.mxu0 0.0
        %6627 = vmatpush1.msra.mxu0 0.0
        %6628 = vmatprep.subr.mxu0 0.0
        %6629 = vmatpush1.msra.mxu0 0.0
        %6630 = vmatprep.subr.mxu0 0.0
        %6631 = vmatpush1.msra.mxu0 0.0
        %6632 = vmatprep.subr.mxu0 0.0
        %6633 = vmatpush1.msra.mxu0 0.0
        %6634 = vmatprep.subr.mxu0 0.0
        %6635 = vmatpush1.msra.mxu0 0.0
        %6636 = vmatprep.subr.mxu0 0.0
        %6637 = vmatpush1.msra.mxu0 0.0
        %6638 = vmatprep.subr.mxu0 0.0
        %6639 = vmatpush1.msra.mxu0 0.0
        %6640 = vmatprep.subr.mxu0 0.0
        %6641 = vmatpush1.msra.mxu0 0.0
        %6642 = vmatprep.subr.mxu0 0.0
        %6643 = vmatpush1.msra.mxu0 0.0
        %6644 = vmatprep.subr.mxu0 0.0
        %6645 = vmatpush1.msra.mxu0 0.0
        %6646 = vmatprep.subr.mxu0 0.0
        %6647 = vmatpush1.msra.mxu0 0.0
        %6648 = vmatprep.subr.mxu0 0.0
        %6649 = vmatpush1.msra.mxu0 0.0
        %6650 = vmatprep.subr.mxu0 0.0
        %6651 = vmatpush1.msra.mxu0 0.0
        %6652 = vmatprep.subr.mxu0 0.0
        %6653 = vmatpush1.msra.mxu0 0.0
        %6654 = vmatprep.subr.mxu0 0.0
        %6655 = vmatpush1.msra.mxu0 0.0
        %6656 = vmatprep.subr.mxu0 0.0
        %6657 = vmatpush1.msra.mxu0 0.0
        %6658 = vmatprep.subr.mxu0 0.0
        %6659 = vmatpush1.msra.mxu0 0.0
        %6660 = vmatprep.mubr.f32.mxu0 0.0
        %6661 = vmatmul.mubr.f32.gmra.mrb[0].mxu0 %v6591
        %v6662 = vpop.f32.mrb[0].mxu0
        %v6663 = vadd.f32 0.0, %v6662
        %v6664 = vpop.f32.mrb[0].mxu0
        %6665 = vmatprep.mubr.f32.mxu0 0.0
        %6666 = vmatmul.mubr.f32.gmra.mrb[0].mxu0 %v6594
        %v6667 = vpop.f32.mrb[0].mxu0
        %v6668 = vadd.f32 0.0, %v6667
        %v6669 = vpop.f32.mrb[0].mxu0
        %6670 = vdwg.mxu0
        %6671 = vrot.lane.b32.xlu0 %v6080, 96
        %v6672 = vpop.permute.xlu0 %6671
        %v6675 = vsel %vm2207, %v6499, 0
        %v6678 = vsel %vm2207, %v6500, 0
        %6680 = vmatprep.subr.mxu0 0.0
        %6681 = vmatpush1.msra.mxu0 %v6672
        %6682 = vmatprep.subr.mxu0 0.0
        %6683 = vmatpush1.msra.mxu0 0.0
        %6684 = vmatprep.subr.mxu0 0.0
        %6685 = vmatpush1.msra.mxu0 0.0
        %6686 = vmatprep.subr.mxu0 0.0
        %6687 = vmatpush1.msra.mxu0 0.0
        %6688 = vmatprep.subr.mxu0 0.0
        %6689 = vmatpush1.msra.mxu0 0.0
        %6690 = vmatprep.subr.mxu0 0.0
        %6691 = vmatpush1.msra.mxu0 0.0
        %6692 = vmatprep.subr.mxu0 0.0
        %6693 = vmatpush1.msra.mxu0 0.0
        %6694 = vmatprep.subr.mxu0 0.0
        %6695 = vmatpush1.msra.mxu0 0.0
        %6696 = vmatprep.subr.mxu0 0.0
        %6697 = vmatpush1.msra.mxu0 0.0
        %6698 = vmatprep.subr.mxu0 0.0
        %6699 = vmatpush1.msra.mxu0 0.0
        %6700 = vmatprep.subr.mxu0 0.0
        %6701 = vmatpush1.msra.mxu0 0.0
        %6702 = vmatprep.subr.mxu0 0.0
        %6703 = vmatpush1.msra.mxu0 0.0
        %6704 = vmatprep.subr.mxu0 0.0
        %6705 = vmatpush1.msra.mxu0 0.0
        %6706 = vmatprep.subr.mxu0 0.0
        %6707 = vmatpush1.msra.mxu0 0.0
        %6708 = vmatprep.subr.mxu0 0.0
        %6709 = vmatpush1.msra.mxu0 0.0
        %6710 = vmatprep.subr.mxu0 0.0
        %6711 = vmatpush1.msra.mxu0 0.0
        %6712 = vmatprep.subr.mxu0 0.0
        %6713 = vmatpush1.msra.mxu0 0.0
        %6714 = vmatprep.subr.mxu0 0.0
        %6715 = vmatpush1.msra.mxu0 0.0
        %6716 = vmatprep.subr.mxu0 0.0
        %6717 = vmatpush1.msra.mxu0 0.0
        %6718 = vmatprep.subr.mxu0 0.0
        %6719 = vmatpush1.msra.mxu0 0.0
        %6720 = vmatprep.subr.mxu0 0.0
        %6721 = vmatpush1.msra.mxu0 0.0
        %6722 = vmatprep.subr.mxu0 0.0
        %6723 = vmatpush1.msra.mxu0 0.0
        %6724 = vmatprep.subr.mxu0 0.0
        %6725 = vmatpush1.msra.mxu0 0.0
        %6726 = vmatprep.subr.mxu0 0.0
        %6727 = vmatpush1.msra.mxu0 0.0
        %6728 = vmatprep.subr.mxu0 0.0
        %6729 = vmatpush1.msra.mxu0 0.0
        %6730 = vmatprep.subr.mxu0 0.0
        %6731 = vmatpush1.msra.mxu0 0.0
        %6732 = vmatprep.subr.mxu0 0.0
        %6733 = vmatpush1.msra.mxu0 0.0
        %6734 = vmatprep.subr.mxu0 0.0
        %6735 = vmatpush1.msra.mxu0 0.0
        %6736 = vmatprep.subr.mxu0 0.0
        %6737 = vmatpush1.msra.mxu0 0.0
        %6738 = vmatprep.subr.mxu0 0.0
        %6739 = vmatpush1.msra.mxu0 0.0
        %6740 = vmatprep.subr.mxu0 0.0
        %6741 = vmatpush1.msra.mxu0 0.0
        %6742 = vmatprep.subr.mxu0 0.0
        %6743 = vmatpush1.msra.mxu0 0.0
        %6744 = vmatprep.mubr.f32.mxu0 0.0
        %6745 = vmatmul.mubr.f32.gmra.mrb[0].mxu0 %v6675
        %v6746 = vpop.f32.mrb[0].mxu0
        %v6747 = vadd.f32 0.0, %v6746
        %v6748 = vpop.f32.mrb[0].mxu0
        %6749 = vmatprep.mubr.f32.mxu0 0.0
        %6750 = vmatmul.mubr.f32.gmra.mrb[0].mxu0 %v6678
        %v6751 = vpop.f32.mrb[0].mxu0
        %v6752 = vadd.f32 0.0, %v6751
        %v6753 = vpop.f32.mrb[0].mxu0
        %6754 = vdwg.mxu0
        %6755 = vrot.lane.b32.xlu0 %v6082, 96
        %v6756 = vpop.permute.xlu0 %6755
        %v6759 = vsel %vm2207, %v6501, 0
        %v6762 = vsel %vm2207, %v6502, 0
        %6764 = vmatprep.subr.mxu0 0.0
        %6765 = vmatpush1.msra.mxu0 %v6756
        %6766 = vmatprep.subr.mxu0 0.0
        %6767 = vmatpush1.msra.mxu0 0.0
        %6768 = vmatprep.subr.mxu0 0.0
        %6769 = vmatpush1.msra.mxu0 0.0
        %6770 = vmatprep.subr.mxu0 0.0
        %6771 = vmatpush1.msra.mxu0 0.0
        %6772 = vmatprep.subr.mxu0 0.0
        %6773 = vmatpush1.msra.mxu0 0.0
        %6774 = vmatprep.subr.mxu0 0.0
        %6775 = vmatpush1.msra.mxu0 0.0
        %6776 = vmatprep.subr.mxu0 0.0
        %6777 = vmatpush1.msra.mxu0 0.0
        %6778 = vmatprep.subr.mxu0 0.0
        %6779 = vmatpush1.msra.mxu0 0.0
        %6780 = vmatprep.subr.mxu0 0.0
        %6781 = vmatpush1.msra.mxu0 0.0
        %6782 = vmatprep.subr.mxu0 0.0
        %6783 = vmatpush1.msra.mxu0 0.0
        %6784 = vmatprep.subr.mxu0 0.0
        %6785 = vmatpush1.msra.mxu0 0.0
        %6786 = vmatprep.subr.mxu0 0.0
        %6787 = vmatpush1.msra.mxu0 0.0
        %6788 = vmatprep.subr.mxu0 0.0
        %6789 = vmatpush1.msra.mxu0 0.0
        %6790 = vmatprep.subr.mxu0 0.0
        %6791 = vmatpush1.msra.mxu0 0.0
        %6792 = vmatprep.subr.mxu0 0.0
        %6793 = vmatpush1.msra.mxu0 0.0
        %6794 = vmatprep.subr.mxu0 0.0
        %6795 = vmatpush1.msra.mxu0 0.0
        %6796 = vmatprep.subr.mxu0 0.0
        %6797 = vmatpush1.msra.mxu0 0.0
        %6798 = vmatprep.subr.mxu0 0.0
        %6799 = vmatpush1.msra.mxu0 0.0
        %6800 = vmatprep.subr.mxu0 0.0
        %6801 = vmatpush1.msra.mxu0 0.0
        %6802 = vmatprep.subr.mxu0 0.0
        %6803 = vmatpush1.msra.mxu0 0.0
        %6804 = vmatprep.subr.mxu0 0.0
        %6805 = vmatpush1.msra.mxu0 0.0
        %6806 = vmatprep.subr.mxu0 0.0
        %6807 = vmatpush1.msra.mxu0 0.0
        %6808 = vmatprep.subr.mxu0 0.0
        %6809 = vmatpush1.msra.mxu0 0.0
        %6810 = vmatprep.subr.mxu0 0.0
        %6811 = vmatpush1.msra.mxu0 0.0
        %6812 = vmatprep.subr.mxu0 0.0
        %6813 = vmatpush1.msra.mxu0 0.0
        %6814 = vmatprep.subr.mxu0 0.0
        %6815 = vmatpush1.msra.mxu0 0.0
        %6816 = vmatprep.subr.mxu0 0.0
        %6817 = vmatpush1.msra.mxu0 0.0
        %6818 = vmatprep.subr.mxu0 0.0
        %6819 = vmatpush1.msra.mxu0 0.0
        %6820 = vmatprep.subr.mxu0 0.0
        %6821 = vmatpush1.msra.mxu0 0.0
        %6822 = vmatprep.subr.mxu0 0.0
        %6823 = vmatpush1.msra.mxu0 0.0
        %6824 = vmatprep.subr.mxu0 0.0
        %6825 = vmatpush1.msra.mxu0 0.0
        %6826 = vmatprep.subr.mxu0 0.0
        %6827 = vmatpush1.msra.mxu0 0.0
        %6828 = vmatprep.mubr.f32.mxu0 0.0
        %6829 = vmatmul.mubr.f32.gmra.mrb[0].mxu0 %v6759
        %v6830 = vpop.f32.mrb[0].mxu0
        %v6831 = vadd.f32 0.0, %v6830
        %v6832 = vpop.f32.mrb[0].mxu0
        %6833 = vmatprep.mubr.f32.mxu0 0.0
        %6834 = vmatmul.mubr.f32.gmra.mrb[0].mxu0 %v6762
        %v6835 = vpop.f32.mrb[0].mxu0
        %v6836 = vadd.f32 0.0, %v6835
        %v6837 = vpop.f32.mrb[0].mxu0
        %6838 = vdwg.mxu0
        %6841 = vrot.lane.b32.xlu0 %v6663, 8
        %v6842 = vpop.permute.xlu0 %6841
        %6843 = vrot.lane.b32.xlu0 %v6668, 8
        %v6844 = vpop.permute.xlu0 %6843
        %6849 = vrot.lane.b32.xlu0 %v6747, 16
        %v6850 = vpop.permute.xlu0 %6849
        %6851 = vrot.lane.b32.xlu0 %v6752, 16
        %v6852 = vpop.permute.xlu0 %6851
        %6857 = vrot.lane.b32.xlu0 %v6831, 24
        %v6858 = vpop.permute.xlu0 %6857
        %6859 = vrot.lane.b32.xlu0 %v6836, 24
        %v6860 = vpop.permute.xlu0 %6859
        %v6863 = vsel %vm2207, %v6579, %v6842
        %v6864 = vsel %vm2207, %v6584, %v6844
        %v6865 = vsel %vm1814, %v6863, %v6850
        %v6866 = vsel %vm1814, %v6864, %v6852
        %v6867 = vsel %vm3004, %v6865, %v6858
        %v6868 = vsel %vm3004, %v6866, %v6860
        %v6870 = vlaneseq
        %v6871 = vshrl.u32 %v6870, 7
        %v6872 = vsub.s32 0, %v6871
        %v6873 = vrot.slane %v5898, %v6872
        %v6876 = vsel %vm1888, %v6867, 0
        %v6879 = vsel %vm1888, %v6868, 0
        %6881 = vmatprep.subr.mxu0 0.0
        %6882 = vmatpush1.msra.mxu0 %v5894
        %6883 = vmatprep.subr.mxu0 0.0
        %6884 = vmatpush1.msra.mxu0 %v5895
        %6885 = vmatprep.subr.mxu0 0.0
        %6886 = vmatpush1.msra.mxu0 %v5896
        %6887 = vmatprep.subr.mxu0 0.0
        %6888 = vmatpush1.msra.mxu0 %v5897
        %6889 = vmatprep.subr.mxu0 0.0
        %6890 = vmatpush1.msra.mxu0 0.0
        %6891 = vmatprep.subr.mxu0 0.0
        %6892 = vmatpush1.msra.mxu0 0.0
        %6893 = vmatprep.subr.mxu0 0.0
        %6894 = vmatpush1.msra.mxu0 0.0
        %6895 = vmatprep.subr.mxu0 0.0
        %6896 = vmatpush1.msra.mxu0 0.0
        %6897 = vmatprep.subr.mxu0 0.0
        %6898 = vmatpush1.msra.mxu0 0.0
        %6899 = vmatprep.subr.mxu0 0.0
        %6900 = vmatpush1.msra.mxu0 0.0
        %6901 = vmatprep.subr.mxu0 0.0
        %6902 = vmatpush1.msra.mxu0 0.0
        %6903 = vmatprep.subr.mxu0 0.0
        %6904 = vmatpush1.msra.mxu0 0.0
        %6905 = vmatprep.subr.mxu0 0.0
        %6906 = vmatpush1.msra.mxu0 0.0
        %6907 = vmatprep.subr.mxu0 0.0
        %6908 = vmatpush1.msra.mxu0 0.0
        %6909 = vmatprep.subr.mxu0 0.0
        %6910 = vmatpush1.msra.mxu0 0.0
        %6911 = vmatprep.subr.mxu0 0.0
        %6912 = vmatpush1.msra.mxu0 0.0
        %6913 = vmatprep.subr.mxu0 0.0
        %6914 = vmatpush1.msra.mxu0 0.0
        %6915 = vmatprep.subr.mxu0 0.0
        %6916 = vmatpush1.msra.mxu0 0.0
        %6917 = vmatprep.subr.mxu0 0.0
        %6918 = vmatpush1.msra.mxu0 0.0
        %6919 = vmatprep.subr.mxu0 0.0
        %6920 = vmatpush1.msra.mxu0 0.0
        %6921 = vmatprep.subr.mxu0 0.0
        %6922 = vmatpush1.msra.mxu0 0.0
        %6923 = vmatprep.subr.mxu0 0.0
        %6924 = vmatpush1.msra.mxu0 0.0
        %6925 = vmatprep.subr.mxu0 0.0
        %6926 = vmatpush1.msra.mxu0 0.0
        %6927 = vmatprep.subr.mxu0 0.0
        %6928 = vmatpush1.msra.mxu0 0.0
        %6929 = vmatprep.subr.mxu0 0.0
        %6930 = vmatpush1.msra.mxu0 0.0
        %6931 = vmatprep.subr.mxu0 0.0
        %6932 = vmatpush1.msra.mxu0 0.0
        %6933 = vmatprep.subr.mxu0 0.0
        %6934 = vmatpush1.msra.mxu0 0.0
        %6935 = vmatprep.subr.mxu0 0.0
        %6936 = vmatpush1.msra.mxu0 0.0
        %6937 = vmatprep.subr.mxu0 0.0
        %6938 = vmatpush1.msra.mxu0 0.0
        %6939 = vmatprep.subr.mxu0 0.0
        %6940 = vmatpush1.msra.mxu0 0.0
        %6941 = vmatprep.subr.mxu0 0.0
        %6942 = vmatpush1.msra.mxu0 0.0
        %6943 = vmatprep.subr.mxu0 0.0
        %6944 = vmatpush1.msra.mxu0 0.0
        %6945 = vmatprep.mubr.f32.mxu0 0.0
        %6946 = vmatmul.mubr.f32.gmra.mrb[0].mxu0 %v6876
        %v6947 = vpop.f32.mrb[0].mxu0
        %v6948 = vadd.f32 %v6873, %v6947
        %v6949 = vpop.f32.mrb[0].mxu0
        %6950 = vmatprep.mubr.f32.mxu0 0.0
        %6951 = vmatmul.mubr.f32.gmra.mrb[0].mxu0 %v6879
        %v6952 = vpop.f32.mrb[0].mxu0
        %v6953 = vadd.f32 %v6873, %v6952
        %v6954 = vpop.f32.mrb[0].mxu0
        %6955 = vdwg.mxu0
        %v6956 = vld [vmem:[#allocation14] sm:$0x1]
        %v6957 = vld [vmem:[#allocation15] sm:$0x1]
        %v6958 = vadd.f32 %v5882, %v6948
        %v6959 = vadd.f32 %v5883, %v6953
        %v6960 = vsel %vm1888, %v6958, 0.0
        %6961 = vadd.xlane.f32.xlu0 %v6960
        %v6962 = vpop.xlane.xlu0 %6961
        %v6963 = vsel %vm1888, %v6959, 0.0
        %6964 = vadd.xlane.f32.xlu0 %v6963
        %v6965 = vpop.xlane.xlu0 %6964
        %v6966 = vmul.f32 %v6962, %v3104
        %v6967 = vmul.f32 %v6965, %v3104
        %v6968 = vsub.f32 %v6958, %v6966
        %v6969 = vsub.f32 %v6959, %v6967
        %v6970 = vmul.f32 %v6968, %v6968
        %v6971 = vmul.f32 %v6969, %v6969
        %v6972 = vsel %vm1888, %v6970, 0.0
        %6973 = vadd.xlane.f32.xlu0 %v6972
        %v6974 = vpop.xlane.xlu0 %6973
        %v6975 = vsel %vm1888, %v6971, 0.0
        %6976 = vadd.xlane.f32.xlu0 %v6975
        %v6977 = vpop.xlane.xlu0 %6976
        %v6978 = vmul.f32 %v6974, %v3104
        %v6979 = vmul.f32 %v6977, %v3104
        %v6980 = vadd.f32 %v6978, 1e-05
        %v6981 = vadd.f32 %v6979, 1e-05
        %v6982 = vrsqrt.pop %v6980
        %v6983 = vrsqrt.pop %v6981
        %v6984 = vmul.f32 %v6968, %v6982
        %v6985 = vmul.f32 %v6969, %v6983
        %v6987 = vlaneseq
        %v6988 = vshrl.u32 %v6987, 7
        %v6989 = vsub.s32 0, %v6988
        %v6990 = vrot.slane %v6956, %v6989
        %v6992 = vmul.f32 %v6984, %v6990
        %v6993 = vmul.f32 %v6985, %v6990
        %v6995 = vlaneseq
        %v6996 = vshrl.u32 %v6995, 7
        %v6997 = vsub.s32 0, %v6996
        %v6998 = vrot.slane %v6957, %v6997
        %v7000 = vadd.f32 %v6992, %v6998
        %v7001 = vadd.f32 %v6993, %v6998
        %v7002 = vld [vmem:[%s91] sm:$0xff]
        %v7003 = vld [vmem:[%s91 + $0x8] sm:$0xff]
        %v7004 = vld [vmem:[%s91 + $0x10] sm:$0xff]
        %v7005 = vld [vmem:[%s91 + $0x18] sm:$0xff]
        %v7006 = vld [vmem:[%s91 + $0x20] sm:$0xff]
        %v7007 = vld [vmem:[%s91 + $0x28] sm:$0xff]
        %v7008 = vld [vmem:[%s91 + $0x30] sm:$0xff]
        %v7009 = vld [vmem:[%s91 + $0x38] sm:$0xff]
        %v7010 = vld [vmem:[%s91 + $0x40] sm:$0xff]
        %v7011 = vld [vmem:[%s91 + $0x48] sm:$0xff]
        %v7012 = vld [vmem:[%s91 + $0x50] sm:$0xff]
        %v7013 = vld [vmem:[%s91 + $0x58] sm:$0xff]
        %v7014 = vld [vmem:[%s91 + $0x60] sm:$0xff]
        %v7015 = vld [vmem:[%s91 + $0x68] sm:$0xff]
        %v7016 = vld [vmem:[%s91 + $0x70] sm:$0xff]
        %v7017 = vld [vmem:[%s91 + $0x78] sm:$0xff]
        %v7018 = vld [vmem:[%s93] sm:$0xf]
        %v7020 = vlaneseq
        %v7021 = vshrl.u32 %v7020, 7
        %v7022 = vsub.s32 0, %v7021
        %v7023 = vrot.slane %v7018, %v7022
        %v7024 = vlaneseq
        %v7025 = vshrl.u32 %v7024, 7
        %v7026 = vsub.s32 1, %v7025
        %v7027 = vrot.slane %v7018, %v7026
        %v7028 = vlaneseq
        %v7029 = vshrl.u32 %v7028, 7
        %v7030 = vsub.s32 2, %v7029
        %v7031 = vrot.slane %v7018, %v7030
        %v7032 = vlaneseq
        %v7033 = vshrl.u32 %v7032, 7
        %v7034 = vsub.s32 3, %v7033
        %v7035 = vrot.slane %v7018, %v7034
        %v7041 = vsel %vm1888, %v7000, 0
        %v7044 = vsel %vm1888, %v7001, 0
        %7046 = vmatprep.subr.mxu0 %v7003
        %7047 = vmatpush1.msra.mxu0 %v7002
        %7048 = vmatprep.subr.mxu0 %v7007
        %7049 = vmatpush1.msra.mxu0 %v7006
        %7050 = vmatprep.subr.mxu0 %v7011
        %7051 = vmatpush1.msra.mxu0 %v7010
        %7052 = vmatprep.subr.mxu0 %v7015
        %7053 = vmatpush1.msra.mxu0 %v7014
        %7054 = vmatprep.subr.mxu0 0.0
        %7055 = vmatpush1.msra.mxu0 0.0
        %7056 = vmatprep.subr.mxu0 0.0
        %7057 = vmatpush1.msra.mxu0 0.0
        %7058 = vmatprep.subr.mxu0 0.0
        %7059 = vmatpush1.msra.mxu0 0.0
        %7060 = vmatprep.subr.mxu0 0.0
        %7061 = vmatpush1.msra.mxu0 0.0
        %7062 = vmatprep.subr.mxu0 0.0
        %7063 = vmatpush1.msra.mxu0 0.0
        %7064 = vmatprep.subr.mxu0 0.0
        %7065 = vmatpush1.msra.mxu0 0.0
        %7066 = vmatprep.subr.mxu0 0.0
        %7067 = vmatpush1.msra.mxu0 0.0
        %7068 = vmatprep.subr.mxu0 0.0
        %7069 = vmatpush1.msra.mxu0 0.0
        %7070 = vmatprep.subr.mxu0 0.0
        %7071 = vmatpush1.msra.mxu0 0.0
        %7072 = vmatprep.subr.mxu0 0.0
        %7073 = vmatpush1.msra.mxu0 0.0
        %7074 = vmatprep.subr.mxu0 0.0
        %7075 = vmatpush1.msra.mxu0 0.0
        %7076 = vmatprep.subr.mxu0 0.0
        %7077 = vmatpush1.msra.mxu0 0.0
        %7078 = vmatprep.subr.mxu0 0.0
        %7079 = vmatpush1.msra.mxu0 0.0
        %7080 = vmatprep.subr.mxu0 0.0
        %7081 = vmatpush1.msra.mxu0 0.0
        %7082 = vmatprep.subr.mxu0 0.0
        %7083 = vmatpush1.msra.mxu0 0.0
        %7084 = vmatprep.subr.mxu0 0.0
        %7085 = vmatpush1.msra.mxu0 0.0
        %7086 = vmatprep.subr.mxu0 0.0
        %7087 = vmatpush1.msra.mxu0 0.0
        %7088 = vmatprep.subr.mxu0 0.0
        %7089 = vmatpush1.msra.mxu0 0.0
        %7090 = vmatprep.subr.mxu0 0.0
        %7091 = vmatpush1.msra.mxu0 0.0
        %7092 = vmatprep.subr.mxu0 0.0
        %7093 = vmatpush1.msra.mxu0 0.0
        %7094 = vmatprep.subr.mxu0 0.0
        %7095 = vmatpush1.msra.mxu0 0.0
        %7096 = vmatprep.subr.mxu0 0.0
        %7097 = vmatpush1.msra.mxu0 0.0
        %7098 = vmatprep.subr.mxu0 0.0
        %7099 = vmatpush1.msra.mxu0 0.0
        %7100 = vmatprep.subr.mxu0 0.0
        %7101 = vmatpush1.msra.mxu0 0.0
        %7102 = vmatprep.subr.mxu0 0.0
        %7103 = vmatpush1.msra.mxu0 0.0
        %7104 = vmatprep.subr.mxu0 0.0
        %7105 = vmatpush1.msra.mxu0 0.0
        %7106 = vmatprep.subr.mxu0 0.0
        %7107 = vmatpush1.msra.mxu0 0.0
        %7108 = vmatprep.subr.mxu0 0.0
        %7109 = vmatpush1.msra.mxu0 0.0
        %7110 = vmatprep.mubr.f32.mxu0 0.0
        %7111 = vmatmul.mubr.f32.gmra.mrb[0].mxu0 %v7041
        %v7112 = vpop.f32.mrb[0].mxu0
        %v7113 = vadd.f32 %v7023, %v7112
        %v7114 = vpop.f32.mrb[0].mxu0
        %v7115 = vadd.f32 %v7027, %v7114
        %7116 = vmatprep.mubr.f32.mxu0 0.0
        %7117 = vmatmul.mubr.f32.gmra.mrb[0].mxu0 %v7044
        %v7118 = vpop.f32.mrb[0].mxu0
        %v7119 = vadd.f32 %v7023, %v7118
        %v7120 = vpop.f32.mrb[0].mxu0
        %v7121 = vadd.f32 %v7027, %v7120
        %7122 = vdwg.mxu0
        %7123 = vmatprep.subr.mxu0 %v7005
        %7124 = vmatpush1.msra.mxu0 %v7004
        %7125 = vmatprep.subr.mxu0 %v7009
        %7126 = vmatpush1.msra.mxu0 %v7008
        %7127 = vmatprep.subr.mxu0 %v7013
        %7128 = vmatpush1.msra.mxu0 %v7012
        %7129 = vmatprep.subr.mxu0 %v7017
        %7130 = vmatpush1.msra.mxu0 %v7016
        %7131 = vmatprep.subr.mxu0 0.0
        %7132 = vmatpush1.msra.mxu0 0.0
        %7133 = vmatprep.subr.mxu0 0.0
        %7134 = vmatpush1.msra.mxu0 0.0
        %7135 = vmatprep.subr.mxu0 0.0
        %7136 = vmatpush1.msra.mxu0 0.0
        %7137 = vmatprep.subr.mxu0 0.0
        %7138 = vmatpush1.msra.mxu0 0.0
        %7139 = vmatprep.subr.mxu0 0.0
        %7140 = vmatpush1.msra.mxu0 0.0
        %7141 = vmatprep.subr.mxu0 0.0
        %7142 = vmatpush1.msra.mxu0 0.0
        %7143 = vmatprep.subr.mxu0 0.0
        %7144 = vmatpush1.msra.mxu0 0.0
        %7145 = vmatprep.subr.mxu0 0.0
        %7146 = vmatpush1.msra.mxu0 0.0
        %7147 = vmatprep.subr.mxu0 0.0
        %7148 = vmatpush1.msra.mxu0 0.0
        %7149 = vmatprep.subr.mxu0 0.0
        %7150 = vmatpush1.msra.mxu0 0.0
        %7151 = vmatprep.subr.mxu0 0.0
        %7152 = vmatpush1.msra.mxu0 0.0
        %7153 = vmatprep.subr.mxu0 0.0
        %7154 = vmatpush1.msra.mxu0 0.0
        %7155 = vmatprep.subr.mxu0 0.0
        %7156 = vmatpush1.msra.mxu0 0.0
        %7157 = vmatprep.subr.mxu0 0.0
        %7158 = vmatpush1.msra.mxu0 0.0
        %7159 = vmatprep.subr.mxu0 0.0
        %7160 = vmatpush1.msra.mxu0 0.0
        %7161 = vmatprep.subr.mxu0 0.0
        %7162 = vmatpush1.msra.mxu0 0.0
        %7163 = vmatprep.subr.mxu0 0.0
        %7164 = vmatpush1.msra.mxu0 0.0
        %7165 = vmatprep.subr.mxu0 0.0
        %7166 = vmatpush1.msra.mxu0 0.0
        %7167 = vmatprep.subr.mxu0 0.0
        %7168 = vmatpush1.msra.mxu0 0.0
        %7169 = vmatprep.subr.mxu0 0.0
        %7170 = vmatpush1.msra.mxu0 0.0
        %7171 = vmatprep.subr.mxu0 0.0
        %7172 = vmatpush1.msra.mxu0 0.0
        %7173 = vmatprep.subr.mxu0 0.0
        %7174 = vmatpush1.msra.mxu0 0.0
        %7175 = vmatprep.subr.mxu0 0.0
        %7176 = vmatpush1.msra.mxu0 0.0
        %7177 = vmatprep.subr.mxu0 0.0
        %7178 = vmatpush1.msra.mxu0 0.0
        %7179 = vmatprep.subr.mxu0 0.0
        %7180 = vmatpush1.msra.mxu0 0.0
        %7181 = vmatprep.subr.mxu0 0.0
        %7182 = vmatpush1.msra.mxu0 0.0
        %7183 = vmatprep.subr.mxu0 0.0
        %7184 = vmatpush1.msra.mxu0 0.0
        %7185 = vmatprep.subr.mxu0 0.0
        %7186 = vmatpush1.msra.mxu0 0.0
        %7187 = vmatprep.mubr.f32.mxu0 0.0
        %7188 = vmatmul.mubr.f32.gmra.mrb[0].mxu0 %v7041
        %v7189 = vpop.f32.mrb[0].mxu0
        %v7190 = vadd.f32 %v7031, %v7189
        %v7191 = vpop.f32.mrb[0].mxu0
        %v7192 = vadd.f32 %v7035, %v7191
        %7193 = vmatprep.mubr.f32.mxu0 0.0
        %7194 = vmatmul.mubr.f32.gmra.mrb[0].mxu0 %v7044
        %v7195 = vpop.f32.mrb[0].mxu0
        %v7196 = vadd.f32 %v7031, %v7195
        %v7197 = vpop.f32.mrb[0].mxu0
        %v7198 = vadd.f32 %v7035, %v7197
        %7199 = vdwg.mxu0
        %v7200 = vmax.f32 %v7113, 0.0
        %v7201 = vmax.f32 %v7115, 0.0
        %v7202 = vmax.f32 %v7190, 0.0
        %v7203 = vmax.f32 %v7192, 0.0
        %v7204 = vmax.f32 %v7119, 0.0
        %v7205 = vmax.f32 %v7121, 0.0
        %v7206 = vmax.f32 %v7196, 0.0
        %v7207 = vmax.f32 %v7198, 0.0
        %v7208 = vld [vmem:[%s95] sm:$0xff]
        %v7209 = vld [vmem:[%s95 + $0x8] sm:$0xff]
        %v7210 = vld [vmem:[%s95 + $0x10] sm:$0xff]
        %v7211 = vld [vmem:[%s95 + $0x18] sm:$0xff]
        %v7212 = vld [vmem:[%s95 + $0x20] sm:$0xff]
        %v7213 = vld [vmem:[%s95 + $0x28] sm:$0xff]
        %v7214 = vld [vmem:[%s95 + $0x30] sm:$0xff]
        %v7215 = vld [vmem:[%s95 + $0x38] sm:$0xff]
        %v7216 = vld [vmem:[%s95 + $0x40] sm:$0xff]
        %v7217 = vld [vmem:[%s95 + $0x48] sm:$0xff]
        %v7218 = vld [vmem:[%s95 + $0x50] sm:$0xff]
        %v7219 = vld [vmem:[%s95 + $0x58] sm:$0xff]
        %v7220 = vld [vmem:[%s95 + $0x60] sm:$0xff]
        %v7221 = vld [vmem:[%s95 + $0x68] sm:$0xff]
        %v7222 = vld [vmem:[%s95 + $0x70] sm:$0xff]
        %v7223 = vld [vmem:[%s95 + $0x78] sm:$0xff]
        %v7224 = vld [vmem:[%s95 + $0x80] sm:$0xff]
        %v7225 = vld [vmem:[%s95 + $0x88] sm:$0xff]
        %v7226 = vld [vmem:[%s95 + $0x90] sm:$0xff]
        %v7227 = vld [vmem:[%s95 + $0x98] sm:$0xff]
        %v7228 = vld [vmem:[%s95 + $0xa0] sm:$0xff]
        %v7229 = vld [vmem:[%s95 + $0xa8] sm:$0xff]
        %v7230 = vld [vmem:[%s95 + $0xb0] sm:$0xff]
        %v7231 = vld [vmem:[%s95 + $0xb8] sm:$0xff]
        %v7232 = vld [vmem:[%s95 + $0xc0] sm:$0xff]
        %v7233 = vld [vmem:[%s95 + $0xc8] sm:$0xff]
        %v7234 = vld [vmem:[%s95 + $0xd0] sm:$0xff]
        %v7235 = vld [vmem:[%s95 + $0xd8] sm:$0xff]
        %v7236 = vld [vmem:[%s95 + $0xe0] sm:$0xff]
        %v7237 = vld [vmem:[%s95 + $0xe8] sm:$0xff]
        %v7238 = vld [vmem:[%s95 + $0xf0] sm:$0xff]
        %v7239 = vld [vmem:[%s95 + $0xf8] sm:$0xff]
        %v7240 = vld [vmem:[%s95 + $0x100] sm:$0xff]
        %v7241 = vld [vmem:[%s95 + $0x108] sm:$0xff]
        %v7242 = vld [vmem:[%s95 + $0x110] sm:$0xff]
        %v7243 = vld [vmem:[%s95 + $0x118] sm:$0xff]
        %v7244 = vld [vmem:[%s95 + $0x120] sm:$0xff]
        %v7245 = vld [vmem:[%s95 + $0x128] sm:$0xff]
        %v7246 = vld [vmem:[%s95 + $0x130] sm:$0xff]
        %v7247 = vld [vmem:[%s95 + $0x138] sm:$0xff]
        %v7248 = vld [vmem:[%s95 + $0x140] sm:$0xff]
        %v7249 = vld [vmem:[%s95 + $0x148] sm:$0xff]
        %v7250 = vld [vmem:[%s95 + $0x150] sm:$0xff]
        %v7251 = vld [vmem:[%s95 + $0x158] sm:$0xff]
        %v7252 = vld [vmem:[%s95 + $0x160] sm:$0xff]
        %v7253 = vld [vmem:[%s95 + $0x168] sm:$0xff]
        %v7254 = vld [vmem:[%s95 + $0x170] sm:$0xff]
        %v7255 = vld [vmem:[%s95 + $0x178] sm:$0xff]
        %v7256 = vld [vmem:[%s95 + $0x180] sm:$0xff]
        %v7257 = vld [vmem:[%s95 + $0x188] sm:$0xff]
        %v7258 = vld [vmem:[%s95 + $0x190] sm:$0xff]
        %v7259 = vld [vmem:[%s95 + $0x198] sm:$0xff]
        %v7260 = vld [vmem:[%s95 + $0x1a0] sm:$0xff]
        %v7261 = vld [vmem:[%s95 + $0x1a8] sm:$0xff]
        %v7262 = vld [vmem:[%s95 + $0x1b0] sm:$0xff]
        %v7263 = vld [vmem:[%s95 + $0x1b8] sm:$0xff]
        %v7264 = vld [vmem:[%s95 + $0x1c0] sm:$0xff]
        %v7265 = vld [vmem:[%s95 + $0x1c8] sm:$0xff]
        %v7266 = vld [vmem:[%s95 + $0x1d0] sm:$0xff]
        %v7267 = vld [vmem:[%s95 + $0x1d8] sm:$0xff]
        %v7268 = vld [vmem:[%s95 + $0x1e0] sm:$0xff]
        %v7269 = vld [vmem:[%s95 + $0x1e8] sm:$0xff]
        %v7270 = vld [vmem:[%s95 + $0x1f0] sm:$0xff]
        %v7271 = vld [vmem:[%s95 + $0x1f8] sm:$0xff]
        %v7272 = vld [vmem:[#allocation17] sm:$0x1]
        %v7274 = vlaneseq
        %v7275 = vshrl.u32 %v7274, 7
        %v7276 = vsub.s32 0, %v7275
        %v7277 = vrot.slane %v7272, %v7276
        %7279 = vmatprep.subr.mxu0 0.0
        %7280 = vmatpush1.msra.mxu0 %v7208
        %7281 = vmatprep.subr.mxu0 0.0
        %7282 = vmatpush1.msra.mxu0 %v7209
        %7283 = vmatprep.subr.mxu0 0.0
        %7284 = vmatpush1.msra.mxu0 %v7210
        %7285 = vmatprep.subr.mxu0 0.0
        %7286 = vmatpush1.msra.mxu0 %v7211
        %7287 = vmatprep.subr.mxu0 0.0
        %7288 = vmatpush1.msra.mxu0 %v7212
        %7289 = vmatprep.subr.mxu0 0.0
        %7290 = vmatpush1.msra.mxu0 %v7213
        %7291 = vmatprep.subr.mxu0 0.0
        %7292 = vmatpush1.msra.mxu0 %v7214
        %7293 = vmatprep.subr.mxu0 0.0
        %7294 = vmatpush1.msra.mxu0 %v7215
        %7295 = vmatprep.subr.mxu0 0.0
        %7296 = vmatpush1.msra.mxu0 %v7216
        %7297 = vmatprep.subr.mxu0 0.0
        %7298 = vmatpush1.msra.mxu0 %v7217
        %7299 = vmatprep.subr.mxu0 0.0
        %7300 = vmatpush1.msra.mxu0 %v7218
        %7301 = vmatprep.subr.mxu0 0.0
        %7302 = vmatpush1.msra.mxu0 %v7219
        %7303 = vmatprep.subr.mxu0 0.0
        %7304 = vmatpush1.msra.mxu0 %v7220
        %7305 = vmatprep.subr.mxu0 0.0
        %7306 = vmatpush1.msra.mxu0 %v7221
        %7307 = vmatprep.subr.mxu0 0.0
        %7308 = vmatpush1.msra.mxu0 %v7222
        %7309 = vmatprep.subr.mxu0 0.0
        %7310 = vmatpush1.msra.mxu0 %v7223
        %7311 = vmatprep.subr.mxu0 0.0
        %7312 = vmatpush1.msra.mxu0 %v7224
        %7313 = vmatprep.subr.mxu0 0.0
        %7314 = vmatpush1.msra.mxu0 %v7225
        %7315 = vmatprep.subr.mxu0 0.0
        %7316 = vmatpush1.msra.mxu0 %v7226
        %7317 = vmatprep.subr.mxu0 0.0
        %7318 = vmatpush1.msra.mxu0 %v7227
        %7319 = vmatprep.subr.mxu0 0.0
        %7320 = vmatpush1.msra.mxu0 %v7228
        %7321 = vmatprep.subr.mxu0 0.0
        %7322 = vmatpush1.msra.mxu0 %v7229
        %7323 = vmatprep.subr.mxu0 0.0
        %7324 = vmatpush1.msra.mxu0 %v7230
        %7325 = vmatprep.subr.mxu0 0.0
        %7326 = vmatpush1.msra.mxu0 %v7231
        %7327 = vmatprep.subr.mxu0 0.0
        %7328 = vmatpush1.msra.mxu0 %v7232
        %7329 = vmatprep.subr.mxu0 0.0
        %7330 = vmatpush1.msra.mxu0 %v7233
        %7331 = vmatprep.subr.mxu0 0.0
        %7332 = vmatpush1.msra.mxu0 %v7234
        %7333 = vmatprep.subr.mxu0 0.0
        %7334 = vmatpush1.msra.mxu0 %v7235
        %7335 = vmatprep.subr.mxu0 0.0
        %7336 = vmatpush1.msra.mxu0 %v7236
        %7337 = vmatprep.subr.mxu0 0.0
        %7338 = vmatpush1.msra.mxu0 %v7237
        %7339 = vmatprep.subr.mxu0 0.0
        %7340 = vmatpush1.msra.mxu0 %v7238
        %7341 = vmatprep.subr.mxu0 0.0
        %7342 = vmatpush1.msra.mxu0 %v7239
        %7343 = vmatprep.mubr.f32.mxu0 %v7201
        %7344 = vmatmul.mubr.f32.gmra.mrb[0].mxu0 %v7200
        %v7345 = vpop.f32.mrb[0].mxu0
        %v7346 = vadd.f32 %v7277, %v7345
        %v7347 = vpop.f32.mrb[0].mxu0
        %7348 = vmatprep.mubr.f32.mxu0 %v7205
        %7349 = vmatmul.mubr.f32.gmra.mrb[0].mxu0 %v7204
        %v7350 = vpop.f32.mrb[0].mxu0
        %v7351 = vadd.f32 %v7277, %v7350
        %v7352 = vpop.f32.mrb[0].mxu0
        %7353 = vdwg.mxu0
        %7354 = vmatprep.subr.mxu0 0.0
        %7355 = vmatpush1.msra.mxu0 %v7240
        %7356 = vmatprep.subr.mxu0 0.0
        %7357 = vmatpush1.msra.mxu0 %v7241
        %7358 = vmatprep.subr.mxu0 0.0
        %7359 = vmatpush1.msra.mxu0 %v7242
        %7360 = vmatprep.subr.mxu0 0.0
        %7361 = vmatpush1.msra.mxu0 %v7243
        %7362 = vmatprep.subr.mxu0 0.0
        %7363 = vmatpush1.msra.mxu0 %v7244
        %7364 = vmatprep.subr.mxu0 0.0
        %7365 = vmatpush1.msra.mxu0 %v7245
        %7366 = vmatprep.subr.mxu0 0.0
        %7367 = vmatpush1.msra.mxu0 %v7246
        %7368 = vmatprep.subr.mxu0 0.0
        %7369 = vmatpush1.msra.mxu0 %v7247
        %7370 = vmatprep.subr.mxu0 0.0
        %7371 = vmatpush1.msra.mxu0 %v7248
        %7372 = vmatprep.subr.mxu0 0.0
        %7373 = vmatpush1.msra.mxu0 %v7249
        %7374 = vmatprep.subr.mxu0 0.0
        %7375 = vmatpush1.msra.mxu0 %v7250
        %7376 = vmatprep.subr.mxu0 0.0
        %7377 = vmatpush1.msra.mxu0 %v7251
        %7378 = vmatprep.subr.mxu0 0.0
        %7379 = vmatpush1.msra.mxu0 %v7252
        %7380 = vmatprep.subr.mxu0 0.0
        %7381 = vmatpush1.msra.mxu0 %v7253
        %7382 = vmatprep.subr.mxu0 0.0
        %7383 = vmatpush1.msra.mxu0 %v7254
        %7384 = vmatprep.subr.mxu0 0.0
        %7385 = vmatpush1.msra.mxu0 %v7255
        %7386 = vmatprep.subr.mxu0 0.0
        %7387 = vmatpush1.msra.mxu0 %v7256
        %7388 = vmatprep.subr.mxu0 0.0
        %7389 = vmatpush1.msra.mxu0 %v7257
        %7390 = vmatprep.subr.mxu0 0.0
        %7391 = vmatpush1.msra.mxu0 %v7258
        %7392 = vmatprep.subr.mxu0 0.0
        %7393 = vmatpush1.msra.mxu0 %v7259
        %7394 = vmatprep.subr.mxu0 0.0
        %7395 = vmatpush1.msra.mxu0 %v7260
        %7396 = vmatprep.subr.mxu0 0.0
        %7397 = vmatpush1.msra.mxu0 %v7261
        %7398 = vmatprep.subr.mxu0 0.0
        %7399 = vmatpush1.msra.mxu0 %v7262
        %7400 = vmatprep.subr.mxu0 0.0
        %7401 = vmatpush1.msra.mxu0 %v7263
        %7402 = vmatprep.subr.mxu0 0.0
        %7403 = vmatpush1.msra.mxu0 %v7264
        %7404 = vmatprep.subr.mxu0 0.0
        %7405 = vmatpush1.msra.mxu0 %v7265
        %7406 = vmatprep.subr.mxu0 0.0
        %7407 = vmatpush1.msra.mxu0 %v7266
        %7408 = vmatprep.subr.mxu0 0.0
        %7409 = vmatpush1.msra.mxu0 %v7267
        %7410 = vmatprep.subr.mxu0 0.0
        %7411 = vmatpush1.msra.mxu0 %v7268
        %7412 = vmatprep.subr.mxu0 0.0
        %7413 = vmatpush1.msra.mxu0 %v7269
        %7414 = vmatprep.subr.mxu0 0.0
        %7415 = vmatpush1.msra.mxu0 %v7270
        %7416 = vmatprep.subr.mxu0 0.0
        %7417 = vmatpush1.msra.mxu0 %v7271
        %7418 = vmatprep.mubr.f32.mxu0 %v7203
        %7419 = vmatmul.mubr.f32.gmra.mrb[0].mxu0 %v7202
        %v7420 = vpop.f32.mrb[0].mxu0
        %v7421 = vadd.f32 %v7346, %v7420
        %v7422 = vpop.f32.mrb[0].mxu0
        %7423 = vmatprep.mubr.f32.mxu0 %v7207
        %7424 = vmatmul.mubr.f32.gmra.mrb[0].mxu0 %v7206
        %v7425 = vpop.f32.mrb[0].mxu0
        %v7426 = vadd.f32 %v7351, %v7425
        %v7427 = vpop.f32.mrb[0].mxu0
        %7428 = vdwg.mxu0
        %v7429 = vld [vmem:[#allocation18] sm:$0x1]
        %v7430 = vld [vmem:[#allocation20] sm:$0x1]
        %v7431 = vadd.f32 %v7000, %v7421
        %v7432 = vadd.f32 %v7001, %v7426
        %v7433 = vsel %vm1888, %v7431, 0.0
        %7434 = vadd.xlane.f32.xlu0 %v7433
        %v7435 = vpop.xlane.xlu0 %7434
        %v7436 = vsel %vm1888, %v7432, 0.0
        %7437 = vadd.xlane.f32.xlu0 %v7436
        %v7438 = vpop.xlane.xlu0 %7437
        %v7439 = vmul.f32 %v7435, %v3104
        %v7440 = vmul.f32 %v7438, %v3104
        %v7441 = vsub.f32 %v7431, %v7439
        %v7442 = vsub.f32 %v7432, %v7440
        %v7443 = vmul.f32 %v7441, %v7441
        %v7444 = vmul.f32 %v7442, %v7442
        %v7445 = vsel %vm1888, %v7443, 0.0
        %7446 = vadd.xlane.f32.xlu0 %v7445
        %v7447 = vpop.xlane.xlu0 %7446
        %v7448 = vsel %vm1888, %v7444, 0.0
        %7449 = vadd.xlane.f32.xlu0 %v7448
        %v7450 = vpop.xlane.xlu0 %7449
        %v7451 = vmul.f32 %v7447, %v3104
        %v7452 = vmul.f32 %v7450, %v3104
        %v7453 = vadd.f32 %v7451, 1e-05
        %v7454 = vadd.f32 %v7452, 1e-05
        %v7455 = vrsqrt.pop %v7453
        %v7456 = vrsqrt.pop %v7454
        %v7457 = vmul.f32 %v7441, %v7455
        %v7458 = vmul.f32 %v7442, %v7456
        %v7460 = vlaneseq
        %v7461 = vshrl.u32 %v7460, 7
        %v7462 = vsub.s32 0, %v7461
        %v7463 = vrot.slane %v7429, %v7462
        %v7465 = vmul.f32 %v7457, %v7463
        %v7466 = vmul.f32 %v7458, %v7463
        %v7468 = vlaneseq
        %v7469 = vshrl.u32 %v7468, 7
        %v7470 = vsub.s32 0, %v7469
        %v7471 = vrot.slane %v7430, %v7470
        %v7473 = vadd.f32 %v7465, %v7471
        %v7474 = vadd.f32 %v7466, %v7471
        %7476 = vrot.lane.b32.xlu0 %v1895, 32
        %v7477 = vpop.permute.xlu0 %7476
        %v7479 = vsel %vm1888, %v7473, %v7477
        %v7480 = vsel %vm1888, %v7474, %v7477
        %v7481 = vmax.f32 %v7479, 0.0
        %v7482 = vmax.f32 %v7480, 0.0
        %v7483 = vld [vmem:[%s103] sm:$0xff]
        %v7484 = vld [vmem:[%s103 + $0x8] sm:$0xff]
        %v7485 = vld [vmem:[%s103 + $0x10] sm:$0xff]
        %v7486 = vld [vmem:[%s103 + $0x18] sm:$0xff]
        %v7487 = vld [vmem:[%s103 + $0x20] sm:$0xff]
        %v7488 = vld [vmem:[%s103 + $0x28] sm:$0xff]
        %v7489 = vld [vmem:[%s103 + $0x30] sm:$0xff]
        %v7490 = vld [vmem:[%s103 + $0x38] sm:$0xff]
        %v7491 = vld [vmem:[#allocation21] sm:$0x1]
        %v7493 = vlaneseq
        %v7494 = vshrl.u32 %v7493, 7
        %v7495 = vsub.s32 0, %v7494
        %v7496 = vrot.slane %v7491, %v7495
        %v7499 = vsel %vm1913, %v7481, 0
        %v7502 = vsel %vm1913, %v7482, 0
        %7504 = vmatprep.subr.mxu0 0.0
        %7505 = vmatpush1.msra.mxu0 %v7483
        %7506 = vmatprep.subr.mxu0 0.0
        %7507 = vmatpush1.msra.mxu0 %v7484
        %7508 = vmatprep.subr.mxu0 0.0
        %7509 = vmatpush1.msra.mxu0 %v7485
        %7510 = vmatprep.subr.mxu0 0.0
        %7511 = vmatpush1.msra.mxu0 %v7486
        %7512 = vmatprep.subr.mxu0 0.0
        %7513 = vmatpush1.msra.mxu0 %v7487
        %7514 = vmatprep.subr.mxu0 0.0
        %7515 = vmatpush1.msra.mxu0 %v7488
        %7516 = vmatprep.subr.mxu0 0.0
        %7517 = vmatpush1.msra.mxu0 %v7489
        %7518 = vmatprep.subr.mxu0 0.0
        %7519 = vmatpush1.msra.mxu0 %v7490
        %7520 = vmatprep.subr.mxu0 0.0
        %7521 = vmatpush1.msra.mxu0 0.0
        %7522 = vmatprep.subr.mxu0 0.0
        %7523 = vmatpush1.msra.mxu0 0.0
        %7524 = vmatprep.subr.mxu0 0.0
        %7525 = vmatpush1.msra.mxu0 0.0
        %7526 = vmatprep.subr.mxu0 0.0
        %7527 = vmatpush1.msra.mxu0 0.0
        %7528 = vmatprep.subr.mxu0 0.0
        %7529 = vmatpush1.msra.mxu0 0.0
        %7530 = vmatprep.subr.mxu0 0.0
        %7531 = vmatpush1.msra.mxu0 0.0
        %7532 = vmatprep.subr.mxu0 0.0
        %7533 = vmatpush1.msra.mxu0 0.0
        %7534 = vmatprep.subr.mxu0 0.0
        %7535 = vmatpush1.msra.mxu0 0.0
        %7536 = vmatprep.subr.mxu0 0.0
        %7537 = vmatpush1.msra.mxu0 0.0
        %7538 = vmatprep.subr.mxu0 0.0
        %7539 = vmatpush1.msra.mxu0 0.0
        %7540 = vmatprep.subr.mxu0 0.0
        %7541 = vmatpush1.msra.mxu0 0.0
        %7542 = vmatprep.subr.mxu0 0.0
        %7543 = vmatpush1.msra.mxu0 0.0
        %7544 = vmatprep.subr.mxu0 0.0
        %7545 = vmatpush1.msra.mxu0 0.0
        %7546 = vmatprep.subr.mxu0 0.0
        %7547 = vmatpush1.msra.mxu0 0.0
        %7548 = vmatprep.subr.mxu0 0.0
        %7549 = vmatpush1.msra.mxu0 0.0
        %7550 = vmatprep.subr.mxu0 0.0
        %7551 = vmatpush1.msra.mxu0 0.0
        %7552 = vmatprep.subr.mxu0 0.0
        %7553 = vmatpush1.msra.mxu0 0.0
        %7554 = vmatprep.subr.mxu0 0.0
        %7555 = vmatpush1.msra.mxu0 0.0
        %7556 = vmatprep.subr.mxu0 0.0
        %7557 = vmatpush1.msra.mxu0 0.0
        %7558 = vmatprep.subr.mxu0 0.0
        %7559 = vmatpush1.msra.mxu0 0.0
        %7560 = vmatprep.subr.mxu0 0.0
        %7561 = vmatpush1.msra.mxu0 0.0
        %7562 = vmatprep.subr.mxu0 0.0
        %7563 = vmatpush1.msra.mxu0 0.0
        %7564 = vmatprep.subr.mxu0 0.0
        %7565 = vmatpush1.msra.mxu0 0.0
        %7566 = vmatprep.subr.mxu0 0.0
        %7567 = vmatpush1.msra.mxu0 0.0
        %7568 = vmatprep.mubr.f32.mxu0 0.0
        %7569 = vmatmul.mubr.f32.gmra.mrb[0].mxu0 %v7499
        %v7570 = vpop.f32.mrb[0].mxu0
        %v7571 = vadd.f32 %v7496, %v7570
        %v7572 = vpop.f32.mrb[0].mxu0
        %7573 = vmatprep.mubr.f32.mxu0 0.0
        %7574 = vmatmul.mubr.f32.gmra.mrb[0].mxu0 %v7502
        %v7575 = vpop.f32.mrb[0].mxu0
        %v7576 = vadd.f32 %v7496, %v7575
        %v7577 = vpop.f32.mrb[0].mxu0
        %7578 = vdwg.mxu0
        %v7579 = vmax.f32 %v7571, 0.0
        %v7580 = vmax.f32 %v7576, 0.0
        %v7581 = vld [vmem:[#allocation23] sm:$0x1]
        %v7582 = vld [vmem:[#allocation2] sm:$0x1]
        %7584 = vset.pattern.permute.xlu0 0
        %7585 = vperm.xlu0 %7584, %v7582
        %v7586 = vpop.permute.xlu0 %7585
        %v7588 = vlaneseq
        %v7589 = vshrl.u32 %v7588, 7
        %v7590 = vsub.s32 0, %v7589
        %v7591 = vrot.slane %v7586, %v7590
        %v7593 = vsel %vm1888, %v7581, 0
        %v7596 = vsel %vm1888, %v7579, 0
        %v7599 = vsel %vm1888, %v7580, 0
        %7601 = vmatprep.subr.mxu0 0.0
        %7602 = vmatpush1.xpose.msra.mxu0 %v7596
        %7603 = vmatprep.subr.mxu0 0.0
        %7604 = vmatpush1.xpose.msra.mxu0 %v7599
        %7605 = vmatprep.subr.mxu0 0.0
        %7606 = vmatpush1.xpose.msra.mxu0 0.0
        %7607 = vmatprep.subr.mxu0 0.0
        %7608 = vmatpush1.xpose.msra.mxu0 0.0
        %7609 = vmatprep.subr.mxu0 0.0
        %7610 = vmatpush1.xpose.msra.mxu0 0.0
        %7611 = vmatprep.subr.mxu0 0.0
        %7612 = vmatpush1.xpose.msra.mxu0 0.0
        %7613 = vmatprep.subr.mxu0 0.0
        %7614 = vmatpush1.xpose.msra.mxu0 0.0
        %7615 = vmatprep.subr.mxu0 0.0
        %7616 = vmatpush1.xpose.msra.mxu0 0.0
        %7617 = vmatprep.subr.mxu0 0.0
        %7618 = vmatpush1.xpose.msra.mxu0 0.0
        %7619 = vmatprep.subr.mxu0 0.0
        %7620 = vmatpush1.xpose.msra.mxu0 0.0
        %7621 = vmatprep.subr.mxu0 0.0
        %7622 = vmatpush1.xpose.msra.mxu0 0.0
        %7623 = vmatprep.subr.mxu0 0.0
        %7624 = vmatpush1.xpose.msra.mxu0 0.0
        %7625 = vmatprep.subr.mxu0 0.0
        %7626 = vmatpush1.xpose.msra.mxu0 0.0
        %7627 = vmatprep.subr.mxu0 0.0
        %7628 = vmatpush1.xpose.msra.mxu0 0.0
        %7629 = vmatprep.subr.mxu0 0.0
        %7630 = vmatpush1.xpose.msra.mxu0 0.0
        %7631 = vmatprep.subr.mxu0 0.0
        %7632 = vmatpush1.xpose.msra.mxu0 0.0
        %7633 = vmatprep.subr.mxu0 0.0
        %7634 = vmatpush1.xpose.msra.mxu0 0.0
        %7635 = vmatprep.subr.mxu0 0.0
        %7636 = vmatpush1.xpose.msra.mxu0 0.0
        %7637 = vmatprep.subr.mxu0 0.0
        %7638 = vmatpush1.xpose.msra.mxu0 0.0
        %7639 = vmatprep.subr.mxu0 0.0
        %7640 = vmatpush1.xpose.msra.mxu0 0.0
        %7641 = vmatprep.subr.mxu0 0.0
        %7642 = vmatpush1.xpose.msra.mxu0 0.0
        %7643 = vmatprep.subr.mxu0 0.0
        %7644 = vmatpush1.xpose.msra.mxu0 0.0
        %7645 = vmatprep.subr.mxu0 0.0
        %7646 = vmatpush1.xpose.msra.mxu0 0.0
        %7647 = vmatprep.subr.mxu0 0.0
        %7648 = vmatpush1.xpose.msra.mxu0 0.0
        %7649 = vmatprep.subr.mxu0 0.0
        %7650 = vmatpush1.xpose.msra.mxu0 0.0
        %7651 = vmatprep.subr.mxu0 0.0
        %7652 = vmatpush1.xpose.msra.mxu0 0.0
        %7653 = vmatprep.subr.mxu0 0.0
        %7654 = vmatpush1.xpose.msra.mxu0 0.0
        %7655 = vmatprep.subr.mxu0 0.0
        %7656 = vmatpush1.xpose.msra.mxu0 0.0
        %7657 = vmatprep.subr.mxu0 0.0
        %7658 = vmatpush1.xpose.msra.mxu0 0.0
        %7659 = vmatprep.subr.mxu0 0.0
        %7660 = vmatpush1.xpose.msra.mxu0 0.0
        %7661 = vmatprep.subr.mxu0 0.0
        %7662 = vmatpush1.xpose.msra.mxu0 0.0
        %7663 = vmatprep.subr.mxu0 0.0
        %7664 = vmatpush1.xpose.msra.mxu0 0.0
        %7665 = vmatprep.mubr.f32.mxu0 0.0
        %7666 = vmatmul.mubr.f32.gmra.mrb[0].mxu0 %v7593
        %v7667 = vpop.f32.mrb[0].mxu0
        %v7668 = vadd.f32 %v7591, %v7667
        %v7669 = vpop.f32.mrb[0].mxu0
        %7670 = vdwg.mxu0
        %vm7671 = vcmask 122880
        %7672 = vst.msk [vmem:[%s1796] sm:$0x1] %vm7671, %v7668
        %s7673 = sand.u32 %s1307, 1
        %s7674 = scalar_lea.sflag [#allocation5], %s7673
        %s7675 = sand.u32 %s1307, 1
        %s7676 = scalar_lea.vmem [#allocation24], %s7675
        // Predicated region
        $region293: #{tpu_custom_call.1} parent=239 // pred_check
          %p7677 = pneg %p1317
        $region294: #{tpu_custom_call.1} parent=239 // pred_check_branch
          %7679 = sbr.rel (%p7677) target = $region296
        $region295: #{tpu_custom_call.1} parent=239 // pred_region
          %s7681 = ssub.s32 16, 16
          %7682 = vsyncadd %s7674, %s7681
          %s7683 = smul.addr %s134, 16
          %s7684 = scalar_lea.hbm %s111, %s7683
          %s7686 = sshll.u32 %s7676, 4
          %s7687 = int_to_ptr.vmem [resolvable:$true] %s7686
          %7689 = dma.vmem_to_hbm [thread:$0]  %s7687, 16, %s7684, %s7674
        $region296: #{tpu_custom_call.1} parent=239 // pred_fallthru
          _
      $region240: #{tpu_custom_call.1} parent=5 // pred_fallthru
        _
      %p7690 = scmp.le.s32.totalorder 2, %s129
      // Predicated region
      $region297: #{tpu_custom_call.1} parent=5 // pred_check
        %p7691 = pneg %p7690
      $region298: #{tpu_custom_call.1} parent=5 // pred_check_branch
        %7693 = sbr.rel (%p7691) target = $region300
      $region299: #{tpu_custom_call.1} parent=5 // pred_region
        %s7694 = ssub.s32 %s129, 2
        // Predicated region
        $region301: #{tpu_custom_call.1} parent=299 // pred_check
          %p7695 = pneg %p1323
        $region302: #{tpu_custom_call.1} parent=299 // pred_check_branch
          %7697 = sbr.rel (%p7695) target = $region304
        $region303: #{tpu_custom_call.1} parent=299 // pred_region
          %s7698 = sand.u32 %s1308, 1
          %s7699 = scalar_lea.sflag [#allocation5], %s7698
          %s7700 = sand.u32 %s1308, 1
          %s7701 = scalar_lea.vmem [#allocation24], %s7700
          %7702 = dma.done %s7699, 16
        $region304: #{tpu_custom_call.1} parent=299 // pred_fallthru
          _
      $region300: #{tpu_custom_call.1} parent=5 // pred_fallthru
        _
    $region6: #{tpu_custom_call.1} parent=1 // loop_footer
      %s133 = sadd.s32 1, %s129
    $region7: #{tpu_custom_call.1} parent=1 // loop_footer_branch
      %128 = sbr.rel target = $region3
    $region8: #{tpu_custom_call.1} parent=1 // loop_exit
      _
    %7703 = vsyncpa [#allocation4], 1
    %s7704 = scalar_lea.sflag [#allocation4], 1
    %7705 = vsyncpa %s7704, 1
    %7706 = vsyncpa [#allocation7], 1
    %7707 = vsyncpa [#allocation10], 1
    %7708 = vsyncpa [#allocation13], 1
    %7709 = vsyncpa [#allocation16], 1
    %7710 = vsyncpa [#allocation19], 1
    %7711 = vsyncpa [#allocation22], 1
    %7712 = vsyncpa [#allocation5], 1
    %s7713 = scalar_lea.sflag [#allocation5], 1
    %7714 = vsyncpa %s7713, 1

</llo_original>
